<compile_context>
chip_gen: v5e
topology: v5e:2x2
jax: 0.10.0
libtpu: 0.0.40
codegen_flags: <defaults>
</compile_context>

<pallas_src>
import functools

import jax
import jax.numpy as jnp
from jax.experimental import pallas as pl
from jax.experimental.pallas import tpu as pltpu


def _round_up(v, m):
    return (v + m - 1) // m * m


def _leaky(v, slope):
    return jnp.where(v >= 0, v, slope * v)


# ----------------------------------------------------------------------------
# Fused Pallas kernel: y = act(x @ w + b)   (2-D blocks, f32 accumulation)
# ----------------------------------------------------------------------------
def _fused_mm_kernel(x_ref, w_ref, b_ref, o_ref, *, slope, n_act, sigmoid):
    acc = jnp.dot(x_ref[...], w_ref[...], preferred_element_type=jnp.float32)
    y = acc + b_ref[...]
    if n_act:
        eff = slope ** n_act                       # n LeakyReLU passes == one pass slope**n
        y = jnp.where(y >= 0, y, eff * y)
    if sigmoid:
        y = jax.nn.sigmoid(y)
    o_ref[...] = y.astype(o_ref.dtype)


def fused_matmul(x, w, b, *, slope=0.02, n_act=1, sigmoid=False,
                 out_dtype=jnp.bfloat16):
    """x:(M,K) any float  w:(K,Np) bf16 (BN pre-folded)  b:(1,Np) f32
       -> act(x @ w + b) : (M, Np) in out_dtype.  No K padding (full-K blocks)."""
    M, K = x.shape
    Kw, Np = w.shape
    assert Kw == K and b.shape == (1, Np) and Np % 128 == 0

    # M tiling: always aim for >=2 tiles so both v7x TensorCores get work; cap TM at 512
    # (friendlier to v5e's store/VALU path; harmless serial loop on v5e/v6e otherwise).
    if M <= 16:
        TM = _round_up(M, 8)
    else:
        TM = min(512, _round_up(pl.cdiv(M, 2), 16))
    Mp = _round_up(M, TM)

    xw = x.astype(jnp.bfloat16)
    if Mp > M:
        xw = jnp.pad(xw, ((0, Mp - M), (0, 0)))

    kernel = functools.partial(_fused_mm_kernel, slope=slope, n_act=n_act,
                               sigmoid=sigmoid)
    cost = pl.CostEstimate(
        flops=2 * Mp * K * Np,
        transcendentals=(Mp * Np) if sigmoid else 0,
        bytes_accessed=int(xw.size) * 2 + int(w.size) * 2 + int(b.size) * 4
        + Mp * Np * jnp.dtype(out_dtype).itemsize)

    # NOTE(v7x scaling): per-step VMEM here is 2*(TM*K + K*Np + TM*Np) bf16 (< ~2.5 MiB at
    # these sizes).  If TM*K grows past a few MiB, add a K reduction grid axis
    # ("arbitrary", last) with an f32 VMEM accumulator and set vmem_limit_bytes.
    out = pl.pallas_call(
        kernel,
        out_shape=jax.ShapeDtypeStruct((Mp, Np), out_dtype),
        grid=(Mp // TM,),
        in_specs=[
            pl.BlockSpec((TM, K), lambda i: (i, 0)),
            pl.BlockSpec((K, Np), lambda i: (0, 0)),
            pl.BlockSpec((1, Np), lambda i: (0, 0)),
        ],
        out_specs=pl.BlockSpec((TM, Np), lambda i: (i, 0)),
        compiler_params=pltpu.CompilerParams(dimension_semantics=("parallel",)),
        cost_estimate=cost,
    )(xw, w, b)
    return out[:M] if Mp > M else out


# ----------------------------------------------------------------------------
# Glue: im2col patch extraction (pure indexing), nearest resize
# ----------------------------------------------------------------------------
def extract_patches(x, kh, kw, ph, pw, dh=1, dw=1):
    # x: (N, H, W, C) -> (N, Hout, Wout, kh*kw*C)  [tap-major, channel-minor]
    n, h, w, c = x.shape
    xp = jnp.pad(x, ((0, 0), (ph, ph), (pw, pw), (0, 0)))
    hout = h + 2 * ph - dh * (kh - 1)
    wout = w + 2 * pw - dw * (kw - 1)
    cols = []
    for i in range(kh):
        for j in range(kw):
            cols.append(xp[:, i * dh:i * dh + hout, j * dw:j * dw + wout, :])
    return jnp.concatenate(cols, axis=-1), hout, wout


def upsampled_patches_3x3(x_small, scale):
    """im2col of a 3x3/pad=1 conv applied to nearest-upsample(x_small, scale), gathered
    directly from the small tensor — the upsampled activation never hits HBM."""
    n, h, w, c = x_small.shape
    hout, wout = h * scale, w * scale
    xp = jnp.pad(x_small, ((0, 0), (1, 1), (1, 1), (0, 0)))
    rows = jnp.arange(hout)
    colsi = jnp.arange(wout)
    cols = []
    for di in range(3):
        ri = (rows + di - 1) // scale + 1       # -1 / hout land in the zero-pad rows
        for dj in range(3):
            ci = (colsi + dj - 1) // scale + 1
            cols.append(xp[:, ri][:, :, ci])
    return jnp.concatenate(cols, axis=-1), hout, wout


def interp_nearest(x, hout, wout):
    # matches F.interpolate(mode='nearest'): src = floor(dst * in / out)
    n, h, w, c = x.shape
    hi = jnp.floor(jnp.arange(hout) * (h / hout)).astype(jnp.int32)
    wi = jnp.floor(jnp.arange(wout) * (w / wout)).astype(jnp.int32)
    return x[:, hi][:, :, wi]


# ----------------------------------------------------------------------------
# Parameter construction: Conv+BN folded, block-diagonal packed, bf16 weights
# ----------------------------------------------------------------------------
def make_conv_bn_raw(key, cin, cout, kh, kw, eps=1e-5):
    """Conv2d(bias=False) + BatchNorm2d (eval) folded -> (kh*kw*cin, cout) f32 W, (cout,) b."""
    k1, k2, k3, k4, k5 = jax.random.split(key, 5)
    kdim = kh * kw * cin
    w = jax.random.normal(k1, (kdim, cout), jnp.float32) / jnp.sqrt(kdim)
    gamma = 1.0 + 0.1 * jax.random.normal(k2, (cout,), jnp.float32)
    beta = 0.1 * jax.random.normal(k3, (cout,), jnp.float32)
    mean = 0.1 * jax.random.normal(k4, (cout,), jnp.float32)
    var = 1.0 + 0.1 * jax.random.uniform(k5, (cout,), jnp.float32)
    scale = gamma / jnp.sqrt(var + eps)
    return w * scale[None, :], beta - mean * scale


def pack_blockdiag(blocks):
    """blocks: list of (W:(Ki,Ci), b:(Ci,)).  Returns a block-diagonal weight
    (sum Ki, round_up(sum Ci,128)) bf16 + bias (1, Np) f32; output columns are the
    concatenation of the branch outputs."""
    k_tot = sum(w.shape[0] for w, _ in blocks)
    c_tot = sum(w.shape[1] for w, _ in blocks)
    np_ = _round_up(c_tot, 128)
    W = jnp.zeros((k_tot, np_), jnp.float32)
    B = jnp.zeros((1, np_), jnp.float32)
    kr = cc = 0
    for w, b in blocks:
        ki, ci = w.shape
        W = W.at[kr:kr + ki, cc:cc + ci].set(w)
        B = B.at[0, cc:cc + ci].set(b)
        kr += ki
        cc += ci
    return {"w": W.astype(jnp.bfloat16), "b": B, "cout": c_tot}


def make_params(key, in_c, out_c):
    keys = jax.random.split(key, 16)
    cwise = make_conv_bn_raw(keys[0], in_c, out_c, 1, 1)
    a6 = make_conv_bn_raw(keys[1], in_c, out_c, 3, 3)
    a12 = make_conv_bn_raw(keys[2], in_c, out_c, 3, 3)
    a18 = make_conv_bn_raw(keys[3], in_c, out_c, 3, 3)
    pool_w, pool_b = make_conv_bn_raw(keys[4], in_c, out_c, 1, 1)
    # totalize weight rows are laid out for feature channel order [x0,x2,x3,x4,x1]
    # (a row permutation of the PyTorch layout; permute when loading real weights).
    tot = make_conv_bn_raw(keys[5], out_c * 5, out_c, 3, 3)
    hid = max(out_c // 16, 1)
    mlp_w1 = jax.random.normal(keys[6], (out_c, hid), jnp.float32) / jnp.sqrt(out_c)
    mlp_b1 = 0.1 * jax.random.normal(keys[7], (hid,), jnp.float32)
    mlp_w2 = jax.random.normal(keys[8], (hid, out_c), jnp.float32) / jnp.sqrt(hid)
    mlp_b2 = 0.1 * jax.random.normal(keys[9], (out_c,), jnp.float32)
    cbam1 = make_conv_bn_raw(keys[10], out_c, out_c, 3, 3)
    sg_e1a = make_conv_bn_raw(keys[11], out_c, out_c, 7, 1)
    sg_e2a = make_conv_bn_raw(keys[12], out_c, out_c, 1, 7)
    sg_e1b = make_conv_bn_raw(keys[13], out_c, 1, 1, 7)
    sg_e2b = make_conv_bn_raw(keys[14], out_c, 1, 7, 1)
    sgf_w, sgf_b = make_conv_bn_raw(keys[15], 2, 1, 1, 1)

    return {
        "out_c": out_c,
        "aspp": pack_blockdiag([cwise, a6, a12, a18]),      # one fused call, 128 valid cols
        "pool_w": pool_w, "pool_b": pool_b,                  # tiny -> plain jnp
        "totalize": pack_blockdiag([tot]),
        "mlp_w1": mlp_w1, "mlp_b1": mlp_b1,                  # ChannelGate MLP -> plain jnp
        "mlp_w2": mlp_w2, "mlp_b2": mlp_b2,
        "cbam_conv1": pack_blockdiag([cbam1]),
        "sg1": pack_blockdiag([sg_e1a, sg_e2a]),             # fused 7x1 / 1x7 pair
        "sg2": pack_blockdiag([sg_e1b, sg_e2b]),             # fused 1x7 / 7x1 pair
        "sgf_w": sgf_w[:, 0], "sgf_b": sgf_b[0],             # 2->1 1x1 conv+BN -> plain jnp
    }


# ----------------------------------------------------------------------------
# DPA forward: (spatial, channel) = DPA(x)
# ----------------------------------------------------------------------------
def dpa_forward(x_nchw, params):
    x = jnp.transpose(x_nchw, (0, 2, 3, 1)).astype(jnp.bfloat16)   # -> NHWC, bf16
    n, h, w, cin = x.shape
    out_c = params["out_c"]
    M = n * h * w

    # --- c_wise + ASPP(6/12/18): ONE block-diagonal matmul (output == [x0|x2|x3|x4]) ---
    p0, _, _ = extract_patches(x, 1, 1, 0, 0)
    p6, _, _ = extract_patches(x, 3, 3, 6, 6, 6, 6)
    p12, _, _ = extract_patches(x, 3, 3, 12, 12, 12, 12)
    p18, _, _ = extract_patches(x, 3, 3, 18, 18, 18, 18)
    aspp_in = jnp.concatenate(
        [p0.reshape(M, -1), p6.reshape(M, -1), p12.reshape(M, -1), p18.reshape(M, -1)],
        axis=-1)                                                   # (M, 112), no K pad
    aspp_out = fused_matmul(aspp_in, params["aspp"]["w"], params["aspp"]["b"])
    x0234 = aspp_out[:, :4 * out_c].reshape(n, h, w, 4 * out_c)

    # --- pooling branch (AdaptiveMaxPool2d(1) -> 1x1 conv with padding=1 -> leaky) ---
    # Tiny (M = 9*N) -> plain jnp under jit; conv over the zero pad ring is just the bias.
    gmax = jnp.max(x.astype(jnp.float32), axis=(1, 2))             # (N, in_c)
    center = _leaky(gmax @ params["pool_w"] + params["pool_b"], 0.02)
    border = _leaky(params["pool_b"], 0.02)
    x1_3x3 = jnp.broadcast_to(border[None, None, None, :], (n, 3, 3, out_c))
    x1_3x3 = x1_3x3.at[:, 1, 1, :].set(center)
    x1 = interp_nearest(x1_3x3.astype(jnp.bfloat16), h, w)         # (N, H, W, out_c)

    # feature in channel order [x0,x2,x3,x4,x1]; totalize weight rows match this order.
    feature = jnp.concatenate([x0234, x1], axis=-1)                # (N, H, W, 5*out_c)

    # totalize: ConvBatchBlock(3x3, LeakyReLU 0.02) + extra LeakyReLU(0.02) == slope 0.02**2
    ft, _, _ = extract_patches(feature, 3, 3, 1, 1)
    res = fused_matmul(ft.reshape(M, -1), params["totalize"]["w"],
                       params["totalize"]["b"], n_act=2)
    result = res[:, :out_c].reshape(n, h, w, out_c)

    # ---- CBAM2 / ChannelGate: max over the 4x nearest upsample == max over `result` ----
    # (the torch avg_pool branch is computed but unused in the reference, so it is omitted)
    mx = jnp.max(result.astype(jnp.float32), axis=(1, 2))          # (N, out_c)
    h1 = jax.nn.relu(mx @ params["mlp_w1"] + params["mlp_b1"])
    gate = jax.nn.sigmoid(h1 @ params["mlp_w2"] + params["mlp_b2"])  # (N, out_c)

    # Gate is per (n, c) -> commutes with nearest upsample: scale the small result, then
    # fold the 4x upsample into the 3x3 im2col gather of cbam_conv1.
    x_cg_small = result * gate[:, None, None, :].astype(result.dtype)
    up_patches, H4, W4 = upsampled_patches_3x3(x_cg_small, 4)
    M4 = n * H4 * W4
    ch = fused_matmul(up_patches.reshape(M4, -1), params["cbam_conv1"]["w"],
                      params["cbam_conv1"]["b"])
    x_out = ch[:, :out_c].reshape(n, H4, W4, out_c)                # "channel" output

    # ---- SpatialGate2: two 2-conv chains, each stage = ONE block-diagonal matmul ----
    pa, _, _ = extract_patches(x_out, 7, 1, 3, 0)
    pb, _, _ = extract_patches(x_out, 1, 7, 0, 3)
    sg1_in = jnp.concatenate([pa.reshape(M4, -1), pb.reshape(M4, -1)], axis=-1)
    sg1 = fused_matmul(sg1_in, params["sg1"]["w"], params["sg1"]["b"])   # cols [s1a|s2a]
    s1a = sg1[:, :out_c].reshape(n, H4, W4, out_c)
    s2a = sg1[:, out_c:2 * out_c].reshape(n, H4, W4, out_c)

    pa2, _, _ = extract_patches(s1a, 1, 7, 0, 3)
    pb2, _, _ = extract_patches(s2a, 7, 1, 3, 0)
    sg2_in = jnp.concatenate([pa2.reshape(M4, -1), pb2.reshape(M4, -1)], axis=-1)
    sg2 = fused_matmul(sg2_in, params["sg2"]["w"], params["sg2"]["b"])   # cols 0/1 = s1/s2

    # final 1x1 conv (2->1, BN folded, no relu) + sigmoid: per-pixel 2-vector dot -> jnp
    spatial = jax.nn.sigmoid(sg2[:, 0:1].astype(jnp.float32) * params["sgf_w"][0]
                             + sg2[:, 1:2].astype(jnp.float32) * params["sgf_w"][1]
                             + params["sgf_b"]).reshape(n, H4, W4, 1)

    # DPA returns (spatial, channel) in NCHW (f32 at the module boundary)
    spatial_nchw = jnp.transpose(spatial, (0, 3, 1, 2)).astype(jnp.float32)
    channel_nchw = jnp.transpose(x_out, (0, 3, 1, 2)).astype(jnp.float32)
    return spatial_nchw, channel_nchw


if __name__ == "__main__":
    key = jax.random.PRNGKey(0)
    kparam, kx = jax.random.split(key)

    in_c, out_c = 4, 32        # out_c >= 16 so ChannelGate ratio=16 gives hidden >= 1
    N, H, W = 2, 16, 16

    params = make_params(kparam, in_c, out_c)
    x = jax.random.normal(kx, (N, in_c, H, W), jnp.float32)        # NCHW like PyTorch

    fwd = jax.jit(lambda inp: dpa_forward(inp, params))
    spatial, channel = fwd(x)
    jax.block_until_ready((spatial, channel))

    assert spatial.shape == (N, 1, 4 * H, 4 * W), spatial.shape
    assert channel.shape == (N, out_c, 4 * H, 4 * W), channel.shape
    assert bool(jnp.all(jnp.isfinite(spatial))) and bool(jnp.all(jnp.isfinite(channel)))
    print("KERNEL_OK")
</pallas_src>

<mosaic_0001>
module attributes {stable_mosaic.version = 11 : i64} {
  func.func @_fused_mm_kernel(%arg0: i32, %arg1: memref<256x112xbf16, #tpu.memory_space<vmem>>, %arg2: memref<112x128xbf16, #tpu.memory_space<vmem>>, %arg3: memref<1x128xf32, #tpu.memory_space<vmem>>, %arg4: memref<256x128xbf16, #tpu.memory_space<vmem>>) attributes {dimension_semantics = [#tpu.dimension_semantics<parallel>], iteration_bounds = array<i64: 2>, scalar_prefetch = 0 : i64, scratch_operands = 0 : i64, tpu.core_type = #tpu.core_type<tc>, window_params = [{transform_indices = @transform_0, window_bounds = array<i64: 256, 112>}, {pipeline_mode = #tpu.pipeline_mode<synchronous>, transform_indices = @transform_1, window_bounds = array<i64: 112, 128>}, {pipeline_mode = #tpu.pipeline_mode<synchronous>, transform_indices = @transform_2, window_bounds = array<i64: 1, 128>}, {transform_indices = @transform_3, window_bounds = array<i64: 256, 128>}]} {
    %c0 = arith.constant 0 : index
    %c0_0 = arith.constant 0 : index
    %0 = vector.load %arg1[%c0, %c0_0] : memref<256x112xbf16, #tpu.memory_space<vmem>>, vector<256x112xbf16>
    %c0_1 = arith.constant 0 : index
    %c0_2 = arith.constant 0 : index
    %1 = vector.load %arg2[%c0_1, %c0_2] : memref<112x128xbf16, #tpu.memory_space<vmem>>, vector<112x128xbf16>
    %cst = arith.constant dense<0.000000e+00> : vector<256x128xf32>
    %2 = tpu.matmul %0, %1, %cst {dimension_numbers = #tpu.dot_dimension_numbers<[1], [0], [0], [1], [0, 0, 1, 1], [], []>} : vector<256x112xbf16>, vector<112x128xbf16>, vector<256x128xf32> -> vector<256x128xf32>
    %c0_3 = arith.constant 0 : index
    %c0_4 = arith.constant 0 : index
    %3 = vector.load %arg3[%c0_3, %c0_4] : memref<1x128xf32, #tpu.memory_space<vmem>>, vector<1x128xf32>
    %4 = vector.broadcast %3 : vector<1x128xf32> to vector<256x128xf32>
    %5 = arith.addf %2, %4 : vector<256x128xf32>
    %cst_5 = arith.constant 0.000000e+00 : f32
    %6 = vector.broadcast %cst_5 : f32 to vector<256x128xf32>
    %7 = arith.cmpf oge, %5, %6 : vector<256x128xf32>
    %cst_6 = arith.constant 2.000000e-02 : f32
    %8 = vector.broadcast %cst_6 : f32 to vector<256x128xf32>
    %9 = arith.mulf %8, %5 : vector<256x128xf32>
    %10 = arith.select %7, %5, %9 : vector<256x128xi1>, vector<256x128xf32>
    %11 = arith.truncf %10 : vector<256x128xf32> to vector<256x128xbf16>
    %c0_7 = arith.constant 0 : index
    %c0_8 = arith.constant 0 : index
    %12 = vector.load %arg4[%c0_7, %c0_8] : memref<256x128xbf16, #tpu.memory_space<vmem>>, vector<256x128xbf16>
    tpu.vector_store %arg4[%c0_7, %c0_8], %11 {strides = array<i32>} : memref<256x128xbf16, #tpu.memory_space<vmem>>, vector<256x128xbf16>,
    return
  }
  func.func @transform_0(%arg0: i32) -> (i32, i32) {
    %c0_i32 = arith.constant 0 : i32
    %c0_i32_0 = arith.constant 0 : i32
    return %arg0, %c0_i32 : i32, i32
  }
  func.func @transform_1(%arg0: i32) -> (i32, i32) {
    %c0_i32 = arith.constant 0 : i32
    %c0_i32_0 = arith.constant 0 : i32
    %c0_i32_1 = arith.constant 0 : i32
    return %c0_i32, %c0_i32_0 : i32, i32
  }
  func.func @transform_2(%arg0: i32) -> (i32, i32) {
    %c0_i32 = arith.constant 0 : i32
    %c0_i32_0 = arith.constant 0 : i32
    %c0_i32_1 = arith.constant 0 : i32
    return %c0_i32, %c0_i32_0 : i32, i32
  }
  func.func @transform_3(%arg0: i32) -> (i32, i32) {
    %c0_i32 = arith.constant 0 : i32
    %c0_i32_0 = arith.constant 0 : i32
    return %arg0, %c0_i32 : i32, i32
  }
}

module attributes {stable_mosaic.version = 11 : i64} {
  func.func @_fused_mm_kernel(%arg0: i32, %arg1: memref<256x1440xbf16, #tpu.memory_space<vmem>>, %arg2: memref<1440x128xbf16, #tpu.memory_space<vmem>>, %arg3: memref<1x128xf32, #tpu.memory_space<vmem>>, %arg4: memref<256x128xbf16, #tpu.memory_space<vmem>>) attributes {dimension_semantics = [#tpu.dimension_semantics<parallel>], iteration_bounds = array<i64: 2>, scalar_prefetch = 0 : i64, scratch_operands = 0 : i64, tpu.core_type = #tpu.core_type<tc>, window_params = [{transform_indices = @transform_0, window_bounds = array<i64: 256, 1440>}, {pipeline_mode = #tpu.pipeline_mode<synchronous>, transform_indices = @transform_1, window_bounds = array<i64: 1440, 128>}, {pipeline_mode = #tpu.pipeline_mode<synchronous>, transform_indices = @transform_2, window_bounds = array<i64: 1, 128>}, {transform_indices = @transform_3, window_bounds = array<i64: 256, 128>}]} {
    %c0 = arith.constant 0 : index
    %c0_0 = arith.constant 0 : index
    %0 = vector.load %arg1[%c0, %c0_0] : memref<256x1440xbf16, #tpu.memory_space<vmem>>, vector<256x1440xbf16>
    %c0_1 = arith.constant 0 : index
    %c0_2 = arith.constant 0 : index
    %1 = vector.load %arg2[%c0_1, %c0_2] : memref<1440x128xbf16, #tpu.memory_space<vmem>>, vector<1440x128xbf16>
    %cst = arith.constant dense<0.000000e+00> : vector<256x128xf32>
    %2 = tpu.matmul %0, %1, %cst {dimension_numbers = #tpu.dot_dimension_numbers<[1], [0], [0], [1], [0, 0, 1, 1], [], []>} : vector<256x1440xbf16>, vector<1440x128xbf16>, vector<256x128xf32> -> vector<256x128xf32>
    %c0_3 = arith.constant 0 : index
    %c0_4 = arith.constant 0 : index
    %3 = vector.load %arg3[%c0_3, %c0_4] : memref<1x128xf32, #tpu.memory_space<vmem>>, vector<1x128xf32>
    %4 = vector.broadcast %3 : vector<1x128xf32> to vector<256x128xf32>
    %5 = arith.addf %2, %4 : vector<256x128xf32>
    %cst_5 = arith.constant 0.000000e+00 : f32
    %6 = vector.broadcast %cst_5 : f32 to vector<256x128xf32>
    %7 = arith.cmpf oge, %5, %6 : vector<256x128xf32>
    %cst_6 = arith.constant 4.000000e-04 : f32
    %8 = vector.broadcast %cst_6 : f32 to vector<256x128xf32>
    %9 = arith.mulf %8, %5 : vector<256x128xf32>
    %10 = arith.select %7, %5, %9 : vector<256x128xi1>, vector<256x128xf32>
    %11 = arith.truncf %10 : vector<256x128xf32> to vector<256x128xbf16>
    %c0_7 = arith.constant 0 : index
    %c0_8 = arith.constant 0 : index
    %12 = vector.load %arg4[%c0_7, %c0_8] : memref<256x128xbf16, #tpu.memory_space<vmem>>, vector<256x128xbf16>
    tpu.vector_store %arg4[%c0_7, %c0_8], %11 {strides = array<i32>} : memref<256x128xbf16, #tpu.memory_space<vmem>>, vector<256x128xbf16>,
    return
  }
  func.func @transform_0(%arg0: i32) -> (i32, i32) {
    %c0_i32 = arith.constant 0 : i32
    %c0_i32_0 = arith.constant 0 : i32
    return %arg0, %c0_i32 : i32, i32
  }
  func.func @transform_1(%arg0: i32) -> (i32, i32) {
    %c0_i32 = arith.constant 0 : i32
    %c0_i32_0 = arith.constant 0 : i32
    %c0_i32_1 = arith.constant 0 : i32
    return %c0_i32, %c0_i32_0 : i32, i32
  }
  func.func @transform_2(%arg0: i32) -> (i32, i32) {
    %c0_i32 = arith.constant 0 : i32
    %c0_i32_0 = arith.constant 0 : i32
    %c0_i32_1 = arith.constant 0 : i32
    return %c0_i32, %c0_i32_0 : i32, i32
  }
  func.func @transform_3(%arg0: i32) -> (i32, i32) {
    %c0_i32 = arith.constant 0 : i32
    %c0_i32_0 = arith.constant 0 : i32
    return %arg0, %c0_i32 : i32, i32
  }
}

module attributes {stable_mosaic.version = 11 : i64} {
  func.func @_fused_mm_kernel(%arg0: i32, %arg1: memref<512x288xbf16, #tpu.memory_space<vmem>>, %arg2: memref<288x128xbf16, #tpu.memory_space<vmem>>, %arg3: memref<1x128xf32, #tpu.memory_space<vmem>>, %arg4: memref<512x128xbf16, #tpu.memory_space<vmem>>) attributes {dimension_semantics = [#tpu.dimension_semantics<parallel>], iteration_bounds = array<i64: 16>, scalar_prefetch = 0 : i64, scratch_operands = 0 : i64, tpu.core_type = #tpu.core_type<tc>, window_params = [{transform_indices = @transform_0, window_bounds = array<i64: 512, 288>}, {pipeline_mode = #tpu.pipeline_mode<synchronous>, transform_indices = @transform_1, window_bounds = array<i64: 288, 128>}, {pipeline_mode = #tpu.pipeline_mode<synchronous>, transform_indices = @transform_2, window_bounds = array<i64: 1, 128>}, {transform_indices = @transform_3, window_bounds = array<i64: 512, 128>}]} {
    %c0 = arith.constant 0 : index
    %c0_0 = arith.constant 0 : index
    %0 = vector.load %arg1[%c0, %c0_0] : memref<512x288xbf16, #tpu.memory_space<vmem>>, vector<512x288xbf16>
    %c0_1 = arith.constant 0 : index
    %c0_2 = arith.constant 0 : index
    %1 = vector.load %arg2[%c0_1, %c0_2] : memref<288x128xbf16, #tpu.memory_space<vmem>>, vector<288x128xbf16>
    %cst = arith.constant dense<0.000000e+00> : vector<512x128xf32>
    %2 = tpu.matmul %0, %1, %cst {dimension_numbers = #tpu.dot_dimension_numbers<[1], [0], [0], [1], [0, 0, 1, 1], [], []>} : vector<512x288xbf16>, vector<288x128xbf16>, vector<512x128xf32> -> vector<512x128xf32>
    %c0_3 = arith.constant 0 : index
    %c0_4 = arith.constant 0 : index
    %3 = vector.load %arg3[%c0_3, %c0_4] : memref<1x128xf32, #tpu.memory_space<vmem>>, vector<1x128xf32>
    %4 = vector.broadcast %3 : vector<1x128xf32> to vector<512x128xf32>
    %5 = arith.addf %2, %4 : vector<512x128xf32>
    %cst_5 = arith.constant 0.000000e+00 : f32
    %6 = vector.broadcast %cst_5 : f32 to vector<512x128xf32>
    %7 = arith.cmpf oge, %5, %6 : vector<512x128xf32>
    %cst_6 = arith.constant 2.000000e-02 : f32
    %8 = vector.broadcast %cst_6 : f32 to vector<512x128xf32>
    %9 = arith.mulf %8, %5 : vector<512x128xf32>
    %10 = arith.select %7, %5, %9 : vector<512x128xi1>, vector<512x128xf32>
    %11 = arith.truncf %10 : vector<512x128xf32> to vector<512x128xbf16>
    %c0_7 = arith.constant 0 : index
    %c0_8 = arith.constant 0 : index
    %12 = vector.load %arg4[%c0_7, %c0_8] : memref<512x128xbf16, #tpu.memory_space<vmem>>, vector<512x128xbf16>
    tpu.vector_store %arg4[%c0_7, %c0_8], %11 {strides = array<i32>} : memref<512x128xbf16, #tpu.memory_space<vmem>>, vector<512x128xbf16>,
    return
  }
  func.func @transform_0(%arg0: i32) -> (i32, i32) {
    %c0_i32 = arith.constant 0 : i32
    %c0_i32_0 = arith.constant 0 : i32
    return %arg0, %c0_i32 : i32, i32
  }
  func.func @transform_1(%arg0: i32) -> (i32, i32) {
    %c0_i32 = arith.constant 0 : i32
    %c0_i32_0 = arith.constant 0 : i32
    %c0_i32_1 = arith.constant 0 : i32
    return %c0_i32, %c0_i32_0 : i32, i32
  }
  func.func @transform_2(%arg0: i32) -> (i32, i32) {
    %c0_i32 = arith.constant 0 : i32
    %c0_i32_0 = arith.constant 0 : i32
    %c0_i32_1 = arith.constant 0 : i32
    return %c0_i32, %c0_i32_0 : i32, i32
  }
  func.func @transform_3(%arg0: i32) -> (i32, i32) {
    %c0_i32 = arith.constant 0 : i32
    %c0_i32_0 = arith.constant 0 : i32
    return %arg0, %c0_i32 : i32, i32
  }
}

module attributes {stable_mosaic.version = 11 : i64} {
  func.func @_fused_mm_kernel(%arg0: i32, %arg1: memref<512x448xbf16, #tpu.memory_space<vmem>>, %arg2: memref<448x128xbf16, #tpu.memory_space<vmem>>, %arg3: memref<1x128xf32, #tpu.memory_space<vmem>>, %arg4: memref<512x128xbf16, #tpu.memory_space<vmem>>) attributes {dimension_semantics = [#tpu.dimension_semantics<parallel>], iteration_bounds = array<i64: 16>, scalar_prefetch = 0 : i64, scratch_operands = 0 : i64, tpu.core_type = #tpu.core_type<tc>, window_params = [{transform_indices = @transform_0, window_bounds = array<i64: 512, 448>}, {pipeline_mode = #tpu.pipeline_mode<synchronous>, transform_indices = @transform_1, window_bounds = array<i64: 448, 128>}, {pipeline_mode = #tpu.pipeline_mode<synchronous>, transform_indices = @transform_2, window_bounds = array<i64: 1, 128>}, {transform_indices = @transform_3, window_bounds = array<i64: 512, 128>}]} {
    %c0 = arith.constant 0 : index
    %c0_0 = arith.constant 0 : index
    %0 = vector.load %arg1[%c0, %c0_0] : memref<512x448xbf16, #tpu.memory_space<vmem>>, vector<512x448xbf16>
    %c0_1 = arith.constant 0 : index
    %c0_2 = arith.constant 0 : index
    %1 = vector.load %arg2[%c0_1, %c0_2] : memref<448x128xbf16, #tpu.memory_space<vmem>>, vector<448x128xbf16>
    %cst = arith.constant dense<0.000000e+00> : vector<512x128xf32>
    %2 = tpu.matmul %0, %1, %cst {dimension_numbers = #tpu.dot_dimension_numbers<[1], [0], [0], [1], [0, 0, 1, 1], [], []>} : vector<512x448xbf16>, vector<448x128xbf16>, vector<512x128xf32> -> vector<512x128xf32>
    %c0_3 = arith.constant 0 : index
    %c0_4 = arith.constant 0 : index
    %3 = vector.load %arg3[%c0_3, %c0_4] : memref<1x128xf32, #tpu.memory_space<vmem>>, vector<1x128xf32>
    %4 = vector.broadcast %3 : vector<1x128xf32> to vector<512x128xf32>
    %5 = arith.addf %2, %4 : vector<512x128xf32>
    %cst_5 = arith.constant 0.000000e+00 : f32
    %6 = vector.broadcast %cst_5 : f32 to vector<512x128xf32>
    %7 = arith.cmpf oge, %5, %6 : vector<512x128xf32>
    %cst_6 = arith.constant 2.000000e-02 : f32
    %8 = vector.broadcast %cst_6 : f32 to vector<512x128xf32>
    %9 = arith.mulf %8, %5 : vector<512x128xf32>
    %10 = arith.select %7, %5, %9 : vector<512x128xi1>, vector<512x128xf32>
    %11 = arith.truncf %10 : vector<512x128xf32> to vector<512x128xbf16>
    %c0_7 = arith.constant 0 : index
    %c0_8 = arith.constant 0 : index
    %12 = vector.load %arg4[%c0_7, %c0_8] : memref<512x128xbf16, #tpu.memory_space<vmem>>, vector<512x128xbf16>
    tpu.vector_store %arg4[%c0_7, %c0_8], %11 {strides = array<i32>} : memref<512x128xbf16, #tpu.memory_space<vmem>>, vector<512x128xbf16>,
    return
  }
  func.func @transform_0(%arg0: i32) -> (i32, i32) {
    %c0_i32 = arith.constant 0 : i32
    %c0_i32_0 = arith.constant 0 : i32
    return %arg0, %c0_i32 : i32, i32
  }
  func.func @transform_1(%arg0: i32) -> (i32, i32) {
    %c0_i32 = arith.constant 0 : i32
    %c0_i32_0 = arith.constant 0 : i32
    %c0_i32_1 = arith.constant 0 : i32
    return %c0_i32, %c0_i32_0 : i32, i32
  }
  func.func @transform_2(%arg0: i32) -> (i32, i32) {
    %c0_i32 = arith.constant 0 : i32
    %c0_i32_0 = arith.constant 0 : i32
    %c0_i32_1 = arith.constant 0 : i32
    return %c0_i32, %c0_i32_0 : i32, i32
  }
  func.func @transform_3(%arg0: i32) -> (i32, i32) {
    %c0_i32 = arith.constant 0 : i32
    %c0_i32_0 = arith.constant 0 : i32
    return %arg0, %c0_i32 : i32, i32
  }
}

</mosaic_0001>

<llo_original>
// kernel: _lambda_.5
$region0: #{_lambda_.5}
  #allocation0 [shape = 'u32[]', space=smem, size = 0x4, offset = 0x4, fixed_abs, tag = 'smem constant byte address 0x4 - core index']
  #allocation1 [shape = 'u32[72,128]{1,0:T(1,128)}', space=vmem, size = 0x9000, scoped, tag = 'internal scratch']
  %s0 = inlined_call_operand.vmem [shape: bf16[512,112], index: 0, kind: input, shape index: {}]
  %s1 = inlined_call_operand.vmem [shape: bf16[112,128], index: 1, kind: input, shape index: {}]
  %s2 = inlined_call_operand.vmem [shape: f32[1,128], index: 2, kind: input, shape index: {}]
  %s3 = inlined_call_operand.vmem [shape: bf16[512,128], index: 3, kind: output, shape index: {}]
  %s4 = sld [smem:[#allocation0]]
  $region45: #{_lambda_.5} parent=0
    _
  %s6 = ssub.s32 1, %s4
  %s7 = scalar_select 0, %s6, %s4
  loop: start=0, step=1, limit=4
  $region2: #{_lambda_.5} parent=0 // loop_pre_header
    _
  $region3: #{_lambda_.5} parent=0 // loop_header
    %s9 = sphi 0, %s13
    %p10 = scmp.ge.s32.totalorder %s9, 4
    %s19 = sphi 0, %s21
    %s22 = sphi 0, %s19
    %s23 = sphi 0, %s22
    %s39 = sphi 0, %s23
    %s43 = sphi 0, %s43
    %s45 = sphi 0, %s43
    %s46 = sphi 0, %s45
    %s60 = sphi 0, %s46
    %s64 = sphi 0, %s64
    %s66 = sphi 0, %s64
    %s67 = sphi 0, %s66
    %s81 = sphi 0, %s67
    %s87 = sphi 0, %s89
    %s90 = sphi 0, %s87
    %s91 = sphi 0, %s90
    %s107 = sphi 0, %s91
  $region4: #{_lambda_.5} parent=0 // loop_header_branch
    %12 = sbr.rel (%p10) target = $region8
  $region5: #{_lambda_.5} parent=0 // loop_body
    %s14 = ssub.s32 %s9, 1
    %s15 = ssub.s32 %s9, 2
    %s16 = sadd.s32 %s9, 1
    %s17 = ssub.s32 %s9, %s16
    %p18 = scmp.eq.s32.totalorder %s17, 0
    %s20 = sadd.s32 %s19, 1
    %s21 = scalar_select %p18, %s19, %s20
    %p24 = pneg %p18
    %p25 = scmp.eq.s32.totalorder %s9, 1
    %p26 = por %p24, %p25
    %p27 = scmp.ne.s32.totalorder %s19, %s22
    %p28 = scmp.eq.s32.totalorder %s9, 0
    %p29 = por %p27, %p28
    %p30 = scmp.ne.s32.totalorder %s19, %s22
    %p31 = scmp.eq.s32.totalorder %s14, 1
    %p32 = por %p30, %p31
    %p33 = scmp.ne.s32.totalorder %s22, %s23
    %p34 = scmp.eq.s32.totalorder %s14, 0
    %p35 = por %p33, %p34
    %p36 = scmp.ne.s32.totalorder %s22, %s23
    %p37 = scmp.eq.s32.totalorder %s15, 1
    %p38 = por %p36, %p37
    %p40 = scmp.ne.s32.totalorder %s23, %s39
    %p41 = scmp.eq.s32.totalorder %s15, 0
    %p42 = por %p40, %p41
    %s44 = sadd.s32 %s43, 1
    %p47 = scmp.eq.s32.totalorder %s9, 1
    %p48 = scmp.ne.s32.totalorder %s43, %s45
    %p49 = scmp.eq.s32.totalorder %s9, 0
    %p50 = por %p48, %p49
    %p51 = scmp.ne.s32.totalorder %s43, %s45
    %p52 = scmp.eq.s32.totalorder %s14, 1
    %p53 = por %p51, %p52
    %p54 = scmp.ne.s32.totalorder %s45, %s46
    %p55 = scmp.eq.s32.totalorder %s14, 0
    %p56 = por %p54, %p55
    %p57 = scmp.ne.s32.totalorder %s45, %s46
    %p58 = scmp.eq.s32.totalorder %s15, 1
    %p59 = por %p57, %p58
    %p61 = scmp.ne.s32.totalorder %s46, %s60
    %p62 = scmp.eq.s32.totalorder %s15, 0
    %p63 = por %p61, %p62
    %s65 = sadd.s32 %s64, 1
    %p68 = scmp.eq.s32.totalorder %s9, 1
    %p69 = scmp.ne.s32.totalorder %s64, %s66
    %p70 = scmp.eq.s32.totalorder %s9, 0
    %p71 = por %p69, %p70
    %p72 = scmp.ne.s32.totalorder %s64, %s66
    %p73 = scmp.eq.s32.totalorder %s14, 1
    %p74 = por %p72, %p73
    %p75 = scmp.ne.s32.totalorder %s66, %s67
    %p76 = scmp.eq.s32.totalorder %s14, 0
    %p77 = por %p75, %p76
    %p78 = scmp.ne.s32.totalorder %s66, %s67
    %p79 = scmp.eq.s32.totalorder %s15, 1
    %p80 = por %p78, %p79
    %p82 = scmp.ne.s32.totalorder %s67, %s81
    %p83 = scmp.eq.s32.totalorder %s15, 0
    %p84 = por %p82, %p83
    %s85 = ssub.s32 %s9, %s16
    %p86 = scmp.eq.s32.totalorder %s85, 0
    %s88 = sadd.s32 %s87, 1
    %s89 = scalar_select %p86, %s87, %s88
    %p92 = pneg %p86
    %p93 = scmp.eq.s32.totalorder %s9, 1
    %p94 = por %p92, %p93
    %p95 = scmp.ne.s32.totalorder %s87, %s90
    %p96 = scmp.eq.s32.totalorder %s9, 0
    %p97 = por %p95, %p96
    %p98 = scmp.ne.s32.totalorder %s87, %s90
    %p99 = scmp.eq.s32.totalorder %s14, 1
    %p100 = por %p98, %p99
    %p101 = scmp.ne.s32.totalorder %s90, %s91
    %p102 = scmp.eq.s32.totalorder %s14, 0
    %p103 = por %p101, %p102
    %p104 = scmp.ne.s32.totalorder %s90, %s91
    %p105 = scmp.eq.s32.totalorder %s15, 1
    %p106 = por %p104, %p105
    %p108 = scmp.ne.s32.totalorder %s91, %s107
    %p109 = scmp.eq.s32.totalorder %s15, 0
    %p110 = por %p108, %p109
    %p111 = scmp.le.s32.totalorder 1, %s9
    %p112 = scmp.lt.s32.totalorder %s9, 3
    %p113 = pnand %p111, %p112
    %p114 = pneg %p113
    // Predicated region
    $region9: #{_lambda_.5} parent=5 // pred_check
      _
    $region10: #{_lambda_.5} parent=5 // pred_check_branch
      %116 = sbr.rel (%p113) target = $region12
    $region11: #{_lambda_.5} parent=5 // pred_region
      %s117 = ssub.s32 %s9, 1
      // Predicated region
      $region13: #{_lambda_.5} parent=11 // pred_check
        %p118 = pneg %p56
      $region14: #{_lambda_.5} parent=11 // pred_check_branch
        %120 = sbr.rel (%p118) target = $region16
      $region15: #{_lambda_.5} parent=11 // pred_region
        _
      $region16: #{_lambda_.5} parent=11 // pred_fallthru
        _
      // Predicated region
      $region17: #{_lambda_.5} parent=11 // pred_check
        %p121 = pneg %p77
      $region18: #{_lambda_.5} parent=11 // pred_check_branch
        %123 = sbr.rel (%p121) target = $region20
      $region19: #{_lambda_.5} parent=11 // pred_region
        _
      $region20: #{_lambda_.5} parent=11 // pred_fallthru
        _
    $region12: #{_lambda_.5} parent=5 // pred_fallthru
      _
    %p124 = scmp.lt.s32.totalorder %s9, 2
    // Predicated region
    $region21: #{_lambda_.5} parent=5 // pred_check
      %p125 = pneg %p124
    $region22: #{_lambda_.5} parent=5 // pred_check_branch
      %127 = sbr.rel (%p125) target = $region24
    $region23: #{_lambda_.5} parent=5 // pred_region
      // Predicated region
      $region25: #{_lambda_.5} parent=23 // pred_check
        %p128 = pneg %p29
      $region26: #{_lambda_.5} parent=23 // pred_check_branch
        %130 = sbr.rel (%p128) target = $region28
      $region27: #{_lambda_.5} parent=23 // pred_region
        %s131 = smul.u32 32, %s9
        %p132 = scmp.lt.s32.totalorder %s131, 63
        %s133 = scalar_select %p132, %s131, 63
        %s134 = smul.addr %s133, 4
        %s135 = scalar_lea.vmem %s0, %s134
        %s136 = smul.u32 32, %s9
      $region28: #{_lambda_.5} parent=23 // pred_fallthru
        _
    $region24: #{_lambda_.5} parent=5 // pred_fallthru
      _
    %p137 = scmp.le.s32.totalorder 1, %s9
    %p138 = scmp.lt.s32.totalorder %s9, 3
    %p139 = pnand %p137, %p138
    %p140 = pneg %p139
    // Predicated region
    $region29: #{_lambda_.5} parent=5 // pred_check
      _
    $region30: #{_lambda_.5} parent=5 // pred_check_branch
      %142 = sbr.rel (%p139) target = $region32
    $region31: #{_lambda_.5} parent=5 // pred_region
      %s143 = ssub.s32 %s9, 1
      %s144 = smul.u32 32, %s14
      %p145 = scmp.lt.s32.totalorder %s144, 63
      %s146 = scalar_select %p145, %s144, 63
      %s147 = smul.addr %s146, 4
      %s148 = scalar_lea.vmem %s0, %s147
      %p149 = pneg %p35
      %p150 = pneg %p32
      %p151 = pneg %p56
      %p152 = pneg %p53
      %p153 = pneg %p77
      %p154 = pneg %p74
      %p155 = pneg %p103
      %p156 = pneg %p100
      %s157 = smul.u32 32, %s14
      %p158 = scmp.lt.s32.totalorder %s157, 63
      %s159 = scalar_select %p158, %s157, 63
      %s160 = smul.addr %s159, 4
      %s161 = scalar_lea.vmem %s3, %s160
      %s162 = smul.u32 32, %s14
      %p163 = scmp.lt.s32.totalorder %s162, 63
      %s164 = scalar_select %p163, %s162, 63
      %s165 = smul.addr %s164, 4
      %s166 = scalar_lea.vmem %s0, %s165
      %s167 = smul.u32 32, %s14
      %s168 = smul.u32 32, %s14
      %p169 = scmp.lt.s32.totalorder %s168, 63
      %s170 = scalar_select %p169, %s168, 63
      %s171 = smul.addr %s170, 4
      %s172 = scalar_lea.vmem %s3, %s171
      %s173 = smul.u32 32, %s14
      %v175 = vld [vmem:[%s166] sm:$0xf]
      %v176 = vld [vmem:[%s166 + $0x4] sm:$0xf]
      %v177 = vld [vmem:[%s166 + $0x8] sm:$0xf]
      %v178 = vld [vmem:[%s166 + $0xc] sm:$0xf]
      %v179 = vld [vmem:[%s166 + $0x10] sm:$0xf]
      %v180 = vld [vmem:[%s166 + $0x14] sm:$0xf]
      %v181 = vld [vmem:[%s166 + $0x18] sm:$0xf]
      %v182 = vld [vmem:[%s166 + $0x1c] sm:$0xf]
      %v183 = vld [vmem:[%s166 + $0x20] sm:$0xf]
      %v184 = vld [vmem:[%s166 + $0x24] sm:$0xf]
      %v185 = vld [vmem:[%s166 + $0x28] sm:$0xf]
      %v186 = vld [vmem:[%s166 + $0x2c] sm:$0xf]
      %v187 = vld [vmem:[%s166 + $0x30] sm:$0xf]
      %v188 = vld [vmem:[%s166 + $0x34] sm:$0xf]
      %v189 = vld [vmem:[%s166 + $0x38] sm:$0xf]
      %v190 = vld [vmem:[%s166 + $0x3c] sm:$0xf]
      %v191 = vld [vmem:[%s166 + $0x40] sm:$0xf]
      %v192 = vld [vmem:[%s166 + $0x44] sm:$0xf]
      %v193 = vld [vmem:[%s166 + $0x48] sm:$0xf]
      %v194 = vld [vmem:[%s166 + $0x4c] sm:$0xf]
      %v195 = vld [vmem:[%s166 + $0x50] sm:$0xf]
      %v196 = vld [vmem:[%s166 + $0x54] sm:$0xf]
      %v197 = vld [vmem:[%s166 + $0x58] sm:$0xf]
      %v198 = vld [vmem:[%s166 + $0x5c] sm:$0xf]
      %v199 = vld [vmem:[%s166 + $0x60] sm:$0xf]
      %v200 = vld [vmem:[%s166 + $0x64] sm:$0xf]
      %v201 = vld [vmem:[%s166 + $0x68] sm:$0xf]
      %v202 = vld [vmem:[%s166 + $0x6c] sm:$0xf]
      %v203 = vld [vmem:[%s166 + $0x70] sm:$0xf]
      %v204 = vld [vmem:[%s166 + $0x74] sm:$0xf]
      %v205 = vld [vmem:[%s166 + $0x78] sm:$0xf]
      %v206 = vld [vmem:[%s166 + $0x7c] sm:$0xf]
      %v207 = vld [vmem:[%s1] sm:$0xf]
      %v208 = vld [vmem:[%s1 + $0x4] sm:$0xf]
      %v209 = vld [vmem:[%s1 + $0x8] sm:$0xf]
      %v210 = vld [vmem:[%s1 + $0xc] sm:$0xf]
      %v211 = vld [vmem:[%s1 + $0x10] sm:$0xf]
      %v212 = vld [vmem:[%s1 + $0x14] sm:$0xf]
      %v213 = vld [vmem:[%s1 + $0x18] sm:$0xf]
      %v214 = vld [vmem:[%s1 + $0x1c] sm:$0xf]
      %v215 = vld [vmem:[%s1 + $0x20] sm:$0xf]
      %v216 = vld [vmem:[%s1 + $0x24] sm:$0xf]
      %v217 = vld [vmem:[%s1 + $0x28] sm:$0xf]
      %v218 = vld [vmem:[%s1 + $0x2c] sm:$0xf]
      %v219 = vld [vmem:[%s1 + $0x30] sm:$0xf]
      %v220 = vld [vmem:[%s1 + $0x34] sm:$0xf]
      %v221 = vld [vmem:[%s2] sm:$0x1]
      %v223 = vperm.slane %v221, 0
      %v257 = vunpack.c.l.b16 %v175
      %v258 = vunpack.c.l.b16 %v176
      %v259 = vunpack.c.l.b16 %v177
      %v260 = vunpack.c.l.b16 %v178
      %v261 = vunpack.c.l.b16 %v179
      %v262 = vunpack.c.l.b16 %v180
      %v263 = vunpack.c.l.b16 %v181
      %v264 = vunpack.c.l.b16 %v182
      %v265 = vunpack.c.l.b16 %v183
      %v266 = vunpack.c.l.b16 %v184
      %v267 = vunpack.c.l.b16 %v185
      %v268 = vunpack.c.l.b16 %v186
      %v269 = vunpack.c.l.b16 %v187
      %v270 = vunpack.c.l.b16 %v188
      %v271 = vunpack.c.l.b16 %v189
      %v272 = vunpack.c.l.b16 %v190
      %v273 = vunpack.c.l.b16 %v191
      %v274 = vunpack.c.l.b16 %v192
      %v275 = vunpack.c.l.b16 %v193
      %v276 = vunpack.c.l.b16 %v194
      %v277 = vunpack.c.l.b16 %v195
      %v278 = vunpack.c.l.b16 %v196
      %v279 = vunpack.c.l.b16 %v197
      %v280 = vunpack.c.l.b16 %v198
      %v281 = vunpack.c.l.b16 %v199
      %v282 = vunpack.c.l.b16 %v200
      %v283 = vunpack.c.l.b16 %v201
      %v284 = vunpack.c.l.b16 %v202
      %v285 = vunpack.c.l.b16 %v203
      %v286 = vunpack.c.l.b16 %v204
      %v287 = vunpack.c.l.b16 %v205
      %v288 = vunpack.c.l.b16 %v206
      %v289 = vpack.c.b16 %v258, %v257
      %v290 = vpack.c.b16 %v260, %v259
      %v291 = vpack.c.b16 %v262, %v261
      %v292 = vpack.c.b16 %v264, %v263
      %v293 = vpack.c.b16 %v266, %v265
      %v294 = vpack.c.b16 %v268, %v267
      %v295 = vpack.c.b16 %v270, %v269
      %v296 = vpack.c.b16 %v272, %v271
      %v297 = vpack.c.b16 %v274, %v273
      %v298 = vpack.c.b16 %v276, %v275
      %v299 = vpack.c.b16 %v278, %v277
      %v300 = vpack.c.b16 %v280, %v279
      %v301 = vpack.c.b16 %v282, %v281
      %v302 = vpack.c.b16 %v284, %v283
      %v303 = vpack.c.b16 %v286, %v285
      %v304 = vpack.c.b16 %v288, %v287
      %v319 = vunpack.c.l.b16 %v207
      %v320 = vunpack.c.l.b16 %v208
      %v321 = vunpack.c.l.b16 %v209
      %v322 = vunpack.c.l.b16 %v210
      %v323 = vunpack.c.l.b16 %v211
      %v324 = vunpack.c.l.b16 %v212
      %v325 = vunpack.c.l.b16 %v213
      %v326 = vunpack.c.l.b16 %v214
      %v327 = vunpack.c.l.b16 %v215
      %v328 = vunpack.c.l.b16 %v216
      %v329 = vunpack.c.l.b16 %v217
      %v330 = vunpack.c.l.b16 %v218
      %v331 = vunpack.c.l.b16 %v219
      %v332 = vunpack.c.l.b16 %v220
      %v333 = vpack.c.b16 %v320, %v319
      %v334 = vpack.c.b16 %v322, %v321
      %v335 = vpack.c.b16 %v324, %v323
      %v336 = vpack.c.b16 %v326, %v325
      %v337 = vpack.c.b16 %v328, %v327
      %v338 = vpack.c.b16 %v330, %v329
      %v339 = vpack.c.b16 %v332, %v331
      %vm347 = vcmask 916480
      %v349 = vsel %vm347, %v289, 0
      %v352 = vsel %vm347, %v290, 0
      %v355 = vsel %vm347, %v291, 0
      %v358 = vsel %vm347, %v292, 0
      %v361 = vsel %vm347, %v293, 0
      %v364 = vsel %vm347, %v294, 0
      %v367 = vsel %vm347, %v295, 0
      %v370 = vsel %vm347, %v296, 0
      %v373 = vsel %vm347, %v297, 0
      %v376 = vsel %vm347, %v298, 0
      %v379 = vsel %vm347, %v299, 0
      %v382 = vsel %vm347, %v300, 0
      %v385 = vsel %vm347, %v301, 0
      %v388 = vsel %vm347, %v302, 0
      %v391 = vsel %vm347, %v303, 0
      %v394 = vsel %vm347, %v304, 0
      %396 = vmatpush.bf16.msra.mxu0 0
      %397 = vmatpush.bf16.msra.mxu0 %v339
      %398 = vmatpush.bf16.msra.mxu0 %v338
      %399 = vmatpush.bf16.msra.mxu0 %v337
      %400 = vmatpush.bf16.msra.mxu0 %v336
      %401 = vmatpush.bf16.msra.mxu0 %v335
      %402 = vmatpush.bf16.msra.mxu0 %v334
      %403 = vmatpush.bf16.msra.mxu0 %v333
      %404 = vmatmul.bf16.gmra.mxu0 %v349
      %v405 = vpop.f32.mrf.mxu0
      %v406 = vadd.f32 %v223, %v405
      %v407 = vpop.f32.mrf.mxu0
      %v408 = vadd.f32 %v223, %v407
      %409 = vmatmul.bf16.gmra.mxu0 %v352
      %v410 = vpop.f32.mrf.mxu0
      %v411 = vadd.f32 %v223, %v410
      %v412 = vpop.f32.mrf.mxu0
      %v413 = vadd.f32 %v223, %v412
      %414 = vmatmul.bf16.gmra.mxu0 %v355
      %v415 = vpop.f32.mrf.mxu0
      %v416 = vadd.f32 %v223, %v415
      %v417 = vpop.f32.mrf.mxu0
      %v418 = vadd.f32 %v223, %v417
      %419 = vmatmul.bf16.gmra.mxu0 %v358
      %v420 = vpop.f32.mrf.mxu0
      %v421 = vadd.f32 %v223, %v420
      %v422 = vpop.f32.mrf.mxu0
      %v423 = vadd.f32 %v223, %v422
      %424 = vmatmul.bf16.gmra.mxu0 %v361
      %v425 = vpop.f32.mrf.mxu0
      %v426 = vadd.f32 %v223, %v425
      %v427 = vpop.f32.mrf.mxu0
      %v428 = vadd.f32 %v223, %v427
      %429 = vmatmul.bf16.gmra.mxu0 %v364
      %v430 = vpop.f32.mrf.mxu0
      %v431 = vadd.f32 %v223, %v430
      %v432 = vpop.f32.mrf.mxu0
      %v433 = vadd.f32 %v223, %v432
      %434 = vmatmul.bf16.gmra.mxu0 %v367
      %v435 = vpop.f32.mrf.mxu0
      %v436 = vadd.f32 %v223, %v435
      %v437 = vpop.f32.mrf.mxu0
      %v438 = vadd.f32 %v223, %v437
      %439 = vmatmul.bf16.gmra.mxu0 %v370
      %v440 = vpop.f32.mrf.mxu0
      %v441 = vadd.f32 %v223, %v440
      %v442 = vpop.f32.mrf.mxu0
      %v443 = vadd.f32 %v223, %v442
      %444 = vmatmul.bf16.gmra.mxu0 %v373
      %v445 = vpop.f32.mrf.mxu0
      %v446 = vadd.f32 %v223, %v445
      %v447 = vpop.f32.mrf.mxu0
      %v448 = vadd.f32 %v223, %v447
      %449 = vmatmul.bf16.gmra.mxu0 %v376
      %v450 = vpop.f32.mrf.mxu0
      %v451 = vadd.f32 %v223, %v450
      %v452 = vpop.f32.mrf.mxu0
      %v453 = vadd.f32 %v223, %v452
      %454 = vmatmul.bf16.gmra.mxu0 %v379
      %v455 = vpop.f32.mrf.mxu0
      %v456 = vadd.f32 %v223, %v455
      %v457 = vpop.f32.mrf.mxu0
      %v458 = vadd.f32 %v223, %v457
      %459 = vmatmul.bf16.gmra.mxu0 %v382
      %v460 = vpop.f32.mrf.mxu0
      %v461 = vadd.f32 %v223, %v460
      %v462 = vpop.f32.mrf.mxu0
      %v463 = vadd.f32 %v223, %v462
      %464 = vmatmul.bf16.gmra.mxu0 %v385
      %v465 = vpop.f32.mrf.mxu0
      %v466 = vadd.f32 %v223, %v465
      %v467 = vpop.f32.mrf.mxu0
      %v468 = vadd.f32 %v223, %v467
      %469 = vmatmul.bf16.gmra.mxu0 %v388
      %v470 = vpop.f32.mrf.mxu0
      %v471 = vadd.f32 %v223, %v470
      %v472 = vpop.f32.mrf.mxu0
      %v473 = vadd.f32 %v223, %v472
      %474 = vmatmul.bf16.gmra.mxu0 %v391
      %v475 = vpop.f32.mrf.mxu0
      %v476 = vadd.f32 %v223, %v475
      %v477 = vpop.f32.mrf.mxu0
      %v478 = vadd.f32 %v223, %v477
      %479 = vmatmul.bf16.gmra.mxu0 %v394
      %v480 = vpop.f32.mrf.mxu0
      %v481 = vadd.f32 %v223, %v480
      %v482 = vpop.f32.mrf.mxu0
      %v483 = vadd.f32 %v223, %v482
      %484 = vdwg.mxu0
      %vm485 = vcmp.ge.f32.partialorder %v406, 0.0
      %vm486 = vcmp.ge.f32.partialorder %v408, 0.0
      %vm487 = vcmp.ge.f32.partialorder %v411, 0.0
      %vm488 = vcmp.ge.f32.partialorder %v413, 0.0
      %vm489 = vcmp.ge.f32.partialorder %v416, 0.0
      %vm490 = vcmp.ge.f32.partialorder %v418, 0.0
      %vm491 = vcmp.ge.f32.partialorder %v421, 0.0
      %vm492 = vcmp.ge.f32.partialorder %v423, 0.0
      %vm493 = vcmp.ge.f32.partialorder %v426, 0.0
      %vm494 = vcmp.ge.f32.partialorder %v428, 0.0
      %vm495 = vcmp.ge.f32.partialorder %v431, 0.0
      %vm496 = vcmp.ge.f32.partialorder %v433, 0.0
      %vm497 = vcmp.ge.f32.partialorder %v436, 0.0
      %vm498 = vcmp.ge.f32.partialorder %v438, 0.0
      %vm499 = vcmp.ge.f32.partialorder %v441, 0.0
      %vm500 = vcmp.ge.f32.partialorder %v443, 0.0
      %vm501 = vcmp.ge.f32.partialorder %v446, 0.0
      %vm502 = vcmp.ge.f32.partialorder %v448, 0.0
      %vm503 = vcmp.ge.f32.partialorder %v451, 0.0
      %vm504 = vcmp.ge.f32.partialorder %v453, 0.0
      %vm505 = vcmp.ge.f32.partialorder %v456, 0.0
      %vm506 = vcmp.ge.f32.partialorder %v458, 0.0
      %vm507 = vcmp.ge.f32.partialorder %v461, 0.0
      %vm508 = vcmp.ge.f32.partialorder %v463, 0.0
      %vm509 = vcmp.ge.f32.partialorder %v466, 0.0
      %vm510 = vcmp.ge.f32.partialorder %v468, 0.0
      %vm511 = vcmp.ge.f32.partialorder %v471, 0.0
      %vm512 = vcmp.ge.f32.partialorder %v473, 0.0
      %vm513 = vcmp.ge.f32.partialorder %v476, 0.0
      %vm514 = vcmp.ge.f32.partialorder %v478, 0.0
      %vm515 = vcmp.ge.f32.partialorder %v481, 0.0
      %vm516 = vcmp.ge.f32.partialorder %v483, 0.0
      %v517 = vmul.f32 %v406, 0.02
      %v518 = vmul.f32 %v408, 0.02
      %v519 = vmul.f32 %v411, 0.02
      %v520 = vmul.f32 %v413, 0.02
      %v521 = vmul.f32 %v416, 0.02
      %v522 = vmul.f32 %v418, 0.02
      %v523 = vmul.f32 %v421, 0.02
      %v524 = vmul.f32 %v423, 0.02
      %v525 = vmul.f32 %v426, 0.02
      %v526 = vmul.f32 %v428, 0.02
      %v527 = vmul.f32 %v431, 0.02
      %v528 = vmul.f32 %v433, 0.02
      %v529 = vmul.f32 %v436, 0.02
      %v530 = vmul.f32 %v438, 0.02
      %v531 = vmul.f32 %v441, 0.02
      %v532 = vmul.f32 %v443, 0.02
      %v533 = vmul.f32 %v446, 0.02
      %v534 = vmul.f32 %v448, 0.02
      %v535 = vmul.f32 %v451, 0.02
      %v536 = vmul.f32 %v453, 0.02
      %v537 = vmul.f32 %v456, 0.02
      %v538 = vmul.f32 %v458, 0.02
      %v539 = vmul.f32 %v461, 0.02
      %v540 = vmul.f32 %v463, 0.02
      %v541 = vmul.f32 %v466, 0.02
      %v542 = vmul.f32 %v468, 0.02
      %v543 = vmul.f32 %v471, 0.02
      %v544 = vmul.f32 %v473, 0.02
      %v545 = vmul.f32 %v476, 0.02
      %v546 = vmul.f32 %v478, 0.02
      %v547 = vmul.f32 %v481, 0.02
      %v548 = vmul.f32 %v483, 0.02
      %v549 = vsel %vm485, %v406, %v517
      %v550 = vsel %vm486, %v408, %v518
      %v551 = vsel %vm487, %v411, %v519
      %v552 = vsel %vm488, %v413, %v520
      %v553 = vsel %vm489, %v416, %v521
      %v554 = vsel %vm490, %v418, %v522
      %v555 = vsel %vm491, %v421, %v523
      %v556 = vsel %vm492, %v423, %v524
      %v557 = vsel %vm493, %v426, %v525
      %v558 = vsel %vm494, %v428, %v526
      %v559 = vsel %vm495, %v431, %v527
      %v560 = vsel %vm496, %v433, %v528
      %v561 = vsel %vm497, %v436, %v529
      %v562 = vsel %vm498, %v438, %v530
      %v563 = vsel %vm499, %v441, %v531
      %v564 = vsel %vm500, %v443, %v532
      %v565 = vsel %vm501, %v446, %v533
      %v566 = vsel %vm502, %v448, %v534
      %v567 = vsel %vm503, %v451, %v535
      %v568 = vsel %vm504, %v453, %v536
      %v569 = vsel %vm505, %v456, %v537
      %v570 = vsel %vm506, %v458, %v538
      %v571 = vsel %vm507, %v461, %v539
      %v572 = vsel %vm508, %v463, %v540
      %v573 = vsel %vm509, %v466, %v541
      %v574 = vsel %vm510, %v468, %v542
      %v575 = vsel %vm511, %v471, %v543
      %v576 = vsel %vm512, %v473, %v544
      %v577 = vsel %vm513, %v476, %v545
      %v578 = vsel %vm514, %v478, %v546
      %v579 = vsel %vm515, %v481, %v547
      %v580 = vsel %vm516, %v483, %v548
      %v581 = vpack.c.bf16 %v549, %v549
      %v582 = vpack.c.bf16 %v550, %v550
      %v583 = vpack.c.bf16 %v551, %v551
      %v584 = vpack.c.bf16 %v552, %v552
      %v585 = vpack.c.bf16 %v553, %v553
      %v586 = vpack.c.bf16 %v554, %v554
      %v587 = vpack.c.bf16 %v555, %v555
      %v588 = vpack.c.bf16 %v556, %v556
      %v589 = vpack.c.bf16 %v557, %v557
      %v590 = vpack.c.bf16 %v558, %v558
      %v591 = vpack.c.bf16 %v559, %v559
      %v592 = vpack.c.bf16 %v560, %v560
      %v593 = vpack.c.bf16 %v561, %v561
      %v594 = vpack.c.bf16 %v562, %v562
      %v595 = vpack.c.bf16 %v563, %v563
      %v596 = vpack.c.bf16 %v564, %v564
      %v597 = vpack.c.bf16 %v565, %v565
      %v598 = vpack.c.bf16 %v566, %v566
      %v599 = vpack.c.bf16 %v567, %v567
      %v600 = vpack.c.bf16 %v568, %v568
      %v601 = vpack.c.bf16 %v569, %v569
      %v602 = vpack.c.bf16 %v570, %v570
      %v603 = vpack.c.bf16 %v571, %v571
      %v604 = vpack.c.bf16 %v572, %v572
      %v605 = vpack.c.bf16 %v573, %v573
      %v606 = vpack.c.bf16 %v574, %v574
      %v607 = vpack.c.bf16 %v575, %v575
      %v608 = vpack.c.bf16 %v576, %v576
      %v609 = vpack.c.bf16 %v577, %v577
      %v610 = vpack.c.bf16 %v578, %v578
      %v611 = vpack.c.bf16 %v579, %v579
      %v612 = vpack.c.bf16 %v580, %v580
      %613 = vst [vmem:[%s172] sm:$0xf] %v581
      %614 = vst [vmem:[%s172 + $0x4] sm:$0xf] %v582
      %615 = vst [vmem:[%s172 + $0x8] sm:$0xf] %v583
      %616 = vst [vmem:[%s172 + $0xc] sm:$0xf] %v584
      %617 = vst [vmem:[%s172 + $0x10] sm:$0xf] %v585
      %618 = vst [vmem:[%s172 + $0x14] sm:$0xf] %v586
      %619 = vst [vmem:[%s172 + $0x18] sm:$0xf] %v587
      %620 = vst [vmem:[%s172 + $0x1c] sm:$0xf] %v588
      %621 = vst [vmem:[%s172 + $0x20] sm:$0xf] %v589
      %622 = vst [vmem:[%s172 + $0x24] sm:$0xf] %v590
      %623 = vst [vmem:[%s172 + $0x28] sm:$0xf] %v591
      %624 = vst [vmem:[%s172 + $0x2c] sm:$0xf] %v592
      %625 = vst [vmem:[%s172 + $0x30] sm:$0xf] %v593
      %626 = vst [vmem:[%s172 + $0x34] sm:$0xf] %v594
      %627 = vst [vmem:[%s172 + $0x38] sm:$0xf] %v595
      %628 = vst [vmem:[%s172 + $0x3c] sm:$0xf] %v596
      %629 = vst [vmem:[%s172 + $0x40] sm:$0xf] %v597
      %630 = vst [vmem:[%s172 + $0x44] sm:$0xf] %v598
      %631 = vst [vmem:[%s172 + $0x48] sm:$0xf] %v599
      %632 = vst [vmem:[%s172 + $0x4c] sm:$0xf] %v600
      %633 = vst [vmem:[%s172 + $0x50] sm:$0xf] %v601
      %634 = vst [vmem:[%s172 + $0x54] sm:$0xf] %v602
      %635 = vst [vmem:[%s172 + $0x58] sm:$0xf] %v603
      %636 = vst [vmem:[%s172 + $0x5c] sm:$0xf] %v604
      %637 = vst [vmem:[%s172 + $0x60] sm:$0xf] %v605
      %638 = vst [vmem:[%s172 + $0x64] sm:$0xf] %v606
      %639 = vst [vmem:[%s172 + $0x68] sm:$0xf] %v607
      %640 = vst [vmem:[%s172 + $0x6c] sm:$0xf] %v608
      %641 = vst [vmem:[%s172 + $0x70] sm:$0xf] %v609
      %642 = vst [vmem:[%s172 + $0x74] sm:$0xf] %v610
      %643 = vst [vmem:[%s172 + $0x78] sm:$0xf] %v611
      %644 = vst [vmem:[%s172 + $0x7c] sm:$0xf] %v612
      %s645 = smul.u32 32, %s14
      %p646 = scmp.lt.s32.totalorder %s645, 63
      %s647 = scalar_select %p646, %s645, 63
      %s648 = smul.addr %s647, 4
      %s649 = scalar_lea.vmem %s3, %s648
      // Predicated region
      $region33: #{_lambda_.5} parent=31 // pred_check
        %p650 = pneg %p100
      $region34: #{_lambda_.5} parent=31 // pred_check_branch
        %652 = sbr.rel (%p650) target = $region36
      $region35: #{_lambda_.5} parent=31 // pred_region
        %s653 = smul.u32 32, %s14
      $region36: #{_lambda_.5} parent=31 // pred_fallthru
        _
    $region32: #{_lambda_.5} parent=5 // pred_fallthru
      _
    %p654 = scmp.le.s32.totalorder 2, %s9
    // Predicated region
    $region37: #{_lambda_.5} parent=5 // pred_check
      %p655 = pneg %p654
    $region38: #{_lambda_.5} parent=5 // pred_check_branch
      %657 = sbr.rel (%p655) target = $region40
    $region39: #{_lambda_.5} parent=5 // pred_region
      %s658 = ssub.s32 %s9, 2
      // Predicated region
      $region41: #{_lambda_.5} parent=39 // pred_check
        %p659 = pneg %p106
      $region42: #{_lambda_.5} parent=39 // pred_check_branch
        %661 = sbr.rel (%p659) target = $region44
      $region43: #{_lambda_.5} parent=39 // pred_region
        %s662 = smul.u32 32, %s15
        %p663 = scmp.lt.s32.totalorder %s662, 63
        %s664 = scalar_select %p663, %s662, 63
        %s665 = smul.addr %s664, 4
        %s666 = scalar_lea.vmem %s3, %s665
      $region44: #{_lambda_.5} parent=39 // pred_fallthru
        _
    $region40: #{_lambda_.5} parent=5 // pred_fallthru
      _
  $region6: #{_lambda_.5} parent=0 // loop_footer
    %s13 = sadd.s32 1, %s9
  $region7: #{_lambda_.5} parent=0 // loop_footer_branch
    %8 = sbr.rel target = $region3
  $region8: #{_lambda_.5} parent=0 // loop_exit
    _

// kernel: _lambda_.6
$region0: #{_lambda_.6}
  #allocation0 [shape = 'u32[]', space=smem, size = 0x4, offset = 0x4, fixed_abs, tag = 'smem constant byte address 0x4 - core index']
  #allocation1 [shape = 'u32[72,128]{1,0:T(1,128)}', space=vmem, size = 0x9000, scoped, tag = 'internal scratch']
  %s0 = inlined_call_operand.vmem [shape: bf16[512,1440], index: 0, kind: input, shape index: {}]
  %s1 = inlined_call_operand.vmem [shape: bf16[1440,128], index: 1, kind: input, shape index: {}]
  %s2 = inlined_call_operand.vmem [shape: f32[1,128], index: 2, kind: input, shape index: {}]
  %s3 = inlined_call_operand.vmem [shape: bf16[512,128], index: 3, kind: output, shape index: {}]
  %s4 = sld [smem:[#allocation0]]
  $region45: #{_lambda_.6} parent=0
    _
  %s6 = ssub.s32 1, %s4
  %s7 = scalar_select 0, %s6, %s4
  loop: start=0, step=1, limit=4
  $region2: #{_lambda_.6} parent=0 // loop_pre_header
    _
  $region3: #{_lambda_.6} parent=0 // loop_header
    %s9 = sphi 0, %s13
    %p10 = scmp.ge.s32.totalorder %s9, 4
    %s19 = sphi 0, %s21
    %s22 = sphi 0, %s19
    %s23 = sphi 0, %s22
    %s39 = sphi 0, %s23
    %s43 = sphi 0, %s43
    %s45 = sphi 0, %s43
    %s46 = sphi 0, %s45
    %s60 = sphi 0, %s46
    %s64 = sphi 0, %s64
    %s66 = sphi 0, %s64
    %s67 = sphi 0, %s66
    %s81 = sphi 0, %s67
    %s87 = sphi 0, %s89
    %s90 = sphi 0, %s87
    %s91 = sphi 0, %s90
    %s107 = sphi 0, %s91
  $region4: #{_lambda_.6} parent=0 // loop_header_branch
    %12 = sbr.rel (%p10) target = $region8
  $region5: #{_lambda_.6} parent=0 // loop_body
    %s14 = ssub.s32 %s9, 1
    %s15 = ssub.s32 %s9, 2
    %s16 = sadd.s32 %s9, 1
    %s17 = ssub.s32 %s9, %s16
    %p18 = scmp.eq.s32.totalorder %s17, 0
    %s20 = sadd.s32 %s19, 1
    %s21 = scalar_select %p18, %s19, %s20
    %p24 = pneg %p18
    %p25 = scmp.eq.s32.totalorder %s9, 1
    %p26 = por %p24, %p25
    %p27 = scmp.ne.s32.totalorder %s19, %s22
    %p28 = scmp.eq.s32.totalorder %s9, 0
    %p29 = por %p27, %p28
    %p30 = scmp.ne.s32.totalorder %s19, %s22
    %p31 = scmp.eq.s32.totalorder %s14, 1
    %p32 = por %p30, %p31
    %p33 = scmp.ne.s32.totalorder %s22, %s23
    %p34 = scmp.eq.s32.totalorder %s14, 0
    %p35 = por %p33, %p34
    %p36 = scmp.ne.s32.totalorder %s22, %s23
    %p37 = scmp.eq.s32.totalorder %s15, 1
    %p38 = por %p36, %p37
    %p40 = scmp.ne.s32.totalorder %s23, %s39
    %p41 = scmp.eq.s32.totalorder %s15, 0
    %p42 = por %p40, %p41
    %s44 = sadd.s32 %s43, 1
    %p47 = scmp.eq.s32.totalorder %s9, 1
    %p48 = scmp.ne.s32.totalorder %s43, %s45
    %p49 = scmp.eq.s32.totalorder %s9, 0
    %p50 = por %p48, %p49
    %p51 = scmp.ne.s32.totalorder %s43, %s45
    %p52 = scmp.eq.s32.totalorder %s14, 1
    %p53 = por %p51, %p52
    %p54 = scmp.ne.s32.totalorder %s45, %s46
    %p55 = scmp.eq.s32.totalorder %s14, 0
    %p56 = por %p54, %p55
    %p57 = scmp.ne.s32.totalorder %s45, %s46
    %p58 = scmp.eq.s32.totalorder %s15, 1
    %p59 = por %p57, %p58
    %p61 = scmp.ne.s32.totalorder %s46, %s60
    %p62 = scmp.eq.s32.totalorder %s15, 0
    %p63 = por %p61, %p62
    %s65 = sadd.s32 %s64, 1
    %p68 = scmp.eq.s32.totalorder %s9, 1
    %p69 = scmp.ne.s32.totalorder %s64, %s66
    %p70 = scmp.eq.s32.totalorder %s9, 0
    %p71 = por %p69, %p70
    %p72 = scmp.ne.s32.totalorder %s64, %s66
    %p73 = scmp.eq.s32.totalorder %s14, 1
    %p74 = por %p72, %p73
    %p75 = scmp.ne.s32.totalorder %s66, %s67
    %p76 = scmp.eq.s32.totalorder %s14, 0
    %p77 = por %p75, %p76
    %p78 = scmp.ne.s32.totalorder %s66, %s67
    %p79 = scmp.eq.s32.totalorder %s15, 1
    %p80 = por %p78, %p79
    %p82 = scmp.ne.s32.totalorder %s67, %s81
    %p83 = scmp.eq.s32.totalorder %s15, 0
    %p84 = por %p82, %p83
    %s85 = ssub.s32 %s9, %s16
    %p86 = scmp.eq.s32.totalorder %s85, 0
    %s88 = sadd.s32 %s87, 1
    %s89 = scalar_select %p86, %s87, %s88
    %p92 = pneg %p86
    %p93 = scmp.eq.s32.totalorder %s9, 1
    %p94 = por %p92, %p93
    %p95 = scmp.ne.s32.totalorder %s87, %s90
    %p96 = scmp.eq.s32.totalorder %s9, 0
    %p97 = por %p95, %p96
    %p98 = scmp.ne.s32.totalorder %s87, %s90
    %p99 = scmp.eq.s32.totalorder %s14, 1
    %p100 = por %p98, %p99
    %p101 = scmp.ne.s32.totalorder %s90, %s91
    %p102 = scmp.eq.s32.totalorder %s14, 0
    %p103 = por %p101, %p102
    %p104 = scmp.ne.s32.totalorder %s90, %s91
    %p105 = scmp.eq.s32.totalorder %s15, 1
    %p106 = por %p104, %p105
    %p108 = scmp.ne.s32.totalorder %s91, %s107
    %p109 = scmp.eq.s32.totalorder %s15, 0
    %p110 = por %p108, %p109
    %p111 = scmp.le.s32.totalorder 1, %s9
    %p112 = scmp.lt.s32.totalorder %s9, 3
    %p113 = pnand %p111, %p112
    %p114 = pneg %p113
    // Predicated region
    $region9: #{_lambda_.6} parent=5 // pred_check
      _
    $region10: #{_lambda_.6} parent=5 // pred_check_branch
      %116 = sbr.rel (%p113) target = $region12
    $region11: #{_lambda_.6} parent=5 // pred_region
      %s117 = ssub.s32 %s9, 1
      // Predicated region
      $region13: #{_lambda_.6} parent=11 // pred_check
        %p118 = pneg %p56
      $region14: #{_lambda_.6} parent=11 // pred_check_branch
        %120 = sbr.rel (%p118) target = $region16
      $region15: #{_lambda_.6} parent=11 // pred_region
        _
      $region16: #{_lambda_.6} parent=11 // pred_fallthru
        _
      // Predicated region
      $region17: #{_lambda_.6} parent=11 // pred_check
        %p121 = pneg %p77
      $region18: #{_lambda_.6} parent=11 // pred_check_branch
        %123 = sbr.rel (%p121) target = $region20
      $region19: #{_lambda_.6} parent=11 // pred_region
        _
      $region20: #{_lambda_.6} parent=11 // pred_fallthru
        _
    $region12: #{_lambda_.6} parent=5 // pred_fallthru
      _
    %p124 = scmp.lt.s32.totalorder %s9, 2
    // Predicated region
    $region21: #{_lambda_.6} parent=5 // pred_check
      %p125 = pneg %p124
    $region22: #{_lambda_.6} parent=5 // pred_check_branch
      %127 = sbr.rel (%p125) target = $region24
    $region23: #{_lambda_.6} parent=5 // pred_region
      // Predicated region
      $region25: #{_lambda_.6} parent=23 // pred_check
        %p128 = pneg %p29
      $region26: #{_lambda_.6} parent=23 // pred_check_branch
        %130 = sbr.rel (%p128) target = $region28
      $region27: #{_lambda_.6} parent=23 // pred_region
        %s131 = smul.u32 32, %s9
        %p132 = scmp.lt.s32.totalorder %s131, 63
        %s133 = scalar_select %p132, %s131, 63
        %s134 = smul.addr %s133, 12
        %s135 = smul.addr %s134, 4
        %s136 = scalar_lea.vmem %s0, %s135
        %s137 = smul.u32 32, %s9
      $region28: #{_lambda_.6} parent=23 // pred_fallthru
        _
    $region24: #{_lambda_.6} parent=5 // pred_fallthru
      _
    %p138 = scmp.le.s32.totalorder 1, %s9
    %p139 = scmp.lt.s32.totalorder %s9, 3
    %p140 = pnand %p138, %p139
    %p141 = pneg %p140
    // Predicated region
    $region29: #{_lambda_.6} parent=5 // pred_check
      _
    $region30: #{_lambda_.6} parent=5 // pred_check_branch
      %143 = sbr.rel (%p140) target = $region32
    $region31: #{_lambda_.6} parent=5 // pred_region
      %s144 = ssub.s32 %s9, 1
      %s145 = smul.u32 32, %s14
      %p146 = scmp.lt.s32.totalorder %s145, 63
      %s147 = scalar_select %p146, %s145, 63
      %s148 = smul.addr %s147, 12
      %s149 = smul.addr %s148, 4
      %s150 = scalar_lea.vmem %s0, %s149
      %p151 = pneg %p35
      %p152 = pneg %p32
      %p153 = pneg %p56
      %p154 = pneg %p53
      %p155 = pneg %p77
      %p156 = pneg %p74
      %p157 = pneg %p103
      %p158 = pneg %p100
      %s159 = smul.u32 32, %s14
      %p160 = scmp.lt.s32.totalorder %s159, 63
      %s161 = scalar_select %p160, %s159, 63
      %s162 = smul.addr %s161, 4
      %s163 = scalar_lea.vmem %s3, %s162
      %s164 = smul.u32 32, %s14
      %p165 = scmp.lt.s32.totalorder %s164, 63
      %s166 = scalar_select %p165, %s164, 63
      %s167 = smul.addr %s166, 12
      %s168 = smul.addr %s167, 4
      %s169 = scalar_lea.vmem %s0, %s168
      %s170 = smul.u32 32, %s14
      %s171 = smul.u32 32, %s14
      %p172 = scmp.lt.s32.totalorder %s171, 63
      %s173 = scalar_select %p172, %s171, 63
      %s174 = smul.addr %s173, 4
      %s175 = scalar_lea.vmem %s3, %s174
      %s176 = smul.u32 32, %s14
      %v178 = vld [vmem:[%s169] sm:$0xff]
      %v179 = vld [vmem:[%s169 + $0x8] sm:$0xff]
      %v180 = vld [vmem:[%s169 + $0x10] sm:$0xff]
      %v181 = vld [vmem:[%s169 + $0x18] sm:$0xff]
      %v182 = vld [vmem:[%s169 + $0x20] sm:$0xff]
      %v183 = vld [vmem:[%s169 + $0x28] sm:$0xff]
      %v184 = vld [vmem:[%s169 + $0x30] sm:$0xff]
      %v185 = vld [vmem:[%s169 + $0x38] sm:$0xff]
      %v186 = vld [vmem:[%s169 + $0x40] sm:$0xff]
      %v187 = vld [vmem:[%s169 + $0x48] sm:$0xff]
      %v188 = vld [vmem:[%s169 + $0x50] sm:$0xff]
      %v189 = vld [vmem:[%s169 + $0x58] sm:$0xff]
      %v190 = vld [vmem:[%s169 + $0x60] sm:$0xff]
      %v191 = vld [vmem:[%s169 + $0x68] sm:$0xff]
      %v192 = vld [vmem:[%s169 + $0x70] sm:$0xff]
      %v193 = vld [vmem:[%s169 + $0x78] sm:$0xff]
      %v194 = vld [vmem:[%s169 + $0x80] sm:$0xff]
      %v195 = vld [vmem:[%s169 + $0x88] sm:$0xff]
      %v196 = vld [vmem:[%s169 + $0x90] sm:$0xff]
      %v197 = vld [vmem:[%s169 + $0x98] sm:$0xff]
      %v198 = vld [vmem:[%s169 + $0xa0] sm:$0xff]
      %v199 = vld [vmem:[%s169 + $0xa8] sm:$0xff]
      %v200 = vld [vmem:[%s169 + $0xb0] sm:$0xff]
      %v201 = vld [vmem:[%s169 + $0xb8] sm:$0xff]
      %v202 = vld [vmem:[%s169 + $0xc0] sm:$0xff]
      %v203 = vld [vmem:[%s169 + $0xc8] sm:$0xff]
      %v204 = vld [vmem:[%s169 + $0xd0] sm:$0xff]
      %v205 = vld [vmem:[%s169 + $0xd8] sm:$0xff]
      %v206 = vld [vmem:[%s169 + $0xe0] sm:$0xff]
      %v207 = vld [vmem:[%s169 + $0xe8] sm:$0xff]
      %v208 = vld [vmem:[%s169 + $0xf0] sm:$0xff]
      %v209 = vld [vmem:[%s169 + $0xf8] sm:$0xff]
      %v210 = vld [vmem:[%s169 + $0x100] sm:$0xff]
      %v211 = vld [vmem:[%s169 + $0x108] sm:$0xff]
      %v212 = vld [vmem:[%s169 + $0x110] sm:$0xff]
      %v213 = vld [vmem:[%s169 + $0x118] sm:$0xff]
      %v214 = vld [vmem:[%s169 + $0x120] sm:$0xff]
      %v215 = vld [vmem:[%s169 + $0x128] sm:$0xff]
      %v216 = vld [vmem:[%s169 + $0x130] sm:$0xff]
      %v217 = vld [vmem:[%s169 + $0x138] sm:$0xff]
      %v218 = vld [vmem:[%s169 + $0x140] sm:$0xff]
      %v219 = vld [vmem:[%s169 + $0x148] sm:$0xff]
      %v220 = vld [vmem:[%s169 + $0x150] sm:$0xff]
      %v221 = vld [vmem:[%s169 + $0x158] sm:$0xff]
      %v222 = vld [vmem:[%s169 + $0x160] sm:$0xff]
      %v223 = vld [vmem:[%s169 + $0x168] sm:$0xff]
      %v224 = vld [vmem:[%s169 + $0x170] sm:$0xff]
      %v225 = vld [vmem:[%s169 + $0x178] sm:$0xff]
      %v226 = vld [vmem:[%s169 + $0x180] sm:$0xff]
      %v227 = vld [vmem:[%s169 + $0x188] sm:$0xff]
      %v228 = vld [vmem:[%s169 + $0x190] sm:$0xff]
      %v229 = vld [vmem:[%s169 + $0x198] sm:$0xff]
      %v230 = vld [vmem:[%s169 + $0x1a0] sm:$0xff]
      %v231 = vld [vmem:[%s169 + $0x1a8] sm:$0xff]
      %v232 = vld [vmem:[%s169 + $0x1b0] sm:$0xff]
      %v233 = vld [vmem:[%s169 + $0x1b8] sm:$0xff]
      %v234 = vld [vmem:[%s169 + $0x1c0] sm:$0xff]
      %v235 = vld [vmem:[%s169 + $0x1c8] sm:$0xff]
      %v236 = vld [vmem:[%s169 + $0x1d0] sm:$0xff]
      %v237 = vld [vmem:[%s169 + $0x1d8] sm:$0xff]
      %v238 = vld [vmem:[%s169 + $0x1e0] sm:$0xff]
      %v239 = vld [vmem:[%s169 + $0x1e8] sm:$0xff]
      %v240 = vld [vmem:[%s169 + $0x1f0] sm:$0xff]
      %v241 = vld [vmem:[%s169 + $0x1f8] sm:$0xff]
      %v242 = vld [vmem:[%s169 + $0x200] sm:$0xff]
      %v243 = vld [vmem:[%s169 + $0x208] sm:$0xff]
      %v244 = vld [vmem:[%s169 + $0x210] sm:$0xff]
      %v245 = vld [vmem:[%s169 + $0x218] sm:$0xff]
      %v246 = vld [vmem:[%s169 + $0x220] sm:$0xff]
      %v247 = vld [vmem:[%s169 + $0x228] sm:$0xff]
      %v248 = vld [vmem:[%s169 + $0x230] sm:$0xff]
      %v249 = vld [vmem:[%s169 + $0x238] sm:$0xff]
      %v250 = vld [vmem:[%s169 + $0x240] sm:$0xff]
      %v251 = vld [vmem:[%s169 + $0x248] sm:$0xff]
      %v252 = vld [vmem:[%s169 + $0x250] sm:$0xff]
      %v253 = vld [vmem:[%s169 + $0x258] sm:$0xff]
      %v254 = vld [vmem:[%s169 + $0x260] sm:$0xff]
      %v255 = vld [vmem:[%s169 + $0x268] sm:$0xff]
      %v256 = vld [vmem:[%s169 + $0x270] sm:$0xff]
      %v257 = vld [vmem:[%s169 + $0x278] sm:$0xff]
      %v258 = vld [vmem:[%s169 + $0x280] sm:$0xff]
      %v259 = vld [vmem:[%s169 + $0x288] sm:$0xff]
      %v260 = vld [vmem:[%s169 + $0x290] sm:$0xff]
      %v261 = vld [vmem:[%s169 + $0x298] sm:$0xff]
      %v262 = vld [vmem:[%s169 + $0x2a0] sm:$0xff]
      %v263 = vld [vmem:[%s169 + $0x2a8] sm:$0xff]
      %v264 = vld [vmem:[%s169 + $0x2b0] sm:$0xff]
      %v265 = vld [vmem:[%s169 + $0x2b8] sm:$0xff]
      %v266 = vld [vmem:[%s169 + $0x2c0] sm:$0xff]
      %v267 = vld [vmem:[%s169 + $0x2c8] sm:$0xff]
      %v268 = vld [vmem:[%s169 + $0x2d0] sm:$0xff]
      %v269 = vld [vmem:[%s169 + $0x2d8] sm:$0xff]
      %v270 = vld [vmem:[%s169 + $0x2e0] sm:$0xff]
      %v271 = vld [vmem:[%s169 + $0x2e8] sm:$0xff]
      %v272 = vld [vmem:[%s169 + $0x2f0] sm:$0xff]
      %v273 = vld [vmem:[%s169 + $0x2f8] sm:$0xff]
      %v274 = vld [vmem:[%s169 + $0x300] sm:$0xff]
      %v275 = vld [vmem:[%s169 + $0x308] sm:$0xff]
      %v276 = vld [vmem:[%s169 + $0x310] sm:$0xff]
      %v277 = vld [vmem:[%s169 + $0x318] sm:$0xff]
      %v278 = vld [vmem:[%s169 + $0x320] sm:$0xff]
      %v279 = vld [vmem:[%s169 + $0x328] sm:$0xff]
      %v280 = vld [vmem:[%s169 + $0x330] sm:$0xff]
      %v281 = vld [vmem:[%s169 + $0x338] sm:$0xff]
      %v282 = vld [vmem:[%s169 + $0x340] sm:$0xff]
      %v283 = vld [vmem:[%s169 + $0x348] sm:$0xff]
      %v284 = vld [vmem:[%s169 + $0x350] sm:$0xff]
      %v285 = vld [vmem:[%s169 + $0x358] sm:$0xff]
      %v286 = vld [vmem:[%s169 + $0x360] sm:$0xff]
      %v287 = vld [vmem:[%s169 + $0x368] sm:$0xff]
      %v288 = vld [vmem:[%s169 + $0x370] sm:$0xff]
      %v289 = vld [vmem:[%s169 + $0x378] sm:$0xff]
      %v290 = vld [vmem:[%s169 + $0x380] sm:$0xff]
      %v291 = vld [vmem:[%s169 + $0x388] sm:$0xff]
      %v292 = vld [vmem:[%s169 + $0x390] sm:$0xff]
      %v293 = vld [vmem:[%s169 + $0x398] sm:$0xff]
      %v294 = vld [vmem:[%s169 + $0x3a0] sm:$0xff]
      %v295 = vld [vmem:[%s169 + $0x3a8] sm:$0xff]
      %v296 = vld [vmem:[%s169 + $0x3b0] sm:$0xff]
      %v297 = vld [vmem:[%s169 + $0x3b8] sm:$0xff]
      %v298 = vld [vmem:[%s169 + $0x3c0] sm:$0xff]
      %v299 = vld [vmem:[%s169 + $0x3c8] sm:$0xff]
      %v300 = vld [vmem:[%s169 + $0x3d0] sm:$0xff]
      %v301 = vld [vmem:[%s169 + $0x3d8] sm:$0xff]
      %v302 = vld [vmem:[%s169 + $0x3e0] sm:$0xff]
      %v303 = vld [vmem:[%s169 + $0x3e8] sm:$0xff]
      %v304 = vld [vmem:[%s169 + $0x3f0] sm:$0xff]
      %v305 = vld [vmem:[%s169 + $0x3f8] sm:$0xff]
      %v306 = vld [vmem:[%s169 + $0x400] sm:$0xff]
      %v307 = vld [vmem:[%s169 + $0x408] sm:$0xff]
      %v308 = vld [vmem:[%s169 + $0x410] sm:$0xff]
      %v309 = vld [vmem:[%s169 + $0x418] sm:$0xff]
      %v310 = vld [vmem:[%s169 + $0x420] sm:$0xff]
      %v311 = vld [vmem:[%s169 + $0x428] sm:$0xff]
      %v312 = vld [vmem:[%s169 + $0x430] sm:$0xff]
      %v313 = vld [vmem:[%s169 + $0x438] sm:$0xff]
      %v314 = vld [vmem:[%s169 + $0x440] sm:$0xff]
      %v315 = vld [vmem:[%s169 + $0x448] sm:$0xff]
      %v316 = vld [vmem:[%s169 + $0x450] sm:$0xff]
      %v317 = vld [vmem:[%s169 + $0x458] sm:$0xff]
      %v318 = vld [vmem:[%s169 + $0x460] sm:$0xff]
      %v319 = vld [vmem:[%s169 + $0x468] sm:$0xff]
      %v320 = vld [vmem:[%s169 + $0x470] sm:$0xff]
      %v321 = vld [vmem:[%s169 + $0x478] sm:$0xff]
      %v322 = vld [vmem:[%s169 + $0x480] sm:$0xff]
      %v323 = vld [vmem:[%s169 + $0x488] sm:$0xff]
      %v324 = vld [vmem:[%s169 + $0x490] sm:$0xff]
      %v325 = vld [vmem:[%s169 + $0x498] sm:$0xff]
      %v326 = vld [vmem:[%s169 + $0x4a0] sm:$0xff]
      %v327 = vld [vmem:[%s169 + $0x4a8] sm:$0xff]
      %v328 = vld [vmem:[%s169 + $0x4b0] sm:$0xff]
      %v329 = vld [vmem:[%s169 + $0x4b8] sm:$0xff]
      %v330 = vld [vmem:[%s169 + $0x4c0] sm:$0xff]
      %v331 = vld [vmem:[%s169 + $0x4c8] sm:$0xff]
      %v332 = vld [vmem:[%s169 + $0x4d0] sm:$0xff]
      %v333 = vld [vmem:[%s169 + $0x4d8] sm:$0xff]
      %v334 = vld [vmem:[%s169 + $0x4e0] sm:$0xff]
      %v335 = vld [vmem:[%s169 + $0x4e8] sm:$0xff]
      %v336 = vld [vmem:[%s169 + $0x4f0] sm:$0xff]
      %v337 = vld [vmem:[%s169 + $0x4f8] sm:$0xff]
      %v338 = vld [vmem:[%s169 + $0x500] sm:$0xff]
      %v339 = vld [vmem:[%s169 + $0x508] sm:$0xff]
      %v340 = vld [vmem:[%s169 + $0x510] sm:$0xff]
      %v341 = vld [vmem:[%s169 + $0x518] sm:$0xff]
      %v342 = vld [vmem:[%s169 + $0x520] sm:$0xff]
      %v343 = vld [vmem:[%s169 + $0x528] sm:$0xff]
      %v344 = vld [vmem:[%s169 + $0x530] sm:$0xff]
      %v345 = vld [vmem:[%s169 + $0x538] sm:$0xff]
      %v346 = vld [vmem:[%s169 + $0x540] sm:$0xff]
      %v347 = vld [vmem:[%s169 + $0x548] sm:$0xff]
      %v348 = vld [vmem:[%s169 + $0x550] sm:$0xff]
      %v349 = vld [vmem:[%s169 + $0x558] sm:$0xff]
      %v350 = vld [vmem:[%s169 + $0x560] sm:$0xff]
      %v351 = vld [vmem:[%s169 + $0x568] sm:$0xff]
      %v352 = vld [vmem:[%s169 + $0x570] sm:$0xff]
      %v353 = vld [vmem:[%s169 + $0x578] sm:$0xff]
      %v354 = vld [vmem:[%s169 + $0x580] sm:$0xff]
      %v355 = vld [vmem:[%s169 + $0x588] sm:$0xff]
      %v356 = vld [vmem:[%s169 + $0x590] sm:$0xff]
      %v357 = vld [vmem:[%s169 + $0x598] sm:$0xff]
      %v358 = vld [vmem:[%s169 + $0x5a0] sm:$0xff]
      %v359 = vld [vmem:[%s169 + $0x5a8] sm:$0xff]
      %v360 = vld [vmem:[%s169 + $0x5b0] sm:$0xff]
      %v361 = vld [vmem:[%s169 + $0x5b8] sm:$0xff]
      %v362 = vld [vmem:[%s169 + $0x5c0] sm:$0xff]
      %v363 = vld [vmem:[%s169 + $0x5c8] sm:$0xff]
      %v364 = vld [vmem:[%s169 + $0x5d0] sm:$0xff]
      %v365 = vld [vmem:[%s169 + $0x5d8] sm:$0xff]
      %v366 = vld [vmem:[%s169 + $0x5e0] sm:$0xff]
      %v367 = vld [vmem:[%s169 + $0x5e8] sm:$0xff]
      %v368 = vld [vmem:[%s169 + $0x5f0] sm:$0xff]
      %v369 = vld [vmem:[%s169 + $0x5f8] sm:$0xff]
      %v370 = vld [vmem:[%s1] sm:$0xf]
      %v371 = vld [vmem:[%s1 + $0x4] sm:$0xf]
      %v372 = vld [vmem:[%s1 + $0x8] sm:$0xf]
      %v373 = vld [vmem:[%s1 + $0xc] sm:$0xf]
      %v374 = vld [vmem:[%s1 + $0x10] sm:$0xf]
      %v375 = vld [vmem:[%s1 + $0x14] sm:$0xf]
      %v376 = vld [vmem:[%s1 + $0x18] sm:$0xf]
      %v377 = vld [vmem:[%s1 + $0x1c] sm:$0xf]
      %v378 = vld [vmem:[%s1 + $0x20] sm:$0xf]
      %v379 = vld [vmem:[%s1 + $0x24] sm:$0xf]
      %v380 = vld [vmem:[%s1 + $0x28] sm:$0xf]
      %v381 = vld [vmem:[%s1 + $0x2c] sm:$0xf]
      %v382 = vld [vmem:[%s1 + $0x30] sm:$0xf]
      %v383 = vld [vmem:[%s1 + $0x34] sm:$0xf]
      %v384 = vld [vmem:[%s1 + $0x38] sm:$0xf]
      %v385 = vld [vmem:[%s1 + $0x3c] sm:$0xf]
      %v386 = vld [vmem:[%s1 + $0x40] sm:$0xf]
      %v387 = vld [vmem:[%s1 + $0x44] sm:$0xf]
      %v388 = vld [vmem:[%s1 + $0x48] sm:$0xf]
      %v389 = vld [vmem:[%s1 + $0x4c] sm:$0xf]
      %v390 = vld [vmem:[%s1 + $0x50] sm:$0xf]
      %v391 = vld [vmem:[%s1 + $0x54] sm:$0xf]
      %v392 = vld [vmem:[%s1 + $0x58] sm:$0xf]
      %v393 = vld [vmem:[%s1 + $0x5c] sm:$0xf]
      %v394 = vld [vmem:[%s1 + $0x60] sm:$0xf]
      %v395 = vld [vmem:[%s1 + $0x64] sm:$0xf]
      %v396 = vld [vmem:[%s1 + $0x68] sm:$0xf]
      %v397 = vld [vmem:[%s1 + $0x6c] sm:$0xf]
      %v398 = vld [vmem:[%s1 + $0x70] sm:$0xf]
      %v399 = vld [vmem:[%s1 + $0x74] sm:$0xf]
      %v400 = vld [vmem:[%s1 + $0x78] sm:$0xf]
      %v401 = vld [vmem:[%s1 + $0x7c] sm:$0xf]
      %v402 = vld [vmem:[%s1 + $0x80] sm:$0xf]
      %v403 = vld [vmem:[%s1 + $0x84] sm:$0xf]
      %v404 = vld [vmem:[%s1 + $0x88] sm:$0xf]
      %v405 = vld [vmem:[%s1 + $0x8c] sm:$0xf]
      %v406 = vld [vmem:[%s1 + $0x90] sm:$0xf]
      %v407 = vld [vmem:[%s1 + $0x94] sm:$0xf]
      %v408 = vld [vmem:[%s1 + $0x98] sm:$0xf]
      %v409 = vld [vmem:[%s1 + $0x9c] sm:$0xf]
      %v410 = vld [vmem:[%s1 + $0xa0] sm:$0xf]
      %v411 = vld [vmem:[%s1 + $0xa4] sm:$0xf]
      %v412 = vld [vmem:[%s1 + $0xa8] sm:$0xf]
      %v413 = vld [vmem:[%s1 + $0xac] sm:$0xf]
      %v414 = vld [vmem:[%s1 + $0xb0] sm:$0xf]
      %v415 = vld [vmem:[%s1 + $0xb4] sm:$0xf]
      %v416 = vld [vmem:[%s1 + $0xb8] sm:$0xf]
      %v417 = vld [vmem:[%s1 + $0xbc] sm:$0xf]
      %v418 = vld [vmem:[%s1 + $0xc0] sm:$0xf]
      %v419 = vld [vmem:[%s1 + $0xc4] sm:$0xf]
      %v420 = vld [vmem:[%s1 + $0xc8] sm:$0xf]
      %v421 = vld [vmem:[%s1 + $0xcc] sm:$0xf]
      %v422 = vld [vmem:[%s1 + $0xd0] sm:$0xf]
      %v423 = vld [vmem:[%s1 + $0xd4] sm:$0xf]
      %v424 = vld [vmem:[%s1 + $0xd8] sm:$0xf]
      %v425 = vld [vmem:[%s1 + $0xdc] sm:$0xf]
      %v426 = vld [vmem:[%s1 + $0xe0] sm:$0xf]
      %v427 = vld [vmem:[%s1 + $0xe4] sm:$0xf]
      %v428 = vld [vmem:[%s1 + $0xe8] sm:$0xf]
      %v429 = vld [vmem:[%s1 + $0xec] sm:$0xf]
      %v430 = vld [vmem:[%s1 + $0xf0] sm:$0xf]
      %v431 = vld [vmem:[%s1 + $0xf4] sm:$0xf]
      %v432 = vld [vmem:[%s1 + $0xf8] sm:$0xf]
      %v433 = vld [vmem:[%s1 + $0xfc] sm:$0xf]
      %v434 = vld [vmem:[%s1 + $0x100] sm:$0xf]
      %v435 = vld [vmem:[%s1 + $0x104] sm:$0xf]
      %v436 = vld [vmem:[%s1 + $0x108] sm:$0xf]
      %v437 = vld [vmem:[%s1 + $0x10c] sm:$0xf]
      %v438 = vld [vmem:[%s1 + $0x110] sm:$0xf]
      %v439 = vld [vmem:[%s1 + $0x114] sm:$0xf]
      %v440 = vld [vmem:[%s1 + $0x118] sm:$0xf]
      %v441 = vld [vmem:[%s1 + $0x11c] sm:$0xf]
      %v442 = vld [vmem:[%s1 + $0x120] sm:$0xf]
      %v443 = vld [vmem:[%s1 + $0x124] sm:$0xf]
      %v444 = vld [vmem:[%s1 + $0x128] sm:$0xf]
      %v445 = vld [vmem:[%s1 + $0x12c] sm:$0xf]
      %v446 = vld [vmem:[%s1 + $0x130] sm:$0xf]
      %v447 = vld [vmem:[%s1 + $0x134] sm:$0xf]
      %v448 = vld [vmem:[%s1 + $0x138] sm:$0xf]
      %v449 = vld [vmem:[%s1 + $0x13c] sm:$0xf]
      %v450 = vld [vmem:[%s1 + $0x140] sm:$0xf]
      %v451 = vld [vmem:[%s1 + $0x144] sm:$0xf]
      %v452 = vld [vmem:[%s1 + $0x148] sm:$0xf]
      %v453 = vld [vmem:[%s1 + $0x14c] sm:$0xf]
      %v454 = vld [vmem:[%s1 + $0x150] sm:$0xf]
      %v455 = vld [vmem:[%s1 + $0x154] sm:$0xf]
      %v456 = vld [vmem:[%s1 + $0x158] sm:$0xf]
      %v457 = vld [vmem:[%s1 + $0x15c] sm:$0xf]
      %v458 = vld [vmem:[%s1 + $0x160] sm:$0xf]
      %v459 = vld [vmem:[%s1 + $0x164] sm:$0xf]
      %v460 = vld [vmem:[%s1 + $0x168] sm:$0xf]
      %v461 = vld [vmem:[%s1 + $0x16c] sm:$0xf]
      %v462 = vld [vmem:[%s1 + $0x170] sm:$0xf]
      %v463 = vld [vmem:[%s1 + $0x174] sm:$0xf]
      %v464 = vld [vmem:[%s1 + $0x178] sm:$0xf]
      %v465 = vld [vmem:[%s1 + $0x17c] sm:$0xf]
      %v466 = vld [vmem:[%s1 + $0x180] sm:$0xf]
      %v467 = vld [vmem:[%s1 + $0x184] sm:$0xf]
      %v468 = vld [vmem:[%s1 + $0x188] sm:$0xf]
      %v469 = vld [vmem:[%s1 + $0x18c] sm:$0xf]
      %v470 = vld [vmem:[%s1 + $0x190] sm:$0xf]
      %v471 = vld [vmem:[%s1 + $0x194] sm:$0xf]
      %v472 = vld [vmem:[%s1 + $0x198] sm:$0xf]
      %v473 = vld [vmem:[%s1 + $0x19c] sm:$0xf]
      %v474 = vld [vmem:[%s1 + $0x1a0] sm:$0xf]
      %v475 = vld [vmem:[%s1 + $0x1a4] sm:$0xf]
      %v476 = vld [vmem:[%s1 + $0x1a8] sm:$0xf]
      %v477 = vld [vmem:[%s1 + $0x1ac] sm:$0xf]
      %v478 = vld [vmem:[%s1 + $0x1b0] sm:$0xf]
      %v479 = vld [vmem:[%s1 + $0x1b4] sm:$0xf]
      %v480 = vld [vmem:[%s1 + $0x1b8] sm:$0xf]
      %v481 = vld [vmem:[%s1 + $0x1bc] sm:$0xf]
      %v482 = vld [vmem:[%s1 + $0x1c0] sm:$0xf]
      %v483 = vld [vmem:[%s1 + $0x1c4] sm:$0xf]
      %v484 = vld [vmem:[%s1 + $0x1c8] sm:$0xf]
      %v485 = vld [vmem:[%s1 + $0x1cc] sm:$0xf]
      %v486 = vld [vmem:[%s1 + $0x1d0] sm:$0xf]
      %v487 = vld [vmem:[%s1 + $0x1d4] sm:$0xf]
      %v488 = vld [vmem:[%s1 + $0x1d8] sm:$0xf]
      %v489 = vld [vmem:[%s1 + $0x1dc] sm:$0xf]
      %v490 = vld [vmem:[%s1 + $0x1e0] sm:$0xf]
      %v491 = vld [vmem:[%s1 + $0x1e4] sm:$0xf]
      %v492 = vld [vmem:[%s1 + $0x1e8] sm:$0xf]
      %v493 = vld [vmem:[%s1 + $0x1ec] sm:$0xf]
      %v494 = vld [vmem:[%s1 + $0x1f0] sm:$0xf]
      %v495 = vld [vmem:[%s1 + $0x1f4] sm:$0xf]
      %v496 = vld [vmem:[%s1 + $0x1f8] sm:$0xf]
      %v497 = vld [vmem:[%s1 + $0x1fc] sm:$0xf]
      %v498 = vld [vmem:[%s1 + $0x200] sm:$0xf]
      %v499 = vld [vmem:[%s1 + $0x204] sm:$0xf]
      %v500 = vld [vmem:[%s1 + $0x208] sm:$0xf]
      %v501 = vld [vmem:[%s1 + $0x20c] sm:$0xf]
      %v502 = vld [vmem:[%s1 + $0x210] sm:$0xf]
      %v503 = vld [vmem:[%s1 + $0x214] sm:$0xf]
      %v504 = vld [vmem:[%s1 + $0x218] sm:$0xf]
      %v505 = vld [vmem:[%s1 + $0x21c] sm:$0xf]
      %v506 = vld [vmem:[%s1 + $0x220] sm:$0xf]
      %v507 = vld [vmem:[%s1 + $0x224] sm:$0xf]
      %v508 = vld [vmem:[%s1 + $0x228] sm:$0xf]
      %v509 = vld [vmem:[%s1 + $0x22c] sm:$0xf]
      %v510 = vld [vmem:[%s1 + $0x230] sm:$0xf]
      %v511 = vld [vmem:[%s1 + $0x234] sm:$0xf]
      %v512 = vld [vmem:[%s1 + $0x238] sm:$0xf]
      %v513 = vld [vmem:[%s1 + $0x23c] sm:$0xf]
      %v514 = vld [vmem:[%s1 + $0x240] sm:$0xf]
      %v515 = vld [vmem:[%s1 + $0x244] sm:$0xf]
      %v516 = vld [vmem:[%s1 + $0x248] sm:$0xf]
      %v517 = vld [vmem:[%s1 + $0x24c] sm:$0xf]
      %v518 = vld [vmem:[%s1 + $0x250] sm:$0xf]
      %v519 = vld [vmem:[%s1 + $0x254] sm:$0xf]
      %v520 = vld [vmem:[%s1 + $0x258] sm:$0xf]
      %v521 = vld [vmem:[%s1 + $0x25c] sm:$0xf]
      %v522 = vld [vmem:[%s1 + $0x260] sm:$0xf]
      %v523 = vld [vmem:[%s1 + $0x264] sm:$0xf]
      %v524 = vld [vmem:[%s1 + $0x268] sm:$0xf]
      %v525 = vld [vmem:[%s1 + $0x26c] sm:$0xf]
      %v526 = vld [vmem:[%s1 + $0x270] sm:$0xf]
      %v527 = vld [vmem:[%s1 + $0x274] sm:$0xf]
      %v528 = vld [vmem:[%s1 + $0x278] sm:$0xf]
      %v529 = vld [vmem:[%s1 + $0x27c] sm:$0xf]
      %v530 = vld [vmem:[%s1 + $0x280] sm:$0xf]
      %v531 = vld [vmem:[%s1 + $0x284] sm:$0xf]
      %v532 = vld [vmem:[%s1 + $0x288] sm:$0xf]
      %v533 = vld [vmem:[%s1 + $0x28c] sm:$0xf]
      %v534 = vld [vmem:[%s1 + $0x290] sm:$0xf]
      %v535 = vld [vmem:[%s1 + $0x294] sm:$0xf]
      %v536 = vld [vmem:[%s1 + $0x298] sm:$0xf]
      %v537 = vld [vmem:[%s1 + $0x29c] sm:$0xf]
      %v538 = vld [vmem:[%s1 + $0x2a0] sm:$0xf]
      %v539 = vld [vmem:[%s1 + $0x2a4] sm:$0xf]
      %v540 = vld [vmem:[%s1 + $0x2a8] sm:$0xf]
      %v541 = vld [vmem:[%s1 + $0x2ac] sm:$0xf]
      %v542 = vld [vmem:[%s1 + $0x2b0] sm:$0xf]
      %v543 = vld [vmem:[%s1 + $0x2b4] sm:$0xf]
      %v544 = vld [vmem:[%s1 + $0x2b8] sm:$0xf]
      %v545 = vld [vmem:[%s1 + $0x2bc] sm:$0xf]
      %v546 = vld [vmem:[%s1 + $0x2c0] sm:$0xf]
      %v547 = vld [vmem:[%s1 + $0x2c4] sm:$0xf]
      %v548 = vld [vmem:[%s1 + $0x2c8] sm:$0xf]
      %v549 = vld [vmem:[%s1 + $0x2cc] sm:$0xf]
      %v550 = vld [vmem:[%s2] sm:$0x1]
      %v552 = vperm.slane %v550, 0
      %v746 = vunpack.c.l.b16 %v178
      %v747 = vunpack.c.h.b16 %v178
      %v748 = vunpack.c.l.b16 %v179
      %v749 = vunpack.c.h.b16 %v179
      %v750 = vunpack.c.l.b16 %v180
      %v751 = vunpack.c.h.b16 %v180
      %v752 = vunpack.c.l.b16 %v181
      %v753 = vunpack.c.h.b16 %v181
      %v754 = vunpack.c.l.b16 %v182
      %v755 = vunpack.c.h.b16 %v182
      %v756 = vunpack.c.l.b16 %v183
      %v757 = vunpack.c.h.b16 %v183
      %v758 = vunpack.c.l.b16 %v184
      %v759 = vunpack.c.h.b16 %v184
      %v760 = vunpack.c.l.b16 %v185
      %v761 = vunpack.c.h.b16 %v185
      %v762 = vunpack.c.l.b16 %v186
      %v763 = vunpack.c.h.b16 %v186
      %v764 = vunpack.c.l.b16 %v187
      %v765 = vunpack.c.h.b16 %v187
      %v766 = vunpack.c.l.b16 %v188
      %v767 = vunpack.c.h.b16 %v188
      %v768 = vunpack.c.l.b16 %v189
      %v769 = vunpack.c.h.b16 %v189
      %v770 = vunpack.c.l.b16 %v190
      %v771 = vunpack.c.h.b16 %v190
      %v772 = vunpack.c.l.b16 %v191
      %v773 = vunpack.c.h.b16 %v191
      %v774 = vunpack.c.l.b16 %v192
      %v775 = vunpack.c.h.b16 %v192
      %v776 = vunpack.c.l.b16 %v193
      %v777 = vunpack.c.h.b16 %v193
      %v778 = vunpack.c.l.b16 %v194
      %v779 = vunpack.c.h.b16 %v194
      %v780 = vunpack.c.l.b16 %v195
      %v781 = vunpack.c.h.b16 %v195
      %v782 = vunpack.c.l.b16 %v196
      %v783 = vunpack.c.h.b16 %v196
      %v784 = vunpack.c.l.b16 %v197
      %v785 = vunpack.c.h.b16 %v197
      %v786 = vunpack.c.l.b16 %v198
      %v787 = vunpack.c.h.b16 %v198
      %v788 = vunpack.c.l.b16 %v199
      %v789 = vunpack.c.h.b16 %v199
      %v790 = vunpack.c.l.b16 %v200
      %v791 = vunpack.c.h.b16 %v200
      %v792 = vunpack.c.l.b16 %v201
      %v793 = vunpack.c.h.b16 %v201
      %v794 = vunpack.c.l.b16 %v202
      %v795 = vunpack.c.h.b16 %v202
      %v796 = vunpack.c.l.b16 %v203
      %v797 = vunpack.c.h.b16 %v203
      %v798 = vunpack.c.l.b16 %v204
      %v799 = vunpack.c.h.b16 %v204
      %v800 = vunpack.c.l.b16 %v205
      %v801 = vunpack.c.h.b16 %v205
      %v802 = vunpack.c.l.b16 %v206
      %v803 = vunpack.c.h.b16 %v206
      %v804 = vunpack.c.l.b16 %v207
      %v805 = vunpack.c.h.b16 %v207
      %v806 = vunpack.c.l.b16 %v208
      %v807 = vunpack.c.h.b16 %v208
      %v808 = vunpack.c.l.b16 %v209
      %v809 = vunpack.c.h.b16 %v209
      %v810 = vunpack.c.l.b16 %v210
      %v811 = vunpack.c.h.b16 %v210
      %v812 = vunpack.c.l.b16 %v211
      %v813 = vunpack.c.h.b16 %v211
      %v814 = vunpack.c.l.b16 %v212
      %v815 = vunpack.c.h.b16 %v212
      %v816 = vunpack.c.l.b16 %v213
      %v817 = vunpack.c.h.b16 %v213
      %v818 = vunpack.c.l.b16 %v214
      %v819 = vunpack.c.h.b16 %v214
      %v820 = vunpack.c.l.b16 %v215
      %v821 = vunpack.c.h.b16 %v215
      %v822 = vunpack.c.l.b16 %v216
      %v823 = vunpack.c.h.b16 %v216
      %v824 = vunpack.c.l.b16 %v217
      %v825 = vunpack.c.h.b16 %v217
      %v826 = vunpack.c.l.b16 %v218
      %v827 = vunpack.c.h.b16 %v218
      %v828 = vunpack.c.l.b16 %v219
      %v829 = vunpack.c.h.b16 %v219
      %v830 = vunpack.c.l.b16 %v220
      %v831 = vunpack.c.h.b16 %v220
      %v832 = vunpack.c.l.b16 %v221
      %v833 = vunpack.c.h.b16 %v221
      %v834 = vunpack.c.l.b16 %v222
      %v835 = vunpack.c.h.b16 %v222
      %v836 = vunpack.c.l.b16 %v223
      %v837 = vunpack.c.h.b16 %v223
      %v838 = vunpack.c.l.b16 %v224
      %v839 = vunpack.c.h.b16 %v224
      %v840 = vunpack.c.l.b16 %v225
      %v841 = vunpack.c.h.b16 %v225
      %v842 = vunpack.c.l.b16 %v226
      %v843 = vunpack.c.h.b16 %v226
      %v844 = vunpack.c.l.b16 %v227
      %v845 = vunpack.c.h.b16 %v227
      %v846 = vunpack.c.l.b16 %v228
      %v847 = vunpack.c.h.b16 %v228
      %v848 = vunpack.c.l.b16 %v229
      %v849 = vunpack.c.h.b16 %v229
      %v850 = vunpack.c.l.b16 %v230
      %v851 = vunpack.c.h.b16 %v230
      %v852 = vunpack.c.l.b16 %v231
      %v853 = vunpack.c.h.b16 %v231
      %v854 = vunpack.c.l.b16 %v232
      %v855 = vunpack.c.h.b16 %v232
      %v856 = vunpack.c.l.b16 %v233
      %v857 = vunpack.c.h.b16 %v233
      %v858 = vunpack.c.l.b16 %v234
      %v859 = vunpack.c.h.b16 %v234
      %v860 = vunpack.c.l.b16 %v235
      %v861 = vunpack.c.h.b16 %v235
      %v862 = vunpack.c.l.b16 %v236
      %v863 = vunpack.c.h.b16 %v236
      %v864 = vunpack.c.l.b16 %v237
      %v865 = vunpack.c.h.b16 %v237
      %v866 = vunpack.c.l.b16 %v238
      %v867 = vunpack.c.h.b16 %v238
      %v868 = vunpack.c.l.b16 %v239
      %v869 = vunpack.c.h.b16 %v239
      %v870 = vunpack.c.l.b16 %v240
      %v871 = vunpack.c.h.b16 %v240
      %v872 = vunpack.c.l.b16 %v241
      %v873 = vunpack.c.h.b16 %v241
      %v874 = vunpack.c.l.b16 %v242
      %v875 = vunpack.c.h.b16 %v242
      %v876 = vunpack.c.l.b16 %v243
      %v877 = vunpack.c.h.b16 %v243
      %v878 = vunpack.c.l.b16 %v244
      %v879 = vunpack.c.h.b16 %v244
      %v880 = vunpack.c.l.b16 %v245
      %v881 = vunpack.c.h.b16 %v245
      %v882 = vunpack.c.l.b16 %v246
      %v883 = vunpack.c.h.b16 %v246
      %v884 = vunpack.c.l.b16 %v247
      %v885 = vunpack.c.h.b16 %v247
      %v886 = vunpack.c.l.b16 %v248
      %v887 = vunpack.c.h.b16 %v248
      %v888 = vunpack.c.l.b16 %v249
      %v889 = vunpack.c.h.b16 %v249
      %v890 = vunpack.c.l.b16 %v250
      %v891 = vunpack.c.h.b16 %v250
      %v892 = vunpack.c.l.b16 %v251
      %v893 = vunpack.c.h.b16 %v251
      %v894 = vunpack.c.l.b16 %v252
      %v895 = vunpack.c.h.b16 %v252
      %v896 = vunpack.c.l.b16 %v253
      %v897 = vunpack.c.h.b16 %v253
      %v898 = vunpack.c.l.b16 %v254
      %v899 = vunpack.c.h.b16 %v254
      %v900 = vunpack.c.l.b16 %v255
      %v901 = vunpack.c.h.b16 %v255
      %v902 = vunpack.c.l.b16 %v256
      %v903 = vunpack.c.h.b16 %v256
      %v904 = vunpack.c.l.b16 %v257
      %v905 = vunpack.c.h.b16 %v257
      %v906 = vunpack.c.l.b16 %v258
      %v907 = vunpack.c.h.b16 %v258
      %v908 = vunpack.c.l.b16 %v259
      %v909 = vunpack.c.h.b16 %v259
      %v910 = vunpack.c.l.b16 %v260
      %v911 = vunpack.c.h.b16 %v260
      %v912 = vunpack.c.l.b16 %v261
      %v913 = vunpack.c.h.b16 %v261
      %v914 = vunpack.c.l.b16 %v262
      %v915 = vunpack.c.h.b16 %v262
      %v916 = vunpack.c.l.b16 %v263
      %v917 = vunpack.c.h.b16 %v263
      %v918 = vunpack.c.l.b16 %v264
      %v919 = vunpack.c.h.b16 %v264
      %v920 = vunpack.c.l.b16 %v265
      %v921 = vunpack.c.h.b16 %v265
      %v922 = vunpack.c.l.b16 %v266
      %v923 = vunpack.c.h.b16 %v266
      %v924 = vunpack.c.l.b16 %v267
      %v925 = vunpack.c.h.b16 %v267
      %v926 = vunpack.c.l.b16 %v268
      %v927 = vunpack.c.h.b16 %v268
      %v928 = vunpack.c.l.b16 %v269
      %v929 = vunpack.c.h.b16 %v269
      %v930 = vunpack.c.l.b16 %v270
      %v931 = vunpack.c.h.b16 %v270
      %v932 = vunpack.c.l.b16 %v271
      %v933 = vunpack.c.h.b16 %v271
      %v934 = vunpack.c.l.b16 %v272
      %v935 = vunpack.c.h.b16 %v272
      %v936 = vunpack.c.l.b16 %v273
      %v937 = vunpack.c.h.b16 %v273
      %v938 = vunpack.c.l.b16 %v274
      %v939 = vunpack.c.h.b16 %v274
      %v940 = vunpack.c.l.b16 %v275
      %v941 = vunpack.c.h.b16 %v275
      %v942 = vunpack.c.l.b16 %v276
      %v943 = vunpack.c.h.b16 %v276
      %v944 = vunpack.c.l.b16 %v277
      %v945 = vunpack.c.h.b16 %v277
      %v946 = vunpack.c.l.b16 %v278
      %v947 = vunpack.c.h.b16 %v278
      %v948 = vunpack.c.l.b16 %v279
      %v949 = vunpack.c.h.b16 %v279
      %v950 = vunpack.c.l.b16 %v280
      %v951 = vunpack.c.h.b16 %v280
      %v952 = vunpack.c.l.b16 %v281
      %v953 = vunpack.c.h.b16 %v281
      %v954 = vunpack.c.l.b16 %v282
      %v955 = vunpack.c.h.b16 %v282
      %v956 = vunpack.c.l.b16 %v283
      %v957 = vunpack.c.h.b16 %v283
      %v958 = vunpack.c.l.b16 %v284
      %v959 = vunpack.c.h.b16 %v284
      %v960 = vunpack.c.l.b16 %v285
      %v961 = vunpack.c.h.b16 %v285
      %v962 = vunpack.c.l.b16 %v286
      %v963 = vunpack.c.h.b16 %v286
      %v964 = vunpack.c.l.b16 %v287
      %v965 = vunpack.c.h.b16 %v287
      %v966 = vunpack.c.l.b16 %v288
      %v967 = vunpack.c.h.b16 %v288
      %v968 = vunpack.c.l.b16 %v289
      %v969 = vunpack.c.h.b16 %v289
      %v970 = vunpack.c.l.b16 %v290
      %v971 = vunpack.c.h.b16 %v290
      %v972 = vunpack.c.l.b16 %v291
      %v973 = vunpack.c.h.b16 %v291
      %v974 = vunpack.c.l.b16 %v292
      %v975 = vunpack.c.h.b16 %v292
      %v976 = vunpack.c.l.b16 %v293
      %v977 = vunpack.c.h.b16 %v293
      %v978 = vunpack.c.l.b16 %v294
      %v979 = vunpack.c.h.b16 %v294
      %v980 = vunpack.c.l.b16 %v295
      %v981 = vunpack.c.h.b16 %v295
      %v982 = vunpack.c.l.b16 %v296
      %v983 = vunpack.c.h.b16 %v296
      %v984 = vunpack.c.l.b16 %v297
      %v985 = vunpack.c.h.b16 %v297
      %v986 = vunpack.c.l.b16 %v298
      %v987 = vunpack.c.h.b16 %v298
      %v988 = vunpack.c.l.b16 %v299
      %v989 = vunpack.c.h.b16 %v299
      %v990 = vunpack.c.l.b16 %v300
      %v991 = vunpack.c.h.b16 %v300
      %v992 = vunpack.c.l.b16 %v301
      %v993 = vunpack.c.h.b16 %v301
      %v994 = vunpack.c.l.b16 %v302
      %v995 = vunpack.c.h.b16 %v302
      %v996 = vunpack.c.l.b16 %v303
      %v997 = vunpack.c.h.b16 %v303
      %v998 = vunpack.c.l.b16 %v304
      %v999 = vunpack.c.h.b16 %v304
      %v1000 = vunpack.c.l.b16 %v305
      %v1001 = vunpack.c.h.b16 %v305
      %v1002 = vunpack.c.l.b16 %v306
      %v1003 = vunpack.c.h.b16 %v306
      %v1004 = vunpack.c.l.b16 %v307
      %v1005 = vunpack.c.h.b16 %v307
      %v1006 = vunpack.c.l.b16 %v308
      %v1007 = vunpack.c.h.b16 %v308
      %v1008 = vunpack.c.l.b16 %v309
      %v1009 = vunpack.c.h.b16 %v309
      %v1010 = vunpack.c.l.b16 %v310
      %v1011 = vunpack.c.h.b16 %v310
      %v1012 = vunpack.c.l.b16 %v311
      %v1013 = vunpack.c.h.b16 %v311
      %v1014 = vunpack.c.l.b16 %v312
      %v1015 = vunpack.c.h.b16 %v312
      %v1016 = vunpack.c.l.b16 %v313
      %v1017 = vunpack.c.h.b16 %v313
      %v1018 = vunpack.c.l.b16 %v314
      %v1019 = vunpack.c.h.b16 %v314
      %v1020 = vunpack.c.l.b16 %v315
      %v1021 = vunpack.c.h.b16 %v315
      %v1022 = vunpack.c.l.b16 %v316
      %v1023 = vunpack.c.h.b16 %v316
      %v1024 = vunpack.c.l.b16 %v317
      %v1025 = vunpack.c.h.b16 %v317
      %v1026 = vunpack.c.l.b16 %v318
      %v1027 = vunpack.c.h.b16 %v318
      %v1028 = vunpack.c.l.b16 %v319
      %v1029 = vunpack.c.h.b16 %v319
      %v1030 = vunpack.c.l.b16 %v320
      %v1031 = vunpack.c.h.b16 %v320
      %v1032 = vunpack.c.l.b16 %v321
      %v1033 = vunpack.c.h.b16 %v321
      %v1034 = vunpack.c.l.b16 %v322
      %v1035 = vunpack.c.h.b16 %v322
      %v1036 = vunpack.c.l.b16 %v323
      %v1037 = vunpack.c.h.b16 %v323
      %v1038 = vunpack.c.l.b16 %v324
      %v1039 = vunpack.c.h.b16 %v324
      %v1040 = vunpack.c.l.b16 %v325
      %v1041 = vunpack.c.h.b16 %v325
      %v1042 = vunpack.c.l.b16 %v326
      %v1043 = vunpack.c.h.b16 %v326
      %v1044 = vunpack.c.l.b16 %v327
      %v1045 = vunpack.c.h.b16 %v327
      %v1046 = vunpack.c.l.b16 %v328
      %v1047 = vunpack.c.h.b16 %v328
      %v1048 = vunpack.c.l.b16 %v329
      %v1049 = vunpack.c.h.b16 %v329
      %v1050 = vunpack.c.l.b16 %v330
      %v1051 = vunpack.c.h.b16 %v330
      %v1052 = vunpack.c.l.b16 %v331
      %v1053 = vunpack.c.h.b16 %v331
      %v1054 = vunpack.c.l.b16 %v332
      %v1055 = vunpack.c.h.b16 %v332
      %v1056 = vunpack.c.l.b16 %v333
      %v1057 = vunpack.c.h.b16 %v333
      %v1058 = vunpack.c.l.b16 %v334
      %v1059 = vunpack.c.h.b16 %v334
      %v1060 = vunpack.c.l.b16 %v335
      %v1061 = vunpack.c.h.b16 %v335
      %v1062 = vunpack.c.l.b16 %v336
      %v1063 = vunpack.c.h.b16 %v336
      %v1064 = vunpack.c.l.b16 %v337
      %v1065 = vunpack.c.h.b16 %v337
      %v1066 = vunpack.c.l.b16 %v338
      %v1067 = vunpack.c.h.b16 %v338
      %v1068 = vunpack.c.l.b16 %v339
      %v1069 = vunpack.c.h.b16 %v339
      %v1070 = vunpack.c.l.b16 %v340
      %v1071 = vunpack.c.h.b16 %v340
      %v1072 = vunpack.c.l.b16 %v341
      %v1073 = vunpack.c.h.b16 %v341
      %v1074 = vunpack.c.l.b16 %v342
      %v1075 = vunpack.c.h.b16 %v342
      %v1076 = vunpack.c.l.b16 %v343
      %v1077 = vunpack.c.h.b16 %v343
      %v1078 = vunpack.c.l.b16 %v344
      %v1079 = vunpack.c.h.b16 %v344
      %v1080 = vunpack.c.l.b16 %v345
      %v1081 = vunpack.c.h.b16 %v345
      %v1082 = vunpack.c.l.b16 %v346
      %v1083 = vunpack.c.h.b16 %v346
      %v1084 = vunpack.c.l.b16 %v347
      %v1085 = vunpack.c.h.b16 %v347
      %v1086 = vunpack.c.l.b16 %v348
      %v1087 = vunpack.c.h.b16 %v348
      %v1088 = vunpack.c.l.b16 %v349
      %v1089 = vunpack.c.h.b16 %v349
      %v1090 = vunpack.c.l.b16 %v350
      %v1091 = vunpack.c.h.b16 %v350
      %v1092 = vunpack.c.l.b16 %v351
      %v1093 = vunpack.c.h.b16 %v351
      %v1094 = vunpack.c.l.b16 %v352
      %v1095 = vunpack.c.h.b16 %v352
      %v1096 = vunpack.c.l.b16 %v353
      %v1097 = vunpack.c.h.b16 %v353
      %v1098 = vunpack.c.l.b16 %v354
      %v1099 = vunpack.c.h.b16 %v354
      %v1100 = vunpack.c.l.b16 %v355
      %v1101 = vunpack.c.h.b16 %v355
      %v1102 = vunpack.c.l.b16 %v356
      %v1103 = vunpack.c.h.b16 %v356
      %v1104 = vunpack.c.l.b16 %v357
      %v1105 = vunpack.c.h.b16 %v357
      %v1106 = vunpack.c.l.b16 %v358
      %v1107 = vunpack.c.h.b16 %v358
      %v1108 = vunpack.c.l.b16 %v359
      %v1109 = vunpack.c.h.b16 %v359
      %v1110 = vunpack.c.l.b16 %v360
      %v1111 = vunpack.c.h.b16 %v360
      %v1112 = vunpack.c.l.b16 %v361
      %v1113 = vunpack.c.h.b16 %v361
      %v1114 = vunpack.c.l.b16 %v362
      %v1115 = vunpack.c.h.b16 %v362
      %v1116 = vunpack.c.l.b16 %v363
      %v1117 = vunpack.c.h.b16 %v363
      %v1118 = vunpack.c.l.b16 %v364
      %v1119 = vunpack.c.h.b16 %v364
      %v1120 = vunpack.c.l.b16 %v365
      %v1121 = vunpack.c.h.b16 %v365
      %v1122 = vunpack.c.l.b16 %v366
      %v1123 = vunpack.c.h.b16 %v366
      %v1124 = vunpack.c.l.b16 %v367
      %v1125 = vunpack.c.h.b16 %v367
      %v1126 = vunpack.c.l.b16 %v368
      %v1127 = vunpack.c.h.b16 %v368
      %v1128 = vunpack.c.l.b16 %v369
      %v1129 = vunpack.c.h.b16 %v369
      %v1130 = vpack.c.b16 %v758, %v746
      %v1131 = vpack.c.b16 %v759, %v747
      %v1132 = vpack.c.b16 %v760, %v748
      %v1133 = vpack.c.b16 %v761, %v749
      %v1134 = vpack.c.b16 %v762, %v750
      %v1135 = vpack.c.b16 %v763, %v751
      %v1136 = vpack.c.b16 %v764, %v752
      %v1137 = vpack.c.b16 %v765, %v753
      %v1138 = vpack.c.b16 %v766, %v754
      %v1139 = vpack.c.b16 %v767, %v755
      %v1140 = vpack.c.b16 %v768, %v756
      %v1141 = vpack.c.b16 %v769, %v757
      %v1142 = vpack.c.b16 %v782, %v770
      %v1143 = vpack.c.b16 %v783, %v771
      %v1144 = vpack.c.b16 %v784, %v772
      %v1145 = vpack.c.b16 %v785, %v773
      %v1146 = vpack.c.b16 %v786, %v774
      %v1147 = vpack.c.b16 %v787, %v775
      %v1148 = vpack.c.b16 %v788, %v776
      %v1149 = vpack.c.b16 %v789, %v777
      %v1150 = vpack.c.b16 %v790, %v778
      %v1151 = vpack.c.b16 %v791, %v779
      %v1152 = vpack.c.b16 %v792, %v780
      %v1153 = vpack.c.b16 %v793, %v781
      %v1154 = vpack.c.b16 %v806, %v794
      %v1155 = vpack.c.b16 %v807, %v795
      %v1156 = vpack.c.b16 %v808, %v796
      %v1157 = vpack.c.b16 %v809, %v797
      %v1158 = vpack.c.b16 %v810, %v798
      %v1159 = vpack.c.b16 %v811, %v799
      %v1160 = vpack.c.b16 %v812, %v800
      %v1161 = vpack.c.b16 %v813, %v801
      %v1162 = vpack.c.b16 %v814, %v802
      %v1163 = vpack.c.b16 %v815, %v803
      %v1164 = vpack.c.b16 %v816, %v804
      %v1165 = vpack.c.b16 %v817, %v805
      %v1166 = vpack.c.b16 %v830, %v818
      %v1167 = vpack.c.b16 %v831, %v819
      %v1168 = vpack.c.b16 %v832, %v820
      %v1169 = vpack.c.b16 %v833, %v821
      %v1170 = vpack.c.b16 %v834, %v822
      %v1171 = vpack.c.b16 %v835, %v823
      %v1172 = vpack.c.b16 %v836, %v824
      %v1173 = vpack.c.b16 %v837, %v825
      %v1174 = vpack.c.b16 %v838, %v826
      %v1175 = vpack.c.b16 %v839, %v827
      %v1176 = vpack.c.b16 %v840, %v828
      %v1177 = vpack.c.b16 %v841, %v829
      %v1178 = vpack.c.b16 %v854, %v842
      %v1179 = vpack.c.b16 %v855, %v843
      %v1180 = vpack.c.b16 %v856, %v844
      %v1181 = vpack.c.b16 %v857, %v845
      %v1182 = vpack.c.b16 %v858, %v846
      %v1183 = vpack.c.b16 %v859, %v847
      %v1184 = vpack.c.b16 %v860, %v848
      %v1185 = vpack.c.b16 %v861, %v849
      %v1186 = vpack.c.b16 %v862, %v850
      %v1187 = vpack.c.b16 %v863, %v851
      %v1188 = vpack.c.b16 %v864, %v852
      %v1189 = vpack.c.b16 %v865, %v853
      %v1190 = vpack.c.b16 %v878, %v866
      %v1191 = vpack.c.b16 %v879, %v867
      %v1192 = vpack.c.b16 %v880, %v868
      %v1193 = vpack.c.b16 %v881, %v869
      %v1194 = vpack.c.b16 %v882, %v870
      %v1195 = vpack.c.b16 %v883, %v871
      %v1196 = vpack.c.b16 %v884, %v872
      %v1197 = vpack.c.b16 %v885, %v873
      %v1198 = vpack.c.b16 %v886, %v874
      %v1199 = vpack.c.b16 %v887, %v875
      %v1200 = vpack.c.b16 %v888, %v876
      %v1201 = vpack.c.b16 %v889, %v877
      %v1202 = vpack.c.b16 %v902, %v890
      %v1203 = vpack.c.b16 %v903, %v891
      %v1204 = vpack.c.b16 %v904, %v892
      %v1205 = vpack.c.b16 %v905, %v893
      %v1206 = vpack.c.b16 %v906, %v894
      %v1207 = vpack.c.b16 %v907, %v895
      %v1208 = vpack.c.b16 %v908, %v896
      %v1209 = vpack.c.b16 %v909, %v897
      %v1210 = vpack.c.b16 %v910, %v898
      %v1211 = vpack.c.b16 %v911, %v899
      %v1212 = vpack.c.b16 %v912, %v900
      %v1213 = vpack.c.b16 %v913, %v901
      %v1214 = vpack.c.b16 %v926, %v914
      %v1215 = vpack.c.b16 %v927, %v915
      %v1216 = vpack.c.b16 %v928, %v916
      %v1217 = vpack.c.b16 %v929, %v917
      %v1218 = vpack.c.b16 %v930, %v918
      %v1219 = vpack.c.b16 %v931, %v919
      %v1220 = vpack.c.b16 %v932, %v920
      %v1221 = vpack.c.b16 %v933, %v921
      %v1222 = vpack.c.b16 %v934, %v922
      %v1223 = vpack.c.b16 %v935, %v923
      %v1224 = vpack.c.b16 %v936, %v924
      %v1225 = vpack.c.b16 %v937, %v925
      %v1226 = vpack.c.b16 %v950, %v938
      %v1227 = vpack.c.b16 %v951, %v939
      %v1228 = vpack.c.b16 %v952, %v940
      %v1229 = vpack.c.b16 %v953, %v941
      %v1230 = vpack.c.b16 %v954, %v942
      %v1231 = vpack.c.b16 %v955, %v943
      %v1232 = vpack.c.b16 %v956, %v944
      %v1233 = vpack.c.b16 %v957, %v945
      %v1234 = vpack.c.b16 %v958, %v946
      %v1235 = vpack.c.b16 %v959, %v947
      %v1236 = vpack.c.b16 %v960, %v948
      %v1237 = vpack.c.b16 %v961, %v949
      %v1238 = vpack.c.b16 %v974, %v962
      %v1239 = vpack.c.b16 %v975, %v963
      %v1240 = vpack.c.b16 %v976, %v964
      %v1241 = vpack.c.b16 %v977, %v965
      %v1242 = vpack.c.b16 %v978, %v966
      %v1243 = vpack.c.b16 %v979, %v967
      %v1244 = vpack.c.b16 %v980, %v968
      %v1245 = vpack.c.b16 %v981, %v969
      %v1246 = vpack.c.b16 %v982, %v970
      %v1247 = vpack.c.b16 %v983, %v971
      %v1248 = vpack.c.b16 %v984, %v972
      %v1249 = vpack.c.b16 %v985, %v973
      %v1250 = vpack.c.b16 %v998, %v986
      %v1251 = vpack.c.b16 %v999, %v987
      %v1252 = vpack.c.b16 %v1000, %v988
      %v1253 = vpack.c.b16 %v1001, %v989
      %v1254 = vpack.c.b16 %v1002, %v990
      %v1255 = vpack.c.b16 %v1003, %v991
      %v1256 = vpack.c.b16 %v1004, %v992
      %v1257 = vpack.c.b16 %v1005, %v993
      %v1258 = vpack.c.b16 %v1006, %v994
      %v1259 = vpack.c.b16 %v1007, %v995
      %v1260 = vpack.c.b16 %v1008, %v996
      %v1261 = vpack.c.b16 %v1009, %v997
      %v1262 = vpack.c.b16 %v1022, %v1010
      %v1263 = vpack.c.b16 %v1023, %v1011
      %v1264 = vpack.c.b16 %v1024, %v1012
      %v1265 = vpack.c.b16 %v1025, %v1013
      %v1266 = vpack.c.b16 %v1026, %v1014
      %v1267 = vpack.c.b16 %v1027, %v1015
      %v1268 = vpack.c.b16 %v1028, %v1016
      %v1269 = vpack.c.b16 %v1029, %v1017
      %v1270 = vpack.c.b16 %v1030, %v1018
      %v1271 = vpack.c.b16 %v1031, %v1019
      %v1272 = vpack.c.b16 %v1032, %v1020
      %v1273 = vpack.c.b16 %v1033, %v1021
      %v1274 = vpack.c.b16 %v1046, %v1034
      %v1275 = vpack.c.b16 %v1047, %v1035
      %v1276 = vpack.c.b16 %v1048, %v1036
      %v1277 = vpack.c.b16 %v1049, %v1037
      %v1278 = vpack.c.b16 %v1050, %v1038
      %v1279 = vpack.c.b16 %v1051, %v1039
      %v1280 = vpack.c.b16 %v1052, %v1040
      %v1281 = vpack.c.b16 %v1053, %v1041
      %v1282 = vpack.c.b16 %v1054, %v1042
      %v1283 = vpack.c.b16 %v1055, %v1043
      %v1284 = vpack.c.b16 %v1056, %v1044
      %v1285 = vpack.c.b16 %v1057, %v1045
      %v1286 = vpack.c.b16 %v1070, %v1058
      %v1287 = vpack.c.b16 %v1071, %v1059
      %v1288 = vpack.c.b16 %v1072, %v1060
      %v1289 = vpack.c.b16 %v1073, %v1061
      %v1290 = vpack.c.b16 %v1074, %v1062
      %v1291 = vpack.c.b16 %v1075, %v1063
      %v1292 = vpack.c.b16 %v1076, %v1064
      %v1293 = vpack.c.b16 %v1077, %v1065
      %v1294 = vpack.c.b16 %v1078, %v1066
      %v1295 = vpack.c.b16 %v1079, %v1067
      %v1296 = vpack.c.b16 %v1080, %v1068
      %v1297 = vpack.c.b16 %v1081, %v1069
      %v1298 = vpack.c.b16 %v1094, %v1082
      %v1299 = vpack.c.b16 %v1095, %v1083
      %v1300 = vpack.c.b16 %v1096, %v1084
      %v1301 = vpack.c.b16 %v1097, %v1085
      %v1302 = vpack.c.b16 %v1098, %v1086
      %v1303 = vpack.c.b16 %v1099, %v1087
      %v1304 = vpack.c.b16 %v1100, %v1088
      %v1305 = vpack.c.b16 %v1101, %v1089
      %v1306 = vpack.c.b16 %v1102, %v1090
      %v1307 = vpack.c.b16 %v1103, %v1091
      %v1308 = vpack.c.b16 %v1104, %v1092
      %v1309 = vpack.c.b16 %v1105, %v1093
      %v1310 = vpack.c.b16 %v1118, %v1106
      %v1311 = vpack.c.b16 %v1119, %v1107
      %v1312 = vpack.c.b16 %v1120, %v1108
      %v1313 = vpack.c.b16 %v1121, %v1109
      %v1314 = vpack.c.b16 %v1122, %v1110
      %v1315 = vpack.c.b16 %v1123, %v1111
      %v1316 = vpack.c.b16 %v1124, %v1112
      %v1317 = vpack.c.b16 %v1125, %v1113
      %v1318 = vpack.c.b16 %v1126, %v1114
      %v1319 = vpack.c.b16 %v1127, %v1115
      %v1320 = vpack.c.b16 %v1128, %v1116
      %v1321 = vpack.c.b16 %v1129, %v1117
      %v1678 = vunpack.c.l.b16 %v370
      %v1679 = vunpack.c.l.b16 %v371
      %v1680 = vunpack.c.l.b16 %v372
      %v1681 = vunpack.c.l.b16 %v373
      %v1682 = vunpack.c.l.b16 %v374
      %v1683 = vunpack.c.l.b16 %v375
      %v1684 = vunpack.c.l.b16 %v376
      %v1685 = vunpack.c.l.b16 %v377
      %v1686 = vunpack.c.l.b16 %v378
      %v1687 = vunpack.c.l.b16 %v379
      %v1688 = vunpack.c.l.b16 %v380
      %v1689 = vunpack.c.l.b16 %v381
      %v1690 = vunpack.c.l.b16 %v382
      %v1691 = vunpack.c.l.b16 %v383
      %v1692 = vunpack.c.l.b16 %v384
      %v1693 = vunpack.c.l.b16 %v385
      %v1694 = vunpack.c.l.b16 %v386
      %v1695 = vunpack.c.l.b16 %v387
      %v1696 = vunpack.c.l.b16 %v388
      %v1697 = vunpack.c.l.b16 %v389
      %v1698 = vunpack.c.l.b16 %v390
      %v1699 = vunpack.c.l.b16 %v391
      %v1700 = vunpack.c.l.b16 %v392
      %v1701 = vunpack.c.l.b16 %v393
      %v1702 = vunpack.c.l.b16 %v394
      %v1703 = vunpack.c.l.b16 %v395
      %v1704 = vunpack.c.l.b16 %v396
      %v1705 = vunpack.c.l.b16 %v397
      %v1706 = vunpack.c.l.b16 %v398
      %v1707 = vunpack.c.l.b16 %v399
      %v1708 = vunpack.c.l.b16 %v400
      %v1709 = vunpack.c.l.b16 %v401
      %v1710 = vunpack.c.l.b16 %v402
      %v1711 = vunpack.c.l.b16 %v403
      %v1712 = vunpack.c.l.b16 %v404
      %v1713 = vunpack.c.l.b16 %v405
      %v1714 = vunpack.c.l.b16 %v406
      %v1715 = vunpack.c.l.b16 %v407
      %v1716 = vunpack.c.l.b16 %v408
      %v1717 = vunpack.c.l.b16 %v409
      %v1718 = vunpack.c.l.b16 %v410
      %v1719 = vunpack.c.l.b16 %v411
      %v1720 = vunpack.c.l.b16 %v412
      %v1721 = vunpack.c.l.b16 %v413
      %v1722 = vunpack.c.l.b16 %v414
      %v1723 = vunpack.c.l.b16 %v415
      %v1724 = vunpack.c.l.b16 %v416
      %v1725 = vunpack.c.l.b16 %v417
      %v1726 = vunpack.c.l.b16 %v418
      %v1727 = vunpack.c.l.b16 %v419
      %v1728 = vunpack.c.l.b16 %v420
      %v1729 = vunpack.c.l.b16 %v421
      %v1730 = vunpack.c.l.b16 %v422
      %v1731 = vunpack.c.l.b16 %v423
      %v1732 = vunpack.c.l.b16 %v424
      %v1733 = vunpack.c.l.b16 %v425
      %v1734 = vunpack.c.l.b16 %v426
      %v1735 = vunpack.c.l.b16 %v427
      %v1736 = vunpack.c.l.b16 %v428
      %v1737 = vunpack.c.l.b16 %v429
      %v1738 = vunpack.c.l.b16 %v430
      %v1739 = vunpack.c.l.b16 %v431
      %v1740 = vunpack.c.l.b16 %v432
      %v1741 = vunpack.c.l.b16 %v433
      %v1742 = vunpack.c.l.b16 %v434
      %v1743 = vunpack.c.l.b16 %v435
      %v1744 = vunpack.c.l.b16 %v436
      %v1745 = vunpack.c.l.b16 %v437
      %v1746 = vunpack.c.l.b16 %v438
      %v1747 = vunpack.c.l.b16 %v439
      %v1748 = vunpack.c.l.b16 %v440
      %v1749 = vunpack.c.l.b16 %v441
      %v1750 = vunpack.c.l.b16 %v442
      %v1751 = vunpack.c.l.b16 %v443
      %v1752 = vunpack.c.l.b16 %v444
      %v1753 = vunpack.c.l.b16 %v445
      %v1754 = vunpack.c.l.b16 %v446
      %v1755 = vunpack.c.l.b16 %v447
      %v1756 = vunpack.c.l.b16 %v448
      %v1757 = vunpack.c.l.b16 %v449
      %v1758 = vunpack.c.l.b16 %v450
      %v1759 = vunpack.c.l.b16 %v451
      %v1760 = vunpack.c.l.b16 %v452
      %v1761 = vunpack.c.l.b16 %v453
      %v1762 = vunpack.c.l.b16 %v454
      %v1763 = vunpack.c.l.b16 %v455
      %v1764 = vunpack.c.l.b16 %v456
      %v1765 = vunpack.c.l.b16 %v457
      %v1766 = vunpack.c.l.b16 %v458
      %v1767 = vunpack.c.l.b16 %v459
      %v1768 = vunpack.c.l.b16 %v460
      %v1769 = vunpack.c.l.b16 %v461
      %v1770 = vunpack.c.l.b16 %v462
      %v1771 = vunpack.c.l.b16 %v463
      %v1772 = vunpack.c.l.b16 %v464
      %v1773 = vunpack.c.l.b16 %v465
      %v1774 = vunpack.c.l.b16 %v466
      %v1775 = vunpack.c.l.b16 %v467
      %v1776 = vunpack.c.l.b16 %v468
      %v1777 = vunpack.c.l.b16 %v469
      %v1778 = vunpack.c.l.b16 %v470
      %v1779 = vunpack.c.l.b16 %v471
      %v1780 = vunpack.c.l.b16 %v472
      %v1781 = vunpack.c.l.b16 %v473
      %v1782 = vunpack.c.l.b16 %v474
      %v1783 = vunpack.c.l.b16 %v475
      %v1784 = vunpack.c.l.b16 %v476
      %v1785 = vunpack.c.l.b16 %v477
      %v1786 = vunpack.c.l.b16 %v478
      %v1787 = vunpack.c.l.b16 %v479
      %v1788 = vunpack.c.l.b16 %v480
      %v1789 = vunpack.c.l.b16 %v481
      %v1790 = vunpack.c.l.b16 %v482
      %v1791 = vunpack.c.l.b16 %v483
      %v1792 = vunpack.c.l.b16 %v484
      %v1793 = vunpack.c.l.b16 %v485
      %v1794 = vunpack.c.l.b16 %v486
      %v1795 = vunpack.c.l.b16 %v487
      %v1796 = vunpack.c.l.b16 %v488
      %v1797 = vunpack.c.l.b16 %v489
      %v1798 = vunpack.c.l.b16 %v490
      %v1799 = vunpack.c.l.b16 %v491
      %v1800 = vunpack.c.l.b16 %v492
      %v1801 = vunpack.c.l.b16 %v493
      %v1802 = vunpack.c.l.b16 %v494
      %v1803 = vunpack.c.l.b16 %v495
      %v1804 = vunpack.c.l.b16 %v496
      %v1805 = vunpack.c.l.b16 %v497
      %v1806 = vunpack.c.l.b16 %v498
      %v1807 = vunpack.c.l.b16 %v499
      %v1808 = vunpack.c.l.b16 %v500
      %v1809 = vunpack.c.l.b16 %v501
      %v1810 = vunpack.c.l.b16 %v502
      %v1811 = vunpack.c.l.b16 %v503
      %v1812 = vunpack.c.l.b16 %v504
      %v1813 = vunpack.c.l.b16 %v505
      %v1814 = vunpack.c.l.b16 %v506
      %v1815 = vunpack.c.l.b16 %v507
      %v1816 = vunpack.c.l.b16 %v508
      %v1817 = vunpack.c.l.b16 %v509
      %v1818 = vunpack.c.l.b16 %v510
      %v1819 = vunpack.c.l.b16 %v511
      %v1820 = vunpack.c.l.b16 %v512
      %v1821 = vunpack.c.l.b16 %v513
      %v1822 = vunpack.c.l.b16 %v514
      %v1823 = vunpack.c.l.b16 %v515
      %v1824 = vunpack.c.l.b16 %v516
      %v1825 = vunpack.c.l.b16 %v517
      %v1826 = vunpack.c.l.b16 %v518
      %v1827 = vunpack.c.l.b16 %v519
      %v1828 = vunpack.c.l.b16 %v520
      %v1829 = vunpack.c.l.b16 %v521
      %v1830 = vunpack.c.l.b16 %v522
      %v1831 = vunpack.c.l.b16 %v523
      %v1832 = vunpack.c.l.b16 %v524
      %v1833 = vunpack.c.l.b16 %v525
      %v1834 = vunpack.c.l.b16 %v526
      %v1835 = vunpack.c.l.b16 %v527
      %v1836 = vunpack.c.l.b16 %v528
      %v1837 = vunpack.c.l.b16 %v529
      %v1838 = vunpack.c.l.b16 %v530
      %v1839 = vunpack.c.l.b16 %v531
      %v1840 = vunpack.c.l.b16 %v532
      %v1841 = vunpack.c.l.b16 %v533
      %v1842 = vunpack.c.l.b16 %v534
      %v1843 = vunpack.c.l.b16 %v535
      %v1844 = vunpack.c.l.b16 %v536
      %v1845 = vunpack.c.l.b16 %v537
      %v1846 = vunpack.c.l.b16 %v538
      %v1847 = vunpack.c.l.b16 %v539
      %v1848 = vunpack.c.l.b16 %v540
      %v1849 = vunpack.c.l.b16 %v541
      %v1850 = vunpack.c.l.b16 %v542
      %v1851 = vunpack.c.l.b16 %v543
      %v1852 = vunpack.c.l.b16 %v544
      %v1853 = vunpack.c.l.b16 %v545
      %v1854 = vunpack.c.l.b16 %v546
      %v1855 = vunpack.c.l.b16 %v547
      %v1856 = vunpack.c.l.b16 %v548
      %v1857 = vunpack.c.l.b16 %v549
      %v1858 = vpack.c.b16 %v1679, %v1678
      %v1859 = vpack.c.b16 %v1681, %v1680
      %v1860 = vpack.c.b16 %v1683, %v1682
      %v1861 = vpack.c.b16 %v1685, %v1684
      %v1862 = vpack.c.b16 %v1687, %v1686
      %v1863 = vpack.c.b16 %v1689, %v1688
      %v1864 = vpack.c.b16 %v1691, %v1690
      %v1865 = vpack.c.b16 %v1693, %v1692
      %v1866 = vpack.c.b16 %v1695, %v1694
      %v1867 = vpack.c.b16 %v1697, %v1696
      %v1868 = vpack.c.b16 %v1699, %v1698
      %v1869 = vpack.c.b16 %v1701, %v1700
      %v1870 = vpack.c.b16 %v1703, %v1702
      %v1871 = vpack.c.b16 %v1705, %v1704
      %v1872 = vpack.c.b16 %v1707, %v1706
      %v1873 = vpack.c.b16 %v1709, %v1708
      %v1874 = vpack.c.b16 %v1711, %v1710
      %v1875 = vpack.c.b16 %v1713, %v1712
      %v1876 = vpack.c.b16 %v1715, %v1714
      %v1877 = vpack.c.b16 %v1717, %v1716
      %v1878 = vpack.c.b16 %v1719, %v1718
      %v1879 = vpack.c.b16 %v1721, %v1720
      %v1880 = vpack.c.b16 %v1723, %v1722
      %v1881 = vpack.c.b16 %v1725, %v1724
      %v1882 = vpack.c.b16 %v1727, %v1726
      %v1883 = vpack.c.b16 %v1729, %v1728
      %v1884 = vpack.c.b16 %v1731, %v1730
      %v1885 = vpack.c.b16 %v1733, %v1732
      %v1886 = vpack.c.b16 %v1735, %v1734
      %v1887 = vpack.c.b16 %v1737, %v1736
      %v1888 = vpack.c.b16 %v1739, %v1738
      %v1889 = vpack.c.b16 %v1741, %v1740
      %v1890 = vpack.c.b16 %v1743, %v1742
      %v1891 = vpack.c.b16 %v1745, %v1744
      %v1892 = vpack.c.b16 %v1747, %v1746
      %v1893 = vpack.c.b16 %v1749, %v1748
      %v1894 = vpack.c.b16 %v1751, %v1750
      %v1895 = vpack.c.b16 %v1753, %v1752
      %v1896 = vpack.c.b16 %v1755, %v1754
      %v1897 = vpack.c.b16 %v1757, %v1756
      %v1898 = vpack.c.b16 %v1759, %v1758
      %v1899 = vpack.c.b16 %v1761, %v1760
      %v1900 = vpack.c.b16 %v1763, %v1762
      %v1901 = vpack.c.b16 %v1765, %v1764
      %v1902 = vpack.c.b16 %v1767, %v1766
      %v1903 = vpack.c.b16 %v1769, %v1768
      %v1904 = vpack.c.b16 %v1771, %v1770
      %v1905 = vpack.c.b16 %v1773, %v1772
      %v1906 = vpack.c.b16 %v1775, %v1774
      %v1907 = vpack.c.b16 %v1777, %v1776
      %v1908 = vpack.c.b16 %v1779, %v1778
      %v1909 = vpack.c.b16 %v1781, %v1780
      %v1910 = vpack.c.b16 %v1783, %v1782
      %v1911 = vpack.c.b16 %v1785, %v1784
      %v1912 = vpack.c.b16 %v1787, %v1786
      %v1913 = vpack.c.b16 %v1789, %v1788
      %v1914 = vpack.c.b16 %v1791, %v1790
      %v1915 = vpack.c.b16 %v1793, %v1792
      %v1916 = vpack.c.b16 %v1795, %v1794
      %v1917 = vpack.c.b16 %v1797, %v1796
      %v1918 = vpack.c.b16 %v1799, %v1798
      %v1919 = vpack.c.b16 %v1801, %v1800
      %v1920 = vpack.c.b16 %v1803, %v1802
      %v1921 = vpack.c.b16 %v1805, %v1804
      %v1922 = vpack.c.b16 %v1807, %v1806
      %v1923 = vpack.c.b16 %v1809, %v1808
      %v1924 = vpack.c.b16 %v1811, %v1810
      %v1925 = vpack.c.b16 %v1813, %v1812
      %v1926 = vpack.c.b16 %v1815, %v1814
      %v1927 = vpack.c.b16 %v1817, %v1816
      %v1928 = vpack.c.b16 %v1819, %v1818
      %v1929 = vpack.c.b16 %v1821, %v1820
      %v1930 = vpack.c.b16 %v1823, %v1822
      %v1931 = vpack.c.b16 %v1825, %v1824
      %v1932 = vpack.c.b16 %v1827, %v1826
      %v1933 = vpack.c.b16 %v1829, %v1828
      %v1934 = vpack.c.b16 %v1831, %v1830
      %v1935 = vpack.c.b16 %v1833, %v1832
      %v1936 = vpack.c.b16 %v1835, %v1834
      %v1937 = vpack.c.b16 %v1837, %v1836
      %v1938 = vpack.c.b16 %v1839, %v1838
      %v1939 = vpack.c.b16 %v1841, %v1840
      %v1940 = vpack.c.b16 %v1843, %v1842
      %v1941 = vpack.c.b16 %v1845, %v1844
      %v1942 = vpack.c.b16 %v1847, %v1846
      %v1943 = vpack.c.b16 %v1849, %v1848
      %v1944 = vpack.c.b16 %v1851, %v1850
      %v1945 = vpack.c.b16 %v1853, %v1852
      %v1946 = vpack.c.b16 %v1855, %v1854
      %v1947 = vpack.c.b16 %v1857, %v1856
      %vm2038 = vcmask 261120
      %v2040 = vsel %vm2038, %v1141, 0
      %v2043 = vsel %vm2038, %v1153, 0
      %v2046 = vsel %vm2038, %v1165, 0
      %v2049 = vsel %vm2038, %v1177, 0
      %v2052 = vsel %vm2038, %v1189, 0
      %v2055 = vsel %vm2038, %v1201, 0
      %v2058 = vsel %vm2038, %v1213, 0
      %v2061 = vsel %vm2038, %v1225, 0
      %v2064 = vsel %vm2038, %v1237, 0
      %v2067 = vsel %vm2038, %v1249, 0
      %v2070 = vsel %vm2038, %v1261, 0
      %v2073 = vsel %vm2038, %v1273, 0
      %v2076 = vsel %vm2038, %v1285, 0
      %v2079 = vsel %vm2038, %v1297, 0
      %v2082 = vsel %vm2038, %v1309, 0
      %v2085 = vsel %vm2038, %v1321, 0
      %2087 = vmatpush.bf16.msra.mxu0 %v1865
      %2088 = vmatpush.bf16.msra.mxu0 %v1864
      %2089 = vmatpush.bf16.msra.mxu0 %v1863
      %2090 = vmatpush.bf16.msra.mxu0 %v1862
      %2091 = vmatpush.bf16.msra.mxu0 %v1861
      %2092 = vmatpush.bf16.msra.mxu0 %v1860
      %2093 = vmatpush.bf16.msra.mxu0 %v1859
      %2094 = vmatpush.bf16.msra.mxu0 %v1858
      %2095 = vmatmul.bf16.gmra.mxu0 %v1130
      %v2096 = vpop.f32.mrf.mxu0
      %v2097 = vadd.f32 %v552, %v2096
      %v2098 = vpop.f32.mrf.mxu0
      %v2099 = vadd.f32 %v552, %v2098
      %2100 = vmatmul.bf16.gmra.mxu0 %v1142
      %v2101 = vpop.f32.mrf.mxu0
      %v2102 = vadd.f32 %v552, %v2101
      %v2103 = vpop.f32.mrf.mxu0
      %v2104 = vadd.f32 %v552, %v2103
      %2105 = vmatmul.bf16.gmra.mxu0 %v1154
      %v2106 = vpop.f32.mrf.mxu0
      %v2107 = vadd.f32 %v552, %v2106
      %v2108 = vpop.f32.mrf.mxu0
      %v2109 = vadd.f32 %v552, %v2108
      %2110 = vmatmul.bf16.gmra.mxu0 %v1166
      %v2111 = vpop.f32.mrf.mxu0
      %v2112 = vadd.f32 %v552, %v2111
      %v2113 = vpop.f32.mrf.mxu0
      %v2114 = vadd.f32 %v552, %v2113
      %2115 = vmatmul.bf16.gmra.mxu0 %v1178
      %v2116 = vpop.f32.mrf.mxu0
      %v2117 = vadd.f32 %v552, %v2116
      %v2118 = vpop.f32.mrf.mxu0
      %v2119 = vadd.f32 %v552, %v2118
      %2120 = vmatmul.bf16.gmra.mxu0 %v1190
      %v2121 = vpop.f32.mrf.mxu0
      %v2122 = vadd.f32 %v552, %v2121
      %v2123 = vpop.f32.mrf.mxu0
      %v2124 = vadd.f32 %v552, %v2123
      %2125 = vmatmul.bf16.gmra.mxu0 %v1202
      %v2126 = vpop.f32.mrf.mxu0
      %v2127 = vadd.f32 %v552, %v2126
      %v2128 = vpop.f32.mrf.mxu0
      %v2129 = vadd.f32 %v552, %v2128
      %2130 = vmatmul.bf16.gmra.mxu0 %v1214
      %v2131 = vpop.f32.mrf.mxu0
      %v2132 = vadd.f32 %v552, %v2131
      %v2133 = vpop.f32.mrf.mxu0
      %v2134 = vadd.f32 %v552, %v2133
      %2135 = vmatmul.bf16.gmra.mxu0 %v1226
      %v2136 = vpop.f32.mrf.mxu0
      %v2137 = vadd.f32 %v552, %v2136
      %v2138 = vpop.f32.mrf.mxu0
      %v2139 = vadd.f32 %v552, %v2138
      %2140 = vmatmul.bf16.gmra.mxu0 %v1238
      %v2141 = vpop.f32.mrf.mxu0
      %v2142 = vadd.f32 %v552, %v2141
      %v2143 = vpop.f32.mrf.mxu0
      %v2144 = vadd.f32 %v552, %v2143
      %2145 = vmatmul.bf16.gmra.mxu0 %v1250
      %v2146 = vpop.f32.mrf.mxu0
      %v2147 = vadd.f32 %v552, %v2146
      %v2148 = vpop.f32.mrf.mxu0
      %v2149 = vadd.f32 %v552, %v2148
      %2150 = vmatmul.bf16.gmra.mxu0 %v1262
      %v2151 = vpop.f32.mrf.mxu0
      %v2152 = vadd.f32 %v552, %v2151
      %v2153 = vpop.f32.mrf.mxu0
      %v2154 = vadd.f32 %v552, %v2153
      %2155 = vmatmul.bf16.gmra.mxu0 %v1274
      %v2156 = vpop.f32.mrf.mxu0
      %v2157 = vadd.f32 %v552, %v2156
      %v2158 = vpop.f32.mrf.mxu0
      %v2159 = vadd.f32 %v552, %v2158
      %2160 = vmatmul.bf16.gmra.mxu0 %v1286
      %v2161 = vpop.f32.mrf.mxu0
      %v2162 = vadd.f32 %v552, %v2161
      %v2163 = vpop.f32.mrf.mxu0
      %v2164 = vadd.f32 %v552, %v2163
      %2165 = vmatmul.bf16.gmra.mxu0 %v1298
      %v2166 = vpop.f32.mrf.mxu0
      %v2167 = vadd.f32 %v552, %v2166
      %v2168 = vpop.f32.mrf.mxu0
      %v2169 = vadd.f32 %v552, %v2168
      %2170 = vmatmul.bf16.gmra.mxu0 %v1310
      %v2171 = vpop.f32.mrf.mxu0
      %v2172 = vadd.f32 %v552, %v2171
      %v2173 = vpop.f32.mrf.mxu0
      %v2174 = vadd.f32 %v552, %v2173
      %2175 = vdwg.mxu0
      %2176 = vmatpush.bf16.msra.mxu0 %v1873
      %2177 = vmatpush.bf16.msra.mxu0 %v1872
      %2178 = vmatpush.bf16.msra.mxu0 %v1871
      %2179 = vmatpush.bf16.msra.mxu0 %v1870
      %2180 = vmatpush.bf16.msra.mxu0 %v1869
      %2181 = vmatpush.bf16.msra.mxu0 %v1868
      %2182 = vmatpush.bf16.msra.mxu0 %v1867
      %2183 = vmatpush.bf16.msra.mxu0 %v1866
      %2184 = vmatmul.bf16.gmra.mxu0 %v1131
      %v2185 = vpop.f32.mrf.mxu0
      %v2186 = vadd.f32 %v2097, %v2185
      %v2187 = vpop.f32.mrf.mxu0
      %v2188 = vadd.f32 %v2099, %v2187
      %2189 = vmatmul.bf16.gmra.mxu0 %v1143
      %v2190 = vpop.f32.mrf.mxu0
      %v2191 = vadd.f32 %v2102, %v2190
      %v2192 = vpop.f32.mrf.mxu0
      %v2193 = vadd.f32 %v2104, %v2192
      %2194 = vmatmul.bf16.gmra.mxu0 %v1155
      %v2195 = vpop.f32.mrf.mxu0
      %v2196 = vadd.f32 %v2107, %v2195
      %v2197 = vpop.f32.mrf.mxu0
      %v2198 = vadd.f32 %v2109, %v2197
      %2199 = vmatmul.bf16.gmra.mxu0 %v1167
      %v2200 = vpop.f32.mrf.mxu0
      %v2201 = vadd.f32 %v2112, %v2200
      %v2202 = vpop.f32.mrf.mxu0
      %v2203 = vadd.f32 %v2114, %v2202
      %2204 = vmatmul.bf16.gmra.mxu0 %v1179
      %v2205 = vpop.f32.mrf.mxu0
      %v2206 = vadd.f32 %v2117, %v2205
      %v2207 = vpop.f32.mrf.mxu0
      %v2208 = vadd.f32 %v2119, %v2207
      %2209 = vmatmul.bf16.gmra.mxu0 %v1191
      %v2210 = vpop.f32.mrf.mxu0
      %v2211 = vadd.f32 %v2122, %v2210
      %v2212 = vpop.f32.mrf.mxu0
      %v2213 = vadd.f32 %v2124, %v2212
      %2214 = vmatmul.bf16.gmra.mxu0 %v1203
      %v2215 = vpop.f32.mrf.mxu0
      %v2216 = vadd.f32 %v2127, %v2215
      %v2217 = vpop.f32.mrf.mxu0
      %v2218 = vadd.f32 %v2129, %v2217
      %2219 = vmatmul.bf16.gmra.mxu0 %v1215
      %v2220 = vpop.f32.mrf.mxu0
      %v2221 = vadd.f32 %v2132, %v2220
      %v2222 = vpop.f32.mrf.mxu0
      %v2223 = vadd.f32 %v2134, %v2222
      %2224 = vmatmul.bf16.gmra.mxu0 %v1227
      %v2225 = vpop.f32.mrf.mxu0
      %v2226 = vadd.f32 %v2137, %v2225
      %v2227 = vpop.f32.mrf.mxu0
      %v2228 = vadd.f32 %v2139, %v2227
      %2229 = vmatmul.bf16.gmra.mxu0 %v1239
      %v2230 = vpop.f32.mrf.mxu0
      %v2231 = vadd.f32 %v2142, %v2230
      %v2232 = vpop.f32.mrf.mxu0
      %v2233 = vadd.f32 %v2144, %v2232
      %2234 = vmatmul.bf16.gmra.mxu0 %v1251
      %v2235 = vpop.f32.mrf.mxu0
      %v2236 = vadd.f32 %v2147, %v2235
      %v2237 = vpop.f32.mrf.mxu0
      %v2238 = vadd.f32 %v2149, %v2237
      %2239 = vmatmul.bf16.gmra.mxu0 %v1263
      %v2240 = vpop.f32.mrf.mxu0
      %v2241 = vadd.f32 %v2152, %v2240
      %v2242 = vpop.f32.mrf.mxu0
      %v2243 = vadd.f32 %v2154, %v2242
      %2244 = vmatmul.bf16.gmra.mxu0 %v1275
      %v2245 = vpop.f32.mrf.mxu0
      %v2246 = vadd.f32 %v2157, %v2245
      %v2247 = vpop.f32.mrf.mxu0
      %v2248 = vadd.f32 %v2159, %v2247
      %2249 = vmatmul.bf16.gmra.mxu0 %v1287
      %v2250 = vpop.f32.mrf.mxu0
      %v2251 = vadd.f32 %v2162, %v2250
      %v2252 = vpop.f32.mrf.mxu0
      %v2253 = vadd.f32 %v2164, %v2252
      %2254 = vmatmul.bf16.gmra.mxu0 %v1299
      %v2255 = vpop.f32.mrf.mxu0
      %v2256 = vadd.f32 %v2167, %v2255
      %v2257 = vpop.f32.mrf.mxu0
      %v2258 = vadd.f32 %v2169, %v2257
      %2259 = vmatmul.bf16.gmra.mxu0 %v1311
      %v2260 = vpop.f32.mrf.mxu0
      %v2261 = vadd.f32 %v2172, %v2260
      %v2262 = vpop.f32.mrf.mxu0
      %v2263 = vadd.f32 %v2174, %v2262
      %2264 = vdwg.mxu0
      %2265 = vmatpush.bf16.msra.mxu0 %v1881
      %2266 = vmatpush.bf16.msra.mxu0 %v1880
      %2267 = vmatpush.bf16.msra.mxu0 %v1879
      %2268 = vmatpush.bf16.msra.mxu0 %v1878
      %2269 = vmatpush.bf16.msra.mxu0 %v1877
      %2270 = vmatpush.bf16.msra.mxu0 %v1876
      %2271 = vmatpush.bf16.msra.mxu0 %v1875
      %2272 = vmatpush.bf16.msra.mxu0 %v1874
      %2273 = vmatmul.bf16.gmra.mxu0 %v1132
      %v2274 = vpop.f32.mrf.mxu0
      %v2275 = vadd.f32 %v2186, %v2274
      %v2276 = vpop.f32.mrf.mxu0
      %v2277 = vadd.f32 %v2188, %v2276
      %2278 = vmatmul.bf16.gmra.mxu0 %v1144
      %v2279 = vpop.f32.mrf.mxu0
      %v2280 = vadd.f32 %v2191, %v2279
      %v2281 = vpop.f32.mrf.mxu0
      %v2282 = vadd.f32 %v2193, %v2281
      %2283 = vmatmul.bf16.gmra.mxu0 %v1156
      %v2284 = vpop.f32.mrf.mxu0
      %v2285 = vadd.f32 %v2196, %v2284
      %v2286 = vpop.f32.mrf.mxu0
      %v2287 = vadd.f32 %v2198, %v2286
      %2288 = vmatmul.bf16.gmra.mxu0 %v1168
      %v2289 = vpop.f32.mrf.mxu0
      %v2290 = vadd.f32 %v2201, %v2289
      %v2291 = vpop.f32.mrf.mxu0
      %v2292 = vadd.f32 %v2203, %v2291
      %2293 = vmatmul.bf16.gmra.mxu0 %v1180
      %v2294 = vpop.f32.mrf.mxu0
      %v2295 = vadd.f32 %v2206, %v2294
      %v2296 = vpop.f32.mrf.mxu0
      %v2297 = vadd.f32 %v2208, %v2296
      %2298 = vmatmul.bf16.gmra.mxu0 %v1192
      %v2299 = vpop.f32.mrf.mxu0
      %v2300 = vadd.f32 %v2211, %v2299
      %v2301 = vpop.f32.mrf.mxu0
      %v2302 = vadd.f32 %v2213, %v2301
      %2303 = vmatmul.bf16.gmra.mxu0 %v1204
      %v2304 = vpop.f32.mrf.mxu0
      %v2305 = vadd.f32 %v2216, %v2304
      %v2306 = vpop.f32.mrf.mxu0
      %v2307 = vadd.f32 %v2218, %v2306
      %2308 = vmatmul.bf16.gmra.mxu0 %v1216
      %v2309 = vpop.f32.mrf.mxu0
      %v2310 = vadd.f32 %v2221, %v2309
      %v2311 = vpop.f32.mrf.mxu0
      %v2312 = vadd.f32 %v2223, %v2311
      %2313 = vmatmul.bf16.gmra.mxu0 %v1228
      %v2314 = vpop.f32.mrf.mxu0
      %v2315 = vadd.f32 %v2226, %v2314
      %v2316 = vpop.f32.mrf.mxu0
      %v2317 = vadd.f32 %v2228, %v2316
      %2318 = vmatmul.bf16.gmra.mxu0 %v1240
      %v2319 = vpop.f32.mrf.mxu0
      %v2320 = vadd.f32 %v2231, %v2319
      %v2321 = vpop.f32.mrf.mxu0
      %v2322 = vadd.f32 %v2233, %v2321
      %2323 = vmatmul.bf16.gmra.mxu0 %v1252
      %v2324 = vpop.f32.mrf.mxu0
      %v2325 = vadd.f32 %v2236, %v2324
      %v2326 = vpop.f32.mrf.mxu0
      %v2327 = vadd.f32 %v2238, %v2326
      %2328 = vmatmul.bf16.gmra.mxu0 %v1264
      %v2329 = vpop.f32.mrf.mxu0
      %v2330 = vadd.f32 %v2241, %v2329
      %v2331 = vpop.f32.mrf.mxu0
      %v2332 = vadd.f32 %v2243, %v2331
      %2333 = vmatmul.bf16.gmra.mxu0 %v1276
      %v2334 = vpop.f32.mrf.mxu0
      %v2335 = vadd.f32 %v2246, %v2334
      %v2336 = vpop.f32.mrf.mxu0
      %v2337 = vadd.f32 %v2248, %v2336
      %2338 = vmatmul.bf16.gmra.mxu0 %v1288
      %v2339 = vpop.f32.mrf.mxu0
      %v2340 = vadd.f32 %v2251, %v2339
      %v2341 = vpop.f32.mrf.mxu0
      %v2342 = vadd.f32 %v2253, %v2341
      %2343 = vmatmul.bf16.gmra.mxu0 %v1300
      %v2344 = vpop.f32.mrf.mxu0
      %v2345 = vadd.f32 %v2256, %v2344
      %v2346 = vpop.f32.mrf.mxu0
      %v2347 = vadd.f32 %v2258, %v2346
      %2348 = vmatmul.bf16.gmra.mxu0 %v1312
      %v2349 = vpop.f32.mrf.mxu0
      %v2350 = vadd.f32 %v2261, %v2349
      %v2351 = vpop.f32.mrf.mxu0
      %v2352 = vadd.f32 %v2263, %v2351
      %2353 = vdwg.mxu0
      %2354 = vmatpush.bf16.msra.mxu0 %v1889
      %2355 = vmatpush.bf16.msra.mxu0 %v1888
      %2356 = vmatpush.bf16.msra.mxu0 %v1887
      %2357 = vmatpush.bf16.msra.mxu0 %v1886
      %2358 = vmatpush.bf16.msra.mxu0 %v1885
      %2359 = vmatpush.bf16.msra.mxu0 %v1884
      %2360 = vmatpush.bf16.msra.mxu0 %v1883
      %2361 = vmatpush.bf16.msra.mxu0 %v1882
      %2362 = vmatmul.bf16.gmra.mxu0 %v1133
      %v2363 = vpop.f32.mrf.mxu0
      %v2364 = vadd.f32 %v2275, %v2363
      %v2365 = vpop.f32.mrf.mxu0
      %v2366 = vadd.f32 %v2277, %v2365
      %2367 = vmatmul.bf16.gmra.mxu0 %v1145
      %v2368 = vpop.f32.mrf.mxu0
      %v2369 = vadd.f32 %v2280, %v2368
      %v2370 = vpop.f32.mrf.mxu0
      %v2371 = vadd.f32 %v2282, %v2370
      %2372 = vmatmul.bf16.gmra.mxu0 %v1157
      %v2373 = vpop.f32.mrf.mxu0
      %v2374 = vadd.f32 %v2285, %v2373
      %v2375 = vpop.f32.mrf.mxu0
      %v2376 = vadd.f32 %v2287, %v2375
      %2377 = vmatmul.bf16.gmra.mxu0 %v1169
      %v2378 = vpop.f32.mrf.mxu0
      %v2379 = vadd.f32 %v2290, %v2378
      %v2380 = vpop.f32.mrf.mxu0
      %v2381 = vadd.f32 %v2292, %v2380
      %2382 = vmatmul.bf16.gmra.mxu0 %v1181
      %v2383 = vpop.f32.mrf.mxu0
      %v2384 = vadd.f32 %v2295, %v2383
      %v2385 = vpop.f32.mrf.mxu0
      %v2386 = vadd.f32 %v2297, %v2385
      %2387 = vmatmul.bf16.gmra.mxu0 %v1193
      %v2388 = vpop.f32.mrf.mxu0
      %v2389 = vadd.f32 %v2300, %v2388
      %v2390 = vpop.f32.mrf.mxu0
      %v2391 = vadd.f32 %v2302, %v2390
      %2392 = vmatmul.bf16.gmra.mxu0 %v1205
      %v2393 = vpop.f32.mrf.mxu0
      %v2394 = vadd.f32 %v2305, %v2393
      %v2395 = vpop.f32.mrf.mxu0
      %v2396 = vadd.f32 %v2307, %v2395
      %2397 = vmatmul.bf16.gmra.mxu0 %v1217
      %v2398 = vpop.f32.mrf.mxu0
      %v2399 = vadd.f32 %v2310, %v2398
      %v2400 = vpop.f32.mrf.mxu0
      %v2401 = vadd.f32 %v2312, %v2400
      %2402 = vmatmul.bf16.gmra.mxu0 %v1229
      %v2403 = vpop.f32.mrf.mxu0
      %v2404 = vadd.f32 %v2315, %v2403
      %v2405 = vpop.f32.mrf.mxu0
      %v2406 = vadd.f32 %v2317, %v2405
      %2407 = vmatmul.bf16.gmra.mxu0 %v1241
      %v2408 = vpop.f32.mrf.mxu0
      %v2409 = vadd.f32 %v2320, %v2408
      %v2410 = vpop.f32.mrf.mxu0
      %v2411 = vadd.f32 %v2322, %v2410
      %2412 = vmatmul.bf16.gmra.mxu0 %v1253
      %v2413 = vpop.f32.mrf.mxu0
      %v2414 = vadd.f32 %v2325, %v2413
      %v2415 = vpop.f32.mrf.mxu0
      %v2416 = vadd.f32 %v2327, %v2415
      %2417 = vmatmul.bf16.gmra.mxu0 %v1265
      %v2418 = vpop.f32.mrf.mxu0
      %v2419 = vadd.f32 %v2330, %v2418
      %v2420 = vpop.f32.mrf.mxu0
      %v2421 = vadd.f32 %v2332, %v2420
      %2422 = vmatmul.bf16.gmra.mxu0 %v1277
      %v2423 = vpop.f32.mrf.mxu0
      %v2424 = vadd.f32 %v2335, %v2423
      %v2425 = vpop.f32.mrf.mxu0
      %v2426 = vadd.f32 %v2337, %v2425
      %2427 = vmatmul.bf16.gmra.mxu0 %v1289
      %v2428 = vpop.f32.mrf.mxu0
      %v2429 = vadd.f32 %v2340, %v2428
      %v2430 = vpop.f32.mrf.mxu0
      %v2431 = vadd.f32 %v2342, %v2430
      %2432 = vmatmul.bf16.gmra.mxu0 %v1301
      %v2433 = vpop.f32.mrf.mxu0
      %v2434 = vadd.f32 %v2345, %v2433
      %v2435 = vpop.f32.mrf.mxu0
      %v2436 = vadd.f32 %v2347, %v2435
      %2437 = vmatmul.bf16.gmra.mxu0 %v1313
      %v2438 = vpop.f32.mrf.mxu0
      %v2439 = vadd.f32 %v2350, %v2438
      %v2440 = vpop.f32.mrf.mxu0
      %v2441 = vadd.f32 %v2352, %v2440
      %2442 = vdwg.mxu0
      %2443 = vmatpush.bf16.msra.mxu0 %v1897
      %2444 = vmatpush.bf16.msra.mxu0 %v1896
      %2445 = vmatpush.bf16.msra.mxu0 %v1895
      %2446 = vmatpush.bf16.msra.mxu0 %v1894
      %2447 = vmatpush.bf16.msra.mxu0 %v1893
      %2448 = vmatpush.bf16.msra.mxu0 %v1892
      %2449 = vmatpush.bf16.msra.mxu0 %v1891
      %2450 = vmatpush.bf16.msra.mxu0 %v1890
      %2451 = vmatmul.bf16.gmra.mxu0 %v1134
      %v2452 = vpop.f32.mrf.mxu0
      %v2453 = vadd.f32 %v2364, %v2452
      %v2454 = vpop.f32.mrf.mxu0
      %v2455 = vadd.f32 %v2366, %v2454
      %2456 = vmatmul.bf16.gmra.mxu0 %v1146
      %v2457 = vpop.f32.mrf.mxu0
      %v2458 = vadd.f32 %v2369, %v2457
      %v2459 = vpop.f32.mrf.mxu0
      %v2460 = vadd.f32 %v2371, %v2459
      %2461 = vmatmul.bf16.gmra.mxu0 %v1158
      %v2462 = vpop.f32.mrf.mxu0
      %v2463 = vadd.f32 %v2374, %v2462
      %v2464 = vpop.f32.mrf.mxu0
      %v2465 = vadd.f32 %v2376, %v2464
      %2466 = vmatmul.bf16.gmra.mxu0 %v1170
      %v2467 = vpop.f32.mrf.mxu0
      %v2468 = vadd.f32 %v2379, %v2467
      %v2469 = vpop.f32.mrf.mxu0
      %v2470 = vadd.f32 %v2381, %v2469
      %2471 = vmatmul.bf16.gmra.mxu0 %v1182
      %v2472 = vpop.f32.mrf.mxu0
      %v2473 = vadd.f32 %v2384, %v2472
      %v2474 = vpop.f32.mrf.mxu0
      %v2475 = vadd.f32 %v2386, %v2474
      %2476 = vmatmul.bf16.gmra.mxu0 %v1194
      %v2477 = vpop.f32.mrf.mxu0
      %v2478 = vadd.f32 %v2389, %v2477
      %v2479 = vpop.f32.mrf.mxu0
      %v2480 = vadd.f32 %v2391, %v2479
      %2481 = vmatmul.bf16.gmra.mxu0 %v1206
      %v2482 = vpop.f32.mrf.mxu0
      %v2483 = vadd.f32 %v2394, %v2482
      %v2484 = vpop.f32.mrf.mxu0
      %v2485 = vadd.f32 %v2396, %v2484
      %2486 = vmatmul.bf16.gmra.mxu0 %v1218
      %v2487 = vpop.f32.mrf.mxu0
      %v2488 = vadd.f32 %v2399, %v2487
      %v2489 = vpop.f32.mrf.mxu0
      %v2490 = vadd.f32 %v2401, %v2489
      %2491 = vmatmul.bf16.gmra.mxu0 %v1230
      %v2492 = vpop.f32.mrf.mxu0
      %v2493 = vadd.f32 %v2404, %v2492
      %v2494 = vpop.f32.mrf.mxu0
      %v2495 = vadd.f32 %v2406, %v2494
      %2496 = vmatmul.bf16.gmra.mxu0 %v1242
      %v2497 = vpop.f32.mrf.mxu0
      %v2498 = vadd.f32 %v2409, %v2497
      %v2499 = vpop.f32.mrf.mxu0
      %v2500 = vadd.f32 %v2411, %v2499
      %2501 = vmatmul.bf16.gmra.mxu0 %v1254
      %v2502 = vpop.f32.mrf.mxu0
      %v2503 = vadd.f32 %v2414, %v2502
      %v2504 = vpop.f32.mrf.mxu0
      %v2505 = vadd.f32 %v2416, %v2504
      %2506 = vmatmul.bf16.gmra.mxu0 %v1266
      %v2507 = vpop.f32.mrf.mxu0
      %v2508 = vadd.f32 %v2419, %v2507
      %v2509 = vpop.f32.mrf.mxu0
      %v2510 = vadd.f32 %v2421, %v2509
      %2511 = vmatmul.bf16.gmra.mxu0 %v1278
      %v2512 = vpop.f32.mrf.mxu0
      %v2513 = vadd.f32 %v2424, %v2512
      %v2514 = vpop.f32.mrf.mxu0
      %v2515 = vadd.f32 %v2426, %v2514
      %2516 = vmatmul.bf16.gmra.mxu0 %v1290
      %v2517 = vpop.f32.mrf.mxu0
      %v2518 = vadd.f32 %v2429, %v2517
      %v2519 = vpop.f32.mrf.mxu0
      %v2520 = vadd.f32 %v2431, %v2519
      %2521 = vmatmul.bf16.gmra.mxu0 %v1302
      %v2522 = vpop.f32.mrf.mxu0
      %v2523 = vadd.f32 %v2434, %v2522
      %v2524 = vpop.f32.mrf.mxu0
      %v2525 = vadd.f32 %v2436, %v2524
      %2526 = vmatmul.bf16.gmra.mxu0 %v1314
      %v2527 = vpop.f32.mrf.mxu0
      %v2528 = vadd.f32 %v2439, %v2527
      %v2529 = vpop.f32.mrf.mxu0
      %v2530 = vadd.f32 %v2441, %v2529
      %2531 = vdwg.mxu0
      %2532 = vmatpush.bf16.msra.mxu0 %v1905
      %2533 = vmatpush.bf16.msra.mxu0 %v1904
      %2534 = vmatpush.bf16.msra.mxu0 %v1903
      %2535 = vmatpush.bf16.msra.mxu0 %v1902
      %2536 = vmatpush.bf16.msra.mxu0 %v1901
      %2537 = vmatpush.bf16.msra.mxu0 %v1900
      %2538 = vmatpush.bf16.msra.mxu0 %v1899
      %2539 = vmatpush.bf16.msra.mxu0 %v1898
      %2540 = vmatmul.bf16.gmra.mxu0 %v1135
      %v2541 = vpop.f32.mrf.mxu0
      %v2542 = vadd.f32 %v2453, %v2541
      %v2543 = vpop.f32.mrf.mxu0
      %v2544 = vadd.f32 %v2455, %v2543
      %2545 = vmatmul.bf16.gmra.mxu0 %v1147
      %v2546 = vpop.f32.mrf.mxu0
      %v2547 = vadd.f32 %v2458, %v2546
      %v2548 = vpop.f32.mrf.mxu0
      %v2549 = vadd.f32 %v2460, %v2548
      %2550 = vmatmul.bf16.gmra.mxu0 %v1159
      %v2551 = vpop.f32.mrf.mxu0
      %v2552 = vadd.f32 %v2463, %v2551
      %v2553 = vpop.f32.mrf.mxu0
      %v2554 = vadd.f32 %v2465, %v2553
      %2555 = vmatmul.bf16.gmra.mxu0 %v1171
      %v2556 = vpop.f32.mrf.mxu0
      %v2557 = vadd.f32 %v2468, %v2556
      %v2558 = vpop.f32.mrf.mxu0
      %v2559 = vadd.f32 %v2470, %v2558
      %2560 = vmatmul.bf16.gmra.mxu0 %v1183
      %v2561 = vpop.f32.mrf.mxu0
      %v2562 = vadd.f32 %v2473, %v2561
      %v2563 = vpop.f32.mrf.mxu0
      %v2564 = vadd.f32 %v2475, %v2563
      %2565 = vmatmul.bf16.gmra.mxu0 %v1195
      %v2566 = vpop.f32.mrf.mxu0
      %v2567 = vadd.f32 %v2478, %v2566
      %v2568 = vpop.f32.mrf.mxu0
      %v2569 = vadd.f32 %v2480, %v2568
      %2570 = vmatmul.bf16.gmra.mxu0 %v1207
      %v2571 = vpop.f32.mrf.mxu0
      %v2572 = vadd.f32 %v2483, %v2571
      %v2573 = vpop.f32.mrf.mxu0
      %v2574 = vadd.f32 %v2485, %v2573
      %2575 = vmatmul.bf16.gmra.mxu0 %v1219
      %v2576 = vpop.f32.mrf.mxu0
      %v2577 = vadd.f32 %v2488, %v2576
      %v2578 = vpop.f32.mrf.mxu0
      %v2579 = vadd.f32 %v2490, %v2578
      %2580 = vmatmul.bf16.gmra.mxu0 %v1231
      %v2581 = vpop.f32.mrf.mxu0
      %v2582 = vadd.f32 %v2493, %v2581
      %v2583 = vpop.f32.mrf.mxu0
      %v2584 = vadd.f32 %v2495, %v2583
      %2585 = vmatmul.bf16.gmra.mxu0 %v1243
      %v2586 = vpop.f32.mrf.mxu0
      %v2587 = vadd.f32 %v2498, %v2586
      %v2588 = vpop.f32.mrf.mxu0
      %v2589 = vadd.f32 %v2500, %v2588
      %2590 = vmatmul.bf16.gmra.mxu0 %v1255
      %v2591 = vpop.f32.mrf.mxu0
      %v2592 = vadd.f32 %v2503, %v2591
      %v2593 = vpop.f32.mrf.mxu0
      %v2594 = vadd.f32 %v2505, %v2593
      %2595 = vmatmul.bf16.gmra.mxu0 %v1267
      %v2596 = vpop.f32.mrf.mxu0
      %v2597 = vadd.f32 %v2508, %v2596
      %v2598 = vpop.f32.mrf.mxu0
      %v2599 = vadd.f32 %v2510, %v2598
      %2600 = vmatmul.bf16.gmra.mxu0 %v1279
      %v2601 = vpop.f32.mrf.mxu0
      %v2602 = vadd.f32 %v2513, %v2601
      %v2603 = vpop.f32.mrf.mxu0
      %v2604 = vadd.f32 %v2515, %v2603
      %2605 = vmatmul.bf16.gmra.mxu0 %v1291
      %v2606 = vpop.f32.mrf.mxu0
      %v2607 = vadd.f32 %v2518, %v2606
      %v2608 = vpop.f32.mrf.mxu0
      %v2609 = vadd.f32 %v2520, %v2608
      %2610 = vmatmul.bf16.gmra.mxu0 %v1303
      %v2611 = vpop.f32.mrf.mxu0
      %v2612 = vadd.f32 %v2523, %v2611
      %v2613 = vpop.f32.mrf.mxu0
      %v2614 = vadd.f32 %v2525, %v2613
      %2615 = vmatmul.bf16.gmra.mxu0 %v1315
      %v2616 = vpop.f32.mrf.mxu0
      %v2617 = vadd.f32 %v2528, %v2616
      %v2618 = vpop.f32.mrf.mxu0
      %v2619 = vadd.f32 %v2530, %v2618
      %2620 = vdwg.mxu0
      %2621 = vmatpush.bf16.msra.mxu0 %v1913
      %2622 = vmatpush.bf16.msra.mxu0 %v1912
      %2623 = vmatpush.bf16.msra.mxu0 %v1911
      %2624 = vmatpush.bf16.msra.mxu0 %v1910
      %2625 = vmatpush.bf16.msra.mxu0 %v1909
      %2626 = vmatpush.bf16.msra.mxu0 %v1908
      %2627 = vmatpush.bf16.msra.mxu0 %v1907
      %2628 = vmatpush.bf16.msra.mxu0 %v1906
      %2629 = vmatmul.bf16.gmra.mxu0 %v1136
      %v2630 = vpop.f32.mrf.mxu0
      %v2631 = vadd.f32 %v2542, %v2630
      %v2632 = vpop.f32.mrf.mxu0
      %v2633 = vadd.f32 %v2544, %v2632
      %2634 = vmatmul.bf16.gmra.mxu0 %v1148
      %v2635 = vpop.f32.mrf.mxu0
      %v2636 = vadd.f32 %v2547, %v2635
      %v2637 = vpop.f32.mrf.mxu0
      %v2638 = vadd.f32 %v2549, %v2637
      %2639 = vmatmul.bf16.gmra.mxu0 %v1160
      %v2640 = vpop.f32.mrf.mxu0
      %v2641 = vadd.f32 %v2552, %v2640
      %v2642 = vpop.f32.mrf.mxu0
      %v2643 = vadd.f32 %v2554, %v2642
      %2644 = vmatmul.bf16.gmra.mxu0 %v1172
      %v2645 = vpop.f32.mrf.mxu0
      %v2646 = vadd.f32 %v2557, %v2645
      %v2647 = vpop.f32.mrf.mxu0
      %v2648 = vadd.f32 %v2559, %v2647
      %2649 = vmatmul.bf16.gmra.mxu0 %v1184
      %v2650 = vpop.f32.mrf.mxu0
      %v2651 = vadd.f32 %v2562, %v2650
      %v2652 = vpop.f32.mrf.mxu0
      %v2653 = vadd.f32 %v2564, %v2652
      %2654 = vmatmul.bf16.gmra.mxu0 %v1196
      %v2655 = vpop.f32.mrf.mxu0
      %v2656 = vadd.f32 %v2567, %v2655
      %v2657 = vpop.f32.mrf.mxu0
      %v2658 = vadd.f32 %v2569, %v2657
      %2659 = vmatmul.bf16.gmra.mxu0 %v1208
      %v2660 = vpop.f32.mrf.mxu0
      %v2661 = vadd.f32 %v2572, %v2660
      %v2662 = vpop.f32.mrf.mxu0
      %v2663 = vadd.f32 %v2574, %v2662
      %2664 = vmatmul.bf16.gmra.mxu0 %v1220
      %v2665 = vpop.f32.mrf.mxu0
      %v2666 = vadd.f32 %v2577, %v2665
      %v2667 = vpop.f32.mrf.mxu0
      %v2668 = vadd.f32 %v2579, %v2667
      %2669 = vmatmul.bf16.gmra.mxu0 %v1232
      %v2670 = vpop.f32.mrf.mxu0
      %v2671 = vadd.f32 %v2582, %v2670
      %v2672 = vpop.f32.mrf.mxu0
      %v2673 = vadd.f32 %v2584, %v2672
      %2674 = vmatmul.bf16.gmra.mxu0 %v1244
      %v2675 = vpop.f32.mrf.mxu0
      %v2676 = vadd.f32 %v2587, %v2675
      %v2677 = vpop.f32.mrf.mxu0
      %v2678 = vadd.f32 %v2589, %v2677
      %2679 = vmatmul.bf16.gmra.mxu0 %v1256
      %v2680 = vpop.f32.mrf.mxu0
      %v2681 = vadd.f32 %v2592, %v2680
      %v2682 = vpop.f32.mrf.mxu0
      %v2683 = vadd.f32 %v2594, %v2682
      %2684 = vmatmul.bf16.gmra.mxu0 %v1268
      %v2685 = vpop.f32.mrf.mxu0
      %v2686 = vadd.f32 %v2597, %v2685
      %v2687 = vpop.f32.mrf.mxu0
      %v2688 = vadd.f32 %v2599, %v2687
      %2689 = vmatmul.bf16.gmra.mxu0 %v1280
      %v2690 = vpop.f32.mrf.mxu0
      %v2691 = vadd.f32 %v2602, %v2690
      %v2692 = vpop.f32.mrf.mxu0
      %v2693 = vadd.f32 %v2604, %v2692
      %2694 = vmatmul.bf16.gmra.mxu0 %v1292
      %v2695 = vpop.f32.mrf.mxu0
      %v2696 = vadd.f32 %v2607, %v2695
      %v2697 = vpop.f32.mrf.mxu0
      %v2698 = vadd.f32 %v2609, %v2697
      %2699 = vmatmul.bf16.gmra.mxu0 %v1304
      %v2700 = vpop.f32.mrf.mxu0
      %v2701 = vadd.f32 %v2612, %v2700
      %v2702 = vpop.f32.mrf.mxu0
      %v2703 = vadd.f32 %v2614, %v2702
      %2704 = vmatmul.bf16.gmra.mxu0 %v1316
      %v2705 = vpop.f32.mrf.mxu0
      %v2706 = vadd.f32 %v2617, %v2705
      %v2707 = vpop.f32.mrf.mxu0
      %v2708 = vadd.f32 %v2619, %v2707
      %2709 = vdwg.mxu0
      %2710 = vmatpush.bf16.msra.mxu0 %v1921
      %2711 = vmatpush.bf16.msra.mxu0 %v1920
      %2712 = vmatpush.bf16.msra.mxu0 %v1919
      %2713 = vmatpush.bf16.msra.mxu0 %v1918
      %2714 = vmatpush.bf16.msra.mxu0 %v1917
      %2715 = vmatpush.bf16.msra.mxu0 %v1916
      %2716 = vmatpush.bf16.msra.mxu0 %v1915
      %2717 = vmatpush.bf16.msra.mxu0 %v1914
      %2718 = vmatmul.bf16.gmra.mxu0 %v1137
      %v2719 = vpop.f32.mrf.mxu0
      %v2720 = vadd.f32 %v2631, %v2719
      %v2721 = vpop.f32.mrf.mxu0
      %v2722 = vadd.f32 %v2633, %v2721
      %2723 = vmatmul.bf16.gmra.mxu0 %v1149
      %v2724 = vpop.f32.mrf.mxu0
      %v2725 = vadd.f32 %v2636, %v2724
      %v2726 = vpop.f32.mrf.mxu0
      %v2727 = vadd.f32 %v2638, %v2726
      %2728 = vmatmul.bf16.gmra.mxu0 %v1161
      %v2729 = vpop.f32.mrf.mxu0
      %v2730 = vadd.f32 %v2641, %v2729
      %v2731 = vpop.f32.mrf.mxu0
      %v2732 = vadd.f32 %v2643, %v2731
      %2733 = vmatmul.bf16.gmra.mxu0 %v1173
      %v2734 = vpop.f32.mrf.mxu0
      %v2735 = vadd.f32 %v2646, %v2734
      %v2736 = vpop.f32.mrf.mxu0
      %v2737 = vadd.f32 %v2648, %v2736
      %2738 = vmatmul.bf16.gmra.mxu0 %v1185
      %v2739 = vpop.f32.mrf.mxu0
      %v2740 = vadd.f32 %v2651, %v2739
      %v2741 = vpop.f32.mrf.mxu0
      %v2742 = vadd.f32 %v2653, %v2741
      %2743 = vmatmul.bf16.gmra.mxu0 %v1197
      %v2744 = vpop.f32.mrf.mxu0
      %v2745 = vadd.f32 %v2656, %v2744
      %v2746 = vpop.f32.mrf.mxu0
      %v2747 = vadd.f32 %v2658, %v2746
      %2748 = vmatmul.bf16.gmra.mxu0 %v1209
      %v2749 = vpop.f32.mrf.mxu0
      %v2750 = vadd.f32 %v2661, %v2749
      %v2751 = vpop.f32.mrf.mxu0
      %v2752 = vadd.f32 %v2663, %v2751
      %2753 = vmatmul.bf16.gmra.mxu0 %v1221
      %v2754 = vpop.f32.mrf.mxu0
      %v2755 = vadd.f32 %v2666, %v2754
      %v2756 = vpop.f32.mrf.mxu0
      %v2757 = vadd.f32 %v2668, %v2756
      %2758 = vmatmul.bf16.gmra.mxu0 %v1233
      %v2759 = vpop.f32.mrf.mxu0
      %v2760 = vadd.f32 %v2671, %v2759
      %v2761 = vpop.f32.mrf.mxu0
      %v2762 = vadd.f32 %v2673, %v2761
      %2763 = vmatmul.bf16.gmra.mxu0 %v1245
      %v2764 = vpop.f32.mrf.mxu0
      %v2765 = vadd.f32 %v2676, %v2764
      %v2766 = vpop.f32.mrf.mxu0
      %v2767 = vadd.f32 %v2678, %v2766
      %2768 = vmatmul.bf16.gmra.mxu0 %v1257
      %v2769 = vpop.f32.mrf.mxu0
      %v2770 = vadd.f32 %v2681, %v2769
      %v2771 = vpop.f32.mrf.mxu0
      %v2772 = vadd.f32 %v2683, %v2771
      %2773 = vmatmul.bf16.gmra.mxu0 %v1269
      %v2774 = vpop.f32.mrf.mxu0
      %v2775 = vadd.f32 %v2686, %v2774
      %v2776 = vpop.f32.mrf.mxu0
      %v2777 = vadd.f32 %v2688, %v2776
      %2778 = vmatmul.bf16.gmra.mxu0 %v1281
      %v2779 = vpop.f32.mrf.mxu0
      %v2780 = vadd.f32 %v2691, %v2779
      %v2781 = vpop.f32.mrf.mxu0
      %v2782 = vadd.f32 %v2693, %v2781
      %2783 = vmatmul.bf16.gmra.mxu0 %v1293
      %v2784 = vpop.f32.mrf.mxu0
      %v2785 = vadd.f32 %v2696, %v2784
      %v2786 = vpop.f32.mrf.mxu0
      %v2787 = vadd.f32 %v2698, %v2786
      %2788 = vmatmul.bf16.gmra.mxu0 %v1305
      %v2789 = vpop.f32.mrf.mxu0
      %v2790 = vadd.f32 %v2701, %v2789
      %v2791 = vpop.f32.mrf.mxu0
      %v2792 = vadd.f32 %v2703, %v2791
      %2793 = vmatmul.bf16.gmra.mxu0 %v1317
      %v2794 = vpop.f32.mrf.mxu0
      %v2795 = vadd.f32 %v2706, %v2794
      %v2796 = vpop.f32.mrf.mxu0
      %v2797 = vadd.f32 %v2708, %v2796
      %2798 = vdwg.mxu0
      %2799 = vmatpush.bf16.msra.mxu0 %v1929
      %2800 = vmatpush.bf16.msra.mxu0 %v1928
      %2801 = vmatpush.bf16.msra.mxu0 %v1927
      %2802 = vmatpush.bf16.msra.mxu0 %v1926
      %2803 = vmatpush.bf16.msra.mxu0 %v1925
      %2804 = vmatpush.bf16.msra.mxu0 %v1924
      %2805 = vmatpush.bf16.msra.mxu0 %v1923
      %2806 = vmatpush.bf16.msra.mxu0 %v1922
      %2807 = vmatmul.bf16.gmra.mxu0 %v1138
      %v2808 = vpop.f32.mrf.mxu0
      %v2809 = vadd.f32 %v2720, %v2808
      %v2810 = vpop.f32.mrf.mxu0
      %v2811 = vadd.f32 %v2722, %v2810
      %2812 = vmatmul.bf16.gmra.mxu0 %v1150
      %v2813 = vpop.f32.mrf.mxu0
      %v2814 = vadd.f32 %v2725, %v2813
      %v2815 = vpop.f32.mrf.mxu0
      %v2816 = vadd.f32 %v2727, %v2815
      %2817 = vmatmul.bf16.gmra.mxu0 %v1162
      %v2818 = vpop.f32.mrf.mxu0
      %v2819 = vadd.f32 %v2730, %v2818
      %v2820 = vpop.f32.mrf.mxu0
      %v2821 = vadd.f32 %v2732, %v2820
      %2822 = vmatmul.bf16.gmra.mxu0 %v1174
      %v2823 = vpop.f32.mrf.mxu0
      %v2824 = vadd.f32 %v2735, %v2823
      %v2825 = vpop.f32.mrf.mxu0
      %v2826 = vadd.f32 %v2737, %v2825
      %2827 = vmatmul.bf16.gmra.mxu0 %v1186
      %v2828 = vpop.f32.mrf.mxu0
      %v2829 = vadd.f32 %v2740, %v2828
      %v2830 = vpop.f32.mrf.mxu0
      %v2831 = vadd.f32 %v2742, %v2830
      %2832 = vmatmul.bf16.gmra.mxu0 %v1198
      %v2833 = vpop.f32.mrf.mxu0
      %v2834 = vadd.f32 %v2745, %v2833
      %v2835 = vpop.f32.mrf.mxu0
      %v2836 = vadd.f32 %v2747, %v2835
      %2837 = vmatmul.bf16.gmra.mxu0 %v1210
      %v2838 = vpop.f32.mrf.mxu0
      %v2839 = vadd.f32 %v2750, %v2838
      %v2840 = vpop.f32.mrf.mxu0
      %v2841 = vadd.f32 %v2752, %v2840
      %2842 = vmatmul.bf16.gmra.mxu0 %v1222
      %v2843 = vpop.f32.mrf.mxu0
      %v2844 = vadd.f32 %v2755, %v2843
      %v2845 = vpop.f32.mrf.mxu0
      %v2846 = vadd.f32 %v2757, %v2845
      %2847 = vmatmul.bf16.gmra.mxu0 %v1234
      %v2848 = vpop.f32.mrf.mxu0
      %v2849 = vadd.f32 %v2760, %v2848
      %v2850 = vpop.f32.mrf.mxu0
      %v2851 = vadd.f32 %v2762, %v2850
      %2852 = vmatmul.bf16.gmra.mxu0 %v1246
      %v2853 = vpop.f32.mrf.mxu0
      %v2854 = vadd.f32 %v2765, %v2853
      %v2855 = vpop.f32.mrf.mxu0
      %v2856 = vadd.f32 %v2767, %v2855
      %2857 = vmatmul.bf16.gmra.mxu0 %v1258
      %v2858 = vpop.f32.mrf.mxu0
      %v2859 = vadd.f32 %v2770, %v2858
      %v2860 = vpop.f32.mrf.mxu0
      %v2861 = vadd.f32 %v2772, %v2860
      %2862 = vmatmul.bf16.gmra.mxu0 %v1270
      %v2863 = vpop.f32.mrf.mxu0
      %v2864 = vadd.f32 %v2775, %v2863
      %v2865 = vpop.f32.mrf.mxu0
      %v2866 = vadd.f32 %v2777, %v2865
      %2867 = vmatmul.bf16.gmra.mxu0 %v1282
      %v2868 = vpop.f32.mrf.mxu0
      %v2869 = vadd.f32 %v2780, %v2868
      %v2870 = vpop.f32.mrf.mxu0
      %v2871 = vadd.f32 %v2782, %v2870
      %2872 = vmatmul.bf16.gmra.mxu0 %v1294
      %v2873 = vpop.f32.mrf.mxu0
      %v2874 = vadd.f32 %v2785, %v2873
      %v2875 = vpop.f32.mrf.mxu0
      %v2876 = vadd.f32 %v2787, %v2875
      %2877 = vmatmul.bf16.gmra.mxu0 %v1306
      %v2878 = vpop.f32.mrf.mxu0
      %v2879 = vadd.f32 %v2790, %v2878
      %v2880 = vpop.f32.mrf.mxu0
      %v2881 = vadd.f32 %v2792, %v2880
      %2882 = vmatmul.bf16.gmra.mxu0 %v1318
      %v2883 = vpop.f32.mrf.mxu0
      %v2884 = vadd.f32 %v2795, %v2883
      %v2885 = vpop.f32.mrf.mxu0
      %v2886 = vadd.f32 %v2797, %v2885
      %2887 = vdwg.mxu0
      %2888 = vmatpush.bf16.msra.mxu0 %v1937
      %2889 = vmatpush.bf16.msra.mxu0 %v1936
      %2890 = vmatpush.bf16.msra.mxu0 %v1935
      %2891 = vmatpush.bf16.msra.mxu0 %v1934
      %2892 = vmatpush.bf16.msra.mxu0 %v1933
      %2893 = vmatpush.bf16.msra.mxu0 %v1932
      %2894 = vmatpush.bf16.msra.mxu0 %v1931
      %2895 = vmatpush.bf16.msra.mxu0 %v1930
      %2896 = vmatmul.bf16.gmra.mxu0 %v1139
      %v2897 = vpop.f32.mrf.mxu0
      %v2898 = vadd.f32 %v2809, %v2897
      %v2899 = vpop.f32.mrf.mxu0
      %v2900 = vadd.f32 %v2811, %v2899
      %2901 = vmatmul.bf16.gmra.mxu0 %v1151
      %v2902 = vpop.f32.mrf.mxu0
      %v2903 = vadd.f32 %v2814, %v2902
      %v2904 = vpop.f32.mrf.mxu0
      %v2905 = vadd.f32 %v2816, %v2904
      %2906 = vmatmul.bf16.gmra.mxu0 %v1163
      %v2907 = vpop.f32.mrf.mxu0
      %v2908 = vadd.f32 %v2819, %v2907
      %v2909 = vpop.f32.mrf.mxu0
      %v2910 = vadd.f32 %v2821, %v2909
      %2911 = vmatmul.bf16.gmra.mxu0 %v1175
      %v2912 = vpop.f32.mrf.mxu0
      %v2913 = vadd.f32 %v2824, %v2912
      %v2914 = vpop.f32.mrf.mxu0
      %v2915 = vadd.f32 %v2826, %v2914
      %2916 = vmatmul.bf16.gmra.mxu0 %v1187
      %v2917 = vpop.f32.mrf.mxu0
      %v2918 = vadd.f32 %v2829, %v2917
      %v2919 = vpop.f32.mrf.mxu0
      %v2920 = vadd.f32 %v2831, %v2919
      %2921 = vmatmul.bf16.gmra.mxu0 %v1199
      %v2922 = vpop.f32.mrf.mxu0
      %v2923 = vadd.f32 %v2834, %v2922
      %v2924 = vpop.f32.mrf.mxu0
      %v2925 = vadd.f32 %v2836, %v2924
      %2926 = vmatmul.bf16.gmra.mxu0 %v1211
      %v2927 = vpop.f32.mrf.mxu0
      %v2928 = vadd.f32 %v2839, %v2927
      %v2929 = vpop.f32.mrf.mxu0
      %v2930 = vadd.f32 %v2841, %v2929
      %2931 = vmatmul.bf16.gmra.mxu0 %v1223
      %v2932 = vpop.f32.mrf.mxu0
      %v2933 = vadd.f32 %v2844, %v2932
      %v2934 = vpop.f32.mrf.mxu0
      %v2935 = vadd.f32 %v2846, %v2934
      %2936 = vmatmul.bf16.gmra.mxu0 %v1235
      %v2937 = vpop.f32.mrf.mxu0
      %v2938 = vadd.f32 %v2849, %v2937
      %v2939 = vpop.f32.mrf.mxu0
      %v2940 = vadd.f32 %v2851, %v2939
      %2941 = vmatmul.bf16.gmra.mxu0 %v1247
      %v2942 = vpop.f32.mrf.mxu0
      %v2943 = vadd.f32 %v2854, %v2942
      %v2944 = vpop.f32.mrf.mxu0
      %v2945 = vadd.f32 %v2856, %v2944
      %2946 = vmatmul.bf16.gmra.mxu0 %v1259
      %v2947 = vpop.f32.mrf.mxu0
      %v2948 = vadd.f32 %v2859, %v2947
      %v2949 = vpop.f32.mrf.mxu0
      %v2950 = vadd.f32 %v2861, %v2949
      %2951 = vmatmul.bf16.gmra.mxu0 %v1271
      %v2952 = vpop.f32.mrf.mxu0
      %v2953 = vadd.f32 %v2864, %v2952
      %v2954 = vpop.f32.mrf.mxu0
      %v2955 = vadd.f32 %v2866, %v2954
      %2956 = vmatmul.bf16.gmra.mxu0 %v1283
      %v2957 = vpop.f32.mrf.mxu0
      %v2958 = vadd.f32 %v2869, %v2957
      %v2959 = vpop.f32.mrf.mxu0
      %v2960 = vadd.f32 %v2871, %v2959
      %2961 = vmatmul.bf16.gmra.mxu0 %v1295
      %v2962 = vpop.f32.mrf.mxu0
      %v2963 = vadd.f32 %v2874, %v2962
      %v2964 = vpop.f32.mrf.mxu0
      %v2965 = vadd.f32 %v2876, %v2964
      %2966 = vmatmul.bf16.gmra.mxu0 %v1307
      %v2967 = vpop.f32.mrf.mxu0
      %v2968 = vadd.f32 %v2879, %v2967
      %v2969 = vpop.f32.mrf.mxu0
      %v2970 = vadd.f32 %v2881, %v2969
      %2971 = vmatmul.bf16.gmra.mxu0 %v1319
      %v2972 = vpop.f32.mrf.mxu0
      %v2973 = vadd.f32 %v2884, %v2972
      %v2974 = vpop.f32.mrf.mxu0
      %v2975 = vadd.f32 %v2886, %v2974
      %2976 = vdwg.mxu0
      %2977 = vmatpush.bf16.msra.mxu0 %v1945
      %2978 = vmatpush.bf16.msra.mxu0 %v1944
      %2979 = vmatpush.bf16.msra.mxu0 %v1943
      %2980 = vmatpush.bf16.msra.mxu0 %v1942
      %2981 = vmatpush.bf16.msra.mxu0 %v1941
      %2982 = vmatpush.bf16.msra.mxu0 %v1940
      %2983 = vmatpush.bf16.msra.mxu0 %v1939
      %2984 = vmatpush.bf16.msra.mxu0 %v1938
      %2985 = vmatmul.bf16.gmra.mxu0 %v1140
      %v2986 = vpop.f32.mrf.mxu0
      %v2987 = vadd.f32 %v2898, %v2986
      %v2988 = vpop.f32.mrf.mxu0
      %v2989 = vadd.f32 %v2900, %v2988
      %2990 = vmatmul.bf16.gmra.mxu0 %v1152
      %v2991 = vpop.f32.mrf.mxu0
      %v2992 = vadd.f32 %v2903, %v2991
      %v2993 = vpop.f32.mrf.mxu0
      %v2994 = vadd.f32 %v2905, %v2993
      %2995 = vmatmul.bf16.gmra.mxu0 %v1164
      %v2996 = vpop.f32.mrf.mxu0
      %v2997 = vadd.f32 %v2908, %v2996
      %v2998 = vpop.f32.mrf.mxu0
      %v2999 = vadd.f32 %v2910, %v2998
      %3000 = vmatmul.bf16.gmra.mxu0 %v1176
      %v3001 = vpop.f32.mrf.mxu0
      %v3002 = vadd.f32 %v2913, %v3001
      %v3003 = vpop.f32.mrf.mxu0
      %v3004 = vadd.f32 %v2915, %v3003
      %3005 = vmatmul.bf16.gmra.mxu0 %v1188
      %v3006 = vpop.f32.mrf.mxu0
      %v3007 = vadd.f32 %v2918, %v3006
      %v3008 = vpop.f32.mrf.mxu0
      %v3009 = vadd.f32 %v2920, %v3008
      %3010 = vmatmul.bf16.gmra.mxu0 %v1200
      %v3011 = vpop.f32.mrf.mxu0
      %v3012 = vadd.f32 %v2923, %v3011
      %v3013 = vpop.f32.mrf.mxu0
      %v3014 = vadd.f32 %v2925, %v3013
      %3015 = vmatmul.bf16.gmra.mxu0 %v1212
      %v3016 = vpop.f32.mrf.mxu0
      %v3017 = vadd.f32 %v2928, %v3016
      %v3018 = vpop.f32.mrf.mxu0
      %v3019 = vadd.f32 %v2930, %v3018
      %3020 = vmatmul.bf16.gmra.mxu0 %v1224
      %v3021 = vpop.f32.mrf.mxu0
      %v3022 = vadd.f32 %v2933, %v3021
      %v3023 = vpop.f32.mrf.mxu0
      %v3024 = vadd.f32 %v2935, %v3023
      %3025 = vmatmul.bf16.gmra.mxu0 %v1236
      %v3026 = vpop.f32.mrf.mxu0
      %v3027 = vadd.f32 %v2938, %v3026
      %v3028 = vpop.f32.mrf.mxu0
      %v3029 = vadd.f32 %v2940, %v3028
      %3030 = vmatmul.bf16.gmra.mxu0 %v1248
      %v3031 = vpop.f32.mrf.mxu0
      %v3032 = vadd.f32 %v2943, %v3031
      %v3033 = vpop.f32.mrf.mxu0
      %v3034 = vadd.f32 %v2945, %v3033
      %3035 = vmatmul.bf16.gmra.mxu0 %v1260
      %v3036 = vpop.f32.mrf.mxu0
      %v3037 = vadd.f32 %v2948, %v3036
      %v3038 = vpop.f32.mrf.mxu0
      %v3039 = vadd.f32 %v2950, %v3038
      %3040 = vmatmul.bf16.gmra.mxu0 %v1272
      %v3041 = vpop.f32.mrf.mxu0
      %v3042 = vadd.f32 %v2953, %v3041
      %v3043 = vpop.f32.mrf.mxu0
      %v3044 = vadd.f32 %v2955, %v3043
      %3045 = vmatmul.bf16.gmra.mxu0 %v1284
      %v3046 = vpop.f32.mrf.mxu0
      %v3047 = vadd.f32 %v2958, %v3046
      %v3048 = vpop.f32.mrf.mxu0
      %v3049 = vadd.f32 %v2960, %v3048
      %3050 = vmatmul.bf16.gmra.mxu0 %v1296
      %v3051 = vpop.f32.mrf.mxu0
      %v3052 = vadd.f32 %v2963, %v3051
      %v3053 = vpop.f32.mrf.mxu0
      %v3054 = vadd.f32 %v2965, %v3053
      %3055 = vmatmul.bf16.gmra.mxu0 %v1308
      %v3056 = vpop.f32.mrf.mxu0
      %v3057 = vadd.f32 %v2968, %v3056
      %v3058 = vpop.f32.mrf.mxu0
      %v3059 = vadd.f32 %v2970, %v3058
      %3060 = vmatmul.bf16.gmra.mxu0 %v1320
      %v3061 = vpop.f32.mrf.mxu0
      %v3062 = vadd.f32 %v2973, %v3061
      %v3063 = vpop.f32.mrf.mxu0
      %v3064 = vadd.f32 %v2975, %v3063
      %3065 = vdwg.mxu0
      %3066 = vmatpush.bf16.msra.mxu0 0
      %3067 = vmatpush.bf16.msra.mxu0 0
      %3068 = vmatpush.bf16.msra.mxu0 0
      %3069 = vmatpush.bf16.msra.mxu0 0
      %3070 = vmatpush.bf16.msra.mxu0 0
      %3071 = vmatpush.bf16.msra.mxu0 0
      %3072 = vmatpush.bf16.msra.mxu0 %v1947
      %3073 = vmatpush.bf16.msra.mxu0 %v1946
      %3074 = vmatmul.bf16.gmra.mxu0 %v2040
      %v3075 = vpop.f32.mrf.mxu0
      %v3076 = vadd.f32 %v2987, %v3075
      %v3077 = vpop.f32.mrf.mxu0
      %v3078 = vadd.f32 %v2989, %v3077
      %3079 = vmatmul.bf16.gmra.mxu0 %v2043
      %v3080 = vpop.f32.mrf.mxu0
      %v3081 = vadd.f32 %v2992, %v3080
      %v3082 = vpop.f32.mrf.mxu0
      %v3083 = vadd.f32 %v2994, %v3082
      %3084 = vmatmul.bf16.gmra.mxu0 %v2046
      %v3085 = vpop.f32.mrf.mxu0
      %v3086 = vadd.f32 %v2997, %v3085
      %v3087 = vpop.f32.mrf.mxu0
      %v3088 = vadd.f32 %v2999, %v3087
      %3089 = vmatmul.bf16.gmra.mxu0 %v2049
      %v3090 = vpop.f32.mrf.mxu0
      %v3091 = vadd.f32 %v3002, %v3090
      %v3092 = vpop.f32.mrf.mxu0
      %v3093 = vadd.f32 %v3004, %v3092
      %3094 = vmatmul.bf16.gmra.mxu0 %v2052
      %v3095 = vpop.f32.mrf.mxu0
      %v3096 = vadd.f32 %v3007, %v3095
      %v3097 = vpop.f32.mrf.mxu0
      %v3098 = vadd.f32 %v3009, %v3097
      %3099 = vmatmul.bf16.gmra.mxu0 %v2055
      %v3100 = vpop.f32.mrf.mxu0
      %v3101 = vadd.f32 %v3012, %v3100
      %v3102 = vpop.f32.mrf.mxu0
      %v3103 = vadd.f32 %v3014, %v3102
      %3104 = vmatmul.bf16.gmra.mxu0 %v2058
      %v3105 = vpop.f32.mrf.mxu0
      %v3106 = vadd.f32 %v3017, %v3105
      %v3107 = vpop.f32.mrf.mxu0
      %v3108 = vadd.f32 %v3019, %v3107
      %3109 = vmatmul.bf16.gmra.mxu0 %v2061
      %v3110 = vpop.f32.mrf.mxu0
      %v3111 = vadd.f32 %v3022, %v3110
      %v3112 = vpop.f32.mrf.mxu0
      %v3113 = vadd.f32 %v3024, %v3112
      %3114 = vmatmul.bf16.gmra.mxu0 %v2064
      %v3115 = vpop.f32.mrf.mxu0
      %v3116 = vadd.f32 %v3027, %v3115
      %v3117 = vpop.f32.mrf.mxu0
      %v3118 = vadd.f32 %v3029, %v3117
      %3119 = vmatmul.bf16.gmra.mxu0 %v2067
      %v3120 = vpop.f32.mrf.mxu0
      %v3121 = vadd.f32 %v3032, %v3120
      %v3122 = vpop.f32.mrf.mxu0
      %v3123 = vadd.f32 %v3034, %v3122
      %3124 = vmatmul.bf16.gmra.mxu0 %v2070
      %v3125 = vpop.f32.mrf.mxu0
      %v3126 = vadd.f32 %v3037, %v3125
      %v3127 = vpop.f32.mrf.mxu0
      %v3128 = vadd.f32 %v3039, %v3127
      %3129 = vmatmul.bf16.gmra.mxu0 %v2073
      %v3130 = vpop.f32.mrf.mxu0
      %v3131 = vadd.f32 %v3042, %v3130
      %v3132 = vpop.f32.mrf.mxu0
      %v3133 = vadd.f32 %v3044, %v3132
      %3134 = vmatmul.bf16.gmra.mxu0 %v2076
      %v3135 = vpop.f32.mrf.mxu0
      %v3136 = vadd.f32 %v3047, %v3135
      %v3137 = vpop.f32.mrf.mxu0
      %v3138 = vadd.f32 %v3049, %v3137
      %3139 = vmatmul.bf16.gmra.mxu0 %v2079
      %v3140 = vpop.f32.mrf.mxu0
      %v3141 = vadd.f32 %v3052, %v3140
      %v3142 = vpop.f32.mrf.mxu0
      %v3143 = vadd.f32 %v3054, %v3142
      %3144 = vmatmul.bf16.gmra.mxu0 %v2082
      %v3145 = vpop.f32.mrf.mxu0
      %v3146 = vadd.f32 %v3057, %v3145
      %v3147 = vpop.f32.mrf.mxu0
      %v3148 = vadd.f32 %v3059, %v3147
      %3149 = vmatmul.bf16.gmra.mxu0 %v2085
      %v3150 = vpop.f32.mrf.mxu0
      %v3151 = vadd.f32 %v3062, %v3150
      %v3152 = vpop.f32.mrf.mxu0
      %v3153 = vadd.f32 %v3064, %v3152
      %3154 = vdwg.mxu0
      %vm3155 = vcmp.ge.f32.partialorder %v3076, 0.0
      %vm3156 = vcmp.ge.f32.partialorder %v3078, 0.0
      %vm3157 = vcmp.ge.f32.partialorder %v3081, 0.0
      %vm3158 = vcmp.ge.f32.partialorder %v3083, 0.0
      %vm3159 = vcmp.ge.f32.partialorder %v3086, 0.0
      %vm3160 = vcmp.ge.f32.partialorder %v3088, 0.0
      %vm3161 = vcmp.ge.f32.partialorder %v3091, 0.0
      %vm3162 = vcmp.ge.f32.partialorder %v3093, 0.0
      %vm3163 = vcmp.ge.f32.partialorder %v3096, 0.0
      %vm3164 = vcmp.ge.f32.partialorder %v3098, 0.0
      %vm3165 = vcmp.ge.f32.partialorder %v3101, 0.0
      %vm3166 = vcmp.ge.f32.partialorder %v3103, 0.0
      %vm3167 = vcmp.ge.f32.partialorder %v3106, 0.0
      %vm3168 = vcmp.ge.f32.partialorder %v3108, 0.0
      %vm3169 = vcmp.ge.f32.partialorder %v3111, 0.0
      %vm3170 = vcmp.ge.f32.partialorder %v3113, 0.0
      %vm3171 = vcmp.ge.f32.partialorder %v3116, 0.0
      %vm3172 = vcmp.ge.f32.partialorder %v3118, 0.0
      %vm3173 = vcmp.ge.f32.partialorder %v3121, 0.0
      %vm3174 = vcmp.ge.f32.partialorder %v3123, 0.0
      %vm3175 = vcmp.ge.f32.partialorder %v3126, 0.0
      %vm3176 = vcmp.ge.f32.partialorder %v3128, 0.0
      %vm3177 = vcmp.ge.f32.partialorder %v3131, 0.0
      %vm3178 = vcmp.ge.f32.partialorder %v3133, 0.0
      %vm3179 = vcmp.ge.f32.partialorder %v3136, 0.0
      %vm3180 = vcmp.ge.f32.partialorder %v3138, 0.0
      %vm3181 = vcmp.ge.f32.partialorder %v3141, 0.0
      %vm3182 = vcmp.ge.f32.partialorder %v3143, 0.0
      %vm3183 = vcmp.ge.f32.partialorder %v3146, 0.0
      %vm3184 = vcmp.ge.f32.partialorder %v3148, 0.0
      %vm3185 = vcmp.ge.f32.partialorder %v3151, 0.0
      %vm3186 = vcmp.ge.f32.partialorder %v3153, 0.0
      %v3187 = vmul.f32 %v3076, 0.0004
      %v3188 = vmul.f32 %v3078, 0.0004
      %v3189 = vmul.f32 %v3081, 0.0004
      %v3190 = vmul.f32 %v3083, 0.0004
      %v3191 = vmul.f32 %v3086, 0.0004
      %v3192 = vmul.f32 %v3088, 0.0004
      %v3193 = vmul.f32 %v3091, 0.0004
      %v3194 = vmul.f32 %v3093, 0.0004
      %v3195 = vmul.f32 %v3096, 0.0004
      %v3196 = vmul.f32 %v3098, 0.0004
      %v3197 = vmul.f32 %v3101, 0.0004
      %v3198 = vmul.f32 %v3103, 0.0004
      %v3199 = vmul.f32 %v3106, 0.0004
      %v3200 = vmul.f32 %v3108, 0.0004
      %v3201 = vmul.f32 %v3111, 0.0004
      %v3202 = vmul.f32 %v3113, 0.0004
      %v3203 = vmul.f32 %v3116, 0.0004
      %v3204 = vmul.f32 %v3118, 0.0004
      %v3205 = vmul.f32 %v3121, 0.0004
      %v3206 = vmul.f32 %v3123, 0.0004
      %v3207 = vmul.f32 %v3126, 0.0004
      %v3208 = vmul.f32 %v3128, 0.0004
      %v3209 = vmul.f32 %v3131, 0.0004
      %v3210 = vmul.f32 %v3133, 0.0004
      %v3211 = vmul.f32 %v3136, 0.0004
      %v3212 = vmul.f32 %v3138, 0.0004
      %v3213 = vmul.f32 %v3141, 0.0004
      %v3214 = vmul.f32 %v3143, 0.0004
      %v3215 = vmul.f32 %v3146, 0.0004
      %v3216 = vmul.f32 %v3148, 0.0004
      %v3217 = vmul.f32 %v3151, 0.0004
      %v3218 = vmul.f32 %v3153, 0.0004
      %v3219 = vsel %vm3155, %v3076, %v3187
      %v3220 = vsel %vm3156, %v3078, %v3188
      %v3221 = vsel %vm3157, %v3081, %v3189
      %v3222 = vsel %vm3158, %v3083, %v3190
      %v3223 = vsel %vm3159, %v3086, %v3191
      %v3224 = vsel %vm3160, %v3088, %v3192
      %v3225 = vsel %vm3161, %v3091, %v3193
      %v3226 = vsel %vm3162, %v3093, %v3194
      %v3227 = vsel %vm3163, %v3096, %v3195
      %v3228 = vsel %vm3164, %v3098, %v3196
      %v3229 = vsel %vm3165, %v3101, %v3197
      %v3230 = vsel %vm3166, %v3103, %v3198
      %v3231 = vsel %vm3167, %v3106, %v3199
      %v3232 = vsel %vm3168, %v3108, %v3200
      %v3233 = vsel %vm3169, %v3111, %v3201
      %v3234 = vsel %vm3170, %v3113, %v3202
      %v3235 = vsel %vm3171, %v3116, %v3203
      %v3236 = vsel %vm3172, %v3118, %v3204
      %v3237 = vsel %vm3173, %v3121, %v3205
      %v3238 = vsel %vm3174, %v3123, %v3206
      %v3239 = vsel %vm3175, %v3126, %v3207
      %v3240 = vsel %vm3176, %v3128, %v3208
      %v3241 = vsel %vm3177, %v3131, %v3209
      %v3242 = vsel %vm3178, %v3133, %v3210
      %v3243 = vsel %vm3179, %v3136, %v3211
      %v3244 = vsel %vm3180, %v3138, %v3212
      %v3245 = vsel %vm3181, %v3141, %v3213
      %v3246 = vsel %vm3182, %v3143, %v3214
      %v3247 = vsel %vm3183, %v3146, %v3215
      %v3248 = vsel %vm3184, %v3148, %v3216
      %v3249 = vsel %vm3185, %v3151, %v3217
      %v3250 = vsel %vm3186, %v3153, %v3218
      %v3251 = vpack.c.bf16 %v3219, %v3219
      %v3252 = vpack.c.bf16 %v3220, %v3220
      %v3253 = vpack.c.bf16 %v3221, %v3221
      %v3254 = vpack.c.bf16 %v3222, %v3222
      %v3255 = vpack.c.bf16 %v3223, %v3223
      %v3256 = vpack.c.bf16 %v3224, %v3224
      %v3257 = vpack.c.bf16 %v3225, %v3225
      %v3258 = vpack.c.bf16 %v3226, %v3226
      %v3259 = vpack.c.bf16 %v3227, %v3227
      %v3260 = vpack.c.bf16 %v3228, %v3228
      %v3261 = vpack.c.bf16 %v3229, %v3229
      %v3262 = vpack.c.bf16 %v3230, %v3230
      %v3263 = vpack.c.bf16 %v3231, %v3231
      %v3264 = vpack.c.bf16 %v3232, %v3232
      %v3265 = vpack.c.bf16 %v3233, %v3233
      %v3266 = vpack.c.bf16 %v3234, %v3234
      %v3267 = vpack.c.bf16 %v3235, %v3235
      %v3268 = vpack.c.bf16 %v3236, %v3236
      %v3269 = vpack.c.bf16 %v3237, %v3237
      %v3270 = vpack.c.bf16 %v3238, %v3238
      %v3271 = vpack.c.bf16 %v3239, %v3239
      %v3272 = vpack.c.bf16 %v3240, %v3240
      %v3273 = vpack.c.bf16 %v3241, %v3241
      %v3274 = vpack.c.bf16 %v3242, %v3242
      %v3275 = vpack.c.bf16 %v3243, %v3243
      %v3276 = vpack.c.bf16 %v3244, %v3244
      %v3277 = vpack.c.bf16 %v3245, %v3245
      %v3278 = vpack.c.bf16 %v3246, %v3246
      %v3279 = vpack.c.bf16 %v3247, %v3247
      %v3280 = vpack.c.bf16 %v3248, %v3248
      %v3281 = vpack.c.bf16 %v3249, %v3249
      %v3282 = vpack.c.bf16 %v3250, %v3250
      %3283 = vst [vmem:[%s175] sm:$0xf] %v3251
      %3284 = vst [vmem:[%s175 + $0x4] sm:$0xf] %v3252
      %3285 = vst [vmem:[%s175 + $0x8] sm:$0xf] %v3253
      %3286 = vst [vmem:[%s175 + $0xc] sm:$0xf] %v3254
      %3287 = vst [vmem:[%s175 + $0x10] sm:$0xf] %v3255
      %3288 = vst [vmem:[%s175 + $0x14] sm:$0xf] %v3256
      %3289 = vst [vmem:[%s175 + $0x18] sm:$0xf] %v3257
      %3290 = vst [vmem:[%s175 + $0x1c] sm:$0xf] %v3258
      %3291 = vst [vmem:[%s175 + $0x20] sm:$0xf] %v3259
      %3292 = vst [vmem:[%s175 + $0x24] sm:$0xf] %v3260
      %3293 = vst [vmem:[%s175 + $0x28] sm:$0xf] %v3261
      %3294 = vst [vmem:[%s175 + $0x2c] sm:$0xf] %v3262
      %3295 = vst [vmem:[%s175 + $0x30] sm:$0xf] %v3263
      %3296 = vst [vmem:[%s175 + $0x34] sm:$0xf] %v3264
      %3297 = vst [vmem:[%s175 + $0x38] sm:$0xf] %v3265
      %3298 = vst [vmem:[%s175 + $0x3c] sm:$0xf] %v3266
      %3299 = vst [vmem:[%s175 + $0x40] sm:$0xf] %v3267
      %3300 = vst [vmem:[%s175 + $0x44] sm:$0xf] %v3268
      %3301 = vst [vmem:[%s175 + $0x48] sm:$0xf] %v3269
      %3302 = vst [vmem:[%s175 + $0x4c] sm:$0xf] %v3270
      %3303 = vst [vmem:[%s175 + $0x50] sm:$0xf] %v3271
      %3304 = vst [vmem:[%s175 + $0x54] sm:$0xf] %v3272
      %3305 = vst [vmem:[%s175 + $0x58] sm:$0xf] %v3273
      %3306 = vst [vmem:[%s175 + $0x5c] sm:$0xf] %v3274
      %3307 = vst [vmem:[%s175 + $0x60] sm:$0xf] %v3275
      %3308 = vst [vmem:[%s175 + $0x64] sm:$0xf] %v3276
      %3309 = vst [vmem:[%s175 + $0x68] sm:$0xf] %v3277
      %3310 = vst [vmem:[%s175 + $0x6c] sm:$0xf] %v3278
      %3311 = vst [vmem:[%s175 + $0x70] sm:$0xf] %v3279
      %3312 = vst [vmem:[%s175 + $0x74] sm:$0xf] %v3280
      %3313 = vst [vmem:[%s175 + $0x78] sm:$0xf] %v3281
      %3314 = vst [vmem:[%s175 + $0x7c] sm:$0xf] %v3282
      %s3315 = smul.u32 32, %s14
      %p3316 = scmp.lt.s32.totalorder %s3315, 63
      %s3317 = scalar_select %p3316, %s3315, 63
      %s3318 = smul.addr %s3317, 4
      %s3319 = scalar_lea.vmem %s3, %s3318
      // Predicated region
      $region33: #{_lambda_.6} parent=31 // pred_check
        %p3320 = pneg %p100
      $region34: #{_lambda_.6} parent=31 // pred_check_branch
        %3322 = sbr.rel (%p3320) target = $region36
      $region35: #{_lambda_.6} parent=31 // pred_region
        %s3323 = smul.u32 32, %s14
      $region36: #{_lambda_.6} parent=31 // pred_fallthru
        _
    $region32: #{_lambda_.6} parent=5 // pred_fallthru
      _
    %p3324 = scmp.le.s32.totalorder 2, %s9
    // Predicated region
    $region37: #{_lambda_.6} parent=5 // pred_check
      %p3325 = pneg %p3324
    $region38: #{_lambda_.6} parent=5 // pred_check_branch
      %3327 = sbr.rel (%p3325) target = $region40
    $region39: #{_lambda_.6} parent=5 // pred_region
      %s3328 = ssub.s32 %s9, 2
      // Predicated region
      $region41: #{_lambda_.6} parent=39 // pred_check
        %p3329 = pneg %p106
      $region42: #{_lambda_.6} parent=39 // pred_check_branch
        %3331 = sbr.rel (%p3329) target = $region44
      $region43: #{_lambda_.6} parent=39 // pred_region
        %s3332 = smul.u32 32, %s15
        %p3333 = scmp.lt.s32.totalorder %s3332, 63
        %s3334 = scalar_select %p3333, %s3332, 63
        %s3335 = smul.addr %s3334, 4
        %s3336 = scalar_lea.vmem %s3, %s3335
      $region44: #{_lambda_.6} parent=39 // pred_fallthru
        _
    $region40: #{_lambda_.6} parent=5 // pred_fallthru
      _
  $region6: #{_lambda_.6} parent=0 // loop_footer
    %s13 = sadd.s32 1, %s9
  $region7: #{_lambda_.6} parent=0 // loop_footer_branch
    %8 = sbr.rel target = $region3
  $region8: #{_lambda_.6} parent=0 // loop_exit
    _

// kernel: _lambda_.7
$region0: #{_lambda_.7}
  #allocation0 [shape = 'u32[]', space=smem, size = 0x4, offset = 0x4, fixed_abs, tag = 'smem constant byte address 0x4 - core index']
  #allocation1 [shape = 'u32[72,128]{1,0:T(1,128)}', space=vmem, size = 0x9000, scoped, tag = 'internal scratch']
  %s0 = inlined_call_operand.vmem [shape: bf16[8192,288], index: 0, kind: input, shape index: {}]
  %s1 = inlined_call_operand.vmem [shape: bf16[288,128], index: 1, kind: input, shape index: {}]
  %s2 = inlined_call_operand.vmem [shape: f32[1,128], index: 2, kind: input, shape index: {}]
  %s3 = inlined_call_operand.vmem [shape: bf16[8192,128], index: 3, kind: output, shape index: {}]
  %s4 = sld [smem:[#allocation0]]
  $region45: #{_lambda_.7} parent=0
    _
  %s6 = ssub.s32 1, %s4
  %s7 = scalar_select 0, %s6, %s4
  loop: start=0, step=1, limit=18
  $region2: #{_lambda_.7} parent=0 // loop_pre_header
    _
  $region3: #{_lambda_.7} parent=0 // loop_header
    %s9 = sphi 0, %s13
    %p10 = scmp.ge.s32.totalorder %s9, 18
    %s19 = sphi 0, %s21
    %s22 = sphi 0, %s19
    %s23 = sphi 0, %s22
    %s39 = sphi 0, %s23
    %s43 = sphi 0, %s43
    %s45 = sphi 0, %s43
    %s46 = sphi 0, %s45
    %s60 = sphi 0, %s46
    %s64 = sphi 0, %s64
    %s66 = sphi 0, %s64
    %s67 = sphi 0, %s66
    %s81 = sphi 0, %s67
    %s87 = sphi 0, %s89
    %s90 = sphi 0, %s87
    %s91 = sphi 0, %s90
    %s107 = sphi 0, %s91
  $region4: #{_lambda_.7} parent=0 // loop_header_branch
    %12 = sbr.rel (%p10) target = $region8
  $region5: #{_lambda_.7} parent=0 // loop_body
    %s14 = ssub.s32 %s9, 1
    %s15 = ssub.s32 %s9, 2
    %s16 = sadd.s32 %s9, 1
    %s17 = ssub.s32 %s9, %s16
    %p18 = scmp.eq.s32.totalorder %s17, 0
    %s20 = sadd.s32 %s19, 1
    %s21 = scalar_select %p18, %s19, %s20
    %p24 = pneg %p18
    %p25 = scmp.eq.s32.totalorder %s9, 15
    %p26 = por %p24, %p25
    %p27 = scmp.ne.s32.totalorder %s19, %s22
    %p28 = scmp.eq.s32.totalorder %s9, 0
    %p29 = por %p27, %p28
    %p30 = scmp.ne.s32.totalorder %s19, %s22
    %p31 = scmp.eq.s32.totalorder %s14, 15
    %p32 = por %p30, %p31
    %p33 = scmp.ne.s32.totalorder %s22, %s23
    %p34 = scmp.eq.s32.totalorder %s14, 0
    %p35 = por %p33, %p34
    %p36 = scmp.ne.s32.totalorder %s22, %s23
    %p37 = scmp.eq.s32.totalorder %s15, 15
    %p38 = por %p36, %p37
    %p40 = scmp.ne.s32.totalorder %s23, %s39
    %p41 = scmp.eq.s32.totalorder %s15, 0
    %p42 = por %p40, %p41
    %s44 = sadd.s32 %s43, 1
    %p47 = scmp.eq.s32.totalorder %s9, 15
    %p48 = scmp.ne.s32.totalorder %s43, %s45
    %p49 = scmp.eq.s32.totalorder %s9, 0
    %p50 = por %p48, %p49
    %p51 = scmp.ne.s32.totalorder %s43, %s45
    %p52 = scmp.eq.s32.totalorder %s14, 15
    %p53 = por %p51, %p52
    %p54 = scmp.ne.s32.totalorder %s45, %s46
    %p55 = scmp.eq.s32.totalorder %s14, 0
    %p56 = por %p54, %p55
    %p57 = scmp.ne.s32.totalorder %s45, %s46
    %p58 = scmp.eq.s32.totalorder %s15, 15
    %p59 = por %p57, %p58
    %p61 = scmp.ne.s32.totalorder %s46, %s60
    %p62 = scmp.eq.s32.totalorder %s15, 0
    %p63 = por %p61, %p62
    %s65 = sadd.s32 %s64, 1
    %p68 = scmp.eq.s32.totalorder %s9, 15
    %p69 = scmp.ne.s32.totalorder %s64, %s66
    %p70 = scmp.eq.s32.totalorder %s9, 0
    %p71 = por %p69, %p70
    %p72 = scmp.ne.s32.totalorder %s64, %s66
    %p73 = scmp.eq.s32.totalorder %s14, 15
    %p74 = por %p72, %p73
    %p75 = scmp.ne.s32.totalorder %s66, %s67
    %p76 = scmp.eq.s32.totalorder %s14, 0
    %p77 = por %p75, %p76
    %p78 = scmp.ne.s32.totalorder %s66, %s67
    %p79 = scmp.eq.s32.totalorder %s15, 15
    %p80 = por %p78, %p79
    %p82 = scmp.ne.s32.totalorder %s67, %s81
    %p83 = scmp.eq.s32.totalorder %s15, 0
    %p84 = por %p82, %p83
    %s85 = ssub.s32 %s9, %s16
    %p86 = scmp.eq.s32.totalorder %s85, 0
    %s88 = sadd.s32 %s87, 1
    %s89 = scalar_select %p86, %s87, %s88
    %p92 = pneg %p86
    %p93 = scmp.eq.s32.totalorder %s9, 15
    %p94 = por %p92, %p93
    %p95 = scmp.ne.s32.totalorder %s87, %s90
    %p96 = scmp.eq.s32.totalorder %s9, 0
    %p97 = por %p95, %p96
    %p98 = scmp.ne.s32.totalorder %s87, %s90
    %p99 = scmp.eq.s32.totalorder %s14, 15
    %p100 = por %p98, %p99
    %p101 = scmp.ne.s32.totalorder %s90, %s91
    %p102 = scmp.eq.s32.totalorder %s14, 0
    %p103 = por %p101, %p102
    %p104 = scmp.ne.s32.totalorder %s90, %s91
    %p105 = scmp.eq.s32.totalorder %s15, 15
    %p106 = por %p104, %p105
    %p108 = scmp.ne.s32.totalorder %s91, %s107
    %p109 = scmp.eq.s32.totalorder %s15, 0
    %p110 = por %p108, %p109
    %p111 = scmp.le.s32.totalorder 1, %s9
    %p112 = scmp.lt.s32.totalorder %s9, 17
    %p113 = pnand %p111, %p112
    %p114 = pneg %p113
    // Predicated region
    $region9: #{_lambda_.7} parent=5 // pred_check
      _
    $region10: #{_lambda_.7} parent=5 // pred_check_branch
      %116 = sbr.rel (%p113) target = $region12
    $region11: #{_lambda_.7} parent=5 // pred_region
      %s117 = ssub.s32 %s9, 1
      // Predicated region
      $region13: #{_lambda_.7} parent=11 // pred_check
        %p118 = pneg %p56
      $region14: #{_lambda_.7} parent=11 // pred_check_branch
        %120 = sbr.rel (%p118) target = $region16
      $region15: #{_lambda_.7} parent=11 // pred_region
        _
      $region16: #{_lambda_.7} parent=11 // pred_fallthru
        _
      // Predicated region
      $region17: #{_lambda_.7} parent=11 // pred_check
        %p121 = pneg %p77
      $region18: #{_lambda_.7} parent=11 // pred_check_branch
        %123 = sbr.rel (%p121) target = $region20
      $region19: #{_lambda_.7} parent=11 // pred_region
        _
      $region20: #{_lambda_.7} parent=11 // pred_fallthru
        _
    $region12: #{_lambda_.7} parent=5 // pred_fallthru
      _
    %p124 = scmp.lt.s32.totalorder %s9, 16
    // Predicated region
    $region21: #{_lambda_.7} parent=5 // pred_check
      %p125 = pneg %p124
    $region22: #{_lambda_.7} parent=5 // pred_check_branch
      %127 = sbr.rel (%p125) target = $region24
    $region23: #{_lambda_.7} parent=5 // pred_region
      // Predicated region
      $region25: #{_lambda_.7} parent=23 // pred_check
        %p128 = pneg %p29
      $region26: #{_lambda_.7} parent=23 // pred_check_branch
        %130 = sbr.rel (%p128) target = $region28
      $region27: #{_lambda_.7} parent=23 // pred_region
        %s131 = smul.u32 64, %s9
        %p132 = scmp.lt.s32.totalorder %s131, 1023
        %s133 = scalar_select %p132, %s131, 1023
        %s134 = smul.addr %s133, 3
        %s135 = smul.addr %s134, 4
        %s136 = scalar_lea.vmem %s0, %s135
        %s137 = smul.u32 64, %s9
      $region28: #{_lambda_.7} parent=23 // pred_fallthru
        _
    $region24: #{_lambda_.7} parent=5 // pred_fallthru
      _
    %p138 = scmp.le.s32.totalorder 1, %s9
    %p139 = scmp.lt.s32.totalorder %s9, 17
    %p140 = pnand %p138, %p139
    %p141 = pneg %p140
    // Predicated region
    $region29: #{_lambda_.7} parent=5 // pred_check
      _
    $region30: #{_lambda_.7} parent=5 // pred_check_branch
      %143 = sbr.rel (%p140) target = $region32
    $region31: #{_lambda_.7} parent=5 // pred_region
      %s144 = ssub.s32 %s9, 1
      %s145 = smul.u32 64, %s14
      %p146 = scmp.lt.s32.totalorder %s145, 1023
      %s147 = scalar_select %p146, %s145, 1023
      %s148 = smul.addr %s147, 3
      %s149 = smul.addr %s148, 4
      %s150 = scalar_lea.vmem %s0, %s149
      %p151 = pneg %p35
      %p152 = pneg %p32
      %p153 = pneg %p56
      %p154 = pneg %p53
      %p155 = pneg %p77
      %p156 = pneg %p74
      %p157 = pneg %p103
      %p158 = pneg %p100
      %s159 = smul.u32 64, %s14
      %p160 = scmp.lt.s32.totalorder %s159, 1023
      %s161 = scalar_select %p160, %s159, 1023
      %s162 = smul.addr %s161, 4
      %s163 = scalar_lea.vmem %s3, %s162
      %s164 = smul.u32 64, %s14
      %p165 = scmp.lt.s32.totalorder %s164, 1023
      %s166 = scalar_select %p165, %s164, 1023
      %s167 = smul.addr %s166, 3
      %s168 = smul.addr %s167, 4
      %s169 = scalar_lea.vmem %s0, %s168
      %s170 = smul.u32 64, %s14
      %s171 = smul.u32 64, %s14
      %p172 = scmp.lt.s32.totalorder %s171, 1023
      %s173 = scalar_select %p172, %s171, 1023
      %s174 = smul.addr %s173, 4
      %s175 = scalar_lea.vmem %s3, %s174
      %s176 = smul.u32 64, %s14
      %v178 = vld [vmem:[%s169] sm:$0xff]
      %v179 = vld [vmem:[%s169 + $0x8] sm:$0xf]
      %v180 = vld [vmem:[%s169 + $0xc] sm:$0xff]
      %v181 = vld [vmem:[%s169 + $0x14] sm:$0xf]
      %v182 = vld [vmem:[%s169 + $0x18] sm:$0xff]
      %v183 = vld [vmem:[%s169 + $0x20] sm:$0xf]
      %v184 = vld [vmem:[%s169 + $0x24] sm:$0xff]
      %v185 = vld [vmem:[%s169 + $0x2c] sm:$0xf]
      %v186 = vld [vmem:[%s169 + $0x30] sm:$0xff]
      %v187 = vld [vmem:[%s169 + $0x38] sm:$0xf]
      %v188 = vld [vmem:[%s169 + $0x3c] sm:$0xff]
      %v189 = vld [vmem:[%s169 + $0x44] sm:$0xf]
      %v190 = vld [vmem:[%s169 + $0x48] sm:$0xff]
      %v191 = vld [vmem:[%s169 + $0x50] sm:$0xf]
      %v192 = vld [vmem:[%s169 + $0x54] sm:$0xff]
      %v193 = vld [vmem:[%s169 + $0x5c] sm:$0xf]
      %v194 = vld [vmem:[%s169 + $0x60] sm:$0xff]
      %v195 = vld [vmem:[%s169 + $0x68] sm:$0xf]
      %v196 = vld [vmem:[%s169 + $0x6c] sm:$0xff]
      %v197 = vld [vmem:[%s169 + $0x74] sm:$0xf]
      %v198 = vld [vmem:[%s169 + $0x78] sm:$0xff]
      %v199 = vld [vmem:[%s169 + $0x80] sm:$0xf]
      %v200 = vld [vmem:[%s169 + $0x84] sm:$0xff]
      %v201 = vld [vmem:[%s169 + $0x8c] sm:$0xf]
      %v202 = vld [vmem:[%s169 + $0x90] sm:$0xff]
      %v203 = vld [vmem:[%s169 + $0x98] sm:$0xf]
      %v204 = vld [vmem:[%s169 + $0x9c] sm:$0xff]
      %v205 = vld [vmem:[%s169 + $0xa4] sm:$0xf]
      %v206 = vld [vmem:[%s169 + $0xa8] sm:$0xff]
      %v207 = vld [vmem:[%s169 + $0xb0] sm:$0xf]
      %v208 = vld [vmem:[%s169 + $0xb4] sm:$0xff]
      %v209 = vld [vmem:[%s169 + $0xbc] sm:$0xf]
      %v210 = vld [vmem:[%s169 + $0xc0] sm:$0xff]
      %v211 = vld [vmem:[%s169 + $0xc8] sm:$0xf]
      %v212 = vld [vmem:[%s169 + $0xcc] sm:$0xff]
      %v213 = vld [vmem:[%s169 + $0xd4] sm:$0xf]
      %v214 = vld [vmem:[%s169 + $0xd8] sm:$0xff]
      %v215 = vld [vmem:[%s169 + $0xe0] sm:$0xf]
      %v216 = vld [vmem:[%s169 + $0xe4] sm:$0xff]
      %v217 = vld [vmem:[%s169 + $0xec] sm:$0xf]
      %v218 = vld [vmem:[%s169 + $0xf0] sm:$0xff]
      %v219 = vld [vmem:[%s169 + $0xf8] sm:$0xf]
      %v220 = vld [vmem:[%s169 + $0xfc] sm:$0xff]
      %v221 = vld [vmem:[%s169 + $0x104] sm:$0xf]
      %v222 = vld [vmem:[%s169 + $0x108] sm:$0xff]
      %v223 = vld [vmem:[%s169 + $0x110] sm:$0xf]
      %v224 = vld [vmem:[%s169 + $0x114] sm:$0xff]
      %v225 = vld [vmem:[%s169 + $0x11c] sm:$0xf]
      %v226 = vld [vmem:[%s169 + $0x120] sm:$0xff]
      %v227 = vld [vmem:[%s169 + $0x128] sm:$0xf]
      %v228 = vld [vmem:[%s169 + $0x12c] sm:$0xff]
      %v229 = vld [vmem:[%s169 + $0x134] sm:$0xf]
      %v230 = vld [vmem:[%s169 + $0x138] sm:$0xff]
      %v231 = vld [vmem:[%s169 + $0x140] sm:$0xf]
      %v232 = vld [vmem:[%s169 + $0x144] sm:$0xff]
      %v233 = vld [vmem:[%s169 + $0x14c] sm:$0xf]
      %v234 = vld [vmem:[%s169 + $0x150] sm:$0xff]
      %v235 = vld [vmem:[%s169 + $0x158] sm:$0xf]
      %v236 = vld [vmem:[%s169 + $0x15c] sm:$0xff]
      %v237 = vld [vmem:[%s169 + $0x164] sm:$0xf]
      %v238 = vld [vmem:[%s169 + $0x168] sm:$0xff]
      %v239 = vld [vmem:[%s169 + $0x170] sm:$0xf]
      %v240 = vld [vmem:[%s169 + $0x174] sm:$0xff]
      %v241 = vld [vmem:[%s169 + $0x17c] sm:$0xf]
      %v242 = vld [vmem:[%s169 + $0x180] sm:$0xff]
      %v243 = vld [vmem:[%s169 + $0x188] sm:$0xf]
      %v244 = vld [vmem:[%s169 + $0x18c] sm:$0xff]
      %v245 = vld [vmem:[%s169 + $0x194] sm:$0xf]
      %v246 = vld [vmem:[%s169 + $0x198] sm:$0xff]
      %v247 = vld [vmem:[%s169 + $0x1a0] sm:$0xf]
      %v248 = vld [vmem:[%s169 + $0x1a4] sm:$0xff]
      %v249 = vld [vmem:[%s169 + $0x1ac] sm:$0xf]
      %v250 = vld [vmem:[%s169 + $0x1b0] sm:$0xff]
      %v251 = vld [vmem:[%s169 + $0x1b8] sm:$0xf]
      %v252 = vld [vmem:[%s169 + $0x1bc] sm:$0xff]
      %v253 = vld [vmem:[%s169 + $0x1c4] sm:$0xf]
      %v254 = vld [vmem:[%s169 + $0x1c8] sm:$0xff]
      %v255 = vld [vmem:[%s169 + $0x1d0] sm:$0xf]
      %v256 = vld [vmem:[%s169 + $0x1d4] sm:$0xff]
      %v257 = vld [vmem:[%s169 + $0x1dc] sm:$0xf]
      %v258 = vld [vmem:[%s169 + $0x1e0] sm:$0xff]
      %v259 = vld [vmem:[%s169 + $0x1e8] sm:$0xf]
      %v260 = vld [vmem:[%s169 + $0x1ec] sm:$0xff]
      %v261 = vld [vmem:[%s169 + $0x1f4] sm:$0xf]
      %v262 = vld [vmem:[%s169 + $0x1f8] sm:$0xff]
      %v263 = vld [vmem:[%s169 + $0x200] sm:$0xf]
      %v264 = vld [vmem:[%s169 + $0x204] sm:$0xff]
      %v265 = vld [vmem:[%s169 + $0x20c] sm:$0xf]
      %v266 = vld [vmem:[%s169 + $0x210] sm:$0xff]
      %v267 = vld [vmem:[%s169 + $0x218] sm:$0xf]
      %v268 = vld [vmem:[%s169 + $0x21c] sm:$0xff]
      %v269 = vld [vmem:[%s169 + $0x224] sm:$0xf]
      %v270 = vld [vmem:[%s169 + $0x228] sm:$0xff]
      %v271 = vld [vmem:[%s169 + $0x230] sm:$0xf]
      %v272 = vld [vmem:[%s169 + $0x234] sm:$0xff]
      %v273 = vld [vmem:[%s169 + $0x23c] sm:$0xf]
      %v274 = vld [vmem:[%s169 + $0x240] sm:$0xff]
      %v275 = vld [vmem:[%s169 + $0x248] sm:$0xf]
      %v276 = vld [vmem:[%s169 + $0x24c] sm:$0xff]
      %v277 = vld [vmem:[%s169 + $0x254] sm:$0xf]
      %v278 = vld [vmem:[%s169 + $0x258] sm:$0xff]
      %v279 = vld [vmem:[%s169 + $0x260] sm:$0xf]
      %v280 = vld [vmem:[%s169 + $0x264] sm:$0xff]
      %v281 = vld [vmem:[%s169 + $0x26c] sm:$0xf]
      %v282 = vld [vmem:[%s169 + $0x270] sm:$0xff]
      %v283 = vld [vmem:[%s169 + $0x278] sm:$0xf]
      %v284 = vld [vmem:[%s169 + $0x27c] sm:$0xff]
      %v285 = vld [vmem:[%s169 + $0x284] sm:$0xf]
      %v286 = vld [vmem:[%s169 + $0x288] sm:$0xff]
      %v287 = vld [vmem:[%s169 + $0x290] sm:$0xf]
      %v288 = vld [vmem:[%s169 + $0x294] sm:$0xff]
      %v289 = vld [vmem:[%s169 + $0x29c] sm:$0xf]
      %v290 = vld [vmem:[%s169 + $0x2a0] sm:$0xff]
      %v291 = vld [vmem:[%s169 + $0x2a8] sm:$0xf]
      %v292 = vld [vmem:[%s169 + $0x2ac] sm:$0xff]
      %v293 = vld [vmem:[%s169 + $0x2b4] sm:$0xf]
      %v294 = vld [vmem:[%s169 + $0x2b8] sm:$0xff]
      %v295 = vld [vmem:[%s169 + $0x2c0] sm:$0xf]
      %v296 = vld [vmem:[%s169 + $0x2c4] sm:$0xff]
      %v297 = vld [vmem:[%s169 + $0x2cc] sm:$0xf]
      %v298 = vld [vmem:[%s169 + $0x2d0] sm:$0xff]
      %v299 = vld [vmem:[%s169 + $0x2d8] sm:$0xf]
      %v300 = vld [vmem:[%s169 + $0x2dc] sm:$0xff]
      %v301 = vld [vmem:[%s169 + $0x2e4] sm:$0xf]
      %v302 = vld [vmem:[%s169 + $0x2e8] sm:$0xff]
      %v303 = vld [vmem:[%s169 + $0x2f0] sm:$0xf]
      %v304 = vld [vmem:[%s169 + $0x2f4] sm:$0xff]
      %v305 = vld [vmem:[%s169 + $0x2fc] sm:$0xf]
      %v306 = vld [vmem:[%s1] sm:$0xf]
      %v307 = vld [vmem:[%s1 + $0x4] sm:$0xf]
      %v308 = vld [vmem:[%s1 + $0x8] sm:$0xf]
      %v309 = vld [vmem:[%s1 + $0xc] sm:$0xf]
      %v310 = vld [vmem:[%s1 + $0x10] sm:$0xf]
      %v311 = vld [vmem:[%s1 + $0x14] sm:$0xf]
      %v312 = vld [vmem:[%s1 + $0x18] sm:$0xf]
      %v313 = vld [vmem:[%s1 + $0x1c] sm:$0xf]
      %v314 = vld [vmem:[%s1 + $0x20] sm:$0xf]
      %v315 = vld [vmem:[%s1 + $0x24] sm:$0xf]
      %v316 = vld [vmem:[%s1 + $0x28] sm:$0xf]
      %v317 = vld [vmem:[%s1 + $0x2c] sm:$0xf]
      %v318 = vld [vmem:[%s1 + $0x30] sm:$0xf]
      %v319 = vld [vmem:[%s1 + $0x34] sm:$0xf]
      %v320 = vld [vmem:[%s1 + $0x38] sm:$0xf]
      %v321 = vld [vmem:[%s1 + $0x3c] sm:$0xf]
      %v322 = vld [vmem:[%s1 + $0x40] sm:$0xf]
      %v323 = vld [vmem:[%s1 + $0x44] sm:$0xf]
      %v324 = vld [vmem:[%s1 + $0x48] sm:$0xf]
      %v325 = vld [vmem:[%s1 + $0x4c] sm:$0xf]
      %v326 = vld [vmem:[%s1 + $0x50] sm:$0xf]
      %v327 = vld [vmem:[%s1 + $0x54] sm:$0xf]
      %v328 = vld [vmem:[%s1 + $0x58] sm:$0xf]
      %v329 = vld [vmem:[%s1 + $0x5c] sm:$0xf]
      %v330 = vld [vmem:[%s1 + $0x60] sm:$0xf]
      %v331 = vld [vmem:[%s1 + $0x64] sm:$0xf]
      %v332 = vld [vmem:[%s1 + $0x68] sm:$0xf]
      %v333 = vld [vmem:[%s1 + $0x6c] sm:$0xf]
      %v334 = vld [vmem:[%s1 + $0x70] sm:$0xf]
      %v335 = vld [vmem:[%s1 + $0x74] sm:$0xf]
      %v336 = vld [vmem:[%s1 + $0x78] sm:$0xf]
      %v337 = vld [vmem:[%s1 + $0x7c] sm:$0xf]
      %v338 = vld [vmem:[%s1 + $0x80] sm:$0xf]
      %v339 = vld [vmem:[%s1 + $0x84] sm:$0xf]
      %v340 = vld [vmem:[%s1 + $0x88] sm:$0xf]
      %v341 = vld [vmem:[%s1 + $0x8c] sm:$0xf]
      %v342 = vld [vmem:[%s2] sm:$0x1]
      %v344 = vperm.slane %v342, 0
      %v474 = vunpack.c.l.b16 %v178
      %v475 = vunpack.c.h.b16 %v178
      %v476 = vunpack.c.l.b16 %v179
      %v477 = vunpack.c.l.b16 %v180
      %v478 = vunpack.c.h.b16 %v180
      %v479 = vunpack.c.l.b16 %v181
      %v480 = vunpack.c.l.b16 %v182
      %v481 = vunpack.c.h.b16 %v182
      %v482 = vunpack.c.l.b16 %v183
      %v483 = vunpack.c.l.b16 %v184
      %v484 = vunpack.c.h.b16 %v184
      %v485 = vunpack.c.l.b16 %v185
      %v486 = vunpack.c.l.b16 %v186
      %v487 = vunpack.c.h.b16 %v186
      %v488 = vunpack.c.l.b16 %v187
      %v489 = vunpack.c.l.b16 %v188
      %v490 = vunpack.c.h.b16 %v188
      %v491 = vunpack.c.l.b16 %v189
      %v492 = vunpack.c.l.b16 %v190
      %v493 = vunpack.c.h.b16 %v190
      %v494 = vunpack.c.l.b16 %v191
      %v495 = vunpack.c.l.b16 %v192
      %v496 = vunpack.c.h.b16 %v192
      %v497 = vunpack.c.l.b16 %v193
      %v498 = vunpack.c.l.b16 %v194
      %v499 = vunpack.c.h.b16 %v194
      %v500 = vunpack.c.l.b16 %v195
      %v501 = vunpack.c.l.b16 %v196
      %v502 = vunpack.c.h.b16 %v196
      %v503 = vunpack.c.l.b16 %v197
      %v504 = vunpack.c.l.b16 %v198
      %v505 = vunpack.c.h.b16 %v198
      %v506 = vunpack.c.l.b16 %v199
      %v507 = vunpack.c.l.b16 %v200
      %v508 = vunpack.c.h.b16 %v200
      %v509 = vunpack.c.l.b16 %v201
      %v510 = vunpack.c.l.b16 %v202
      %v511 = vunpack.c.h.b16 %v202
      %v512 = vunpack.c.l.b16 %v203
      %v513 = vunpack.c.l.b16 %v204
      %v514 = vunpack.c.h.b16 %v204
      %v515 = vunpack.c.l.b16 %v205
      %v516 = vunpack.c.l.b16 %v206
      %v517 = vunpack.c.h.b16 %v206
      %v518 = vunpack.c.l.b16 %v207
      %v519 = vunpack.c.l.b16 %v208
      %v520 = vunpack.c.h.b16 %v208
      %v521 = vunpack.c.l.b16 %v209
      %v522 = vunpack.c.l.b16 %v210
      %v523 = vunpack.c.h.b16 %v210
      %v524 = vunpack.c.l.b16 %v211
      %v525 = vunpack.c.l.b16 %v212
      %v526 = vunpack.c.h.b16 %v212
      %v527 = vunpack.c.l.b16 %v213
      %v528 = vunpack.c.l.b16 %v214
      %v529 = vunpack.c.h.b16 %v214
      %v530 = vunpack.c.l.b16 %v215
      %v531 = vunpack.c.l.b16 %v216
      %v532 = vunpack.c.h.b16 %v216
      %v533 = vunpack.c.l.b16 %v217
      %v534 = vunpack.c.l.b16 %v218
      %v535 = vunpack.c.h.b16 %v218
      %v536 = vunpack.c.l.b16 %v219
      %v537 = vunpack.c.l.b16 %v220
      %v538 = vunpack.c.h.b16 %v220
      %v539 = vunpack.c.l.b16 %v221
      %v540 = vunpack.c.l.b16 %v222
      %v541 = vunpack.c.h.b16 %v222
      %v542 = vunpack.c.l.b16 %v223
      %v543 = vunpack.c.l.b16 %v224
      %v544 = vunpack.c.h.b16 %v224
      %v545 = vunpack.c.l.b16 %v225
      %v546 = vunpack.c.l.b16 %v226
      %v547 = vunpack.c.h.b16 %v226
      %v548 = vunpack.c.l.b16 %v227
      %v549 = vunpack.c.l.b16 %v228
      %v550 = vunpack.c.h.b16 %v228
      %v551 = vunpack.c.l.b16 %v229
      %v552 = vunpack.c.l.b16 %v230
      %v553 = vunpack.c.h.b16 %v230
      %v554 = vunpack.c.l.b16 %v231
      %v555 = vunpack.c.l.b16 %v232
      %v556 = vunpack.c.h.b16 %v232
      %v557 = vunpack.c.l.b16 %v233
      %v558 = vunpack.c.l.b16 %v234
      %v559 = vunpack.c.h.b16 %v234
      %v560 = vunpack.c.l.b16 %v235
      %v561 = vunpack.c.l.b16 %v236
      %v562 = vunpack.c.h.b16 %v236
      %v563 = vunpack.c.l.b16 %v237
      %v564 = vunpack.c.l.b16 %v238
      %v565 = vunpack.c.h.b16 %v238
      %v566 = vunpack.c.l.b16 %v239
      %v567 = vunpack.c.l.b16 %v240
      %v568 = vunpack.c.h.b16 %v240
      %v569 = vunpack.c.l.b16 %v241
      %v570 = vunpack.c.l.b16 %v242
      %v571 = vunpack.c.h.b16 %v242
      %v572 = vunpack.c.l.b16 %v243
      %v573 = vunpack.c.l.b16 %v244
      %v574 = vunpack.c.h.b16 %v244
      %v575 = vunpack.c.l.b16 %v245
      %v576 = vunpack.c.l.b16 %v246
      %v577 = vunpack.c.h.b16 %v246
      %v578 = vunpack.c.l.b16 %v247
      %v579 = vunpack.c.l.b16 %v248
      %v580 = vunpack.c.h.b16 %v248
      %v581 = vunpack.c.l.b16 %v249
      %v582 = vunpack.c.l.b16 %v250
      %v583 = vunpack.c.h.b16 %v250
      %v584 = vunpack.c.l.b16 %v251
      %v585 = vunpack.c.l.b16 %v252
      %v586 = vunpack.c.h.b16 %v252
      %v587 = vunpack.c.l.b16 %v253
      %v588 = vunpack.c.l.b16 %v254
      %v589 = vunpack.c.h.b16 %v254
      %v590 = vunpack.c.l.b16 %v255
      %v591 = vunpack.c.l.b16 %v256
      %v592 = vunpack.c.h.b16 %v256
      %v593 = vunpack.c.l.b16 %v257
      %v594 = vunpack.c.l.b16 %v258
      %v595 = vunpack.c.h.b16 %v258
      %v596 = vunpack.c.l.b16 %v259
      %v597 = vunpack.c.l.b16 %v260
      %v598 = vunpack.c.h.b16 %v260
      %v599 = vunpack.c.l.b16 %v261
      %v600 = vunpack.c.l.b16 %v262
      %v601 = vunpack.c.h.b16 %v262
      %v602 = vunpack.c.l.b16 %v263
      %v603 = vunpack.c.l.b16 %v264
      %v604 = vunpack.c.h.b16 %v264
      %v605 = vunpack.c.l.b16 %v265
      %v606 = vunpack.c.l.b16 %v266
      %v607 = vunpack.c.h.b16 %v266
      %v608 = vunpack.c.l.b16 %v267
      %v609 = vunpack.c.l.b16 %v268
      %v610 = vunpack.c.h.b16 %v268
      %v611 = vunpack.c.l.b16 %v269
      %v612 = vunpack.c.l.b16 %v270
      %v613 = vunpack.c.h.b16 %v270
      %v614 = vunpack.c.l.b16 %v271
      %v615 = vunpack.c.l.b16 %v272
      %v616 = vunpack.c.h.b16 %v272
      %v617 = vunpack.c.l.b16 %v273
      %v618 = vunpack.c.l.b16 %v274
      %v619 = vunpack.c.h.b16 %v274
      %v620 = vunpack.c.l.b16 %v275
      %v621 = vunpack.c.l.b16 %v276
      %v622 = vunpack.c.h.b16 %v276
      %v623 = vunpack.c.l.b16 %v277
      %v624 = vunpack.c.l.b16 %v278
      %v625 = vunpack.c.h.b16 %v278
      %v626 = vunpack.c.l.b16 %v279
      %v627 = vunpack.c.l.b16 %v280
      %v628 = vunpack.c.h.b16 %v280
      %v629 = vunpack.c.l.b16 %v281
      %v630 = vunpack.c.l.b16 %v282
      %v631 = vunpack.c.h.b16 %v282
      %v632 = vunpack.c.l.b16 %v283
      %v633 = vunpack.c.l.b16 %v284
      %v634 = vunpack.c.h.b16 %v284
      %v635 = vunpack.c.l.b16 %v285
      %v636 = vunpack.c.l.b16 %v286
      %v637 = vunpack.c.h.b16 %v286
      %v638 = vunpack.c.l.b16 %v287
      %v639 = vunpack.c.l.b16 %v288
      %v640 = vunpack.c.h.b16 %v288
      %v641 = vunpack.c.l.b16 %v289
      %v642 = vunpack.c.l.b16 %v290
      %v643 = vunpack.c.h.b16 %v290
      %v644 = vunpack.c.l.b16 %v291
      %v645 = vunpack.c.l.b16 %v292
      %v646 = vunpack.c.h.b16 %v292
      %v647 = vunpack.c.l.b16 %v293
      %v648 = vunpack.c.l.b16 %v294
      %v649 = vunpack.c.h.b16 %v294
      %v650 = vunpack.c.l.b16 %v295
      %v651 = vunpack.c.l.b16 %v296
      %v652 = vunpack.c.h.b16 %v296
      %v653 = vunpack.c.l.b16 %v297
      %v654 = vunpack.c.l.b16 %v298
      %v655 = vunpack.c.h.b16 %v298
      %v656 = vunpack.c.l.b16 %v299
      %v657 = vunpack.c.l.b16 %v300
      %v658 = vunpack.c.h.b16 %v300
      %v659 = vunpack.c.l.b16 %v301
      %v660 = vunpack.c.l.b16 %v302
      %v661 = vunpack.c.h.b16 %v302
      %v662 = vunpack.c.l.b16 %v303
      %v663 = vunpack.c.l.b16 %v304
      %v664 = vunpack.c.h.b16 %v304
      %v665 = vunpack.c.l.b16 %v305
      %v666 = vpack.c.b16 %v477, %v474
      %v667 = vpack.c.b16 %v478, %v475
      %v668 = vpack.c.b16 %v479, %v476
      %v669 = vpack.c.b16 %v483, %v480
      %v670 = vpack.c.b16 %v484, %v481
      %v671 = vpack.c.b16 %v485, %v482
      %v672 = vpack.c.b16 %v489, %v486
      %v673 = vpack.c.b16 %v490, %v487
      %v674 = vpack.c.b16 %v491, %v488
      %v675 = vpack.c.b16 %v495, %v492
      %v676 = vpack.c.b16 %v496, %v493
      %v677 = vpack.c.b16 %v497, %v494
      %v678 = vpack.c.b16 %v501, %v498
      %v679 = vpack.c.b16 %v502, %v499
      %v680 = vpack.c.b16 %v503, %v500
      %v681 = vpack.c.b16 %v507, %v504
      %v682 = vpack.c.b16 %v508, %v505
      %v683 = vpack.c.b16 %v509, %v506
      %v684 = vpack.c.b16 %v513, %v510
      %v685 = vpack.c.b16 %v514, %v511
      %v686 = vpack.c.b16 %v515, %v512
      %v687 = vpack.c.b16 %v519, %v516
      %v688 = vpack.c.b16 %v520, %v517
      %v689 = vpack.c.b16 %v521, %v518
      %v690 = vpack.c.b16 %v525, %v522
      %v691 = vpack.c.b16 %v526, %v523
      %v692 = vpack.c.b16 %v527, %v524
      %v693 = vpack.c.b16 %v531, %v528
      %v694 = vpack.c.b16 %v532, %v529
      %v695 = vpack.c.b16 %v533, %v530
      %v696 = vpack.c.b16 %v537, %v534
      %v697 = vpack.c.b16 %v538, %v535
      %v698 = vpack.c.b16 %v539, %v536
      %v699 = vpack.c.b16 %v543, %v540
      %v700 = vpack.c.b16 %v544, %v541
      %v701 = vpack.c.b16 %v545, %v542
      %v702 = vpack.c.b16 %v549, %v546
      %v703 = vpack.c.b16 %v550, %v547
      %v704 = vpack.c.b16 %v551, %v548
      %v705 = vpack.c.b16 %v555, %v552
      %v706 = vpack.c.b16 %v556, %v553
      %v707 = vpack.c.b16 %v557, %v554
      %v708 = vpack.c.b16 %v561, %v558
      %v709 = vpack.c.b16 %v562, %v559
      %v710 = vpack.c.b16 %v563, %v560
      %v711 = vpack.c.b16 %v567, %v564
      %v712 = vpack.c.b16 %v568, %v565
      %v713 = vpack.c.b16 %v569, %v566
      %v714 = vpack.c.b16 %v573, %v570
      %v715 = vpack.c.b16 %v574, %v571
      %v716 = vpack.c.b16 %v575, %v572
      %v717 = vpack.c.b16 %v579, %v576
      %v718 = vpack.c.b16 %v580, %v577
      %v719 = vpack.c.b16 %v581, %v578
      %v720 = vpack.c.b16 %v585, %v582
      %v721 = vpack.c.b16 %v586, %v583
      %v722 = vpack.c.b16 %v587, %v584
      %v723 = vpack.c.b16 %v591, %v588
      %v724 = vpack.c.b16 %v592, %v589
      %v725 = vpack.c.b16 %v593, %v590
      %v726 = vpack.c.b16 %v597, %v594
      %v727 = vpack.c.b16 %v598, %v595
      %v728 = vpack.c.b16 %v599, %v596
      %v729 = vpack.c.b16 %v603, %v600
      %v730 = vpack.c.b16 %v604, %v601
      %v731 = vpack.c.b16 %v605, %v602
      %v732 = vpack.c.b16 %v609, %v606
      %v733 = vpack.c.b16 %v610, %v607
      %v734 = vpack.c.b16 %v611, %v608
      %v735 = vpack.c.b16 %v615, %v612
      %v736 = vpack.c.b16 %v616, %v613
      %v737 = vpack.c.b16 %v617, %v614
      %v738 = vpack.c.b16 %v621, %v618
      %v739 = vpack.c.b16 %v622, %v619
      %v740 = vpack.c.b16 %v623, %v620
      %v741 = vpack.c.b16 %v627, %v624
      %v742 = vpack.c.b16 %v628, %v625
      %v743 = vpack.c.b16 %v629, %v626
      %v744 = vpack.c.b16 %v633, %v630
      %v745 = vpack.c.b16 %v634, %v631
      %v746 = vpack.c.b16 %v635, %v632
      %v747 = vpack.c.b16 %v639, %v636
      %v748 = vpack.c.b16 %v640, %v637
      %v749 = vpack.c.b16 %v641, %v638
      %v750 = vpack.c.b16 %v645, %v642
      %v751 = vpack.c.b16 %v646, %v643
      %v752 = vpack.c.b16 %v647, %v644
      %v753 = vpack.c.b16 %v651, %v648
      %v754 = vpack.c.b16 %v652, %v649
      %v755 = vpack.c.b16 %v653, %v650
      %v756 = vpack.c.b16 %v657, %v654
      %v757 = vpack.c.b16 %v658, %v655
      %v758 = vpack.c.b16 %v659, %v656
      %v759 = vpack.c.b16 %v663, %v660
      %v760 = vpack.c.b16 %v664, %v661
      %v761 = vpack.c.b16 %v665, %v662
      %v862 = vunpack.c.l.b16 %v306
      %v863 = vunpack.c.l.b16 %v307
      %v864 = vunpack.c.l.b16 %v308
      %v865 = vunpack.c.l.b16 %v309
      %v866 = vunpack.c.l.b16 %v310
      %v867 = vunpack.c.l.b16 %v311
      %v868 = vunpack.c.l.b16 %v312
      %v869 = vunpack.c.l.b16 %v313
      %v870 = vunpack.c.l.b16 %v314
      %v871 = vunpack.c.l.b16 %v315
      %v872 = vunpack.c.l.b16 %v316
      %v873 = vunpack.c.l.b16 %v317
      %v874 = vunpack.c.l.b16 %v318
      %v875 = vunpack.c.l.b16 %v319
      %v876 = vunpack.c.l.b16 %v320
      %v877 = vunpack.c.l.b16 %v321
      %v878 = vunpack.c.l.b16 %v322
      %v879 = vunpack.c.l.b16 %v323
      %v880 = vunpack.c.l.b16 %v324
      %v881 = vunpack.c.l.b16 %v325
      %v882 = vunpack.c.l.b16 %v326
      %v883 = vunpack.c.l.b16 %v327
      %v884 = vunpack.c.l.b16 %v328
      %v885 = vunpack.c.l.b16 %v329
      %v886 = vunpack.c.l.b16 %v330
      %v887 = vunpack.c.l.b16 %v331
      %v888 = vunpack.c.l.b16 %v332
      %v889 = vunpack.c.l.b16 %v333
      %v890 = vunpack.c.l.b16 %v334
      %v891 = vunpack.c.l.b16 %v335
      %v892 = vunpack.c.l.b16 %v336
      %v893 = vunpack.c.l.b16 %v337
      %v894 = vunpack.c.l.b16 %v338
      %v895 = vunpack.c.l.b16 %v339
      %v896 = vunpack.c.l.b16 %v340
      %v897 = vunpack.c.l.b16 %v341
      %v898 = vpack.c.b16 %v863, %v862
      %v899 = vpack.c.b16 %v865, %v864
      %v900 = vpack.c.b16 %v867, %v866
      %v901 = vpack.c.b16 %v869, %v868
      %v902 = vpack.c.b16 %v871, %v870
      %v903 = vpack.c.b16 %v873, %v872
      %v904 = vpack.c.b16 %v875, %v874
      %v905 = vpack.c.b16 %v877, %v876
      %v906 = vpack.c.b16 %v879, %v878
      %v907 = vpack.c.b16 %v881, %v880
      %v908 = vpack.c.b16 %v883, %v882
      %v909 = vpack.c.b16 %v885, %v884
      %v910 = vpack.c.b16 %v887, %v886
      %v911 = vpack.c.b16 %v889, %v888
      %v912 = vpack.c.b16 %v891, %v890
      %v913 = vpack.c.b16 %v893, %v892
      %v914 = vpack.c.b16 %v895, %v894
      %v915 = vpack.c.b16 %v897, %v896
      %vm934 = vcmask 261120
      %v936 = vsel %vm934, %v668, 0
      %v939 = vsel %vm934, %v671, 0
      %v942 = vsel %vm934, %v674, 0
      %v945 = vsel %vm934, %v677, 0
      %v948 = vsel %vm934, %v680, 0
      %v951 = vsel %vm934, %v683, 0
      %v954 = vsel %vm934, %v686, 0
      %v957 = vsel %vm934, %v689, 0
      %v960 = vsel %vm934, %v692, 0
      %v963 = vsel %vm934, %v695, 0
      %v966 = vsel %vm934, %v698, 0
      %v969 = vsel %vm934, %v701, 0
      %v972 = vsel %vm934, %v704, 0
      %v975 = vsel %vm934, %v707, 0
      %v978 = vsel %vm934, %v710, 0
      %v981 = vsel %vm934, %v713, 0
      %v984 = vsel %vm934, %v716, 0
      %v987 = vsel %vm934, %v719, 0
      %v990 = vsel %vm934, %v722, 0
      %v993 = vsel %vm934, %v725, 0
      %v996 = vsel %vm934, %v728, 0
      %v999 = vsel %vm934, %v731, 0
      %v1002 = vsel %vm934, %v734, 0
      %v1005 = vsel %vm934, %v737, 0
      %v1008 = vsel %vm934, %v740, 0
      %v1011 = vsel %vm934, %v743, 0
      %v1014 = vsel %vm934, %v746, 0
      %v1017 = vsel %vm934, %v749, 0
      %v1020 = vsel %vm934, %v752, 0
      %v1023 = vsel %vm934, %v755, 0
      %v1026 = vsel %vm934, %v758, 0
      %v1029 = vsel %vm934, %v761, 0
      %1031 = vmatpush.bf16.msra.mxu0 %v905
      %1032 = vmatpush.bf16.msra.mxu0 %v904
      %1033 = vmatpush.bf16.msra.mxu0 %v903
      %1034 = vmatpush.bf16.msra.mxu0 %v902
      %1035 = vmatpush.bf16.msra.mxu0 %v901
      %1036 = vmatpush.bf16.msra.mxu0 %v900
      %1037 = vmatpush.bf16.msra.mxu0 %v899
      %1038 = vmatpush.bf16.msra.mxu0 %v898
      %1039 = vmatmul.bf16.gmra.mxu0 %v666
      %v1040 = vpop.f32.mrf.mxu0
      %v1041 = vadd.f32 %v344, %v1040
      %v1042 = vpop.f32.mrf.mxu0
      %v1043 = vadd.f32 %v344, %v1042
      %1044 = vmatmul.bf16.gmra.mxu0 %v669
      %v1045 = vpop.f32.mrf.mxu0
      %v1046 = vadd.f32 %v344, %v1045
      %v1047 = vpop.f32.mrf.mxu0
      %v1048 = vadd.f32 %v344, %v1047
      %1049 = vmatmul.bf16.gmra.mxu0 %v672
      %v1050 = vpop.f32.mrf.mxu0
      %v1051 = vadd.f32 %v344, %v1050
      %v1052 = vpop.f32.mrf.mxu0
      %v1053 = vadd.f32 %v344, %v1052
      %1054 = vmatmul.bf16.gmra.mxu0 %v675
      %v1055 = vpop.f32.mrf.mxu0
      %v1056 = vadd.f32 %v344, %v1055
      %v1057 = vpop.f32.mrf.mxu0
      %v1058 = vadd.f32 %v344, %v1057
      %1059 = vmatmul.bf16.gmra.mxu0 %v678
      %v1060 = vpop.f32.mrf.mxu0
      %v1061 = vadd.f32 %v344, %v1060
      %v1062 = vpop.f32.mrf.mxu0
      %v1063 = vadd.f32 %v344, %v1062
      %1064 = vmatmul.bf16.gmra.mxu0 %v681
      %v1065 = vpop.f32.mrf.mxu0
      %v1066 = vadd.f32 %v344, %v1065
      %v1067 = vpop.f32.mrf.mxu0
      %v1068 = vadd.f32 %v344, %v1067
      %1069 = vmatmul.bf16.gmra.mxu0 %v684
      %v1070 = vpop.f32.mrf.mxu0
      %v1071 = vadd.f32 %v344, %v1070
      %v1072 = vpop.f32.mrf.mxu0
      %v1073 = vadd.f32 %v344, %v1072
      %1074 = vmatmul.bf16.gmra.mxu0 %v687
      %v1075 = vpop.f32.mrf.mxu0
      %v1076 = vadd.f32 %v344, %v1075
      %v1077 = vpop.f32.mrf.mxu0
      %v1078 = vadd.f32 %v344, %v1077
      %1079 = vmatmul.bf16.gmra.mxu0 %v690
      %v1080 = vpop.f32.mrf.mxu0
      %v1081 = vadd.f32 %v344, %v1080
      %v1082 = vpop.f32.mrf.mxu0
      %v1083 = vadd.f32 %v344, %v1082
      %1084 = vmatmul.bf16.gmra.mxu0 %v693
      %v1085 = vpop.f32.mrf.mxu0
      %v1086 = vadd.f32 %v344, %v1085
      %v1087 = vpop.f32.mrf.mxu0
      %v1088 = vadd.f32 %v344, %v1087
      %1089 = vmatmul.bf16.gmra.mxu0 %v696
      %v1090 = vpop.f32.mrf.mxu0
      %v1091 = vadd.f32 %v344, %v1090
      %v1092 = vpop.f32.mrf.mxu0
      %v1093 = vadd.f32 %v344, %v1092
      %1094 = vmatmul.bf16.gmra.mxu0 %v699
      %v1095 = vpop.f32.mrf.mxu0
      %v1096 = vadd.f32 %v344, %v1095
      %v1097 = vpop.f32.mrf.mxu0
      %v1098 = vadd.f32 %v344, %v1097
      %1099 = vmatmul.bf16.gmra.mxu0 %v702
      %v1100 = vpop.f32.mrf.mxu0
      %v1101 = vadd.f32 %v344, %v1100
      %v1102 = vpop.f32.mrf.mxu0
      %v1103 = vadd.f32 %v344, %v1102
      %1104 = vmatmul.bf16.gmra.mxu0 %v705
      %v1105 = vpop.f32.mrf.mxu0
      %v1106 = vadd.f32 %v344, %v1105
      %v1107 = vpop.f32.mrf.mxu0
      %v1108 = vadd.f32 %v344, %v1107
      %1109 = vmatmul.bf16.gmra.mxu0 %v708
      %v1110 = vpop.f32.mrf.mxu0
      %v1111 = vadd.f32 %v344, %v1110
      %v1112 = vpop.f32.mrf.mxu0
      %v1113 = vadd.f32 %v344, %v1112
      %1114 = vmatmul.bf16.gmra.mxu0 %v711
      %v1115 = vpop.f32.mrf.mxu0
      %v1116 = vadd.f32 %v344, %v1115
      %v1117 = vpop.f32.mrf.mxu0
      %v1118 = vadd.f32 %v344, %v1117
      %1119 = vmatmul.bf16.gmra.mxu0 %v714
      %v1120 = vpop.f32.mrf.mxu0
      %v1121 = vadd.f32 %v344, %v1120
      %v1122 = vpop.f32.mrf.mxu0
      %v1123 = vadd.f32 %v344, %v1122
      %1124 = vmatmul.bf16.gmra.mxu0 %v717
      %v1125 = vpop.f32.mrf.mxu0
      %v1126 = vadd.f32 %v344, %v1125
      %v1127 = vpop.f32.mrf.mxu0
      %v1128 = vadd.f32 %v344, %v1127
      %1129 = vmatmul.bf16.gmra.mxu0 %v720
      %v1130 = vpop.f32.mrf.mxu0
      %v1131 = vadd.f32 %v344, %v1130
      %v1132 = vpop.f32.mrf.mxu0
      %v1133 = vadd.f32 %v344, %v1132
      %1134 = vmatmul.bf16.gmra.mxu0 %v723
      %v1135 = vpop.f32.mrf.mxu0
      %v1136 = vadd.f32 %v344, %v1135
      %v1137 = vpop.f32.mrf.mxu0
      %v1138 = vadd.f32 %v344, %v1137
      %1139 = vmatmul.bf16.gmra.mxu0 %v726
      %v1140 = vpop.f32.mrf.mxu0
      %v1141 = vadd.f32 %v344, %v1140
      %v1142 = vpop.f32.mrf.mxu0
      %v1143 = vadd.f32 %v344, %v1142
      %1144 = vmatmul.bf16.gmra.mxu0 %v729
      %v1145 = vpop.f32.mrf.mxu0
      %v1146 = vadd.f32 %v344, %v1145
      %v1147 = vpop.f32.mrf.mxu0
      %v1148 = vadd.f32 %v344, %v1147
      %1149 = vmatmul.bf16.gmra.mxu0 %v732
      %v1150 = vpop.f32.mrf.mxu0
      %v1151 = vadd.f32 %v344, %v1150
      %v1152 = vpop.f32.mrf.mxu0
      %v1153 = vadd.f32 %v344, %v1152
      %1154 = vmatmul.bf16.gmra.mxu0 %v735
      %v1155 = vpop.f32.mrf.mxu0
      %v1156 = vadd.f32 %v344, %v1155
      %v1157 = vpop.f32.mrf.mxu0
      %v1158 = vadd.f32 %v344, %v1157
      %1159 = vmatmul.bf16.gmra.mxu0 %v738
      %v1160 = vpop.f32.mrf.mxu0
      %v1161 = vadd.f32 %v344, %v1160
      %v1162 = vpop.f32.mrf.mxu0
      %v1163 = vadd.f32 %v344, %v1162
      %1164 = vmatmul.bf16.gmra.mxu0 %v741
      %v1165 = vpop.f32.mrf.mxu0
      %v1166 = vadd.f32 %v344, %v1165
      %v1167 = vpop.f32.mrf.mxu0
      %v1168 = vadd.f32 %v344, %v1167
      %1169 = vmatmul.bf16.gmra.mxu0 %v744
      %v1170 = vpop.f32.mrf.mxu0
      %v1171 = vadd.f32 %v344, %v1170
      %v1172 = vpop.f32.mrf.mxu0
      %v1173 = vadd.f32 %v344, %v1172
      %1174 = vmatmul.bf16.gmra.mxu0 %v747
      %v1175 = vpop.f32.mrf.mxu0
      %v1176 = vadd.f32 %v344, %v1175
      %v1177 = vpop.f32.mrf.mxu0
      %v1178 = vadd.f32 %v344, %v1177
      %1179 = vmatmul.bf16.gmra.mxu0 %v750
      %v1180 = vpop.f32.mrf.mxu0
      %v1181 = vadd.f32 %v344, %v1180
      %v1182 = vpop.f32.mrf.mxu0
      %v1183 = vadd.f32 %v344, %v1182
      %1184 = vmatmul.bf16.gmra.mxu0 %v753
      %v1185 = vpop.f32.mrf.mxu0
      %v1186 = vadd.f32 %v344, %v1185
      %v1187 = vpop.f32.mrf.mxu0
      %v1188 = vadd.f32 %v344, %v1187
      %1189 = vmatmul.bf16.gmra.mxu0 %v756
      %v1190 = vpop.f32.mrf.mxu0
      %v1191 = vadd.f32 %v344, %v1190
      %v1192 = vpop.f32.mrf.mxu0
      %v1193 = vadd.f32 %v344, %v1192
      %1194 = vmatmul.bf16.gmra.mxu0 %v759
      %v1195 = vpop.f32.mrf.mxu0
      %v1196 = vadd.f32 %v344, %v1195
      %v1197 = vpop.f32.mrf.mxu0
      %v1198 = vadd.f32 %v344, %v1197
      %1199 = vdwg.mxu0
      %1200 = vmatpush.bf16.msra.mxu0 %v913
      %1201 = vmatpush.bf16.msra.mxu0 %v912
      %1202 = vmatpush.bf16.msra.mxu0 %v911
      %1203 = vmatpush.bf16.msra.mxu0 %v910
      %1204 = vmatpush.bf16.msra.mxu0 %v909
      %1205 = vmatpush.bf16.msra.mxu0 %v908
      %1206 = vmatpush.bf16.msra.mxu0 %v907
      %1207 = vmatpush.bf16.msra.mxu0 %v906
      %1208 = vmatmul.bf16.gmra.mxu0 %v667
      %v1209 = vpop.f32.mrf.mxu0
      %v1210 = vadd.f32 %v1041, %v1209
      %v1211 = vpop.f32.mrf.mxu0
      %v1212 = vadd.f32 %v1043, %v1211
      %1213 = vmatmul.bf16.gmra.mxu0 %v670
      %v1214 = vpop.f32.mrf.mxu0
      %v1215 = vadd.f32 %v1046, %v1214
      %v1216 = vpop.f32.mrf.mxu0
      %v1217 = vadd.f32 %v1048, %v1216
      %1218 = vmatmul.bf16.gmra.mxu0 %v673
      %v1219 = vpop.f32.mrf.mxu0
      %v1220 = vadd.f32 %v1051, %v1219
      %v1221 = vpop.f32.mrf.mxu0
      %v1222 = vadd.f32 %v1053, %v1221
      %1223 = vmatmul.bf16.gmra.mxu0 %v676
      %v1224 = vpop.f32.mrf.mxu0
      %v1225 = vadd.f32 %v1056, %v1224
      %v1226 = vpop.f32.mrf.mxu0
      %v1227 = vadd.f32 %v1058, %v1226
      %1228 = vmatmul.bf16.gmra.mxu0 %v679
      %v1229 = vpop.f32.mrf.mxu0
      %v1230 = vadd.f32 %v1061, %v1229
      %v1231 = vpop.f32.mrf.mxu0
      %v1232 = vadd.f32 %v1063, %v1231
      %1233 = vmatmul.bf16.gmra.mxu0 %v682
      %v1234 = vpop.f32.mrf.mxu0
      %v1235 = vadd.f32 %v1066, %v1234
      %v1236 = vpop.f32.mrf.mxu0
      %v1237 = vadd.f32 %v1068, %v1236
      %1238 = vmatmul.bf16.gmra.mxu0 %v685
      %v1239 = vpop.f32.mrf.mxu0
      %v1240 = vadd.f32 %v1071, %v1239
      %v1241 = vpop.f32.mrf.mxu0
      %v1242 = vadd.f32 %v1073, %v1241
      %1243 = vmatmul.bf16.gmra.mxu0 %v688
      %v1244 = vpop.f32.mrf.mxu0
      %v1245 = vadd.f32 %v1076, %v1244
      %v1246 = vpop.f32.mrf.mxu0
      %v1247 = vadd.f32 %v1078, %v1246
      %1248 = vmatmul.bf16.gmra.mxu0 %v691
      %v1249 = vpop.f32.mrf.mxu0
      %v1250 = vadd.f32 %v1081, %v1249
      %v1251 = vpop.f32.mrf.mxu0
      %v1252 = vadd.f32 %v1083, %v1251
      %1253 = vmatmul.bf16.gmra.mxu0 %v694
      %v1254 = vpop.f32.mrf.mxu0
      %v1255 = vadd.f32 %v1086, %v1254
      %v1256 = vpop.f32.mrf.mxu0
      %v1257 = vadd.f32 %v1088, %v1256
      %1258 = vmatmul.bf16.gmra.mxu0 %v697
      %v1259 = vpop.f32.mrf.mxu0
      %v1260 = vadd.f32 %v1091, %v1259
      %v1261 = vpop.f32.mrf.mxu0
      %v1262 = vadd.f32 %v1093, %v1261
      %1263 = vmatmul.bf16.gmra.mxu0 %v700
      %v1264 = vpop.f32.mrf.mxu0
      %v1265 = vadd.f32 %v1096, %v1264
      %v1266 = vpop.f32.mrf.mxu0
      %v1267 = vadd.f32 %v1098, %v1266
      %1268 = vmatmul.bf16.gmra.mxu0 %v703
      %v1269 = vpop.f32.mrf.mxu0
      %v1270 = vadd.f32 %v1101, %v1269
      %v1271 = vpop.f32.mrf.mxu0
      %v1272 = vadd.f32 %v1103, %v1271
      %1273 = vmatmul.bf16.gmra.mxu0 %v706
      %v1274 = vpop.f32.mrf.mxu0
      %v1275 = vadd.f32 %v1106, %v1274
      %v1276 = vpop.f32.mrf.mxu0
      %v1277 = vadd.f32 %v1108, %v1276
      %1278 = vmatmul.bf16.gmra.mxu0 %v709
      %v1279 = vpop.f32.mrf.mxu0
      %v1280 = vadd.f32 %v1111, %v1279
      %v1281 = vpop.f32.mrf.mxu0
      %v1282 = vadd.f32 %v1113, %v1281
      %1283 = vmatmul.bf16.gmra.mxu0 %v712
      %v1284 = vpop.f32.mrf.mxu0
      %v1285 = vadd.f32 %v1116, %v1284
      %v1286 = vpop.f32.mrf.mxu0
      %v1287 = vadd.f32 %v1118, %v1286
      %1288 = vmatmul.bf16.gmra.mxu0 %v715
      %v1289 = vpop.f32.mrf.mxu0
      %v1290 = vadd.f32 %v1121, %v1289
      %v1291 = vpop.f32.mrf.mxu0
      %v1292 = vadd.f32 %v1123, %v1291
      %1293 = vmatmul.bf16.gmra.mxu0 %v718
      %v1294 = vpop.f32.mrf.mxu0
      %v1295 = vadd.f32 %v1126, %v1294
      %v1296 = vpop.f32.mrf.mxu0
      %v1297 = vadd.f32 %v1128, %v1296
      %1298 = vmatmul.bf16.gmra.mxu0 %v721
      %v1299 = vpop.f32.mrf.mxu0
      %v1300 = vadd.f32 %v1131, %v1299
      %v1301 = vpop.f32.mrf.mxu0
      %v1302 = vadd.f32 %v1133, %v1301
      %1303 = vmatmul.bf16.gmra.mxu0 %v724
      %v1304 = vpop.f32.mrf.mxu0
      %v1305 = vadd.f32 %v1136, %v1304
      %v1306 = vpop.f32.mrf.mxu0
      %v1307 = vadd.f32 %v1138, %v1306
      %1308 = vmatmul.bf16.gmra.mxu0 %v727
      %v1309 = vpop.f32.mrf.mxu0
      %v1310 = vadd.f32 %v1141, %v1309
      %v1311 = vpop.f32.mrf.mxu0
      %v1312 = vadd.f32 %v1143, %v1311
      %1313 = vmatmul.bf16.gmra.mxu0 %v730
      %v1314 = vpop.f32.mrf.mxu0
      %v1315 = vadd.f32 %v1146, %v1314
      %v1316 = vpop.f32.mrf.mxu0
      %v1317 = vadd.f32 %v1148, %v1316
      %1318 = vmatmul.bf16.gmra.mxu0 %v733
      %v1319 = vpop.f32.mrf.mxu0
      %v1320 = vadd.f32 %v1151, %v1319
      %v1321 = vpop.f32.mrf.mxu0
      %v1322 = vadd.f32 %v1153, %v1321
      %1323 = vmatmul.bf16.gmra.mxu0 %v736
      %v1324 = vpop.f32.mrf.mxu0
      %v1325 = vadd.f32 %v1156, %v1324
      %v1326 = vpop.f32.mrf.mxu0
      %v1327 = vadd.f32 %v1158, %v1326
      %1328 = vmatmul.bf16.gmra.mxu0 %v739
      %v1329 = vpop.f32.mrf.mxu0
      %v1330 = vadd.f32 %v1161, %v1329
      %v1331 = vpop.f32.mrf.mxu0
      %v1332 = vadd.f32 %v1163, %v1331
      %1333 = vmatmul.bf16.gmra.mxu0 %v742
      %v1334 = vpop.f32.mrf.mxu0
      %v1335 = vadd.f32 %v1166, %v1334
      %v1336 = vpop.f32.mrf.mxu0
      %v1337 = vadd.f32 %v1168, %v1336
      %1338 = vmatmul.bf16.gmra.mxu0 %v745
      %v1339 = vpop.f32.mrf.mxu0
      %v1340 = vadd.f32 %v1171, %v1339
      %v1341 = vpop.f32.mrf.mxu0
      %v1342 = vadd.f32 %v1173, %v1341
      %1343 = vmatmul.bf16.gmra.mxu0 %v748
      %v1344 = vpop.f32.mrf.mxu0
      %v1345 = vadd.f32 %v1176, %v1344
      %v1346 = vpop.f32.mrf.mxu0
      %v1347 = vadd.f32 %v1178, %v1346
      %1348 = vmatmul.bf16.gmra.mxu0 %v751
      %v1349 = vpop.f32.mrf.mxu0
      %v1350 = vadd.f32 %v1181, %v1349
      %v1351 = vpop.f32.mrf.mxu0
      %v1352 = vadd.f32 %v1183, %v1351
      %1353 = vmatmul.bf16.gmra.mxu0 %v754
      %v1354 = vpop.f32.mrf.mxu0
      %v1355 = vadd.f32 %v1186, %v1354
      %v1356 = vpop.f32.mrf.mxu0
      %v1357 = vadd.f32 %v1188, %v1356
      %1358 = vmatmul.bf16.gmra.mxu0 %v757
      %v1359 = vpop.f32.mrf.mxu0
      %v1360 = vadd.f32 %v1191, %v1359
      %v1361 = vpop.f32.mrf.mxu0
      %v1362 = vadd.f32 %v1193, %v1361
      %1363 = vmatmul.bf16.gmra.mxu0 %v760
      %v1364 = vpop.f32.mrf.mxu0
      %v1365 = vadd.f32 %v1196, %v1364
      %v1366 = vpop.f32.mrf.mxu0
      %v1367 = vadd.f32 %v1198, %v1366
      %1368 = vdwg.mxu0
      %1369 = vmatpush.bf16.msra.mxu0 0
      %1370 = vmatpush.bf16.msra.mxu0 0
      %1371 = vmatpush.bf16.msra.mxu0 0
      %1372 = vmatpush.bf16.msra.mxu0 0
      %1373 = vmatpush.bf16.msra.mxu0 0
      %1374 = vmatpush.bf16.msra.mxu0 0
      %1375 = vmatpush.bf16.msra.mxu0 %v915
      %1376 = vmatpush.bf16.msra.mxu0 %v914
      %1377 = vmatmul.bf16.gmra.mxu0 %v936
      %v1378 = vpop.f32.mrf.mxu0
      %v1379 = vadd.f32 %v1210, %v1378
      %v1380 = vpop.f32.mrf.mxu0
      %v1381 = vadd.f32 %v1212, %v1380
      %1382 = vmatmul.bf16.gmra.mxu0 %v939
      %v1383 = vpop.f32.mrf.mxu0
      %v1384 = vadd.f32 %v1215, %v1383
      %v1385 = vpop.f32.mrf.mxu0
      %v1386 = vadd.f32 %v1217, %v1385
      %1387 = vmatmul.bf16.gmra.mxu0 %v942
      %v1388 = vpop.f32.mrf.mxu0
      %v1389 = vadd.f32 %v1220, %v1388
      %v1390 = vpop.f32.mrf.mxu0
      %v1391 = vadd.f32 %v1222, %v1390
      %1392 = vmatmul.bf16.gmra.mxu0 %v945
      %v1393 = vpop.f32.mrf.mxu0
      %v1394 = vadd.f32 %v1225, %v1393
      %v1395 = vpop.f32.mrf.mxu0
      %v1396 = vadd.f32 %v1227, %v1395
      %1397 = vmatmul.bf16.gmra.mxu0 %v948
      %v1398 = vpop.f32.mrf.mxu0
      %v1399 = vadd.f32 %v1230, %v1398
      %v1400 = vpop.f32.mrf.mxu0
      %v1401 = vadd.f32 %v1232, %v1400
      %1402 = vmatmul.bf16.gmra.mxu0 %v951
      %v1403 = vpop.f32.mrf.mxu0
      %v1404 = vadd.f32 %v1235, %v1403
      %v1405 = vpop.f32.mrf.mxu0
      %v1406 = vadd.f32 %v1237, %v1405
      %1407 = vmatmul.bf16.gmra.mxu0 %v954
      %v1408 = vpop.f32.mrf.mxu0
      %v1409 = vadd.f32 %v1240, %v1408
      %v1410 = vpop.f32.mrf.mxu0
      %v1411 = vadd.f32 %v1242, %v1410
      %1412 = vmatmul.bf16.gmra.mxu0 %v957
      %v1413 = vpop.f32.mrf.mxu0
      %v1414 = vadd.f32 %v1245, %v1413
      %v1415 = vpop.f32.mrf.mxu0
      %v1416 = vadd.f32 %v1247, %v1415
      %1417 = vmatmul.bf16.gmra.mxu0 %v960
      %v1418 = vpop.f32.mrf.mxu0
      %v1419 = vadd.f32 %v1250, %v1418
      %v1420 = vpop.f32.mrf.mxu0
      %v1421 = vadd.f32 %v1252, %v1420
      %1422 = vmatmul.bf16.gmra.mxu0 %v963
      %v1423 = vpop.f32.mrf.mxu0
      %v1424 = vadd.f32 %v1255, %v1423
      %v1425 = vpop.f32.mrf.mxu0
      %v1426 = vadd.f32 %v1257, %v1425
      %1427 = vmatmul.bf16.gmra.mxu0 %v966
      %v1428 = vpop.f32.mrf.mxu0
      %v1429 = vadd.f32 %v1260, %v1428
      %v1430 = vpop.f32.mrf.mxu0
      %v1431 = vadd.f32 %v1262, %v1430
      %1432 = vmatmul.bf16.gmra.mxu0 %v969
      %v1433 = vpop.f32.mrf.mxu0
      %v1434 = vadd.f32 %v1265, %v1433
      %v1435 = vpop.f32.mrf.mxu0
      %v1436 = vadd.f32 %v1267, %v1435
      %1437 = vmatmul.bf16.gmra.mxu0 %v972
      %v1438 = vpop.f32.mrf.mxu0
      %v1439 = vadd.f32 %v1270, %v1438
      %v1440 = vpop.f32.mrf.mxu0
      %v1441 = vadd.f32 %v1272, %v1440
      %1442 = vmatmul.bf16.gmra.mxu0 %v975
      %v1443 = vpop.f32.mrf.mxu0
      %v1444 = vadd.f32 %v1275, %v1443
      %v1445 = vpop.f32.mrf.mxu0
      %v1446 = vadd.f32 %v1277, %v1445
      %1447 = vmatmul.bf16.gmra.mxu0 %v978
      %v1448 = vpop.f32.mrf.mxu0
      %v1449 = vadd.f32 %v1280, %v1448
      %v1450 = vpop.f32.mrf.mxu0
      %v1451 = vadd.f32 %v1282, %v1450
      %1452 = vmatmul.bf16.gmra.mxu0 %v981
      %v1453 = vpop.f32.mrf.mxu0
      %v1454 = vadd.f32 %v1285, %v1453
      %v1455 = vpop.f32.mrf.mxu0
      %v1456 = vadd.f32 %v1287, %v1455
      %1457 = vmatmul.bf16.gmra.mxu0 %v984
      %v1458 = vpop.f32.mrf.mxu0
      %v1459 = vadd.f32 %v1290, %v1458
      %v1460 = vpop.f32.mrf.mxu0
      %v1461 = vadd.f32 %v1292, %v1460
      %1462 = vmatmul.bf16.gmra.mxu0 %v987
      %v1463 = vpop.f32.mrf.mxu0
      %v1464 = vadd.f32 %v1295, %v1463
      %v1465 = vpop.f32.mrf.mxu0
      %v1466 = vadd.f32 %v1297, %v1465
      %1467 = vmatmul.bf16.gmra.mxu0 %v990
      %v1468 = vpop.f32.mrf.mxu0
      %v1469 = vadd.f32 %v1300, %v1468
      %v1470 = vpop.f32.mrf.mxu0
      %v1471 = vadd.f32 %v1302, %v1470
      %1472 = vmatmul.bf16.gmra.mxu0 %v993
      %v1473 = vpop.f32.mrf.mxu0
      %v1474 = vadd.f32 %v1305, %v1473
      %v1475 = vpop.f32.mrf.mxu0
      %v1476 = vadd.f32 %v1307, %v1475
      %1477 = vmatmul.bf16.gmra.mxu0 %v996
      %v1478 = vpop.f32.mrf.mxu0
      %v1479 = vadd.f32 %v1310, %v1478
      %v1480 = vpop.f32.mrf.mxu0
      %v1481 = vadd.f32 %v1312, %v1480
      %1482 = vmatmul.bf16.gmra.mxu0 %v999
      %v1483 = vpop.f32.mrf.mxu0
      %v1484 = vadd.f32 %v1315, %v1483
      %v1485 = vpop.f32.mrf.mxu0
      %v1486 = vadd.f32 %v1317, %v1485
      %1487 = vmatmul.bf16.gmra.mxu0 %v1002
      %v1488 = vpop.f32.mrf.mxu0
      %v1489 = vadd.f32 %v1320, %v1488
      %v1490 = vpop.f32.mrf.mxu0
      %v1491 = vadd.f32 %v1322, %v1490
      %1492 = vmatmul.bf16.gmra.mxu0 %v1005
      %v1493 = vpop.f32.mrf.mxu0
      %v1494 = vadd.f32 %v1325, %v1493
      %v1495 = vpop.f32.mrf.mxu0
      %v1496 = vadd.f32 %v1327, %v1495
      %1497 = vmatmul.bf16.gmra.mxu0 %v1008
      %v1498 = vpop.f32.mrf.mxu0
      %v1499 = vadd.f32 %v1330, %v1498
      %v1500 = vpop.f32.mrf.mxu0
      %v1501 = vadd.f32 %v1332, %v1500
      %1502 = vmatmul.bf16.gmra.mxu0 %v1011
      %v1503 = vpop.f32.mrf.mxu0
      %v1504 = vadd.f32 %v1335, %v1503
      %v1505 = vpop.f32.mrf.mxu0
      %v1506 = vadd.f32 %v1337, %v1505
      %1507 = vmatmul.bf16.gmra.mxu0 %v1014
      %v1508 = vpop.f32.mrf.mxu0
      %v1509 = vadd.f32 %v1340, %v1508
      %v1510 = vpop.f32.mrf.mxu0
      %v1511 = vadd.f32 %v1342, %v1510
      %1512 = vmatmul.bf16.gmra.mxu0 %v1017
      %v1513 = vpop.f32.mrf.mxu0
      %v1514 = vadd.f32 %v1345, %v1513
      %v1515 = vpop.f32.mrf.mxu0
      %v1516 = vadd.f32 %v1347, %v1515
      %1517 = vmatmul.bf16.gmra.mxu0 %v1020
      %v1518 = vpop.f32.mrf.mxu0
      %v1519 = vadd.f32 %v1350, %v1518
      %v1520 = vpop.f32.mrf.mxu0
      %v1521 = vadd.f32 %v1352, %v1520
      %1522 = vmatmul.bf16.gmra.mxu0 %v1023
      %v1523 = vpop.f32.mrf.mxu0
      %v1524 = vadd.f32 %v1355, %v1523
      %v1525 = vpop.f32.mrf.mxu0
      %v1526 = vadd.f32 %v1357, %v1525
      %1527 = vmatmul.bf16.gmra.mxu0 %v1026
      %v1528 = vpop.f32.mrf.mxu0
      %v1529 = vadd.f32 %v1360, %v1528
      %v1530 = vpop.f32.mrf.mxu0
      %v1531 = vadd.f32 %v1362, %v1530
      %1532 = vmatmul.bf16.gmra.mxu0 %v1029
      %v1533 = vpop.f32.mrf.mxu0
      %v1534 = vadd.f32 %v1365, %v1533
      %v1535 = vpop.f32.mrf.mxu0
      %v1536 = vadd.f32 %v1367, %v1535
      %1537 = vdwg.mxu0
      %vm1538 = vcmp.ge.f32.partialorder %v1379, 0.0
      %vm1539 = vcmp.ge.f32.partialorder %v1381, 0.0
      %vm1540 = vcmp.ge.f32.partialorder %v1384, 0.0
      %vm1541 = vcmp.ge.f32.partialorder %v1386, 0.0
      %vm1542 = vcmp.ge.f32.partialorder %v1389, 0.0
      %vm1543 = vcmp.ge.f32.partialorder %v1391, 0.0
      %vm1544 = vcmp.ge.f32.partialorder %v1394, 0.0
      %vm1545 = vcmp.ge.f32.partialorder %v1396, 0.0
      %vm1546 = vcmp.ge.f32.partialorder %v1399, 0.0
      %vm1547 = vcmp.ge.f32.partialorder %v1401, 0.0
      %vm1548 = vcmp.ge.f32.partialorder %v1404, 0.0
      %vm1549 = vcmp.ge.f32.partialorder %v1406, 0.0
      %vm1550 = vcmp.ge.f32.partialorder %v1409, 0.0
      %vm1551 = vcmp.ge.f32.partialorder %v1411, 0.0
      %vm1552 = vcmp.ge.f32.partialorder %v1414, 0.0
      %vm1553 = vcmp.ge.f32.partialorder %v1416, 0.0
      %vm1554 = vcmp.ge.f32.partialorder %v1419, 0.0
      %vm1555 = vcmp.ge.f32.partialorder %v1421, 0.0
      %vm1556 = vcmp.ge.f32.partialorder %v1424, 0.0
      %vm1557 = vcmp.ge.f32.partialorder %v1426, 0.0
      %vm1558 = vcmp.ge.f32.partialorder %v1429, 0.0
      %vm1559 = vcmp.ge.f32.partialorder %v1431, 0.0
      %vm1560 = vcmp.ge.f32.partialorder %v1434, 0.0
      %vm1561 = vcmp.ge.f32.partialorder %v1436, 0.0
      %vm1562 = vcmp.ge.f32.partialorder %v1439, 0.0
      %vm1563 = vcmp.ge.f32.partialorder %v1441, 0.0
      %vm1564 = vcmp.ge.f32.partialorder %v1444, 0.0
      %vm1565 = vcmp.ge.f32.partialorder %v1446, 0.0
      %vm1566 = vcmp.ge.f32.partialorder %v1449, 0.0
      %vm1567 = vcmp.ge.f32.partialorder %v1451, 0.0
      %vm1568 = vcmp.ge.f32.partialorder %v1454, 0.0
      %vm1569 = vcmp.ge.f32.partialorder %v1456, 0.0
      %vm1570 = vcmp.ge.f32.partialorder %v1459, 0.0
      %vm1571 = vcmp.ge.f32.partialorder %v1461, 0.0
      %vm1572 = vcmp.ge.f32.partialorder %v1464, 0.0
      %vm1573 = vcmp.ge.f32.partialorder %v1466, 0.0
      %vm1574 = vcmp.ge.f32.partialorder %v1469, 0.0
      %vm1575 = vcmp.ge.f32.partialorder %v1471, 0.0
      %vm1576 = vcmp.ge.f32.partialorder %v1474, 0.0
      %vm1577 = vcmp.ge.f32.partialorder %v1476, 0.0
      %vm1578 = vcmp.ge.f32.partialorder %v1479, 0.0
      %vm1579 = vcmp.ge.f32.partialorder %v1481, 0.0
      %vm1580 = vcmp.ge.f32.partialorder %v1484, 0.0
      %vm1581 = vcmp.ge.f32.partialorder %v1486, 0.0
      %vm1582 = vcmp.ge.f32.partialorder %v1489, 0.0
      %vm1583 = vcmp.ge.f32.partialorder %v1491, 0.0
      %vm1584 = vcmp.ge.f32.partialorder %v1494, 0.0
      %vm1585 = vcmp.ge.f32.partialorder %v1496, 0.0
      %vm1586 = vcmp.ge.f32.partialorder %v1499, 0.0
      %vm1587 = vcmp.ge.f32.partialorder %v1501, 0.0
      %vm1588 = vcmp.ge.f32.partialorder %v1504, 0.0
      %vm1589 = vcmp.ge.f32.partialorder %v1506, 0.0
      %vm1590 = vcmp.ge.f32.partialorder %v1509, 0.0
      %vm1591 = vcmp.ge.f32.partialorder %v1511, 0.0
      %vm1592 = vcmp.ge.f32.partialorder %v1514, 0.0
      %vm1593 = vcmp.ge.f32.partialorder %v1516, 0.0
      %vm1594 = vcmp.ge.f32.partialorder %v1519, 0.0
      %vm1595 = vcmp.ge.f32.partialorder %v1521, 0.0
      %vm1596 = vcmp.ge.f32.partialorder %v1524, 0.0
      %vm1597 = vcmp.ge.f32.partialorder %v1526, 0.0
      %vm1598 = vcmp.ge.f32.partialorder %v1529, 0.0
      %vm1599 = vcmp.ge.f32.partialorder %v1531, 0.0
      %vm1600 = vcmp.ge.f32.partialorder %v1534, 0.0
      %vm1601 = vcmp.ge.f32.partialorder %v1536, 0.0
      %v1602 = vmul.f32 %v1379, 0.02
      %v1603 = vmul.f32 %v1381, 0.02
      %v1604 = vmul.f32 %v1384, 0.02
      %v1605 = vmul.f32 %v1386, 0.02
      %v1606 = vmul.f32 %v1389, 0.02
      %v1607 = vmul.f32 %v1391, 0.02
      %v1608 = vmul.f32 %v1394, 0.02
      %v1609 = vmul.f32 %v1396, 0.02
      %v1610 = vmul.f32 %v1399, 0.02
      %v1611 = vmul.f32 %v1401, 0.02
      %v1612 = vmul.f32 %v1404, 0.02
      %v1613 = vmul.f32 %v1406, 0.02
      %v1614 = vmul.f32 %v1409, 0.02
      %v1615 = vmul.f32 %v1411, 0.02
      %v1616 = vmul.f32 %v1414, 0.02
      %v1617 = vmul.f32 %v1416, 0.02
      %v1618 = vmul.f32 %v1419, 0.02
      %v1619 = vmul.f32 %v1421, 0.02
      %v1620 = vmul.f32 %v1424, 0.02
      %v1621 = vmul.f32 %v1426, 0.02
      %v1622 = vmul.f32 %v1429, 0.02
      %v1623 = vmul.f32 %v1431, 0.02
      %v1624 = vmul.f32 %v1434, 0.02
      %v1625 = vmul.f32 %v1436, 0.02
      %v1626 = vmul.f32 %v1439, 0.02
      %v1627 = vmul.f32 %v1441, 0.02
      %v1628 = vmul.f32 %v1444, 0.02
      %v1629 = vmul.f32 %v1446, 0.02
      %v1630 = vmul.f32 %v1449, 0.02
      %v1631 = vmul.f32 %v1451, 0.02
      %v1632 = vmul.f32 %v1454, 0.02
      %v1633 = vmul.f32 %v1456, 0.02
      %v1634 = vmul.f32 %v1459, 0.02
      %v1635 = vmul.f32 %v1461, 0.02
      %v1636 = vmul.f32 %v1464, 0.02
      %v1637 = vmul.f32 %v1466, 0.02
      %v1638 = vmul.f32 %v1469, 0.02
      %v1639 = vmul.f32 %v1471, 0.02
      %v1640 = vmul.f32 %v1474, 0.02
      %v1641 = vmul.f32 %v1476, 0.02
      %v1642 = vmul.f32 %v1479, 0.02
      %v1643 = vmul.f32 %v1481, 0.02
      %v1644 = vmul.f32 %v1484, 0.02
      %v1645 = vmul.f32 %v1486, 0.02
      %v1646 = vmul.f32 %v1489, 0.02
      %v1647 = vmul.f32 %v1491, 0.02
      %v1648 = vmul.f32 %v1494, 0.02
      %v1649 = vmul.f32 %v1496, 0.02
      %v1650 = vmul.f32 %v1499, 0.02
      %v1651 = vmul.f32 %v1501, 0.02
      %v1652 = vmul.f32 %v1504, 0.02
      %v1653 = vmul.f32 %v1506, 0.02
      %v1654 = vmul.f32 %v1509, 0.02
      %v1655 = vmul.f32 %v1511, 0.02
      %v1656 = vmul.f32 %v1514, 0.02
      %v1657 = vmul.f32 %v1516, 0.02
      %v1658 = vmul.f32 %v1519, 0.02
      %v1659 = vmul.f32 %v1521, 0.02
      %v1660 = vmul.f32 %v1524, 0.02
      %v1661 = vmul.f32 %v1526, 0.02
      %v1662 = vmul.f32 %v1529, 0.02
      %v1663 = vmul.f32 %v1531, 0.02
      %v1664 = vmul.f32 %v1534, 0.02
      %v1665 = vmul.f32 %v1536, 0.02
      %v1666 = vsel %vm1538, %v1379, %v1602
      %v1667 = vsel %vm1539, %v1381, %v1603
      %v1668 = vsel %vm1540, %v1384, %v1604
      %v1669 = vsel %vm1541, %v1386, %v1605
      %v1670 = vsel %vm1542, %v1389, %v1606
      %v1671 = vsel %vm1543, %v1391, %v1607
      %v1672 = vsel %vm1544, %v1394, %v1608
      %v1673 = vsel %vm1545, %v1396, %v1609
      %v1674 = vsel %vm1546, %v1399, %v1610
      %v1675 = vsel %vm1547, %v1401, %v1611
      %v1676 = vsel %vm1548, %v1404, %v1612
      %v1677 = vsel %vm1549, %v1406, %v1613
      %v1678 = vsel %vm1550, %v1409, %v1614
      %v1679 = vsel %vm1551, %v1411, %v1615
      %v1680 = vsel %vm1552, %v1414, %v1616
      %v1681 = vsel %vm1553, %v1416, %v1617
      %v1682 = vsel %vm1554, %v1419, %v1618
      %v1683 = vsel %vm1555, %v1421, %v1619
      %v1684 = vsel %vm1556, %v1424, %v1620
      %v1685 = vsel %vm1557, %v1426, %v1621
      %v1686 = vsel %vm1558, %v1429, %v1622
      %v1687 = vsel %vm1559, %v1431, %v1623
      %v1688 = vsel %vm1560, %v1434, %v1624
      %v1689 = vsel %vm1561, %v1436, %v1625
      %v1690 = vsel %vm1562, %v1439, %v1626
      %v1691 = vsel %vm1563, %v1441, %v1627
      %v1692 = vsel %vm1564, %v1444, %v1628
      %v1693 = vsel %vm1565, %v1446, %v1629
      %v1694 = vsel %vm1566, %v1449, %v1630
      %v1695 = vsel %vm1567, %v1451, %v1631
      %v1696 = vsel %vm1568, %v1454, %v1632
      %v1697 = vsel %vm1569, %v1456, %v1633
      %v1698 = vsel %vm1570, %v1459, %v1634
      %v1699 = vsel %vm1571, %v1461, %v1635
      %v1700 = vsel %vm1572, %v1464, %v1636
      %v1701 = vsel %vm1573, %v1466, %v1637
      %v1702 = vsel %vm1574, %v1469, %v1638
      %v1703 = vsel %vm1575, %v1471, %v1639
      %v1704 = vsel %vm1576, %v1474, %v1640
      %v1705 = vsel %vm1577, %v1476, %v1641
      %v1706 = vsel %vm1578, %v1479, %v1642
      %v1707 = vsel %vm1579, %v1481, %v1643
      %v1708 = vsel %vm1580, %v1484, %v1644
      %v1709 = vsel %vm1581, %v1486, %v1645
      %v1710 = vsel %vm1582, %v1489, %v1646
      %v1711 = vsel %vm1583, %v1491, %v1647
      %v1712 = vsel %vm1584, %v1494, %v1648
      %v1713 = vsel %vm1585, %v1496, %v1649
      %v1714 = vsel %vm1586, %v1499, %v1650
      %v1715 = vsel %vm1587, %v1501, %v1651
      %v1716 = vsel %vm1588, %v1504, %v1652
      %v1717 = vsel %vm1589, %v1506, %v1653
      %v1718 = vsel %vm1590, %v1509, %v1654
      %v1719 = vsel %vm1591, %v1511, %v1655
      %v1720 = vsel %vm1592, %v1514, %v1656
      %v1721 = vsel %vm1593, %v1516, %v1657
      %v1722 = vsel %vm1594, %v1519, %v1658
      %v1723 = vsel %vm1595, %v1521, %v1659
      %v1724 = vsel %vm1596, %v1524, %v1660
      %v1725 = vsel %vm1597, %v1526, %v1661
      %v1726 = vsel %vm1598, %v1529, %v1662
      %v1727 = vsel %vm1599, %v1531, %v1663
      %v1728 = vsel %vm1600, %v1534, %v1664
      %v1729 = vsel %vm1601, %v1536, %v1665
      %v1730 = vpack.c.bf16 %v1666, %v1666
      %v1731 = vpack.c.bf16 %v1667, %v1667
      %v1732 = vpack.c.bf16 %v1668, %v1668
      %v1733 = vpack.c.bf16 %v1669, %v1669
      %v1734 = vpack.c.bf16 %v1670, %v1670
      %v1735 = vpack.c.bf16 %v1671, %v1671
      %v1736 = vpack.c.bf16 %v1672, %v1672
      %v1737 = vpack.c.bf16 %v1673, %v1673
      %v1738 = vpack.c.bf16 %v1674, %v1674
      %v1739 = vpack.c.bf16 %v1675, %v1675
      %v1740 = vpack.c.bf16 %v1676, %v1676
      %v1741 = vpack.c.bf16 %v1677, %v1677
      %v1742 = vpack.c.bf16 %v1678, %v1678
      %v1743 = vpack.c.bf16 %v1679, %v1679
      %v1744 = vpack.c.bf16 %v1680, %v1680
      %v1745 = vpack.c.bf16 %v1681, %v1681
      %v1746 = vpack.c.bf16 %v1682, %v1682
      %v1747 = vpack.c.bf16 %v1683, %v1683
      %v1748 = vpack.c.bf16 %v1684, %v1684
      %v1749 = vpack.c.bf16 %v1685, %v1685
      %v1750 = vpack.c.bf16 %v1686, %v1686
      %v1751 = vpack.c.bf16 %v1687, %v1687
      %v1752 = vpack.c.bf16 %v1688, %v1688
      %v1753 = vpack.c.bf16 %v1689, %v1689
      %v1754 = vpack.c.bf16 %v1690, %v1690
      %v1755 = vpack.c.bf16 %v1691, %v1691
      %v1756 = vpack.c.bf16 %v1692, %v1692
      %v1757 = vpack.c.bf16 %v1693, %v1693
      %v1758 = vpack.c.bf16 %v1694, %v1694
      %v1759 = vpack.c.bf16 %v1695, %v1695
      %v1760 = vpack.c.bf16 %v1696, %v1696
      %v1761 = vpack.c.bf16 %v1697, %v1697
      %v1762 = vpack.c.bf16 %v1698, %v1698
      %v1763 = vpack.c.bf16 %v1699, %v1699
      %v1764 = vpack.c.bf16 %v1700, %v1700
      %v1765 = vpack.c.bf16 %v1701, %v1701
      %v1766 = vpack.c.bf16 %v1702, %v1702
      %v1767 = vpack.c.bf16 %v1703, %v1703
      %v1768 = vpack.c.bf16 %v1704, %v1704
      %v1769 = vpack.c.bf16 %v1705, %v1705
      %v1770 = vpack.c.bf16 %v1706, %v1706
      %v1771 = vpack.c.bf16 %v1707, %v1707
      %v1772 = vpack.c.bf16 %v1708, %v1708
      %v1773 = vpack.c.bf16 %v1709, %v1709
      %v1774 = vpack.c.bf16 %v1710, %v1710
      %v1775 = vpack.c.bf16 %v1711, %v1711
      %v1776 = vpack.c.bf16 %v1712, %v1712
      %v1777 = vpack.c.bf16 %v1713, %v1713
      %v1778 = vpack.c.bf16 %v1714, %v1714
      %v1779 = vpack.c.bf16 %v1715, %v1715
      %v1780 = vpack.c.bf16 %v1716, %v1716
      %v1781 = vpack.c.bf16 %v1717, %v1717
      %v1782 = vpack.c.bf16 %v1718, %v1718
      %v1783 = vpack.c.bf16 %v1719, %v1719
      %v1784 = vpack.c.bf16 %v1720, %v1720
      %v1785 = vpack.c.bf16 %v1721, %v1721
      %v1786 = vpack.c.bf16 %v1722, %v1722
      %v1787 = vpack.c.bf16 %v1723, %v1723
      %v1788 = vpack.c.bf16 %v1724, %v1724
      %v1789 = vpack.c.bf16 %v1725, %v1725
      %v1790 = vpack.c.bf16 %v1726, %v1726
      %v1791 = vpack.c.bf16 %v1727, %v1727
      %v1792 = vpack.c.bf16 %v1728, %v1728
      %v1793 = vpack.c.bf16 %v1729, %v1729
      %1794 = vst [vmem:[%s175] sm:$0xf] %v1730
      %1795 = vst [vmem:[%s175 + $0x4] sm:$0xf] %v1731
      %1796 = vst [vmem:[%s175 + $0x8] sm:$0xf] %v1732
      %1797 = vst [vmem:[%s175 + $0xc] sm:$0xf] %v1733
      %1798 = vst [vmem:[%s175 + $0x10] sm:$0xf] %v1734
      %1799 = vst [vmem:[%s175 + $0x14] sm:$0xf] %v1735
      %1800 = vst [vmem:[%s175 + $0x18] sm:$0xf] %v1736
      %1801 = vst [vmem:[%s175 + $0x1c] sm:$0xf] %v1737
      %1802 = vst [vmem:[%s175 + $0x20] sm:$0xf] %v1738
      %1803 = vst [vmem:[%s175 + $0x24] sm:$0xf] %v1739
      %1804 = vst [vmem:[%s175 + $0x28] sm:$0xf] %v1740
      %1805 = vst [vmem:[%s175 + $0x2c] sm:$0xf] %v1741
      %1806 = vst [vmem:[%s175 + $0x30] sm:$0xf] %v1742
      %1807 = vst [vmem:[%s175 + $0x34] sm:$0xf] %v1743
      %1808 = vst [vmem:[%s175 + $0x38] sm:$0xf] %v1744
      %1809 = vst [vmem:[%s175 + $0x3c] sm:$0xf] %v1745
      %1810 = vst [vmem:[%s175 + $0x40] sm:$0xf] %v1746
      %1811 = vst [vmem:[%s175 + $0x44] sm:$0xf] %v1747
      %1812 = vst [vmem:[%s175 + $0x48] sm:$0xf] %v1748
      %1813 = vst [vmem:[%s175 + $0x4c] sm:$0xf] %v1749
      %1814 = vst [vmem:[%s175 + $0x50] sm:$0xf] %v1750
      %1815 = vst [vmem:[%s175 + $0x54] sm:$0xf] %v1751
      %1816 = vst [vmem:[%s175 + $0x58] sm:$0xf] %v1752
      %1817 = vst [vmem:[%s175 + $0x5c] sm:$0xf] %v1753
      %1818 = vst [vmem:[%s175 + $0x60] sm:$0xf] %v1754
      %1819 = vst [vmem:[%s175 + $0x64] sm:$0xf] %v1755
      %1820 = vst [vmem:[%s175 + $0x68] sm:$0xf] %v1756
      %1821 = vst [vmem:[%s175 + $0x6c] sm:$0xf] %v1757
      %1822 = vst [vmem:[%s175 + $0x70] sm:$0xf] %v1758
      %1823 = vst [vmem:[%s175 + $0x74] sm:$0xf] %v1759
      %1824 = vst [vmem:[%s175 + $0x78] sm:$0xf] %v1760
      %1825 = vst [vmem:[%s175 + $0x7c] sm:$0xf] %v1761
      %1826 = vst [vmem:[%s175 + $0x80] sm:$0xf] %v1762
      %1827 = vst [vmem:[%s175 + $0x84] sm:$0xf] %v1763
      %1828 = vst [vmem:[%s175 + $0x88] sm:$0xf] %v1764
      %1829 = vst [vmem:[%s175 + $0x8c] sm:$0xf] %v1765
      %1830 = vst [vmem:[%s175 + $0x90] sm:$0xf] %v1766
      %1831 = vst [vmem:[%s175 + $0x94] sm:$0xf] %v1767
      %1832 = vst [vmem:[%s175 + $0x98] sm:$0xf] %v1768
      %1833 = vst [vmem:[%s175 + $0x9c] sm:$0xf] %v1769
      %1834 = vst [vmem:[%s175 + $0xa0] sm:$0xf] %v1770
      %1835 = vst [vmem:[%s175 + $0xa4] sm:$0xf] %v1771
      %1836 = vst [vmem:[%s175 + $0xa8] sm:$0xf] %v1772
      %1837 = vst [vmem:[%s175 + $0xac] sm:$0xf] %v1773
      %1838 = vst [vmem:[%s175 + $0xb0] sm:$0xf] %v1774
      %1839 = vst [vmem:[%s175 + $0xb4] sm:$0xf] %v1775
      %1840 = vst [vmem:[%s175 + $0xb8] sm:$0xf] %v1776
      %1841 = vst [vmem:[%s175 + $0xbc] sm:$0xf] %v1777
      %1842 = vst [vmem:[%s175 + $0xc0] sm:$0xf] %v1778
      %1843 = vst [vmem:[%s175 + $0xc4] sm:$0xf] %v1779
      %1844 = vst [vmem:[%s175 + $0xc8] sm:$0xf] %v1780
      %1845 = vst [vmem:[%s175 + $0xcc] sm:$0xf] %v1781
      %1846 = vst [vmem:[%s175 + $0xd0] sm:$0xf] %v1782
      %1847 = vst [vmem:[%s175 + $0xd4] sm:$0xf] %v1783
      %1848 = vst [vmem:[%s175 + $0xd8] sm:$0xf] %v1784
      %1849 = vst [vmem:[%s175 + $0xdc] sm:$0xf] %v1785
      %1850 = vst [vmem:[%s175 + $0xe0] sm:$0xf] %v1786
      %1851 = vst [vmem:[%s175 + $0xe4] sm:$0xf] %v1787
      %1852 = vst [vmem:[%s175 + $0xe8] sm:$0xf] %v1788
      %1853 = vst [vmem:[%s175 + $0xec] sm:$0xf] %v1789
      %1854 = vst [vmem:[%s175 + $0xf0] sm:$0xf] %v1790
      %1855 = vst [vmem:[%s175 + $0xf4] sm:$0xf] %v1791
      %1856 = vst [vmem:[%s175 + $0xf8] sm:$0xf] %v1792
      %1857 = vst [vmem:[%s175 + $0xfc] sm:$0xf] %v1793
      %s1858 = smul.u32 64, %s14
      %p1859 = scmp.lt.s32.totalorder %s1858, 1023
      %s1860 = scalar_select %p1859, %s1858, 1023
      %s1861 = smul.addr %s1860, 4
      %s1862 = scalar_lea.vmem %s3, %s1861
      // Predicated region
      $region33: #{_lambda_.7} parent=31 // pred_check
        %p1863 = pneg %p100
      $region34: #{_lambda_.7} parent=31 // pred_check_branch
        %1865 = sbr.rel (%p1863) target = $region36
      $region35: #{_lambda_.7} parent=31 // pred_region
        %s1866 = smul.u32 64, %s14
      $region36: #{_lambda_.7} parent=31 // pred_fallthru
        _
    $region32: #{_lambda_.7} parent=5 // pred_fallthru
      _
    %p1867 = scmp.le.s32.totalorder 2, %s9
    // Predicated region
    $region37: #{_lambda_.7} parent=5 // pred_check
      %p1868 = pneg %p1867
    $region38: #{_lambda_.7} parent=5 // pred_check_branch
      %1870 = sbr.rel (%p1868) target = $region40
    $region39: #{_lambda_.7} parent=5 // pred_region
      %s1871 = ssub.s32 %s9, 2
      // Predicated region
      $region41: #{_lambda_.7} parent=39 // pred_check
        %p1872 = pneg %p106
      $region42: #{_lambda_.7} parent=39 // pred_check_branch
        %1874 = sbr.rel (%p1872) target = $region44
      $region43: #{_lambda_.7} parent=39 // pred_region
        %s1875 = smul.u32 64, %s15
        %p1876 = scmp.lt.s32.totalorder %s1875, 1023
        %s1877 = scalar_select %p1876, %s1875, 1023
        %s1878 = smul.addr %s1877, 4
        %s1879 = scalar_lea.vmem %s3, %s1878
      $region44: #{_lambda_.7} parent=39 // pred_fallthru
        _
    $region40: #{_lambda_.7} parent=5 // pred_fallthru
      _
  $region6: #{_lambda_.7} parent=0 // loop_footer
    %s13 = sadd.s32 1, %s9
  $region7: #{_lambda_.7} parent=0 // loop_footer_branch
    %8 = sbr.rel target = $region3
  $region8: #{_lambda_.7} parent=0 // loop_exit
    _

// kernel: _lambda_.8
$region0: #{_lambda_.8}
  #allocation0 [shape = 'u32[]', space=smem, size = 0x4, offset = 0x4, fixed_abs, tag = 'smem constant byte address 0x4 - core index']
  #allocation1 [shape = 'u32[72,128]{1,0:T(1,128)}', space=vmem, size = 0x9000, scoped, tag = 'internal scratch']
  %s0 = inlined_call_operand.vmem [shape: bf16[8192,448], index: 0, kind: input, shape index: {}]
  %s1 = inlined_call_operand.vmem [shape: bf16[448,128], index: 1, kind: input, shape index: {}]
  %s2 = inlined_call_operand.vmem [shape: f32[1,128], index: 2, kind: input, shape index: {}]
  %s3 = inlined_call_operand.vmem [shape: bf16[8192,128], index: 3, kind: output, shape index: {}]
  %s4 = sld [smem:[#allocation0]]
  $region45: #{_lambda_.8} parent=0
    _
  %s6 = ssub.s32 1, %s4
  %s7 = scalar_select 0, %s6, %s4
  loop: start=0, step=1, limit=18
  $region2: #{_lambda_.8} parent=0 // loop_pre_header
    _
  $region3: #{_lambda_.8} parent=0 // loop_header
    %s9 = sphi 0, %s13
    %p10 = scmp.ge.s32.totalorder %s9, 18
    %s19 = sphi 0, %s21
    %s22 = sphi 0, %s19
    %s23 = sphi 0, %s22
    %s39 = sphi 0, %s23
    %s43 = sphi 0, %s43
    %s45 = sphi 0, %s43
    %s46 = sphi 0, %s45
    %s60 = sphi 0, %s46
    %s64 = sphi 0, %s64
    %s66 = sphi 0, %s64
    %s67 = sphi 0, %s66
    %s81 = sphi 0, %s67
    %s87 = sphi 0, %s89
    %s90 = sphi 0, %s87
    %s91 = sphi 0, %s90
    %s107 = sphi 0, %s91
  $region4: #{_lambda_.8} parent=0 // loop_header_branch
    %12 = sbr.rel (%p10) target = $region8
  $region5: #{_lambda_.8} parent=0 // loop_body
    %s14 = ssub.s32 %s9, 1
    %s15 = ssub.s32 %s9, 2
    %s16 = sadd.s32 %s9, 1
    %s17 = ssub.s32 %s9, %s16
    %p18 = scmp.eq.s32.totalorder %s17, 0
    %s20 = sadd.s32 %s19, 1
    %s21 = scalar_select %p18, %s19, %s20
    %p24 = pneg %p18
    %p25 = scmp.eq.s32.totalorder %s9, 15
    %p26 = por %p24, %p25
    %p27 = scmp.ne.s32.totalorder %s19, %s22
    %p28 = scmp.eq.s32.totalorder %s9, 0
    %p29 = por %p27, %p28
    %p30 = scmp.ne.s32.totalorder %s19, %s22
    %p31 = scmp.eq.s32.totalorder %s14, 15
    %p32 = por %p30, %p31
    %p33 = scmp.ne.s32.totalorder %s22, %s23
    %p34 = scmp.eq.s32.totalorder %s14, 0
    %p35 = por %p33, %p34
    %p36 = scmp.ne.s32.totalorder %s22, %s23
    %p37 = scmp.eq.s32.totalorder %s15, 15
    %p38 = por %p36, %p37
    %p40 = scmp.ne.s32.totalorder %s23, %s39
    %p41 = scmp.eq.s32.totalorder %s15, 0
    %p42 = por %p40, %p41
    %s44 = sadd.s32 %s43, 1
    %p47 = scmp.eq.s32.totalorder %s9, 15
    %p48 = scmp.ne.s32.totalorder %s43, %s45
    %p49 = scmp.eq.s32.totalorder %s9, 0
    %p50 = por %p48, %p49
    %p51 = scmp.ne.s32.totalorder %s43, %s45
    %p52 = scmp.eq.s32.totalorder %s14, 15
    %p53 = por %p51, %p52
    %p54 = scmp.ne.s32.totalorder %s45, %s46
    %p55 = scmp.eq.s32.totalorder %s14, 0
    %p56 = por %p54, %p55
    %p57 = scmp.ne.s32.totalorder %s45, %s46
    %p58 = scmp.eq.s32.totalorder %s15, 15
    %p59 = por %p57, %p58
    %p61 = scmp.ne.s32.totalorder %s46, %s60
    %p62 = scmp.eq.s32.totalorder %s15, 0
    %p63 = por %p61, %p62
    %s65 = sadd.s32 %s64, 1
    %p68 = scmp.eq.s32.totalorder %s9, 15
    %p69 = scmp.ne.s32.totalorder %s64, %s66
    %p70 = scmp.eq.s32.totalorder %s9, 0
    %p71 = por %p69, %p70
    %p72 = scmp.ne.s32.totalorder %s64, %s66
    %p73 = scmp.eq.s32.totalorder %s14, 15
    %p74 = por %p72, %p73
    %p75 = scmp.ne.s32.totalorder %s66, %s67
    %p76 = scmp.eq.s32.totalorder %s14, 0
    %p77 = por %p75, %p76
    %p78 = scmp.ne.s32.totalorder %s66, %s67
    %p79 = scmp.eq.s32.totalorder %s15, 15
    %p80 = por %p78, %p79
    %p82 = scmp.ne.s32.totalorder %s67, %s81
    %p83 = scmp.eq.s32.totalorder %s15, 0
    %p84 = por %p82, %p83
    %s85 = ssub.s32 %s9, %s16
    %p86 = scmp.eq.s32.totalorder %s85, 0
    %s88 = sadd.s32 %s87, 1
    %s89 = scalar_select %p86, %s87, %s88
    %p92 = pneg %p86
    %p93 = scmp.eq.s32.totalorder %s9, 15
    %p94 = por %p92, %p93
    %p95 = scmp.ne.s32.totalorder %s87, %s90
    %p96 = scmp.eq.s32.totalorder %s9, 0
    %p97 = por %p95, %p96
    %p98 = scmp.ne.s32.totalorder %s87, %s90
    %p99 = scmp.eq.s32.totalorder %s14, 15
    %p100 = por %p98, %p99
    %p101 = scmp.ne.s32.totalorder %s90, %s91
    %p102 = scmp.eq.s32.totalorder %s14, 0
    %p103 = por %p101, %p102
    %p104 = scmp.ne.s32.totalorder %s90, %s91
    %p105 = scmp.eq.s32.totalorder %s15, 15
    %p106 = por %p104, %p105
    %p108 = scmp.ne.s32.totalorder %s91, %s107
    %p109 = scmp.eq.s32.totalorder %s15, 0
    %p110 = por %p108, %p109
    %p111 = scmp.le.s32.totalorder 1, %s9
    %p112 = scmp.lt.s32.totalorder %s9, 17
    %p113 = pnand %p111, %p112
    %p114 = pneg %p113
    // Predicated region
    $region9: #{_lambda_.8} parent=5 // pred_check
      _
    $region10: #{_lambda_.8} parent=5 // pred_check_branch
      %116 = sbr.rel (%p113) target = $region12
    $region11: #{_lambda_.8} parent=5 // pred_region
      %s117 = ssub.s32 %s9, 1
      // Predicated region
      $region13: #{_lambda_.8} parent=11 // pred_check
        %p118 = pneg %p56
      $region14: #{_lambda_.8} parent=11 // pred_check_branch
        %120 = sbr.rel (%p118) target = $region16
      $region15: #{_lambda_.8} parent=11 // pred_region
        _
      $region16: #{_lambda_.8} parent=11 // pred_fallthru
        _
      // Predicated region
      $region17: #{_lambda_.8} parent=11 // pred_check
        %p121 = pneg %p77
      $region18: #{_lambda_.8} parent=11 // pred_check_branch
        %123 = sbr.rel (%p121) target = $region20
      $region19: #{_lambda_.8} parent=11 // pred_region
        _
      $region20: #{_lambda_.8} parent=11 // pred_fallthru
        _
    $region12: #{_lambda_.8} parent=5 // pred_fallthru
      _
    %p124 = scmp.lt.s32.totalorder %s9, 16
    // Predicated region
    $region21: #{_lambda_.8} parent=5 // pred_check
      %p125 = pneg %p124
    $region22: #{_lambda_.8} parent=5 // pred_check_branch
      %127 = sbr.rel (%p125) target = $region24
    $region23: #{_lambda_.8} parent=5 // pred_region
      // Predicated region
      $region25: #{_lambda_.8} parent=23 // pred_check
        %p128 = pneg %p29
      $region26: #{_lambda_.8} parent=23 // pred_check_branch
        %130 = sbr.rel (%p128) target = $region28
      $region27: #{_lambda_.8} parent=23 // pred_region
        %s131 = smul.u32 64, %s9
        %p132 = scmp.lt.s32.totalorder %s131, 1023
        %s133 = scalar_select %p132, %s131, 1023
        %s134 = smul.addr %s133, 4
        %s135 = smul.addr %s134, 4
        %s136 = scalar_lea.vmem %s0, %s135
        %s137 = smul.u32 64, %s9
      $region28: #{_lambda_.8} parent=23 // pred_fallthru
        _
    $region24: #{_lambda_.8} parent=5 // pred_fallthru
      _
    %p138 = scmp.le.s32.totalorder 1, %s9
    %p139 = scmp.lt.s32.totalorder %s9, 17
    %p140 = pnand %p138, %p139
    %p141 = pneg %p140
    // Predicated region
    $region29: #{_lambda_.8} parent=5 // pred_check
      _
    $region30: #{_lambda_.8} parent=5 // pred_check_branch
      %143 = sbr.rel (%p140) target = $region32
    $region31: #{_lambda_.8} parent=5 // pred_region
      %s144 = ssub.s32 %s9, 1
      %s145 = smul.u32 64, %s14
      %p146 = scmp.lt.s32.totalorder %s145, 1023
      %s147 = scalar_select %p146, %s145, 1023
      %s148 = smul.addr %s147, 4
      %s149 = smul.addr %s148, 4
      %s150 = scalar_lea.vmem %s0, %s149
      %p151 = pneg %p35
      %p152 = pneg %p32
      %p153 = pneg %p56
      %p154 = pneg %p53
      %p155 = pneg %p77
      %p156 = pneg %p74
      %p157 = pneg %p103
      %p158 = pneg %p100
      %s159 = smul.u32 64, %s14
      %p160 = scmp.lt.s32.totalorder %s159, 1023
      %s161 = scalar_select %p160, %s159, 1023
      %s162 = smul.addr %s161, 4
      %s163 = scalar_lea.vmem %s3, %s162
      %s164 = smul.u32 64, %s14
      %p165 = scmp.lt.s32.totalorder %s164, 1023
      %s166 = scalar_select %p165, %s164, 1023
      %s167 = smul.addr %s166, 4
      %s168 = smul.addr %s167, 4
      %s169 = scalar_lea.vmem %s0, %s168
      %s170 = smul.u32 64, %s14
      %s171 = smul.u32 64, %s14
      %p172 = scmp.lt.s32.totalorder %s171, 1023
      %s173 = scalar_select %p172, %s171, 1023
      %s174 = smul.addr %s173, 4
      %s175 = scalar_lea.vmem %s3, %s174
      %s176 = smul.u32 64, %s14
      %v178 = vld [vmem:[%s169] sm:$0xff]
      %v179 = vld [vmem:[%s169 + $0x8] sm:$0xff]
      %v180 = vld [vmem:[%s169 + $0x10] sm:$0xff]
      %v181 = vld [vmem:[%s169 + $0x18] sm:$0xff]
      %v182 = vld [vmem:[%s169 + $0x20] sm:$0xff]
      %v183 = vld [vmem:[%s169 + $0x28] sm:$0xff]
      %v184 = vld [vmem:[%s169 + $0x30] sm:$0xff]
      %v185 = vld [vmem:[%s169 + $0x38] sm:$0xff]
      %v186 = vld [vmem:[%s169 + $0x40] sm:$0xff]
      %v187 = vld [vmem:[%s169 + $0x48] sm:$0xff]
      %v188 = vld [vmem:[%s169 + $0x50] sm:$0xff]
      %v189 = vld [vmem:[%s169 + $0x58] sm:$0xff]
      %v190 = vld [vmem:[%s169 + $0x60] sm:$0xff]
      %v191 = vld [vmem:[%s169 + $0x68] sm:$0xff]
      %v192 = vld [vmem:[%s169 + $0x70] sm:$0xff]
      %v193 = vld [vmem:[%s169 + $0x78] sm:$0xff]
      %v194 = vld [vmem:[%s169 + $0x80] sm:$0xff]
      %v195 = vld [vmem:[%s169 + $0x88] sm:$0xff]
      %v196 = vld [vmem:[%s169 + $0x90] sm:$0xff]
      %v197 = vld [vmem:[%s169 + $0x98] sm:$0xff]
      %v198 = vld [vmem:[%s169 + $0xa0] sm:$0xff]
      %v199 = vld [vmem:[%s169 + $0xa8] sm:$0xff]
      %v200 = vld [vmem:[%s169 + $0xb0] sm:$0xff]
      %v201 = vld [vmem:[%s169 + $0xb8] sm:$0xff]
      %v202 = vld [vmem:[%s169 + $0xc0] sm:$0xff]
      %v203 = vld [vmem:[%s169 + $0xc8] sm:$0xff]
      %v204 = vld [vmem:[%s169 + $0xd0] sm:$0xff]
      %v205 = vld [vmem:[%s169 + $0xd8] sm:$0xff]
      %v206 = vld [vmem:[%s169 + $0xe0] sm:$0xff]
      %v207 = vld [vmem:[%s169 + $0xe8] sm:$0xff]
      %v208 = vld [vmem:[%s169 + $0xf0] sm:$0xff]
      %v209 = vld [vmem:[%s169 + $0xf8] sm:$0xff]
      %v210 = vld [vmem:[%s169 + $0x100] sm:$0xff]
      %v211 = vld [vmem:[%s169 + $0x108] sm:$0xff]
      %v212 = vld [vmem:[%s169 + $0x110] sm:$0xff]
      %v213 = vld [vmem:[%s169 + $0x118] sm:$0xff]
      %v214 = vld [vmem:[%s169 + $0x120] sm:$0xff]
      %v215 = vld [vmem:[%s169 + $0x128] sm:$0xff]
      %v216 = vld [vmem:[%s169 + $0x130] sm:$0xff]
      %v217 = vld [vmem:[%s169 + $0x138] sm:$0xff]
      %v218 = vld [vmem:[%s169 + $0x140] sm:$0xff]
      %v219 = vld [vmem:[%s169 + $0x148] sm:$0xff]
      %v220 = vld [vmem:[%s169 + $0x150] sm:$0xff]
      %v221 = vld [vmem:[%s169 + $0x158] sm:$0xff]
      %v222 = vld [vmem:[%s169 + $0x160] sm:$0xff]
      %v223 = vld [vmem:[%s169 + $0x168] sm:$0xff]
      %v224 = vld [vmem:[%s169 + $0x170] sm:$0xff]
      %v225 = vld [vmem:[%s169 + $0x178] sm:$0xff]
      %v226 = vld [vmem:[%s169 + $0x180] sm:$0xff]
      %v227 = vld [vmem:[%s169 + $0x188] sm:$0xff]
      %v228 = vld [vmem:[%s169 + $0x190] sm:$0xff]
      %v229 = vld [vmem:[%s169 + $0x198] sm:$0xff]
      %v230 = vld [vmem:[%s169 + $0x1a0] sm:$0xff]
      %v231 = vld [vmem:[%s169 + $0x1a8] sm:$0xff]
      %v232 = vld [vmem:[%s169 + $0x1b0] sm:$0xff]
      %v233 = vld [vmem:[%s169 + $0x1b8] sm:$0xff]
      %v234 = vld [vmem:[%s169 + $0x1c0] sm:$0xff]
      %v235 = vld [vmem:[%s169 + $0x1c8] sm:$0xff]
      %v236 = vld [vmem:[%s169 + $0x1d0] sm:$0xff]
      %v237 = vld [vmem:[%s169 + $0x1d8] sm:$0xff]
      %v238 = vld [vmem:[%s169 + $0x1e0] sm:$0xff]
      %v239 = vld [vmem:[%s169 + $0x1e8] sm:$0xff]
      %v240 = vld [vmem:[%s169 + $0x1f0] sm:$0xff]
      %v241 = vld [vmem:[%s169 + $0x1f8] sm:$0xff]
      %v242 = vld [vmem:[%s169 + $0x200] sm:$0xff]
      %v243 = vld [vmem:[%s169 + $0x208] sm:$0xff]
      %v244 = vld [vmem:[%s169 + $0x210] sm:$0xff]
      %v245 = vld [vmem:[%s169 + $0x218] sm:$0xff]
      %v246 = vld [vmem:[%s169 + $0x220] sm:$0xff]
      %v247 = vld [vmem:[%s169 + $0x228] sm:$0xff]
      %v248 = vld [vmem:[%s169 + $0x230] sm:$0xff]
      %v249 = vld [vmem:[%s169 + $0x238] sm:$0xff]
      %v250 = vld [vmem:[%s169 + $0x240] sm:$0xff]
      %v251 = vld [vmem:[%s169 + $0x248] sm:$0xff]
      %v252 = vld [vmem:[%s169 + $0x250] sm:$0xff]
      %v253 = vld [vmem:[%s169 + $0x258] sm:$0xff]
      %v254 = vld [vmem:[%s169 + $0x260] sm:$0xff]
      %v255 = vld [vmem:[%s169 + $0x268] sm:$0xff]
      %v256 = vld [vmem:[%s169 + $0x270] sm:$0xff]
      %v257 = vld [vmem:[%s169 + $0x278] sm:$0xff]
      %v258 = vld [vmem:[%s169 + $0x280] sm:$0xff]
      %v259 = vld [vmem:[%s169 + $0x288] sm:$0xff]
      %v260 = vld [vmem:[%s169 + $0x290] sm:$0xff]
      %v261 = vld [vmem:[%s169 + $0x298] sm:$0xff]
      %v262 = vld [vmem:[%s169 + $0x2a0] sm:$0xff]
      %v263 = vld [vmem:[%s169 + $0x2a8] sm:$0xff]
      %v264 = vld [vmem:[%s169 + $0x2b0] sm:$0xff]
      %v265 = vld [vmem:[%s169 + $0x2b8] sm:$0xff]
      %v266 = vld [vmem:[%s169 + $0x2c0] sm:$0xff]
      %v267 = vld [vmem:[%s169 + $0x2c8] sm:$0xff]
      %v268 = vld [vmem:[%s169 + $0x2d0] sm:$0xff]
      %v269 = vld [vmem:[%s169 + $0x2d8] sm:$0xff]
      %v270 = vld [vmem:[%s169 + $0x2e0] sm:$0xff]
      %v271 = vld [vmem:[%s169 + $0x2e8] sm:$0xff]
      %v272 = vld [vmem:[%s169 + $0x2f0] sm:$0xff]
      %v273 = vld [vmem:[%s169 + $0x2f8] sm:$0xff]
      %v274 = vld [vmem:[%s169 + $0x300] sm:$0xff]
      %v275 = vld [vmem:[%s169 + $0x308] sm:$0xff]
      %v276 = vld [vmem:[%s169 + $0x310] sm:$0xff]
      %v277 = vld [vmem:[%s169 + $0x318] sm:$0xff]
      %v278 = vld [vmem:[%s169 + $0x320] sm:$0xff]
      %v279 = vld [vmem:[%s169 + $0x328] sm:$0xff]
      %v280 = vld [vmem:[%s169 + $0x330] sm:$0xff]
      %v281 = vld [vmem:[%s169 + $0x338] sm:$0xff]
      %v282 = vld [vmem:[%s169 + $0x340] sm:$0xff]
      %v283 = vld [vmem:[%s169 + $0x348] sm:$0xff]
      %v284 = vld [vmem:[%s169 + $0x350] sm:$0xff]
      %v285 = vld [vmem:[%s169 + $0x358] sm:$0xff]
      %v286 = vld [vmem:[%s169 + $0x360] sm:$0xff]
      %v287 = vld [vmem:[%s169 + $0x368] sm:$0xff]
      %v288 = vld [vmem:[%s169 + $0x370] sm:$0xff]
      %v289 = vld [vmem:[%s169 + $0x378] sm:$0xff]
      %v290 = vld [vmem:[%s169 + $0x380] sm:$0xff]
      %v291 = vld [vmem:[%s169 + $0x388] sm:$0xff]
      %v292 = vld [vmem:[%s169 + $0x390] sm:$0xff]
      %v293 = vld [vmem:[%s169 + $0x398] sm:$0xff]
      %v294 = vld [vmem:[%s169 + $0x3a0] sm:$0xff]
      %v295 = vld [vmem:[%s169 + $0x3a8] sm:$0xff]
      %v296 = vld [vmem:[%s169 + $0x3b0] sm:$0xff]
      %v297 = vld [vmem:[%s169 + $0x3b8] sm:$0xff]
      %v298 = vld [vmem:[%s169 + $0x3c0] sm:$0xff]
      %v299 = vld [vmem:[%s169 + $0x3c8] sm:$0xff]
      %v300 = vld [vmem:[%s169 + $0x3d0] sm:$0xff]
      %v301 = vld [vmem:[%s169 + $0x3d8] sm:$0xff]
      %v302 = vld [vmem:[%s169 + $0x3e0] sm:$0xff]
      %v303 = vld [vmem:[%s169 + $0x3e8] sm:$0xff]
      %v304 = vld [vmem:[%s169 + $0x3f0] sm:$0xff]
      %v305 = vld [vmem:[%s169 + $0x3f8] sm:$0xff]
      %v306 = vld [vmem:[%s1] sm:$0xf]
      %v307 = vld [vmem:[%s1 + $0x4] sm:$0xf]
      %v308 = vld [vmem:[%s1 + $0x8] sm:$0xf]
      %v309 = vld [vmem:[%s1 + $0xc] sm:$0xf]
      %v310 = vld [vmem:[%s1 + $0x10] sm:$0xf]
      %v311 = vld [vmem:[%s1 + $0x14] sm:$0xf]
      %v312 = vld [vmem:[%s1 + $0x18] sm:$0xf]
      %v313 = vld [vmem:[%s1 + $0x1c] sm:$0xf]
      %v314 = vld [vmem:[%s1 + $0x20] sm:$0xf]
      %v315 = vld [vmem:[%s1 + $0x24] sm:$0xf]
      %v316 = vld [vmem:[%s1 + $0x28] sm:$0xf]
      %v317 = vld [vmem:[%s1 + $0x2c] sm:$0xf]
      %v318 = vld [vmem:[%s1 + $0x30] sm:$0xf]
      %v319 = vld [vmem:[%s1 + $0x34] sm:$0xf]
      %v320 = vld [vmem:[%s1 + $0x38] sm:$0xf]
      %v321 = vld [vmem:[%s1 + $0x3c] sm:$0xf]
      %v322 = vld [vmem:[%s1 + $0x40] sm:$0xf]
      %v323 = vld [vmem:[%s1 + $0x44] sm:$0xf]
      %v324 = vld [vmem:[%s1 + $0x48] sm:$0xf]
      %v325 = vld [vmem:[%s1 + $0x4c] sm:$0xf]
      %v326 = vld [vmem:[%s1 + $0x50] sm:$0xf]
      %v327 = vld [vmem:[%s1 + $0x54] sm:$0xf]
      %v328 = vld [vmem:[%s1 + $0x58] sm:$0xf]
      %v329 = vld [vmem:[%s1 + $0x5c] sm:$0xf]
      %v330 = vld [vmem:[%s1 + $0x60] sm:$0xf]
      %v331 = vld [vmem:[%s1 + $0x64] sm:$0xf]
      %v332 = vld [vmem:[%s1 + $0x68] sm:$0xf]
      %v333 = vld [vmem:[%s1 + $0x6c] sm:$0xf]
      %v334 = vld [vmem:[%s1 + $0x70] sm:$0xf]
      %v335 = vld [vmem:[%s1 + $0x74] sm:$0xf]
      %v336 = vld [vmem:[%s1 + $0x78] sm:$0xf]
      %v337 = vld [vmem:[%s1 + $0x7c] sm:$0xf]
      %v338 = vld [vmem:[%s1 + $0x80] sm:$0xf]
      %v339 = vld [vmem:[%s1 + $0x84] sm:$0xf]
      %v340 = vld [vmem:[%s1 + $0x88] sm:$0xf]
      %v341 = vld [vmem:[%s1 + $0x8c] sm:$0xf]
      %v342 = vld [vmem:[%s1 + $0x90] sm:$0xf]
      %v343 = vld [vmem:[%s1 + $0x94] sm:$0xf]
      %v344 = vld [vmem:[%s1 + $0x98] sm:$0xf]
      %v345 = vld [vmem:[%s1 + $0x9c] sm:$0xf]
      %v346 = vld [vmem:[%s1 + $0xa0] sm:$0xf]
      %v347 = vld [vmem:[%s1 + $0xa4] sm:$0xf]
      %v348 = vld [vmem:[%s1 + $0xa8] sm:$0xf]
      %v349 = vld [vmem:[%s1 + $0xac] sm:$0xf]
      %v350 = vld [vmem:[%s1 + $0xb0] sm:$0xf]
      %v351 = vld [vmem:[%s1 + $0xb4] sm:$0xf]
      %v352 = vld [vmem:[%s1 + $0xb8] sm:$0xf]
      %v353 = vld [vmem:[%s1 + $0xbc] sm:$0xf]
      %v354 = vld [vmem:[%s1 + $0xc0] sm:$0xf]
      %v355 = vld [vmem:[%s1 + $0xc4] sm:$0xf]
      %v356 = vld [vmem:[%s1 + $0xc8] sm:$0xf]
      %v357 = vld [vmem:[%s1 + $0xcc] sm:$0xf]
      %v358 = vld [vmem:[%s1 + $0xd0] sm:$0xf]
      %v359 = vld [vmem:[%s1 + $0xd4] sm:$0xf]
      %v360 = vld [vmem:[%s1 + $0xd8] sm:$0xf]
      %v361 = vld [vmem:[%s1 + $0xdc] sm:$0xf]
      %v362 = vld [vmem:[%s2] sm:$0x1]
      %v364 = vperm.slane %v362, 0
      %v494 = vunpack.c.l.b16 %v178
      %v495 = vunpack.c.h.b16 %v178
      %v496 = vunpack.c.l.b16 %v179
      %v497 = vunpack.c.h.b16 %v179
      %v498 = vunpack.c.l.b16 %v180
      %v499 = vunpack.c.h.b16 %v180
      %v500 = vunpack.c.l.b16 %v181
      %v501 = vunpack.c.h.b16 %v181
      %v502 = vunpack.c.l.b16 %v182
      %v503 = vunpack.c.h.b16 %v182
      %v504 = vunpack.c.l.b16 %v183
      %v505 = vunpack.c.h.b16 %v183
      %v506 = vunpack.c.l.b16 %v184
      %v507 = vunpack.c.h.b16 %v184
      %v508 = vunpack.c.l.b16 %v185
      %v509 = vunpack.c.h.b16 %v185
      %v510 = vunpack.c.l.b16 %v186
      %v511 = vunpack.c.h.b16 %v186
      %v512 = vunpack.c.l.b16 %v187
      %v513 = vunpack.c.h.b16 %v187
      %v514 = vunpack.c.l.b16 %v188
      %v515 = vunpack.c.h.b16 %v188
      %v516 = vunpack.c.l.b16 %v189
      %v517 = vunpack.c.h.b16 %v189
      %v518 = vunpack.c.l.b16 %v190
      %v519 = vunpack.c.h.b16 %v190
      %v520 = vunpack.c.l.b16 %v191
      %v521 = vunpack.c.h.b16 %v191
      %v522 = vunpack.c.l.b16 %v192
      %v523 = vunpack.c.h.b16 %v192
      %v524 = vunpack.c.l.b16 %v193
      %v525 = vunpack.c.h.b16 %v193
      %v526 = vunpack.c.l.b16 %v194
      %v527 = vunpack.c.h.b16 %v194
      %v528 = vunpack.c.l.b16 %v195
      %v529 = vunpack.c.h.b16 %v195
      %v530 = vunpack.c.l.b16 %v196
      %v531 = vunpack.c.h.b16 %v196
      %v532 = vunpack.c.l.b16 %v197
      %v533 = vunpack.c.h.b16 %v197
      %v534 = vunpack.c.l.b16 %v198
      %v535 = vunpack.c.h.b16 %v198
      %v536 = vunpack.c.l.b16 %v199
      %v537 = vunpack.c.h.b16 %v199
      %v538 = vunpack.c.l.b16 %v200
      %v539 = vunpack.c.h.b16 %v200
      %v540 = vunpack.c.l.b16 %v201
      %v541 = vunpack.c.h.b16 %v201
      %v542 = vunpack.c.l.b16 %v202
      %v543 = vunpack.c.h.b16 %v202
      %v544 = vunpack.c.l.b16 %v203
      %v545 = vunpack.c.h.b16 %v203
      %v546 = vunpack.c.l.b16 %v204
      %v547 = vunpack.c.h.b16 %v204
      %v548 = vunpack.c.l.b16 %v205
      %v549 = vunpack.c.h.b16 %v205
      %v550 = vunpack.c.l.b16 %v206
      %v551 = vunpack.c.h.b16 %v206
      %v552 = vunpack.c.l.b16 %v207
      %v553 = vunpack.c.h.b16 %v207
      %v554 = vunpack.c.l.b16 %v208
      %v555 = vunpack.c.h.b16 %v208
      %v556 = vunpack.c.l.b16 %v209
      %v557 = vunpack.c.h.b16 %v209
      %v558 = vunpack.c.l.b16 %v210
      %v559 = vunpack.c.h.b16 %v210
      %v560 = vunpack.c.l.b16 %v211
      %v561 = vunpack.c.h.b16 %v211
      %v562 = vunpack.c.l.b16 %v212
      %v563 = vunpack.c.h.b16 %v212
      %v564 = vunpack.c.l.b16 %v213
      %v565 = vunpack.c.h.b16 %v213
      %v566 = vunpack.c.l.b16 %v214
      %v567 = vunpack.c.h.b16 %v214
      %v568 = vunpack.c.l.b16 %v215
      %v569 = vunpack.c.h.b16 %v215
      %v570 = vunpack.c.l.b16 %v216
      %v571 = vunpack.c.h.b16 %v216
      %v572 = vunpack.c.l.b16 %v217
      %v573 = vunpack.c.h.b16 %v217
      %v574 = vunpack.c.l.b16 %v218
      %v575 = vunpack.c.h.b16 %v218
      %v576 = vunpack.c.l.b16 %v219
      %v577 = vunpack.c.h.b16 %v219
      %v578 = vunpack.c.l.b16 %v220
      %v579 = vunpack.c.h.b16 %v220
      %v580 = vunpack.c.l.b16 %v221
      %v581 = vunpack.c.h.b16 %v221
      %v582 = vunpack.c.l.b16 %v222
      %v583 = vunpack.c.h.b16 %v222
      %v584 = vunpack.c.l.b16 %v223
      %v585 = vunpack.c.h.b16 %v223
      %v586 = vunpack.c.l.b16 %v224
      %v587 = vunpack.c.h.b16 %v224
      %v588 = vunpack.c.l.b16 %v225
      %v589 = vunpack.c.h.b16 %v225
      %v590 = vunpack.c.l.b16 %v226
      %v591 = vunpack.c.h.b16 %v226
      %v592 = vunpack.c.l.b16 %v227
      %v593 = vunpack.c.h.b16 %v227
      %v594 = vunpack.c.l.b16 %v228
      %v595 = vunpack.c.h.b16 %v228
      %v596 = vunpack.c.l.b16 %v229
      %v597 = vunpack.c.h.b16 %v229
      %v598 = vunpack.c.l.b16 %v230
      %v599 = vunpack.c.h.b16 %v230
      %v600 = vunpack.c.l.b16 %v231
      %v601 = vunpack.c.h.b16 %v231
      %v602 = vunpack.c.l.b16 %v232
      %v603 = vunpack.c.h.b16 %v232
      %v604 = vunpack.c.l.b16 %v233
      %v605 = vunpack.c.h.b16 %v233
      %v606 = vunpack.c.l.b16 %v234
      %v607 = vunpack.c.h.b16 %v234
      %v608 = vunpack.c.l.b16 %v235
      %v609 = vunpack.c.h.b16 %v235
      %v610 = vunpack.c.l.b16 %v236
      %v611 = vunpack.c.h.b16 %v236
      %v612 = vunpack.c.l.b16 %v237
      %v613 = vunpack.c.h.b16 %v237
      %v614 = vunpack.c.l.b16 %v238
      %v615 = vunpack.c.h.b16 %v238
      %v616 = vunpack.c.l.b16 %v239
      %v617 = vunpack.c.h.b16 %v239
      %v618 = vunpack.c.l.b16 %v240
      %v619 = vunpack.c.h.b16 %v240
      %v620 = vunpack.c.l.b16 %v241
      %v621 = vunpack.c.h.b16 %v241
      %v622 = vunpack.c.l.b16 %v242
      %v623 = vunpack.c.h.b16 %v242
      %v624 = vunpack.c.l.b16 %v243
      %v625 = vunpack.c.h.b16 %v243
      %v626 = vunpack.c.l.b16 %v244
      %v627 = vunpack.c.h.b16 %v244
      %v628 = vunpack.c.l.b16 %v245
      %v629 = vunpack.c.h.b16 %v245
      %v630 = vunpack.c.l.b16 %v246
      %v631 = vunpack.c.h.b16 %v246
      %v632 = vunpack.c.l.b16 %v247
      %v633 = vunpack.c.h.b16 %v247
      %v634 = vunpack.c.l.b16 %v248
      %v635 = vunpack.c.h.b16 %v248
      %v636 = vunpack.c.l.b16 %v249
      %v637 = vunpack.c.h.b16 %v249
      %v638 = vunpack.c.l.b16 %v250
      %v639 = vunpack.c.h.b16 %v250
      %v640 = vunpack.c.l.b16 %v251
      %v641 = vunpack.c.h.b16 %v251
      %v642 = vunpack.c.l.b16 %v252
      %v643 = vunpack.c.h.b16 %v252
      %v644 = vunpack.c.l.b16 %v253
      %v645 = vunpack.c.h.b16 %v253
      %v646 = vunpack.c.l.b16 %v254
      %v647 = vunpack.c.h.b16 %v254
      %v648 = vunpack.c.l.b16 %v255
      %v649 = vunpack.c.h.b16 %v255
      %v650 = vunpack.c.l.b16 %v256
      %v651 = vunpack.c.h.b16 %v256
      %v652 = vunpack.c.l.b16 %v257
      %v653 = vunpack.c.h.b16 %v257
      %v654 = vunpack.c.l.b16 %v258
      %v655 = vunpack.c.h.b16 %v258
      %v656 = vunpack.c.l.b16 %v259
      %v657 = vunpack.c.h.b16 %v259
      %v658 = vunpack.c.l.b16 %v260
      %v659 = vunpack.c.h.b16 %v260
      %v660 = vunpack.c.l.b16 %v261
      %v661 = vunpack.c.h.b16 %v261
      %v662 = vunpack.c.l.b16 %v262
      %v663 = vunpack.c.h.b16 %v262
      %v664 = vunpack.c.l.b16 %v263
      %v665 = vunpack.c.h.b16 %v263
      %v666 = vunpack.c.l.b16 %v264
      %v667 = vunpack.c.h.b16 %v264
      %v668 = vunpack.c.l.b16 %v265
      %v669 = vunpack.c.h.b16 %v265
      %v670 = vunpack.c.l.b16 %v266
      %v671 = vunpack.c.h.b16 %v266
      %v672 = vunpack.c.l.b16 %v267
      %v673 = vunpack.c.h.b16 %v267
      %v674 = vunpack.c.l.b16 %v268
      %v675 = vunpack.c.h.b16 %v268
      %v676 = vunpack.c.l.b16 %v269
      %v677 = vunpack.c.h.b16 %v269
      %v678 = vunpack.c.l.b16 %v270
      %v679 = vunpack.c.h.b16 %v270
      %v680 = vunpack.c.l.b16 %v271
      %v681 = vunpack.c.h.b16 %v271
      %v682 = vunpack.c.l.b16 %v272
      %v683 = vunpack.c.h.b16 %v272
      %v684 = vunpack.c.l.b16 %v273
      %v685 = vunpack.c.h.b16 %v273
      %v686 = vunpack.c.l.b16 %v274
      %v687 = vunpack.c.h.b16 %v274
      %v688 = vunpack.c.l.b16 %v275
      %v689 = vunpack.c.h.b16 %v275
      %v690 = vunpack.c.l.b16 %v276
      %v691 = vunpack.c.h.b16 %v276
      %v692 = vunpack.c.l.b16 %v277
      %v693 = vunpack.c.h.b16 %v277
      %v694 = vunpack.c.l.b16 %v278
      %v695 = vunpack.c.h.b16 %v278
      %v696 = vunpack.c.l.b16 %v279
      %v697 = vunpack.c.h.b16 %v279
      %v698 = vunpack.c.l.b16 %v280
      %v699 = vunpack.c.h.b16 %v280
      %v700 = vunpack.c.l.b16 %v281
      %v701 = vunpack.c.h.b16 %v281
      %v702 = vunpack.c.l.b16 %v282
      %v703 = vunpack.c.h.b16 %v282
      %v704 = vunpack.c.l.b16 %v283
      %v705 = vunpack.c.h.b16 %v283
      %v706 = vunpack.c.l.b16 %v284
      %v707 = vunpack.c.h.b16 %v284
      %v708 = vunpack.c.l.b16 %v285
      %v709 = vunpack.c.h.b16 %v285
      %v710 = vunpack.c.l.b16 %v286
      %v711 = vunpack.c.h.b16 %v286
      %v712 = vunpack.c.l.b16 %v287
      %v713 = vunpack.c.h.b16 %v287
      %v714 = vunpack.c.l.b16 %v288
      %v715 = vunpack.c.h.b16 %v288
      %v716 = vunpack.c.l.b16 %v289
      %v717 = vunpack.c.h.b16 %v289
      %v718 = vunpack.c.l.b16 %v290
      %v719 = vunpack.c.h.b16 %v290
      %v720 = vunpack.c.l.b16 %v291
      %v721 = vunpack.c.h.b16 %v291
      %v722 = vunpack.c.l.b16 %v292
      %v723 = vunpack.c.h.b16 %v292
      %v724 = vunpack.c.l.b16 %v293
      %v725 = vunpack.c.h.b16 %v293
      %v726 = vunpack.c.l.b16 %v294
      %v727 = vunpack.c.h.b16 %v294
      %v728 = vunpack.c.l.b16 %v295
      %v729 = vunpack.c.h.b16 %v295
      %v730 = vunpack.c.l.b16 %v296
      %v731 = vunpack.c.h.b16 %v296
      %v732 = vunpack.c.l.b16 %v297
      %v733 = vunpack.c.h.b16 %v297
      %v734 = vunpack.c.l.b16 %v298
      %v735 = vunpack.c.h.b16 %v298
      %v736 = vunpack.c.l.b16 %v299
      %v737 = vunpack.c.h.b16 %v299
      %v738 = vunpack.c.l.b16 %v300
      %v739 = vunpack.c.h.b16 %v300
      %v740 = vunpack.c.l.b16 %v301
      %v741 = vunpack.c.h.b16 %v301
      %v742 = vunpack.c.l.b16 %v302
      %v743 = vunpack.c.h.b16 %v302
      %v744 = vunpack.c.l.b16 %v303
      %v745 = vunpack.c.h.b16 %v303
      %v746 = vunpack.c.l.b16 %v304
      %v747 = vunpack.c.h.b16 %v304
      %v748 = vunpack.c.l.b16 %v305
      %v749 = vunpack.c.h.b16 %v305
      %v750 = vpack.c.b16 %v498, %v494
      %v751 = vpack.c.b16 %v499, %v495
      %v752 = vpack.c.b16 %v500, %v496
      %v753 = vpack.c.b16 %v501, %v497
      %v754 = vpack.c.b16 %v506, %v502
      %v755 = vpack.c.b16 %v507, %v503
      %v756 = vpack.c.b16 %v508, %v504
      %v757 = vpack.c.b16 %v509, %v505
      %v758 = vpack.c.b16 %v514, %v510
      %v759 = vpack.c.b16 %v515, %v511
      %v760 = vpack.c.b16 %v516, %v512
      %v761 = vpack.c.b16 %v517, %v513
      %v762 = vpack.c.b16 %v522, %v518
      %v763 = vpack.c.b16 %v523, %v519
      %v764 = vpack.c.b16 %v524, %v520
      %v765 = vpack.c.b16 %v525, %v521
      %v766 = vpack.c.b16 %v530, %v526
      %v767 = vpack.c.b16 %v531, %v527
      %v768 = vpack.c.b16 %v532, %v528
      %v769 = vpack.c.b16 %v533, %v529
      %v770 = vpack.c.b16 %v538, %v534
      %v771 = vpack.c.b16 %v539, %v535
      %v772 = vpack.c.b16 %v540, %v536
      %v773 = vpack.c.b16 %v541, %v537
      %v774 = vpack.c.b16 %v546, %v542
      %v775 = vpack.c.b16 %v547, %v543
      %v776 = vpack.c.b16 %v548, %v544
      %v777 = vpack.c.b16 %v549, %v545
      %v778 = vpack.c.b16 %v554, %v550
      %v779 = vpack.c.b16 %v555, %v551
      %v780 = vpack.c.b16 %v556, %v552
      %v781 = vpack.c.b16 %v557, %v553
      %v782 = vpack.c.b16 %v562, %v558
      %v783 = vpack.c.b16 %v563, %v559
      %v784 = vpack.c.b16 %v564, %v560
      %v785 = vpack.c.b16 %v565, %v561
      %v786 = vpack.c.b16 %v570, %v566
      %v787 = vpack.c.b16 %v571, %v567
      %v788 = vpack.c.b16 %v572, %v568
      %v789 = vpack.c.b16 %v573, %v569
      %v790 = vpack.c.b16 %v578, %v574
      %v791 = vpack.c.b16 %v579, %v575
      %v792 = vpack.c.b16 %v580, %v576
      %v793 = vpack.c.b16 %v581, %v577
      %v794 = vpack.c.b16 %v586, %v582
      %v795 = vpack.c.b16 %v587, %v583
      %v796 = vpack.c.b16 %v588, %v584
      %v797 = vpack.c.b16 %v589, %v585
      %v798 = vpack.c.b16 %v594, %v590
      %v799 = vpack.c.b16 %v595, %v591
      %v800 = vpack.c.b16 %v596, %v592
      %v801 = vpack.c.b16 %v597, %v593
      %v802 = vpack.c.b16 %v602, %v598
      %v803 = vpack.c.b16 %v603, %v599
      %v804 = vpack.c.b16 %v604, %v600
      %v805 = vpack.c.b16 %v605, %v601
      %v806 = vpack.c.b16 %v610, %v606
      %v807 = vpack.c.b16 %v611, %v607
      %v808 = vpack.c.b16 %v612, %v608
      %v809 = vpack.c.b16 %v613, %v609
      %v810 = vpack.c.b16 %v618, %v614
      %v811 = vpack.c.b16 %v619, %v615
      %v812 = vpack.c.b16 %v620, %v616
      %v813 = vpack.c.b16 %v621, %v617
      %v814 = vpack.c.b16 %v626, %v622
      %v815 = vpack.c.b16 %v627, %v623
      %v816 = vpack.c.b16 %v628, %v624
      %v817 = vpack.c.b16 %v629, %v625
      %v818 = vpack.c.b16 %v634, %v630
      %v819 = vpack.c.b16 %v635, %v631
      %v820 = vpack.c.b16 %v636, %v632
      %v821 = vpack.c.b16 %v637, %v633
      %v822 = vpack.c.b16 %v642, %v638
      %v823 = vpack.c.b16 %v643, %v639
      %v824 = vpack.c.b16 %v644, %v640
      %v825 = vpack.c.b16 %v645, %v641
      %v826 = vpack.c.b16 %v650, %v646
      %v827 = vpack.c.b16 %v651, %v647
      %v828 = vpack.c.b16 %v652, %v648
      %v829 = vpack.c.b16 %v653, %v649
      %v830 = vpack.c.b16 %v658, %v654
      %v831 = vpack.c.b16 %v659, %v655
      %v832 = vpack.c.b16 %v660, %v656
      %v833 = vpack.c.b16 %v661, %v657
      %v834 = vpack.c.b16 %v666, %v662
      %v835 = vpack.c.b16 %v667, %v663
      %v836 = vpack.c.b16 %v668, %v664
      %v837 = vpack.c.b16 %v669, %v665
      %v838 = vpack.c.b16 %v674, %v670
      %v839 = vpack.c.b16 %v675, %v671
      %v840 = vpack.c.b16 %v676, %v672
      %v841 = vpack.c.b16 %v677, %v673
      %v842 = vpack.c.b16 %v682, %v678
      %v843 = vpack.c.b16 %v683, %v679
      %v844 = vpack.c.b16 %v684, %v680
      %v845 = vpack.c.b16 %v685, %v681
      %v846 = vpack.c.b16 %v690, %v686
      %v847 = vpack.c.b16 %v691, %v687
      %v848 = vpack.c.b16 %v692, %v688
      %v849 = vpack.c.b16 %v693, %v689
      %v850 = vpack.c.b16 %v698, %v694
      %v851 = vpack.c.b16 %v699, %v695
      %v852 = vpack.c.b16 %v700, %v696
      %v853 = vpack.c.b16 %v701, %v697
      %v854 = vpack.c.b16 %v706, %v702
      %v855 = vpack.c.b16 %v707, %v703
      %v856 = vpack.c.b16 %v708, %v704
      %v857 = vpack.c.b16 %v709, %v705
      %v858 = vpack.c.b16 %v714, %v710
      %v859 = vpack.c.b16 %v715, %v711
      %v860 = vpack.c.b16 %v716, %v712
      %v861 = vpack.c.b16 %v717, %v713
      %v862 = vpack.c.b16 %v722, %v718
      %v863 = vpack.c.b16 %v723, %v719
      %v864 = vpack.c.b16 %v724, %v720
      %v865 = vpack.c.b16 %v725, %v721
      %v866 = vpack.c.b16 %v730, %v726
      %v867 = vpack.c.b16 %v731, %v727
      %v868 = vpack.c.b16 %v732, %v728
      %v869 = vpack.c.b16 %v733, %v729
      %v870 = vpack.c.b16 %v738, %v734
      %v871 = vpack.c.b16 %v739, %v735
      %v872 = vpack.c.b16 %v740, %v736
      %v873 = vpack.c.b16 %v741, %v737
      %v874 = vpack.c.b16 %v746, %v742
      %v875 = vpack.c.b16 %v747, %v743
      %v876 = vpack.c.b16 %v748, %v744
      %v877 = vpack.c.b16 %v749, %v745
      %v1030 = vunpack.c.l.b16 %v306
      %v1031 = vunpack.c.l.b16 %v307
      %v1032 = vunpack.c.l.b16 %v308
      %v1033 = vunpack.c.l.b16 %v309
      %v1034 = vunpack.c.l.b16 %v310
      %v1035 = vunpack.c.l.b16 %v311
      %v1036 = vunpack.c.l.b16 %v312
      %v1037 = vunpack.c.l.b16 %v313
      %v1038 = vunpack.c.l.b16 %v314
      %v1039 = vunpack.c.l.b16 %v315
      %v1040 = vunpack.c.l.b16 %v316
      %v1041 = vunpack.c.l.b16 %v317
      %v1042 = vunpack.c.l.b16 %v318
      %v1043 = vunpack.c.l.b16 %v319
      %v1044 = vunpack.c.l.b16 %v320
      %v1045 = vunpack.c.l.b16 %v321
      %v1046 = vunpack.c.l.b16 %v322
      %v1047 = vunpack.c.l.b16 %v323
      %v1048 = vunpack.c.l.b16 %v324
      %v1049 = vunpack.c.l.b16 %v325
      %v1050 = vunpack.c.l.b16 %v326
      %v1051 = vunpack.c.l.b16 %v327
      %v1052 = vunpack.c.l.b16 %v328
      %v1053 = vunpack.c.l.b16 %v329
      %v1054 = vunpack.c.l.b16 %v330
      %v1055 = vunpack.c.l.b16 %v331
      %v1056 = vunpack.c.l.b16 %v332
      %v1057 = vunpack.c.l.b16 %v333
      %v1058 = vunpack.c.l.b16 %v334
      %v1059 = vunpack.c.l.b16 %v335
      %v1060 = vunpack.c.l.b16 %v336
      %v1061 = vunpack.c.l.b16 %v337
      %v1062 = vunpack.c.l.b16 %v338
      %v1063 = vunpack.c.l.b16 %v339
      %v1064 = vunpack.c.l.b16 %v340
      %v1065 = vunpack.c.l.b16 %v341
      %v1066 = vunpack.c.l.b16 %v342
      %v1067 = vunpack.c.l.b16 %v343
      %v1068 = vunpack.c.l.b16 %v344
      %v1069 = vunpack.c.l.b16 %v345
      %v1070 = vunpack.c.l.b16 %v346
      %v1071 = vunpack.c.l.b16 %v347
      %v1072 = vunpack.c.l.b16 %v348
      %v1073 = vunpack.c.l.b16 %v349
      %v1074 = vunpack.c.l.b16 %v350
      %v1075 = vunpack.c.l.b16 %v351
      %v1076 = vunpack.c.l.b16 %v352
      %v1077 = vunpack.c.l.b16 %v353
      %v1078 = vunpack.c.l.b16 %v354
      %v1079 = vunpack.c.l.b16 %v355
      %v1080 = vunpack.c.l.b16 %v356
      %v1081 = vunpack.c.l.b16 %v357
      %v1082 = vunpack.c.l.b16 %v358
      %v1083 = vunpack.c.l.b16 %v359
      %v1084 = vunpack.c.l.b16 %v360
      %v1085 = vunpack.c.l.b16 %v361
      %v1086 = vpack.c.b16 %v1031, %v1030
      %v1087 = vpack.c.b16 %v1033, %v1032
      %v1088 = vpack.c.b16 %v1035, %v1034
      %v1089 = vpack.c.b16 %v1037, %v1036
      %v1090 = vpack.c.b16 %v1039, %v1038
      %v1091 = vpack.c.b16 %v1041, %v1040
      %v1092 = vpack.c.b16 %v1043, %v1042
      %v1093 = vpack.c.b16 %v1045, %v1044
      %v1094 = vpack.c.b16 %v1047, %v1046
      %v1095 = vpack.c.b16 %v1049, %v1048
      %v1096 = vpack.c.b16 %v1051, %v1050
      %v1097 = vpack.c.b16 %v1053, %v1052
      %v1098 = vpack.c.b16 %v1055, %v1054
      %v1099 = vpack.c.b16 %v1057, %v1056
      %v1100 = vpack.c.b16 %v1059, %v1058
      %v1101 = vpack.c.b16 %v1061, %v1060
      %v1102 = vpack.c.b16 %v1063, %v1062
      %v1103 = vpack.c.b16 %v1065, %v1064
      %v1104 = vpack.c.b16 %v1067, %v1066
      %v1105 = vpack.c.b16 %v1069, %v1068
      %v1106 = vpack.c.b16 %v1071, %v1070
      %v1107 = vpack.c.b16 %v1073, %v1072
      %v1108 = vpack.c.b16 %v1075, %v1074
      %v1109 = vpack.c.b16 %v1077, %v1076
      %v1110 = vpack.c.b16 %v1079, %v1078
      %v1111 = vpack.c.b16 %v1081, %v1080
      %v1112 = vpack.c.b16 %v1083, %v1082
      %v1113 = vpack.c.b16 %v1085, %v1084
      %vm1142 = vcmask 523264
      %v1144 = vsel %vm1142, %v753, 0
      %v1147 = vsel %vm1142, %v757, 0
      %v1150 = vsel %vm1142, %v761, 0
      %v1153 = vsel %vm1142, %v765, 0
      %v1156 = vsel %vm1142, %v769, 0
      %v1159 = vsel %vm1142, %v773, 0
      %v1162 = vsel %vm1142, %v777, 0
      %v1165 = vsel %vm1142, %v781, 0
      %v1168 = vsel %vm1142, %v785, 0
      %v1171 = vsel %vm1142, %v789, 0
      %v1174 = vsel %vm1142, %v793, 0
      %v1177 = vsel %vm1142, %v797, 0
      %v1180 = vsel %vm1142, %v801, 0
      %v1183 = vsel %vm1142, %v805, 0
      %v1186 = vsel %vm1142, %v809, 0
      %v1189 = vsel %vm1142, %v813, 0
      %v1192 = vsel %vm1142, %v817, 0
      %v1195 = vsel %vm1142, %v821, 0
      %v1198 = vsel %vm1142, %v825, 0
      %v1201 = vsel %vm1142, %v829, 0
      %v1204 = vsel %vm1142, %v833, 0
      %v1207 = vsel %vm1142, %v837, 0
      %v1210 = vsel %vm1142, %v841, 0
      %v1213 = vsel %vm1142, %v845, 0
      %v1216 = vsel %vm1142, %v849, 0
      %v1219 = vsel %vm1142, %v853, 0
      %v1222 = vsel %vm1142, %v857, 0
      %v1225 = vsel %vm1142, %v861, 0
      %v1228 = vsel %vm1142, %v865, 0
      %v1231 = vsel %vm1142, %v869, 0
      %v1234 = vsel %vm1142, %v873, 0
      %v1237 = vsel %vm1142, %v877, 0
      %1239 = vmatpush.bf16.msra.mxu0 %v1093
      %1240 = vmatpush.bf16.msra.mxu0 %v1092
      %1241 = vmatpush.bf16.msra.mxu0 %v1091
      %1242 = vmatpush.bf16.msra.mxu0 %v1090
      %1243 = vmatpush.bf16.msra.mxu0 %v1089
      %1244 = vmatpush.bf16.msra.mxu0 %v1088
      %1245 = vmatpush.bf16.msra.mxu0 %v1087
      %1246 = vmatpush.bf16.msra.mxu0 %v1086
      %1247 = vmatmul.bf16.gmra.mxu0 %v750
      %v1248 = vpop.f32.mrf.mxu0
      %v1249 = vadd.f32 %v364, %v1248
      %v1250 = vpop.f32.mrf.mxu0
      %v1251 = vadd.f32 %v364, %v1250
      %1252 = vmatmul.bf16.gmra.mxu0 %v754
      %v1253 = vpop.f32.mrf.mxu0
      %v1254 = vadd.f32 %v364, %v1253
      %v1255 = vpop.f32.mrf.mxu0
      %v1256 = vadd.f32 %v364, %v1255
      %1257 = vmatmul.bf16.gmra.mxu0 %v758
      %v1258 = vpop.f32.mrf.mxu0
      %v1259 = vadd.f32 %v364, %v1258
      %v1260 = vpop.f32.mrf.mxu0
      %v1261 = vadd.f32 %v364, %v1260
      %1262 = vmatmul.bf16.gmra.mxu0 %v762
      %v1263 = vpop.f32.mrf.mxu0
      %v1264 = vadd.f32 %v364, %v1263
      %v1265 = vpop.f32.mrf.mxu0
      %v1266 = vadd.f32 %v364, %v1265
      %1267 = vmatmul.bf16.gmra.mxu0 %v766
      %v1268 = vpop.f32.mrf.mxu0
      %v1269 = vadd.f32 %v364, %v1268
      %v1270 = vpop.f32.mrf.mxu0
      %v1271 = vadd.f32 %v364, %v1270
      %1272 = vmatmul.bf16.gmra.mxu0 %v770
      %v1273 = vpop.f32.mrf.mxu0
      %v1274 = vadd.f32 %v364, %v1273
      %v1275 = vpop.f32.mrf.mxu0
      %v1276 = vadd.f32 %v364, %v1275
      %1277 = vmatmul.bf16.gmra.mxu0 %v774
      %v1278 = vpop.f32.mrf.mxu0
      %v1279 = vadd.f32 %v364, %v1278
      %v1280 = vpop.f32.mrf.mxu0
      %v1281 = vadd.f32 %v364, %v1280
      %1282 = vmatmul.bf16.gmra.mxu0 %v778
      %v1283 = vpop.f32.mrf.mxu0
      %v1284 = vadd.f32 %v364, %v1283
      %v1285 = vpop.f32.mrf.mxu0
      %v1286 = vadd.f32 %v364, %v1285
      %1287 = vmatmul.bf16.gmra.mxu0 %v782
      %v1288 = vpop.f32.mrf.mxu0
      %v1289 = vadd.f32 %v364, %v1288
      %v1290 = vpop.f32.mrf.mxu0
      %v1291 = vadd.f32 %v364, %v1290
      %1292 = vmatmul.bf16.gmra.mxu0 %v786
      %v1293 = vpop.f32.mrf.mxu0
      %v1294 = vadd.f32 %v364, %v1293
      %v1295 = vpop.f32.mrf.mxu0
      %v1296 = vadd.f32 %v364, %v1295
      %1297 = vmatmul.bf16.gmra.mxu0 %v790
      %v1298 = vpop.f32.mrf.mxu0
      %v1299 = vadd.f32 %v364, %v1298
      %v1300 = vpop.f32.mrf.mxu0
      %v1301 = vadd.f32 %v364, %v1300
      %1302 = vmatmul.bf16.gmra.mxu0 %v794
      %v1303 = vpop.f32.mrf.mxu0
      %v1304 = vadd.f32 %v364, %v1303
      %v1305 = vpop.f32.mrf.mxu0
      %v1306 = vadd.f32 %v364, %v1305
      %1307 = vmatmul.bf16.gmra.mxu0 %v798
      %v1308 = vpop.f32.mrf.mxu0
      %v1309 = vadd.f32 %v364, %v1308
      %v1310 = vpop.f32.mrf.mxu0
      %v1311 = vadd.f32 %v364, %v1310
      %1312 = vmatmul.bf16.gmra.mxu0 %v802
      %v1313 = vpop.f32.mrf.mxu0
      %v1314 = vadd.f32 %v364, %v1313
      %v1315 = vpop.f32.mrf.mxu0
      %v1316 = vadd.f32 %v364, %v1315
      %1317 = vmatmul.bf16.gmra.mxu0 %v806
      %v1318 = vpop.f32.mrf.mxu0
      %v1319 = vadd.f32 %v364, %v1318
      %v1320 = vpop.f32.mrf.mxu0
      %v1321 = vadd.f32 %v364, %v1320
      %1322 = vmatmul.bf16.gmra.mxu0 %v810
      %v1323 = vpop.f32.mrf.mxu0
      %v1324 = vadd.f32 %v364, %v1323
      %v1325 = vpop.f32.mrf.mxu0
      %v1326 = vadd.f32 %v364, %v1325
      %1327 = vmatmul.bf16.gmra.mxu0 %v814
      %v1328 = vpop.f32.mrf.mxu0
      %v1329 = vadd.f32 %v364, %v1328
      %v1330 = vpop.f32.mrf.mxu0
      %v1331 = vadd.f32 %v364, %v1330
      %1332 = vmatmul.bf16.gmra.mxu0 %v818
      %v1333 = vpop.f32.mrf.mxu0
      %v1334 = vadd.f32 %v364, %v1333
      %v1335 = vpop.f32.mrf.mxu0
      %v1336 = vadd.f32 %v364, %v1335
      %1337 = vmatmul.bf16.gmra.mxu0 %v822
      %v1338 = vpop.f32.mrf.mxu0
      %v1339 = vadd.f32 %v364, %v1338
      %v1340 = vpop.f32.mrf.mxu0
      %v1341 = vadd.f32 %v364, %v1340
      %1342 = vmatmul.bf16.gmra.mxu0 %v826
      %v1343 = vpop.f32.mrf.mxu0
      %v1344 = vadd.f32 %v364, %v1343
      %v1345 = vpop.f32.mrf.mxu0
      %v1346 = vadd.f32 %v364, %v1345
      %1347 = vmatmul.bf16.gmra.mxu0 %v830
      %v1348 = vpop.f32.mrf.mxu0
      %v1349 = vadd.f32 %v364, %v1348
      %v1350 = vpop.f32.mrf.mxu0
      %v1351 = vadd.f32 %v364, %v1350
      %1352 = vmatmul.bf16.gmra.mxu0 %v834
      %v1353 = vpop.f32.mrf.mxu0
      %v1354 = vadd.f32 %v364, %v1353
      %v1355 = vpop.f32.mrf.mxu0
      %v1356 = vadd.f32 %v364, %v1355
      %1357 = vmatmul.bf16.gmra.mxu0 %v838
      %v1358 = vpop.f32.mrf.mxu0
      %v1359 = vadd.f32 %v364, %v1358
      %v1360 = vpop.f32.mrf.mxu0
      %v1361 = vadd.f32 %v364, %v1360
      %1362 = vmatmul.bf16.gmra.mxu0 %v842
      %v1363 = vpop.f32.mrf.mxu0
      %v1364 = vadd.f32 %v364, %v1363
      %v1365 = vpop.f32.mrf.mxu0
      %v1366 = vadd.f32 %v364, %v1365
      %1367 = vmatmul.bf16.gmra.mxu0 %v846
      %v1368 = vpop.f32.mrf.mxu0
      %v1369 = vadd.f32 %v364, %v1368
      %v1370 = vpop.f32.mrf.mxu0
      %v1371 = vadd.f32 %v364, %v1370
      %1372 = vmatmul.bf16.gmra.mxu0 %v850
      %v1373 = vpop.f32.mrf.mxu0
      %v1374 = vadd.f32 %v364, %v1373
      %v1375 = vpop.f32.mrf.mxu0
      %v1376 = vadd.f32 %v364, %v1375
      %1377 = vmatmul.bf16.gmra.mxu0 %v854
      %v1378 = vpop.f32.mrf.mxu0
      %v1379 = vadd.f32 %v364, %v1378
      %v1380 = vpop.f32.mrf.mxu0
      %v1381 = vadd.f32 %v364, %v1380
      %1382 = vmatmul.bf16.gmra.mxu0 %v858
      %v1383 = vpop.f32.mrf.mxu0
      %v1384 = vadd.f32 %v364, %v1383
      %v1385 = vpop.f32.mrf.mxu0
      %v1386 = vadd.f32 %v364, %v1385
      %1387 = vmatmul.bf16.gmra.mxu0 %v862
      %v1388 = vpop.f32.mrf.mxu0
      %v1389 = vadd.f32 %v364, %v1388
      %v1390 = vpop.f32.mrf.mxu0
      %v1391 = vadd.f32 %v364, %v1390
      %1392 = vmatmul.bf16.gmra.mxu0 %v866
      %v1393 = vpop.f32.mrf.mxu0
      %v1394 = vadd.f32 %v364, %v1393
      %v1395 = vpop.f32.mrf.mxu0
      %v1396 = vadd.f32 %v364, %v1395
      %1397 = vmatmul.bf16.gmra.mxu0 %v870
      %v1398 = vpop.f32.mrf.mxu0
      %v1399 = vadd.f32 %v364, %v1398
      %v1400 = vpop.f32.mrf.mxu0
      %v1401 = vadd.f32 %v364, %v1400
      %1402 = vmatmul.bf16.gmra.mxu0 %v874
      %v1403 = vpop.f32.mrf.mxu0
      %v1404 = vadd.f32 %v364, %v1403
      %v1405 = vpop.f32.mrf.mxu0
      %v1406 = vadd.f32 %v364, %v1405
      %1407 = vdwg.mxu0
      %1408 = vmatpush.bf16.msra.mxu0 %v1101
      %1409 = vmatpush.bf16.msra.mxu0 %v1100
      %1410 = vmatpush.bf16.msra.mxu0 %v1099
      %1411 = vmatpush.bf16.msra.mxu0 %v1098
      %1412 = vmatpush.bf16.msra.mxu0 %v1097
      %1413 = vmatpush.bf16.msra.mxu0 %v1096
      %1414 = vmatpush.bf16.msra.mxu0 %v1095
      %1415 = vmatpush.bf16.msra.mxu0 %v1094
      %1416 = vmatmul.bf16.gmra.mxu0 %v751
      %v1417 = vpop.f32.mrf.mxu0
      %v1418 = vadd.f32 %v1249, %v1417
      %v1419 = vpop.f32.mrf.mxu0
      %v1420 = vadd.f32 %v1251, %v1419
      %1421 = vmatmul.bf16.gmra.mxu0 %v755
      %v1422 = vpop.f32.mrf.mxu0
      %v1423 = vadd.f32 %v1254, %v1422
      %v1424 = vpop.f32.mrf.mxu0
      %v1425 = vadd.f32 %v1256, %v1424
      %1426 = vmatmul.bf16.gmra.mxu0 %v759
      %v1427 = vpop.f32.mrf.mxu0
      %v1428 = vadd.f32 %v1259, %v1427
      %v1429 = vpop.f32.mrf.mxu0
      %v1430 = vadd.f32 %v1261, %v1429
      %1431 = vmatmul.bf16.gmra.mxu0 %v763
      %v1432 = vpop.f32.mrf.mxu0
      %v1433 = vadd.f32 %v1264, %v1432
      %v1434 = vpop.f32.mrf.mxu0
      %v1435 = vadd.f32 %v1266, %v1434
      %1436 = vmatmul.bf16.gmra.mxu0 %v767
      %v1437 = vpop.f32.mrf.mxu0
      %v1438 = vadd.f32 %v1269, %v1437
      %v1439 = vpop.f32.mrf.mxu0
      %v1440 = vadd.f32 %v1271, %v1439
      %1441 = vmatmul.bf16.gmra.mxu0 %v771
      %v1442 = vpop.f32.mrf.mxu0
      %v1443 = vadd.f32 %v1274, %v1442
      %v1444 = vpop.f32.mrf.mxu0
      %v1445 = vadd.f32 %v1276, %v1444
      %1446 = vmatmul.bf16.gmra.mxu0 %v775
      %v1447 = vpop.f32.mrf.mxu0
      %v1448 = vadd.f32 %v1279, %v1447
      %v1449 = vpop.f32.mrf.mxu0
      %v1450 = vadd.f32 %v1281, %v1449
      %1451 = vmatmul.bf16.gmra.mxu0 %v779
      %v1452 = vpop.f32.mrf.mxu0
      %v1453 = vadd.f32 %v1284, %v1452
      %v1454 = vpop.f32.mrf.mxu0
      %v1455 = vadd.f32 %v1286, %v1454
      %1456 = vmatmul.bf16.gmra.mxu0 %v783
      %v1457 = vpop.f32.mrf.mxu0
      %v1458 = vadd.f32 %v1289, %v1457
      %v1459 = vpop.f32.mrf.mxu0
      %v1460 = vadd.f32 %v1291, %v1459
      %1461 = vmatmul.bf16.gmra.mxu0 %v787
      %v1462 = vpop.f32.mrf.mxu0
      %v1463 = vadd.f32 %v1294, %v1462
      %v1464 = vpop.f32.mrf.mxu0
      %v1465 = vadd.f32 %v1296, %v1464
      %1466 = vmatmul.bf16.gmra.mxu0 %v791
      %v1467 = vpop.f32.mrf.mxu0
      %v1468 = vadd.f32 %v1299, %v1467
      %v1469 = vpop.f32.mrf.mxu0
      %v1470 = vadd.f32 %v1301, %v1469
      %1471 = vmatmul.bf16.gmra.mxu0 %v795
      %v1472 = vpop.f32.mrf.mxu0
      %v1473 = vadd.f32 %v1304, %v1472
      %v1474 = vpop.f32.mrf.mxu0
      %v1475 = vadd.f32 %v1306, %v1474
      %1476 = vmatmul.bf16.gmra.mxu0 %v799
      %v1477 = vpop.f32.mrf.mxu0
      %v1478 = vadd.f32 %v1309, %v1477
      %v1479 = vpop.f32.mrf.mxu0
      %v1480 = vadd.f32 %v1311, %v1479
      %1481 = vmatmul.bf16.gmra.mxu0 %v803
      %v1482 = vpop.f32.mrf.mxu0
      %v1483 = vadd.f32 %v1314, %v1482
      %v1484 = vpop.f32.mrf.mxu0
      %v1485 = vadd.f32 %v1316, %v1484
      %1486 = vmatmul.bf16.gmra.mxu0 %v807
      %v1487 = vpop.f32.mrf.mxu0
      %v1488 = vadd.f32 %v1319, %v1487
      %v1489 = vpop.f32.mrf.mxu0
      %v1490 = vadd.f32 %v1321, %v1489
      %1491 = vmatmul.bf16.gmra.mxu0 %v811
      %v1492 = vpop.f32.mrf.mxu0
      %v1493 = vadd.f32 %v1324, %v1492
      %v1494 = vpop.f32.mrf.mxu0
      %v1495 = vadd.f32 %v1326, %v1494
      %1496 = vmatmul.bf16.gmra.mxu0 %v815
      %v1497 = vpop.f32.mrf.mxu0
      %v1498 = vadd.f32 %v1329, %v1497
      %v1499 = vpop.f32.mrf.mxu0
      %v1500 = vadd.f32 %v1331, %v1499
      %1501 = vmatmul.bf16.gmra.mxu0 %v819
      %v1502 = vpop.f32.mrf.mxu0
      %v1503 = vadd.f32 %v1334, %v1502
      %v1504 = vpop.f32.mrf.mxu0
      %v1505 = vadd.f32 %v1336, %v1504
      %1506 = vmatmul.bf16.gmra.mxu0 %v823
      %v1507 = vpop.f32.mrf.mxu0
      %v1508 = vadd.f32 %v1339, %v1507
      %v1509 = vpop.f32.mrf.mxu0
      %v1510 = vadd.f32 %v1341, %v1509
      %1511 = vmatmul.bf16.gmra.mxu0 %v827
      %v1512 = vpop.f32.mrf.mxu0
      %v1513 = vadd.f32 %v1344, %v1512
      %v1514 = vpop.f32.mrf.mxu0
      %v1515 = vadd.f32 %v1346, %v1514
      %1516 = vmatmul.bf16.gmra.mxu0 %v831
      %v1517 = vpop.f32.mrf.mxu0
      %v1518 = vadd.f32 %v1349, %v1517
      %v1519 = vpop.f32.mrf.mxu0
      %v1520 = vadd.f32 %v1351, %v1519
      %1521 = vmatmul.bf16.gmra.mxu0 %v835
      %v1522 = vpop.f32.mrf.mxu0
      %v1523 = vadd.f32 %v1354, %v1522
      %v1524 = vpop.f32.mrf.mxu0
      %v1525 = vadd.f32 %v1356, %v1524
      %1526 = vmatmul.bf16.gmra.mxu0 %v839
      %v1527 = vpop.f32.mrf.mxu0
      %v1528 = vadd.f32 %v1359, %v1527
      %v1529 = vpop.f32.mrf.mxu0
      %v1530 = vadd.f32 %v1361, %v1529
      %1531 = vmatmul.bf16.gmra.mxu0 %v843
      %v1532 = vpop.f32.mrf.mxu0
      %v1533 = vadd.f32 %v1364, %v1532
      %v1534 = vpop.f32.mrf.mxu0
      %v1535 = vadd.f32 %v1366, %v1534
      %1536 = vmatmul.bf16.gmra.mxu0 %v847
      %v1537 = vpop.f32.mrf.mxu0
      %v1538 = vadd.f32 %v1369, %v1537
      %v1539 = vpop.f32.mrf.mxu0
      %v1540 = vadd.f32 %v1371, %v1539
      %1541 = vmatmul.bf16.gmra.mxu0 %v851
      %v1542 = vpop.f32.mrf.mxu0
      %v1543 = vadd.f32 %v1374, %v1542
      %v1544 = vpop.f32.mrf.mxu0
      %v1545 = vadd.f32 %v1376, %v1544
      %1546 = vmatmul.bf16.gmra.mxu0 %v855
      %v1547 = vpop.f32.mrf.mxu0
      %v1548 = vadd.f32 %v1379, %v1547
      %v1549 = vpop.f32.mrf.mxu0
      %v1550 = vadd.f32 %v1381, %v1549
      %1551 = vmatmul.bf16.gmra.mxu0 %v859
      %v1552 = vpop.f32.mrf.mxu0
      %v1553 = vadd.f32 %v1384, %v1552
      %v1554 = vpop.f32.mrf.mxu0
      %v1555 = vadd.f32 %v1386, %v1554
      %1556 = vmatmul.bf16.gmra.mxu0 %v863
      %v1557 = vpop.f32.mrf.mxu0
      %v1558 = vadd.f32 %v1389, %v1557
      %v1559 = vpop.f32.mrf.mxu0
      %v1560 = vadd.f32 %v1391, %v1559
      %1561 = vmatmul.bf16.gmra.mxu0 %v867
      %v1562 = vpop.f32.mrf.mxu0
      %v1563 = vadd.f32 %v1394, %v1562
      %v1564 = vpop.f32.mrf.mxu0
      %v1565 = vadd.f32 %v1396, %v1564
      %1566 = vmatmul.bf16.gmra.mxu0 %v871
      %v1567 = vpop.f32.mrf.mxu0
      %v1568 = vadd.f32 %v1399, %v1567
      %v1569 = vpop.f32.mrf.mxu0
      %v1570 = vadd.f32 %v1401, %v1569
      %1571 = vmatmul.bf16.gmra.mxu0 %v875
      %v1572 = vpop.f32.mrf.mxu0
      %v1573 = vadd.f32 %v1404, %v1572
      %v1574 = vpop.f32.mrf.mxu0
      %v1575 = vadd.f32 %v1406, %v1574
      %1576 = vdwg.mxu0
      %1577 = vmatpush.bf16.msra.mxu0 %v1109
      %1578 = vmatpush.bf16.msra.mxu0 %v1108
      %1579 = vmatpush.bf16.msra.mxu0 %v1107
      %1580 = vmatpush.bf16.msra.mxu0 %v1106
      %1581 = vmatpush.bf16.msra.mxu0 %v1105
      %1582 = vmatpush.bf16.msra.mxu0 %v1104
      %1583 = vmatpush.bf16.msra.mxu0 %v1103
      %1584 = vmatpush.bf16.msra.mxu0 %v1102
      %1585 = vmatmul.bf16.gmra.mxu0 %v752
      %v1586 = vpop.f32.mrf.mxu0
      %v1587 = vadd.f32 %v1418, %v1586
      %v1588 = vpop.f32.mrf.mxu0
      %v1589 = vadd.f32 %v1420, %v1588
      %1590 = vmatmul.bf16.gmra.mxu0 %v756
      %v1591 = vpop.f32.mrf.mxu0
      %v1592 = vadd.f32 %v1423, %v1591
      %v1593 = vpop.f32.mrf.mxu0
      %v1594 = vadd.f32 %v1425, %v1593
      %1595 = vmatmul.bf16.gmra.mxu0 %v760
      %v1596 = vpop.f32.mrf.mxu0
      %v1597 = vadd.f32 %v1428, %v1596
      %v1598 = vpop.f32.mrf.mxu0
      %v1599 = vadd.f32 %v1430, %v1598
      %1600 = vmatmul.bf16.gmra.mxu0 %v764
      %v1601 = vpop.f32.mrf.mxu0
      %v1602 = vadd.f32 %v1433, %v1601
      %v1603 = vpop.f32.mrf.mxu0
      %v1604 = vadd.f32 %v1435, %v1603
      %1605 = vmatmul.bf16.gmra.mxu0 %v768
      %v1606 = vpop.f32.mrf.mxu0
      %v1607 = vadd.f32 %v1438, %v1606
      %v1608 = vpop.f32.mrf.mxu0
      %v1609 = vadd.f32 %v1440, %v1608
      %1610 = vmatmul.bf16.gmra.mxu0 %v772
      %v1611 = vpop.f32.mrf.mxu0
      %v1612 = vadd.f32 %v1443, %v1611
      %v1613 = vpop.f32.mrf.mxu0
      %v1614 = vadd.f32 %v1445, %v1613
      %1615 = vmatmul.bf16.gmra.mxu0 %v776
      %v1616 = vpop.f32.mrf.mxu0
      %v1617 = vadd.f32 %v1448, %v1616
      %v1618 = vpop.f32.mrf.mxu0
      %v1619 = vadd.f32 %v1450, %v1618
      %1620 = vmatmul.bf16.gmra.mxu0 %v780
      %v1621 = vpop.f32.mrf.mxu0
      %v1622 = vadd.f32 %v1453, %v1621
      %v1623 = vpop.f32.mrf.mxu0
      %v1624 = vadd.f32 %v1455, %v1623
      %1625 = vmatmul.bf16.gmra.mxu0 %v784
      %v1626 = vpop.f32.mrf.mxu0
      %v1627 = vadd.f32 %v1458, %v1626
      %v1628 = vpop.f32.mrf.mxu0
      %v1629 = vadd.f32 %v1460, %v1628
      %1630 = vmatmul.bf16.gmra.mxu0 %v788
      %v1631 = vpop.f32.mrf.mxu0
      %v1632 = vadd.f32 %v1463, %v1631
      %v1633 = vpop.f32.mrf.mxu0
      %v1634 = vadd.f32 %v1465, %v1633
      %1635 = vmatmul.bf16.gmra.mxu0 %v792
      %v1636 = vpop.f32.mrf.mxu0
      %v1637 = vadd.f32 %v1468, %v1636
      %v1638 = vpop.f32.mrf.mxu0
      %v1639 = vadd.f32 %v1470, %v1638
      %1640 = vmatmul.bf16.gmra.mxu0 %v796
      %v1641 = vpop.f32.mrf.mxu0
      %v1642 = vadd.f32 %v1473, %v1641
      %v1643 = vpop.f32.mrf.mxu0
      %v1644 = vadd.f32 %v1475, %v1643
      %1645 = vmatmul.bf16.gmra.mxu0 %v800
      %v1646 = vpop.f32.mrf.mxu0
      %v1647 = vadd.f32 %v1478, %v1646
      %v1648 = vpop.f32.mrf.mxu0
      %v1649 = vadd.f32 %v1480, %v1648
      %1650 = vmatmul.bf16.gmra.mxu0 %v804
      %v1651 = vpop.f32.mrf.mxu0
      %v1652 = vadd.f32 %v1483, %v1651
      %v1653 = vpop.f32.mrf.mxu0
      %v1654 = vadd.f32 %v1485, %v1653
      %1655 = vmatmul.bf16.gmra.mxu0 %v808
      %v1656 = vpop.f32.mrf.mxu0
      %v1657 = vadd.f32 %v1488, %v1656
      %v1658 = vpop.f32.mrf.mxu0
      %v1659 = vadd.f32 %v1490, %v1658
      %1660 = vmatmul.bf16.gmra.mxu0 %v812
      %v1661 = vpop.f32.mrf.mxu0
      %v1662 = vadd.f32 %v1493, %v1661
      %v1663 = vpop.f32.mrf.mxu0
      %v1664 = vadd.f32 %v1495, %v1663
      %1665 = vmatmul.bf16.gmra.mxu0 %v816
      %v1666 = vpop.f32.mrf.mxu0
      %v1667 = vadd.f32 %v1498, %v1666
      %v1668 = vpop.f32.mrf.mxu0
      %v1669 = vadd.f32 %v1500, %v1668
      %1670 = vmatmul.bf16.gmra.mxu0 %v820
      %v1671 = vpop.f32.mrf.mxu0
      %v1672 = vadd.f32 %v1503, %v1671
      %v1673 = vpop.f32.mrf.mxu0
      %v1674 = vadd.f32 %v1505, %v1673
      %1675 = vmatmul.bf16.gmra.mxu0 %v824
      %v1676 = vpop.f32.mrf.mxu0
      %v1677 = vadd.f32 %v1508, %v1676
      %v1678 = vpop.f32.mrf.mxu0
      %v1679 = vadd.f32 %v1510, %v1678
      %1680 = vmatmul.bf16.gmra.mxu0 %v828
      %v1681 = vpop.f32.mrf.mxu0
      %v1682 = vadd.f32 %v1513, %v1681
      %v1683 = vpop.f32.mrf.mxu0
      %v1684 = vadd.f32 %v1515, %v1683
      %1685 = vmatmul.bf16.gmra.mxu0 %v832
      %v1686 = vpop.f32.mrf.mxu0
      %v1687 = vadd.f32 %v1518, %v1686
      %v1688 = vpop.f32.mrf.mxu0
      %v1689 = vadd.f32 %v1520, %v1688
      %1690 = vmatmul.bf16.gmra.mxu0 %v836
      %v1691 = vpop.f32.mrf.mxu0
      %v1692 = vadd.f32 %v1523, %v1691
      %v1693 = vpop.f32.mrf.mxu0
      %v1694 = vadd.f32 %v1525, %v1693
      %1695 = vmatmul.bf16.gmra.mxu0 %v840
      %v1696 = vpop.f32.mrf.mxu0
      %v1697 = vadd.f32 %v1528, %v1696
      %v1698 = vpop.f32.mrf.mxu0
      %v1699 = vadd.f32 %v1530, %v1698
      %1700 = vmatmul.bf16.gmra.mxu0 %v844
      %v1701 = vpop.f32.mrf.mxu0
      %v1702 = vadd.f32 %v1533, %v1701
      %v1703 = vpop.f32.mrf.mxu0
      %v1704 = vadd.f32 %v1535, %v1703
      %1705 = vmatmul.bf16.gmra.mxu0 %v848
      %v1706 = vpop.f32.mrf.mxu0
      %v1707 = vadd.f32 %v1538, %v1706
      %v1708 = vpop.f32.mrf.mxu0
      %v1709 = vadd.f32 %v1540, %v1708
      %1710 = vmatmul.bf16.gmra.mxu0 %v852
      %v1711 = vpop.f32.mrf.mxu0
      %v1712 = vadd.f32 %v1543, %v1711
      %v1713 = vpop.f32.mrf.mxu0
      %v1714 = vadd.f32 %v1545, %v1713
      %1715 = vmatmul.bf16.gmra.mxu0 %v856
      %v1716 = vpop.f32.mrf.mxu0
      %v1717 = vadd.f32 %v1548, %v1716
      %v1718 = vpop.f32.mrf.mxu0
      %v1719 = vadd.f32 %v1550, %v1718
      %1720 = vmatmul.bf16.gmra.mxu0 %v860
      %v1721 = vpop.f32.mrf.mxu0
      %v1722 = vadd.f32 %v1553, %v1721
      %v1723 = vpop.f32.mrf.mxu0
      %v1724 = vadd.f32 %v1555, %v1723
      %1725 = vmatmul.bf16.gmra.mxu0 %v864
      %v1726 = vpop.f32.mrf.mxu0
      %v1727 = vadd.f32 %v1558, %v1726
      %v1728 = vpop.f32.mrf.mxu0
      %v1729 = vadd.f32 %v1560, %v1728
      %1730 = vmatmul.bf16.gmra.mxu0 %v868
      %v1731 = vpop.f32.mrf.mxu0
      %v1732 = vadd.f32 %v1563, %v1731
      %v1733 = vpop.f32.mrf.mxu0
      %v1734 = vadd.f32 %v1565, %v1733
      %1735 = vmatmul.bf16.gmra.mxu0 %v872
      %v1736 = vpop.f32.mrf.mxu0
      %v1737 = vadd.f32 %v1568, %v1736
      %v1738 = vpop.f32.mrf.mxu0
      %v1739 = vadd.f32 %v1570, %v1738
      %1740 = vmatmul.bf16.gmra.mxu0 %v876
      %v1741 = vpop.f32.mrf.mxu0
      %v1742 = vadd.f32 %v1573, %v1741
      %v1743 = vpop.f32.mrf.mxu0
      %v1744 = vadd.f32 %v1575, %v1743
      %1745 = vdwg.mxu0
      %1746 = vmatpush.bf16.msra.mxu0 0
      %1747 = vmatpush.bf16.msra.mxu0 0
      %1748 = vmatpush.bf16.msra.mxu0 0
      %1749 = vmatpush.bf16.msra.mxu0 0
      %1750 = vmatpush.bf16.msra.mxu0 %v1113
      %1751 = vmatpush.bf16.msra.mxu0 %v1112
      %1752 = vmatpush.bf16.msra.mxu0 %v1111
      %1753 = vmatpush.bf16.msra.mxu0 %v1110
      %1754 = vmatmul.bf16.gmra.mxu0 %v1144
      %v1755 = vpop.f32.mrf.mxu0
      %v1756 = vadd.f32 %v1587, %v1755
      %v1757 = vpop.f32.mrf.mxu0
      %v1758 = vadd.f32 %v1589, %v1757
      %1759 = vmatmul.bf16.gmra.mxu0 %v1147
      %v1760 = vpop.f32.mrf.mxu0
      %v1761 = vadd.f32 %v1592, %v1760
      %v1762 = vpop.f32.mrf.mxu0
      %v1763 = vadd.f32 %v1594, %v1762
      %1764 = vmatmul.bf16.gmra.mxu0 %v1150
      %v1765 = vpop.f32.mrf.mxu0
      %v1766 = vadd.f32 %v1597, %v1765
      %v1767 = vpop.f32.mrf.mxu0
      %v1768 = vadd.f32 %v1599, %v1767
      %1769 = vmatmul.bf16.gmra.mxu0 %v1153
      %v1770 = vpop.f32.mrf.mxu0
      %v1771 = vadd.f32 %v1602, %v1770
      %v1772 = vpop.f32.mrf.mxu0
      %v1773 = vadd.f32 %v1604, %v1772
      %1774 = vmatmul.bf16.gmra.mxu0 %v1156
      %v1775 = vpop.f32.mrf.mxu0
      %v1776 = vadd.f32 %v1607, %v1775
      %v1777 = vpop.f32.mrf.mxu0
      %v1778 = vadd.f32 %v1609, %v1777
      %1779 = vmatmul.bf16.gmra.mxu0 %v1159
      %v1780 = vpop.f32.mrf.mxu0
      %v1781 = vadd.f32 %v1612, %v1780
      %v1782 = vpop.f32.mrf.mxu0
      %v1783 = vadd.f32 %v1614, %v1782
      %1784 = vmatmul.bf16.gmra.mxu0 %v1162
      %v1785 = vpop.f32.mrf.mxu0
      %v1786 = vadd.f32 %v1617, %v1785
      %v1787 = vpop.f32.mrf.mxu0
      %v1788 = vadd.f32 %v1619, %v1787
      %1789 = vmatmul.bf16.gmra.mxu0 %v1165
      %v1790 = vpop.f32.mrf.mxu0
      %v1791 = vadd.f32 %v1622, %v1790
      %v1792 = vpop.f32.mrf.mxu0
      %v1793 = vadd.f32 %v1624, %v1792
      %1794 = vmatmul.bf16.gmra.mxu0 %v1168
      %v1795 = vpop.f32.mrf.mxu0
      %v1796 = vadd.f32 %v1627, %v1795
      %v1797 = vpop.f32.mrf.mxu0
      %v1798 = vadd.f32 %v1629, %v1797
      %1799 = vmatmul.bf16.gmra.mxu0 %v1171
      %v1800 = vpop.f32.mrf.mxu0
      %v1801 = vadd.f32 %v1632, %v1800
      %v1802 = vpop.f32.mrf.mxu0
      %v1803 = vadd.f32 %v1634, %v1802
      %1804 = vmatmul.bf16.gmra.mxu0 %v1174
      %v1805 = vpop.f32.mrf.mxu0
      %v1806 = vadd.f32 %v1637, %v1805
      %v1807 = vpop.f32.mrf.mxu0
      %v1808 = vadd.f32 %v1639, %v1807
      %1809 = vmatmul.bf16.gmra.mxu0 %v1177
      %v1810 = vpop.f32.mrf.mxu0
      %v1811 = vadd.f32 %v1642, %v1810
      %v1812 = vpop.f32.mrf.mxu0
      %v1813 = vadd.f32 %v1644, %v1812
      %1814 = vmatmul.bf16.gmra.mxu0 %v1180
      %v1815 = vpop.f32.mrf.mxu0
      %v1816 = vadd.f32 %v1647, %v1815
      %v1817 = vpop.f32.mrf.mxu0
      %v1818 = vadd.f32 %v1649, %v1817
      %1819 = vmatmul.bf16.gmra.mxu0 %v1183
      %v1820 = vpop.f32.mrf.mxu0
      %v1821 = vadd.f32 %v1652, %v1820
      %v1822 = vpop.f32.mrf.mxu0
      %v1823 = vadd.f32 %v1654, %v1822
      %1824 = vmatmul.bf16.gmra.mxu0 %v1186
      %v1825 = vpop.f32.mrf.mxu0
      %v1826 = vadd.f32 %v1657, %v1825
      %v1827 = vpop.f32.mrf.mxu0
      %v1828 = vadd.f32 %v1659, %v1827
      %1829 = vmatmul.bf16.gmra.mxu0 %v1189
      %v1830 = vpop.f32.mrf.mxu0
      %v1831 = vadd.f32 %v1662, %v1830
      %v1832 = vpop.f32.mrf.mxu0
      %v1833 = vadd.f32 %v1664, %v1832
      %1834 = vmatmul.bf16.gmra.mxu0 %v1192
      %v1835 = vpop.f32.mrf.mxu0
      %v1836 = vadd.f32 %v1667, %v1835
      %v1837 = vpop.f32.mrf.mxu0
      %v1838 = vadd.f32 %v1669, %v1837
      %1839 = vmatmul.bf16.gmra.mxu0 %v1195
      %v1840 = vpop.f32.mrf.mxu0
      %v1841 = vadd.f32 %v1672, %v1840
      %v1842 = vpop.f32.mrf.mxu0
      %v1843 = vadd.f32 %v1674, %v1842
      %1844 = vmatmul.bf16.gmra.mxu0 %v1198
      %v1845 = vpop.f32.mrf.mxu0
      %v1846 = vadd.f32 %v1677, %v1845
      %v1847 = vpop.f32.mrf.mxu0
      %v1848 = vadd.f32 %v1679, %v1847
      %1849 = vmatmul.bf16.gmra.mxu0 %v1201
      %v1850 = vpop.f32.mrf.mxu0
      %v1851 = vadd.f32 %v1682, %v1850
      %v1852 = vpop.f32.mrf.mxu0
      %v1853 = vadd.f32 %v1684, %v1852
      %1854 = vmatmul.bf16.gmra.mxu0 %v1204
      %v1855 = vpop.f32.mrf.mxu0
      %v1856 = vadd.f32 %v1687, %v1855
      %v1857 = vpop.f32.mrf.mxu0
      %v1858 = vadd.f32 %v1689, %v1857
      %1859 = vmatmul.bf16.gmra.mxu0 %v1207
      %v1860 = vpop.f32.mrf.mxu0
      %v1861 = vadd.f32 %v1692, %v1860
      %v1862 = vpop.f32.mrf.mxu0
      %v1863 = vadd.f32 %v1694, %v1862
      %1864 = vmatmul.bf16.gmra.mxu0 %v1210
      %v1865 = vpop.f32.mrf.mxu0
      %v1866 = vadd.f32 %v1697, %v1865
      %v1867 = vpop.f32.mrf.mxu0
      %v1868 = vadd.f32 %v1699, %v1867
      %1869 = vmatmul.bf16.gmra.mxu0 %v1213
      %v1870 = vpop.f32.mrf.mxu0
      %v1871 = vadd.f32 %v1702, %v1870
      %v1872 = vpop.f32.mrf.mxu0
      %v1873 = vadd.f32 %v1704, %v1872
      %1874 = vmatmul.bf16.gmra.mxu0 %v1216
      %v1875 = vpop.f32.mrf.mxu0
      %v1876 = vadd.f32 %v1707, %v1875
      %v1877 = vpop.f32.mrf.mxu0
      %v1878 = vadd.f32 %v1709, %v1877
      %1879 = vmatmul.bf16.gmra.mxu0 %v1219
      %v1880 = vpop.f32.mrf.mxu0
      %v1881 = vadd.f32 %v1712, %v1880
      %v1882 = vpop.f32.mrf.mxu0
      %v1883 = vadd.f32 %v1714, %v1882
      %1884 = vmatmul.bf16.gmra.mxu0 %v1222
      %v1885 = vpop.f32.mrf.mxu0
      %v1886 = vadd.f32 %v1717, %v1885
      %v1887 = vpop.f32.mrf.mxu0
      %v1888 = vadd.f32 %v1719, %v1887
      %1889 = vmatmul.bf16.gmra.mxu0 %v1225
      %v1890 = vpop.f32.mrf.mxu0
      %v1891 = vadd.f32 %v1722, %v1890
      %v1892 = vpop.f32.mrf.mxu0
      %v1893 = vadd.f32 %v1724, %v1892
      %1894 = vmatmul.bf16.gmra.mxu0 %v1228
      %v1895 = vpop.f32.mrf.mxu0
      %v1896 = vadd.f32 %v1727, %v1895
      %v1897 = vpop.f32.mrf.mxu0
      %v1898 = vadd.f32 %v1729, %v1897
      %1899 = vmatmul.bf16.gmra.mxu0 %v1231
      %v1900 = vpop.f32.mrf.mxu0
      %v1901 = vadd.f32 %v1732, %v1900
      %v1902 = vpop.f32.mrf.mxu0
      %v1903 = vadd.f32 %v1734, %v1902
      %1904 = vmatmul.bf16.gmra.mxu0 %v1234
      %v1905 = vpop.f32.mrf.mxu0
      %v1906 = vadd.f32 %v1737, %v1905
      %v1907 = vpop.f32.mrf.mxu0
      %v1908 = vadd.f32 %v1739, %v1907
      %1909 = vmatmul.bf16.gmra.mxu0 %v1237
      %v1910 = vpop.f32.mrf.mxu0
      %v1911 = vadd.f32 %v1742, %v1910
      %v1912 = vpop.f32.mrf.mxu0
      %v1913 = vadd.f32 %v1744, %v1912
      %1914 = vdwg.mxu0
      %vm1915 = vcmp.ge.f32.partialorder %v1756, 0.0
      %vm1916 = vcmp.ge.f32.partialorder %v1758, 0.0
      %vm1917 = vcmp.ge.f32.partialorder %v1761, 0.0
      %vm1918 = vcmp.ge.f32.partialorder %v1763, 0.0
      %vm1919 = vcmp.ge.f32.partialorder %v1766, 0.0
      %vm1920 = vcmp.ge.f32.partialorder %v1768, 0.0
      %vm1921 = vcmp.ge.f32.partialorder %v1771, 0.0
      %vm1922 = vcmp.ge.f32.partialorder %v1773, 0.0
      %vm1923 = vcmp.ge.f32.partialorder %v1776, 0.0
      %vm1924 = vcmp.ge.f32.partialorder %v1778, 0.0
      %vm1925 = vcmp.ge.f32.partialorder %v1781, 0.0
      %vm1926 = vcmp.ge.f32.partialorder %v1783, 0.0
      %vm1927 = vcmp.ge.f32.partialorder %v1786, 0.0
      %vm1928 = vcmp.ge.f32.partialorder %v1788, 0.0
      %vm1929 = vcmp.ge.f32.partialorder %v1791, 0.0
      %vm1930 = vcmp.ge.f32.partialorder %v1793, 0.0
      %vm1931 = vcmp.ge.f32.partialorder %v1796, 0.0
      %vm1932 = vcmp.ge.f32.partialorder %v1798, 0.0
      %vm1933 = vcmp.ge.f32.partialorder %v1801, 0.0
      %vm1934 = vcmp.ge.f32.partialorder %v1803, 0.0
      %vm1935 = vcmp.ge.f32.partialorder %v1806, 0.0
      %vm1936 = vcmp.ge.f32.partialorder %v1808, 0.0
      %vm1937 = vcmp.ge.f32.partialorder %v1811, 0.0
      %vm1938 = vcmp.ge.f32.partialorder %v1813, 0.0
      %vm1939 = vcmp.ge.f32.partialorder %v1816, 0.0
      %vm1940 = vcmp.ge.f32.partialorder %v1818, 0.0
      %vm1941 = vcmp.ge.f32.partialorder %v1821, 0.0
      %vm1942 = vcmp.ge.f32.partialorder %v1823, 0.0
      %vm1943 = vcmp.ge.f32.partialorder %v1826, 0.0
      %vm1944 = vcmp.ge.f32.partialorder %v1828, 0.0
      %vm1945 = vcmp.ge.f32.partialorder %v1831, 0.0
      %vm1946 = vcmp.ge.f32.partialorder %v1833, 0.0
      %vm1947 = vcmp.ge.f32.partialorder %v1836, 0.0
      %vm1948 = vcmp.ge.f32.partialorder %v1838, 0.0
      %vm1949 = vcmp.ge.f32.partialorder %v1841, 0.0
      %vm1950 = vcmp.ge.f32.partialorder %v1843, 0.0
      %vm1951 = vcmp.ge.f32.partialorder %v1846, 0.0
      %vm1952 = vcmp.ge.f32.partialorder %v1848, 0.0
      %vm1953 = vcmp.ge.f32.partialorder %v1851, 0.0
      %vm1954 = vcmp.ge.f32.partialorder %v1853, 0.0
      %vm1955 = vcmp.ge.f32.partialorder %v1856, 0.0
      %vm1956 = vcmp.ge.f32.partialorder %v1858, 0.0
      %vm1957 = vcmp.ge.f32.partialorder %v1861, 0.0
      %vm1958 = vcmp.ge.f32.partialorder %v1863, 0.0
      %vm1959 = vcmp.ge.f32.partialorder %v1866, 0.0
      %vm1960 = vcmp.ge.f32.partialorder %v1868, 0.0
      %vm1961 = vcmp.ge.f32.partialorder %v1871, 0.0
      %vm1962 = vcmp.ge.f32.partialorder %v1873, 0.0
      %vm1963 = vcmp.ge.f32.partialorder %v1876, 0.0
      %vm1964 = vcmp.ge.f32.partialorder %v1878, 0.0
      %vm1965 = vcmp.ge.f32.partialorder %v1881, 0.0
      %vm1966 = vcmp.ge.f32.partialorder %v1883, 0.0
      %vm1967 = vcmp.ge.f32.partialorder %v1886, 0.0
      %vm1968 = vcmp.ge.f32.partialorder %v1888, 0.0
      %vm1969 = vcmp.ge.f32.partialorder %v1891, 0.0
      %vm1970 = vcmp.ge.f32.partialorder %v1893, 0.0
      %vm1971 = vcmp.ge.f32.partialorder %v1896, 0.0
      %vm1972 = vcmp.ge.f32.partialorder %v1898, 0.0
      %vm1973 = vcmp.ge.f32.partialorder %v1901, 0.0
      %vm1974 = vcmp.ge.f32.partialorder %v1903, 0.0
      %vm1975 = vcmp.ge.f32.partialorder %v1906, 0.0
      %vm1976 = vcmp.ge.f32.partialorder %v1908, 0.0
      %vm1977 = vcmp.ge.f32.partialorder %v1911, 0.0
      %vm1978 = vcmp.ge.f32.partialorder %v1913, 0.0
      %v1979 = vmul.f32 %v1756, 0.02
      %v1980 = vmul.f32 %v1758, 0.02
      %v1981 = vmul.f32 %v1761, 0.02
      %v1982 = vmul.f32 %v1763, 0.02
      %v1983 = vmul.f32 %v1766, 0.02
      %v1984 = vmul.f32 %v1768, 0.02
      %v1985 = vmul.f32 %v1771, 0.02
      %v1986 = vmul.f32 %v1773, 0.02
      %v1987 = vmul.f32 %v1776, 0.02
      %v1988 = vmul.f32 %v1778, 0.02
      %v1989 = vmul.f32 %v1781, 0.02
      %v1990 = vmul.f32 %v1783, 0.02
      %v1991 = vmul.f32 %v1786, 0.02
      %v1992 = vmul.f32 %v1788, 0.02
      %v1993 = vmul.f32 %v1791, 0.02
      %v1994 = vmul.f32 %v1793, 0.02
      %v1995 = vmul.f32 %v1796, 0.02
      %v1996 = vmul.f32 %v1798, 0.02
      %v1997 = vmul.f32 %v1801, 0.02
      %v1998 = vmul.f32 %v1803, 0.02
      %v1999 = vmul.f32 %v1806, 0.02
      %v2000 = vmul.f32 %v1808, 0.02
      %v2001 = vmul.f32 %v1811, 0.02
      %v2002 = vmul.f32 %v1813, 0.02
      %v2003 = vmul.f32 %v1816, 0.02
      %v2004 = vmul.f32 %v1818, 0.02
      %v2005 = vmul.f32 %v1821, 0.02
      %v2006 = vmul.f32 %v1823, 0.02
      %v2007 = vmul.f32 %v1826, 0.02
      %v2008 = vmul.f32 %v1828, 0.02
      %v2009 = vmul.f32 %v1831, 0.02
      %v2010 = vmul.f32 %v1833, 0.02
      %v2011 = vmul.f32 %v1836, 0.02
      %v2012 = vmul.f32 %v1838, 0.02
      %v2013 = vmul.f32 %v1841, 0.02
      %v2014 = vmul.f32 %v1843, 0.02
      %v2015 = vmul.f32 %v1846, 0.02
      %v2016 = vmul.f32 %v1848, 0.02
      %v2017 = vmul.f32 %v1851, 0.02
      %v2018 = vmul.f32 %v1853, 0.02
      %v2019 = vmul.f32 %v1856, 0.02
      %v2020 = vmul.f32 %v1858, 0.02
      %v2021 = vmul.f32 %v1861, 0.02
      %v2022 = vmul.f32 %v1863, 0.02
      %v2023 = vmul.f32 %v1866, 0.02
      %v2024 = vmul.f32 %v1868, 0.02
      %v2025 = vmul.f32 %v1871, 0.02
      %v2026 = vmul.f32 %v1873, 0.02
      %v2027 = vmul.f32 %v1876, 0.02
      %v2028 = vmul.f32 %v1878, 0.02
      %v2029 = vmul.f32 %v1881, 0.02
      %v2030 = vmul.f32 %v1883, 0.02
      %v2031 = vmul.f32 %v1886, 0.02
      %v2032 = vmul.f32 %v1888, 0.02
      %v2033 = vmul.f32 %v1891, 0.02
      %v2034 = vmul.f32 %v1893, 0.02
      %v2035 = vmul.f32 %v1896, 0.02
      %v2036 = vmul.f32 %v1898, 0.02
      %v2037 = vmul.f32 %v1901, 0.02
      %v2038 = vmul.f32 %v1903, 0.02
      %v2039 = vmul.f32 %v1906, 0.02
      %v2040 = vmul.f32 %v1908, 0.02
      %v2041 = vmul.f32 %v1911, 0.02
      %v2042 = vmul.f32 %v1913, 0.02
      %v2043 = vsel %vm1915, %v1756, %v1979
      %v2044 = vsel %vm1916, %v1758, %v1980
      %v2045 = vsel %vm1917, %v1761, %v1981
      %v2046 = vsel %vm1918, %v1763, %v1982
      %v2047 = vsel %vm1919, %v1766, %v1983
      %v2048 = vsel %vm1920, %v1768, %v1984
      %v2049 = vsel %vm1921, %v1771, %v1985
      %v2050 = vsel %vm1922, %v1773, %v1986
      %v2051 = vsel %vm1923, %v1776, %v1987
      %v2052 = vsel %vm1924, %v1778, %v1988
      %v2053 = vsel %vm1925, %v1781, %v1989
      %v2054 = vsel %vm1926, %v1783, %v1990
      %v2055 = vsel %vm1927, %v1786, %v1991
      %v2056 = vsel %vm1928, %v1788, %v1992
      %v2057 = vsel %vm1929, %v1791, %v1993
      %v2058 = vsel %vm1930, %v1793, %v1994
      %v2059 = vsel %vm1931, %v1796, %v1995
      %v2060 = vsel %vm1932, %v1798, %v1996
      %v2061 = vsel %vm1933, %v1801, %v1997
      %v2062 = vsel %vm1934, %v1803, %v1998
      %v2063 = vsel %vm1935, %v1806, %v1999
      %v2064 = vsel %vm1936, %v1808, %v2000
      %v2065 = vsel %vm1937, %v1811, %v2001
      %v2066 = vsel %vm1938, %v1813, %v2002
      %v2067 = vsel %vm1939, %v1816, %v2003
      %v2068 = vsel %vm1940, %v1818, %v2004
      %v2069 = vsel %vm1941, %v1821, %v2005
      %v2070 = vsel %vm1942, %v1823, %v2006
      %v2071 = vsel %vm1943, %v1826, %v2007
      %v2072 = vsel %vm1944, %v1828, %v2008
      %v2073 = vsel %vm1945, %v1831, %v2009
      %v2074 = vsel %vm1946, %v1833, %v2010
      %v2075 = vsel %vm1947, %v1836, %v2011
      %v2076 = vsel %vm1948, %v1838, %v2012
      %v2077 = vsel %vm1949, %v1841, %v2013
      %v2078 = vsel %vm1950, %v1843, %v2014
      %v2079 = vsel %vm1951, %v1846, %v2015
      %v2080 = vsel %vm1952, %v1848, %v2016
      %v2081 = vsel %vm1953, %v1851, %v2017
      %v2082 = vsel %vm1954, %v1853, %v2018
      %v2083 = vsel %vm1955, %v1856, %v2019
      %v2084 = vsel %vm1956, %v1858, %v2020
      %v2085 = vsel %vm1957, %v1861, %v2021
      %v2086 = vsel %vm1958, %v1863, %v2022
      %v2087 = vsel %vm1959, %v1866, %v2023
      %v2088 = vsel %vm1960, %v1868, %v2024
      %v2089 = vsel %vm1961, %v1871, %v2025
      %v2090 = vsel %vm1962, %v1873, %v2026
      %v2091 = vsel %vm1963, %v1876, %v2027
      %v2092 = vsel %vm1964, %v1878, %v2028
      %v2093 = vsel %vm1965, %v1881, %v2029
      %v2094 = vsel %vm1966, %v1883, %v2030
      %v2095 = vsel %vm1967, %v1886, %v2031
      %v2096 = vsel %vm1968, %v1888, %v2032
      %v2097 = vsel %vm1969, %v1891, %v2033
      %v2098 = vsel %vm1970, %v1893, %v2034
      %v2099 = vsel %vm1971, %v1896, %v2035
      %v2100 = vsel %vm1972, %v1898, %v2036
      %v2101 = vsel %vm1973, %v1901, %v2037
      %v2102 = vsel %vm1974, %v1903, %v2038
      %v2103 = vsel %vm1975, %v1906, %v2039
      %v2104 = vsel %vm1976, %v1908, %v2040
      %v2105 = vsel %vm1977, %v1911, %v2041
      %v2106 = vsel %vm1978, %v1913, %v2042
      %v2107 = vpack.c.bf16 %v2043, %v2043
      %v2108 = vpack.c.bf16 %v2044, %v2044
      %v2109 = vpack.c.bf16 %v2045, %v2045
      %v2110 = vpack.c.bf16 %v2046, %v2046
      %v2111 = vpack.c.bf16 %v2047, %v2047
      %v2112 = vpack.c.bf16 %v2048, %v2048
      %v2113 = vpack.c.bf16 %v2049, %v2049
      %v2114 = vpack.c.bf16 %v2050, %v2050
      %v2115 = vpack.c.bf16 %v2051, %v2051
      %v2116 = vpack.c.bf16 %v2052, %v2052
      %v2117 = vpack.c.bf16 %v2053, %v2053
      %v2118 = vpack.c.bf16 %v2054, %v2054
      %v2119 = vpack.c.bf16 %v2055, %v2055
      %v2120 = vpack.c.bf16 %v2056, %v2056
      %v2121 = vpack.c.bf16 %v2057, %v2057
      %v2122 = vpack.c.bf16 %v2058, %v2058
      %v2123 = vpack.c.bf16 %v2059, %v2059
      %v2124 = vpack.c.bf16 %v2060, %v2060
      %v2125 = vpack.c.bf16 %v2061, %v2061
      %v2126 = vpack.c.bf16 %v2062, %v2062
      %v2127 = vpack.c.bf16 %v2063, %v2063
      %v2128 = vpack.c.bf16 %v2064, %v2064
      %v2129 = vpack.c.bf16 %v2065, %v2065
      %v2130 = vpack.c.bf16 %v2066, %v2066
      %v2131 = vpack.c.bf16 %v2067, %v2067
      %v2132 = vpack.c.bf16 %v2068, %v2068
      %v2133 = vpack.c.bf16 %v2069, %v2069
      %v2134 = vpack.c.bf16 %v2070, %v2070
      %v2135 = vpack.c.bf16 %v2071, %v2071
      %v2136 = vpack.c.bf16 %v2072, %v2072
      %v2137 = vpack.c.bf16 %v2073, %v2073
      %v2138 = vpack.c.bf16 %v2074, %v2074
      %v2139 = vpack.c.bf16 %v2075, %v2075
      %v2140 = vpack.c.bf16 %v2076, %v2076
      %v2141 = vpack.c.bf16 %v2077, %v2077
      %v2142 = vpack.c.bf16 %v2078, %v2078
      %v2143 = vpack.c.bf16 %v2079, %v2079
      %v2144 = vpack.c.bf16 %v2080, %v2080
      %v2145 = vpack.c.bf16 %v2081, %v2081
      %v2146 = vpack.c.bf16 %v2082, %v2082
      %v2147 = vpack.c.bf16 %v2083, %v2083
      %v2148 = vpack.c.bf16 %v2084, %v2084
      %v2149 = vpack.c.bf16 %v2085, %v2085
      %v2150 = vpack.c.bf16 %v2086, %v2086
      %v2151 = vpack.c.bf16 %v2087, %v2087
      %v2152 = vpack.c.bf16 %v2088, %v2088
      %v2153 = vpack.c.bf16 %v2089, %v2089
      %v2154 = vpack.c.bf16 %v2090, %v2090
      %v2155 = vpack.c.bf16 %v2091, %v2091
      %v2156 = vpack.c.bf16 %v2092, %v2092
      %v2157 = vpack.c.bf16 %v2093, %v2093
      %v2158 = vpack.c.bf16 %v2094, %v2094
      %v2159 = vpack.c.bf16 %v2095, %v2095
      %v2160 = vpack.c.bf16 %v2096, %v2096
      %v2161 = vpack.c.bf16 %v2097, %v2097
      %v2162 = vpack.c.bf16 %v2098, %v2098
      %v2163 = vpack.c.bf16 %v2099, %v2099
      %v2164 = vpack.c.bf16 %v2100, %v2100
      %v2165 = vpack.c.bf16 %v2101, %v2101
      %v2166 = vpack.c.bf16 %v2102, %v2102
      %v2167 = vpack.c.bf16 %v2103, %v2103
      %v2168 = vpack.c.bf16 %v2104, %v2104
      %v2169 = vpack.c.bf16 %v2105, %v2105
      %v2170 = vpack.c.bf16 %v2106, %v2106
      %2171 = vst [vmem:[%s175] sm:$0xf] %v2107
      %2172 = vst [vmem:[%s175 + $0x4] sm:$0xf] %v2108
      %2173 = vst [vmem:[%s175 + $0x8] sm:$0xf] %v2109
      %2174 = vst [vmem:[%s175 + $0xc] sm:$0xf] %v2110
      %2175 = vst [vmem:[%s175 + $0x10] sm:$0xf] %v2111
      %2176 = vst [vmem:[%s175 + $0x14] sm:$0xf] %v2112
      %2177 = vst [vmem:[%s175 + $0x18] sm:$0xf] %v2113
      %2178 = vst [vmem:[%s175 + $0x1c] sm:$0xf] %v2114
      %2179 = vst [vmem:[%s175 + $0x20] sm:$0xf] %v2115
      %2180 = vst [vmem:[%s175 + $0x24] sm:$0xf] %v2116
      %2181 = vst [vmem:[%s175 + $0x28] sm:$0xf] %v2117
      %2182 = vst [vmem:[%s175 + $0x2c] sm:$0xf] %v2118
      %2183 = vst [vmem:[%s175 + $0x30] sm:$0xf] %v2119
      %2184 = vst [vmem:[%s175 + $0x34] sm:$0xf] %v2120
      %2185 = vst [vmem:[%s175 + $0x38] sm:$0xf] %v2121
      %2186 = vst [vmem:[%s175 + $0x3c] sm:$0xf] %v2122
      %2187 = vst [vmem:[%s175 + $0x40] sm:$0xf] %v2123
      %2188 = vst [vmem:[%s175 + $0x44] sm:$0xf] %v2124
      %2189 = vst [vmem:[%s175 + $0x48] sm:$0xf] %v2125
      %2190 = vst [vmem:[%s175 + $0x4c] sm:$0xf] %v2126
      %2191 = vst [vmem:[%s175 + $0x50] sm:$0xf] %v2127
      %2192 = vst [vmem:[%s175 + $0x54] sm:$0xf] %v2128
      %2193 = vst [vmem:[%s175 + $0x58] sm:$0xf] %v2129
      %2194 = vst [vmem:[%s175 + $0x5c] sm:$0xf] %v2130
      %2195 = vst [vmem:[%s175 + $0x60] sm:$0xf] %v2131
      %2196 = vst [vmem:[%s175 + $0x64] sm:$0xf] %v2132
      %2197 = vst [vmem:[%s175 + $0x68] sm:$0xf] %v2133
      %2198 = vst [vmem:[%s175 + $0x6c] sm:$0xf] %v2134
      %2199 = vst [vmem:[%s175 + $0x70] sm:$0xf] %v2135
      %2200 = vst [vmem:[%s175 + $0x74] sm:$0xf] %v2136
      %2201 = vst [vmem:[%s175 + $0x78] sm:$0xf] %v2137
      %2202 = vst [vmem:[%s175 + $0x7c] sm:$0xf] %v2138
      %2203 = vst [vmem:[%s175 + $0x80] sm:$0xf] %v2139
      %2204 = vst [vmem:[%s175 + $0x84] sm:$0xf] %v2140
      %2205 = vst [vmem:[%s175 + $0x88] sm:$0xf] %v2141
      %2206 = vst [vmem:[%s175 + $0x8c] sm:$0xf] %v2142
      %2207 = vst [vmem:[%s175 + $0x90] sm:$0xf] %v2143
      %2208 = vst [vmem:[%s175 + $0x94] sm:$0xf] %v2144
      %2209 = vst [vmem:[%s175 + $0x98] sm:$0xf] %v2145
      %2210 = vst [vmem:[%s175 + $0x9c] sm:$0xf] %v2146
      %2211 = vst [vmem:[%s175 + $0xa0] sm:$0xf] %v2147
      %2212 = vst [vmem:[%s175 + $0xa4] sm:$0xf] %v2148
      %2213 = vst [vmem:[%s175 + $0xa8] sm:$0xf] %v2149
      %2214 = vst [vmem:[%s175 + $0xac] sm:$0xf] %v2150
      %2215 = vst [vmem:[%s175 + $0xb0] sm:$0xf] %v2151
      %2216 = vst [vmem:[%s175 + $0xb4] sm:$0xf] %v2152
      %2217 = vst [vmem:[%s175 + $0xb8] sm:$0xf] %v2153
      %2218 = vst [vmem:[%s175 + $0xbc] sm:$0xf] %v2154
      %2219 = vst [vmem:[%s175 + $0xc0] sm:$0xf] %v2155
      %2220 = vst [vmem:[%s175 + $0xc4] sm:$0xf] %v2156
      %2221 = vst [vmem:[%s175 + $0xc8] sm:$0xf] %v2157
      %2222 = vst [vmem:[%s175 + $0xcc] sm:$0xf] %v2158
      %2223 = vst [vmem:[%s175 + $0xd0] sm:$0xf] %v2159
      %2224 = vst [vmem:[%s175 + $0xd4] sm:$0xf] %v2160
      %2225 = vst [vmem:[%s175 + $0xd8] sm:$0xf] %v2161
      %2226 = vst [vmem:[%s175 + $0xdc] sm:$0xf] %v2162
      %2227 = vst [vmem:[%s175 + $0xe0] sm:$0xf] %v2163
      %2228 = vst [vmem:[%s175 + $0xe4] sm:$0xf] %v2164
      %2229 = vst [vmem:[%s175 + $0xe8] sm:$0xf] %v2165
      %2230 = vst [vmem:[%s175 + $0xec] sm:$0xf] %v2166
      %2231 = vst [vmem:[%s175 + $0xf0] sm:$0xf] %v2167
      %2232 = vst [vmem:[%s175 + $0xf4] sm:$0xf] %v2168
      %2233 = vst [vmem:[%s175 + $0xf8] sm:$0xf] %v2169
      %2234 = vst [vmem:[%s175 + $0xfc] sm:$0xf] %v2170
      %s2235 = smul.u32 64, %s14
      %p2236 = scmp.lt.s32.totalorder %s2235, 1023
      %s2237 = scalar_select %p2236, %s2235, 1023
      %s2238 = smul.addr %s2237, 4
      %s2239 = scalar_lea.vmem %s3, %s2238
      // Predicated region
      $region33: #{_lambda_.8} parent=31 // pred_check
        %p2240 = pneg %p100
      $region34: #{_lambda_.8} parent=31 // pred_check_branch
        %2242 = sbr.rel (%p2240) target = $region36
      $region35: #{_lambda_.8} parent=31 // pred_region
        %s2243 = smul.u32 64, %s14
      $region36: #{_lambda_.8} parent=31 // pred_fallthru
        _
    $region32: #{_lambda_.8} parent=5 // pred_fallthru
      _
    %p2244 = scmp.le.s32.totalorder 2, %s9
    // Predicated region
    $region37: #{_lambda_.8} parent=5 // pred_check
      %p2245 = pneg %p2244
    $region38: #{_lambda_.8} parent=5 // pred_check_branch
      %2247 = sbr.rel (%p2245) target = $region40
    $region39: #{_lambda_.8} parent=5 // pred_region
      %s2248 = ssub.s32 %s9, 2
      // Predicated region
      $region41: #{_lambda_.8} parent=39 // pred_check
        %p2249 = pneg %p106
      $region42: #{_lambda_.8} parent=39 // pred_check_branch
        %2251 = sbr.rel (%p2249) target = $region44
      $region43: #{_lambda_.8} parent=39 // pred_region
        %s2252 = smul.u32 64, %s15
        %p2253 = scmp.lt.s32.totalorder %s2252, 1023
        %s2254 = scalar_select %p2253, %s2252, 1023
        %s2255 = smul.addr %s2254, 4
        %s2256 = scalar_lea.vmem %s3, %s2255
      $region44: #{_lambda_.8} parent=39 // pred_fallthru
        _
    $region40: #{_lambda_.8} parent=5 // pred_fallthru
      _
  $region6: #{_lambda_.8} parent=0 // loop_footer
    %s13 = sadd.s32 1, %s9
  $region7: #{_lambda_.8} parent=0 // loop_footer_branch
    %8 = sbr.rel target = $region3
  $region8: #{_lambda_.8} parent=0 // loop_exit
    _

</llo_original>
